<compile_context>
chip_gen: v7x
topology: tpu7x:2x2x1
jax: 0.10.0
libtpu: 0.0.40
codegen_flags: <defaults>
</compile_context>

<pallas_src>
import functools

import jax
import jax.numpy as jnp
from jax.experimental import pallas as pl
from jax.experimental.pallas import tpu as pltpu

_CHUNK_ROWS = 8   # image rows per M-chunk -> 8*W output pixels, 16-vreg f32 acc


# ----------------------------------------------------------------------------
# Fused kernel: conv1 (im2col matmul) -> ReLU -> conv2 (9 direct MXU taps)
# ----------------------------------------------------------------------------
def _base_block_kernel(x_col_ref, w1_ref, w2_ref, o_ref, pad2_ref, *,
                       n_pb, H, W, Cin, Cmid, compute_dtype):
    f32 = jnp.float32
    HW = H * W
    R = _CHUNK_ROWS
    CH = R * W                      # chunk M (128 when W == 16)
    n_chunks = H // R

    # ---- zero ONLY the 1-pixel halo of pad2 (interior fully overwritten) ----
    zrow = jnp.zeros((n_pb, 1, W + 2, Cmid), compute_dtype)
    zcol = jnp.zeros((n_pb, H + 2, 1, Cmid), compute_dtype)
    pad2_ref[:, 0:1, :, :] = zrow
    pad2_ref[:, H + 1:H + 2, :, :] = zrow
    pad2_ref[:, :, 0:1, :] = zcol
    pad2_ref[:, :, W + 1:W + 2, :] = zcol

    w1 = w1_ref[...]                # (9*Cin, Cmid), compute_dtype

    # ---- conv1 (+ fused ReLU): single K = 9*Cin matmul per chunk ----
    for n in range(n_pb):
        for c in range(n_chunks):
            m0 = n * HW + c * CH
            a = jnp.dot(x_col_ref[m0:m0 + CH, :], w1,
                        preferred_element_type=f32)            # (CH, Cmid) f32
            a = jnp.maximum(a, 0.0).astype(compute_dtype)      # fused ReLU
            pad2_ref[n:n + 1, 1 + c * R:1 + (c + 1) * R, 1:W + 1, :] = (
                a.reshape(1, R, W, Cmid))

    # ---- conv2: 9 direct MXU taps per chunk (no materialized im2col) ----
    for n in range(n_pb):
        for c in range(n_chunks):
            acc = jnp.zeros((CH, Cmid), f32)                   # 16 vregs
            for ky in range(3):
                r0 = c * R + ky
                for kx in range(3):
                    tap = pad2_ref[n:n + 1, r0:r0 + R, kx:kx + W, :]
                    acc = acc + jnp.dot(tap.reshape(CH, Cmid), w2_ref[ky, kx],
                                        preferred_element_type=f32)
            # Channel-major, lane-dense store (lane dim = CH >= 128).
            c0 = c * CH
            o_ref[n:n + 1, :, c0:c0 + CH] = (
                acc.T.reshape(1, Cmid, CH).astype(o_ref.dtype))


# ----------------------------------------------------------------------------
# Wrapper: PyTorch NCHW / OIHW layouts in, NCHW out (free reshape, no transpose)
# ----------------------------------------------------------------------------
def base_block(x_nchw, w1_oihw, w2_oihw, *, compute_dtype=jnp.bfloat16,
               num_batch_blocks=1):
    """BaseBlock forward: Conv2d(3,1,1,bias=False) -> ReLU -> Conv2d(3,1,1,bias=False).

    compute_dtype=bfloat16 (default): operands/weights in bf16, f32 accumulation
    (fast path; parity within ~1e-2). compute_dtype=float32: exact f32 path.
    num_batch_blocks: set to 2 on v7x so both TensorCores get work.
    """
    N, Cin, H, W = x_nchw.shape
    Cmid = w1_oihw.shape[0]
    assert w1_oihw.shape == (Cmid, Cin, 3, 3)
    assert w2_oihw.shape == (Cmid, Cmid, 3, 3)
    assert H % _CHUNK_ROWS == 0, "H must be a multiple of 8"
    assert N % num_batch_blocks == 0
    n_pb = N // num_batch_blocks

    # Boundary layout plumbing (tiny, one XLA fusion each).  conv1's im2col is
    # built here: Cin=4 is lane-sparse, and the (N*H*W, 36) operand is only
    # ~73 KB, so one XLA gather beats 9 masked relayouts per step in-kernel.
    x_nhwc = jnp.transpose(x_nchw, (0, 2, 3, 1))
    xp = jnp.pad(x_nhwc, ((0, 0), (1, 1), (1, 1), (0, 0)))
    x_col = jnp.concatenate(
        [xp[:, ky:ky + H, kx:kx + W, :] for ky in range(3) for kx in range(3)],
        axis=-1).reshape(N * H * W, 9 * Cin).astype(compute_dtype)

    w1_col = jnp.transpose(w1_oihw, (2, 3, 1, 0)).reshape(9 * Cin, Cmid)
    w1_col = w1_col.astype(compute_dtype)                        # (9*Cin, Cmid)
    w2_hwio = jnp.transpose(w2_oihw, (2, 3, 1, 0)).astype(compute_dtype)  # (3,3,Cmid,Cmid)

    kernel = functools.partial(
        _base_block_kernel, n_pb=n_pb, H=H, W=W, Cin=Cin, Cmid=Cmid,
        compute_dtype=compute_dtype)

    itm = jnp.dtype(compute_dtype).itemsize
    flops = 2 * N * H * W * 9 * (Cin * Cmid + Cmid * Cmid)
    bytes_accessed = (x_col.size * itm + w1_col.size * itm + w2_hwio.size * itm
                      + N * Cmid * H * W * x_nchw.dtype.itemsize)

    out = pl.pallas_call(
        kernel,
        out_shape=jax.ShapeDtypeStruct((N, Cmid, H * W), x_nchw.dtype),
        grid=(num_batch_blocks,),
        in_specs=[
            pl.BlockSpec((n_pb * H * W, 9 * Cin), lambda b: (b, 0)),
            pl.BlockSpec((9 * Cin, Cmid), lambda b: (0, 0)),
            pl.BlockSpec((3, 3, Cmid, Cmid), lambda b: (0, 0, 0, 0)),
        ],
        out_specs=pl.BlockSpec((n_pb, Cmid, H * W), lambda b: (b, 0, 0)),
        scratch_shapes=[
            pltpu.VMEM((n_pb, H + 2, W + 2, Cmid), compute_dtype),  # padded mid
        ],
        compiler_params=pltpu.CompilerParams(
            dimension_semantics=("parallel",)),
        cost_estimate=pl.CostEstimate(flops=flops, transcendentals=0,
                                      bytes_accessed=bytes_accessed),
    )(x_col, w1_col, w2_hwio)

    # (N, Cmid, H*W) -> NCHW is a pure reshape: no transpose, no HBM round trip.
    return out.reshape(N, Cmid, H, W)


# ----------------------------------------------------------------------------
# Plain-XLA reference (for numerical parity)
# ----------------------------------------------------------------------------
def _reference_base_block(x, w1, w2):
    dn = ('NCHW', 'OIHW', 'NCHW')
    y = jax.lax.conv_general_dilated(
        x, w1, window_strides=(1, 1), padding='SAME',
        dimension_numbers=dn, precision=jax.lax.Precision.HIGHEST)
    y = jnp.maximum(y, 0.0)
    y = jax.lax.conv_general_dilated(
        y, w2, window_strides=(1, 1), padding='SAME',
        dimension_numbers=dn, precision=jax.lax.Precision.HIGHEST)
    return y


# ----------------------------------------------------------------------------
if __name__ == "__main__":
    key = jax.random.PRNGKey(0)
    kx, k1, k2 = jax.random.split(key, 3)

    # Small shapes consistent with the module: batch=2, in_dims=4, 16x16 spatial,
    # out_dims=128 (one full lane group of activation channels).
    N, Cin, H, W = 2, 4, 16, 16
    Cout = 128

    x = jax.random.normal(kx, (N, Cin, H, W), jnp.float32)                  # NCHW
    w1 = jax.random.normal(k1, (Cout, Cin, 3, 3), jnp.float32) / (3.0 * (Cin ** 0.5))
    w2 = jax.random.normal(k2, (Cout, Cout, 3, 3), jnp.float32) / (3.0 * (Cout ** 0.5))

    y_ref = _reference_base_block(x, w1, w2)

    # Exact path (f32 operands end to end): tight parity check.
    fwd_f32 = jax.jit(functools.partial(base_block, compute_dtype=jnp.float32))
    y = fwd_f32(x, w1, w2)
    jax.block_until_ready(y)
    assert y.shape == (N, Cout, H, W), y.shape
    assert bool(jnp.all(jnp.isfinite(y)))
    err_f32 = float(jnp.max(jnp.abs(y - y_ref)))
    assert err_f32 < 2e-3, f"f32 path max abs err {err_f32}"

    # Reduced-precision perf path (bf16 operands/weights, f32 accumulation):
    # halves the dominant HBM transfer (w2); looser parity bound by design.
    fwd_bf16 = jax.jit(functools.partial(base_block, compute_dtype=jnp.bfloat16))
    y16 = fwd_bf16(x, w1, w2)
    jax.block_until_ready(y16)
    assert bool(jnp.all(jnp.isfinite(y16)))
    err_bf16 = float(jnp.max(jnp.abs(y16 - y_ref)))
    assert err_bf16 < 5e-2, f"bf16 path max abs err {err_bf16}"

    print("KERNEL_OK")
</pallas_src>

<mosaic_0001>
module attributes {stable_mosaic.version = 11 : i64} {
  func.func @_base_block_kernel(%arg0: i32, %arg1: memref<512x36xf32, #tpu.memory_space<vmem>>, %arg2: memref<36x128xf32, #tpu.memory_space<vmem>>, %arg3: memref<3x3x128x128xf32, #tpu.memory_space<vmem>>, %arg4: memref<2x128x256xf32, #tpu.memory_space<vmem>>, %arg5: memref<2x18x18x128xf32, #tpu.memory_space<vmem>>) attributes {dimension_semantics = [#tpu.dimension_semantics<parallel>], iteration_bounds = array<i64: 1>, scalar_prefetch = 0 : i64, scratch_operands = 1 : i64, tpu.core_type = #tpu.core_type<tc>, window_params = [{transform_indices = @transform_0, window_bounds = array<i64: 512, 36>}, {pipeline_mode = #tpu.pipeline_mode<synchronous>, transform_indices = @transform_1, window_bounds = array<i64: 36, 128>}, {pipeline_mode = #tpu.pipeline_mode<synchronous>, transform_indices = @transform_2, window_bounds = array<i64: 3, 3, 128, 128>}, {transform_indices = @transform_3, window_bounds = array<i64: 2, 128, 256>}]} {
    %cst = arith.constant 0.000000e+00 : f32
    %0 = vector.broadcast %cst : f32 to vector<2x1x18x128xf32>
    %cst_0 = arith.constant 0.000000e+00 : f32
    %1 = vector.broadcast %cst_0 : f32 to vector<2x18x1x128xf32>
    %c0 = arith.constant 0 : index
    %c0_1 = arith.constant 0 : index
    %c0_2 = arith.constant 0 : index
    %c0_3 = arith.constant 0 : index
    %2 = vector.load %arg5[%c0, %c0_1, %c0_2, %c0_3] : memref<2x18x18x128xf32, #tpu.memory_space<vmem>>, vector<2x1x18x128xf32>
    tpu.vector_store %arg5[%c0, %c0_1, %c0_2, %c0_3], %0 {strides = array<i32>} : memref<2x18x18x128xf32, #tpu.memory_space<vmem>>, vector<2x1x18x128xf32>,
    %c0_4 = arith.constant 0 : index
    %c17 = arith.constant 17 : index
    %c0_5 = arith.constant 0 : index
    %c0_6 = arith.constant 0 : index
    %3 = vector.load %arg5[%c0_4, %c17, %c0_5, %c0_6] : memref<2x18x18x128xf32, #tpu.memory_space<vmem>>, vector<2x1x18x128xf32>
    tpu.vector_store %arg5[%c0_4, %c17, %c0_5, %c0_6], %0 {strides = array<i32>} : memref<2x18x18x128xf32, #tpu.memory_space<vmem>>, vector<2x1x18x128xf32>,
    %c0_7 = arith.constant 0 : index
    %c0_8 = arith.constant 0 : index
    %c0_9 = arith.constant 0 : index
    %c0_10 = arith.constant 0 : index
    %4 = vector.load %arg5[%c0_7, %c0_8, %c0_9, %c0_10] : memref<2x18x18x128xf32, #tpu.memory_space<vmem>>, vector<2x18x1x128xf32>
    tpu.vector_store %arg5[%c0_7, %c0_8, %c0_9, %c0_10], %1 {strides = array<i32>} : memref<2x18x18x128xf32, #tpu.memory_space<vmem>>, vector<2x18x1x128xf32>,
    %c0_11 = arith.constant 0 : index
    %c0_12 = arith.constant 0 : index
    %c17_13 = arith.constant 17 : index
    %c0_14 = arith.constant 0 : index
    %5 = vector.load %arg5[%c0_11, %c0_12, %c17_13, %c0_14] : memref<2x18x18x128xf32, #tpu.memory_space<vmem>>, vector<2x18x1x128xf32>
    tpu.vector_store %arg5[%c0_11, %c0_12, %c17_13, %c0_14], %1 {strides = array<i32>} : memref<2x18x18x128xf32, #tpu.memory_space<vmem>>, vector<2x18x1x128xf32>,
    %c0_15 = arith.constant 0 : index
    %c0_16 = arith.constant 0 : index
    %6 = vector.load %arg2[%c0_15, %c0_16] : memref<36x128xf32, #tpu.memory_space<vmem>>, vector<36x128xf32>
    %c0_17 = arith.constant 0 : index
    %c0_18 = arith.constant 0 : index
    %7 = vector.load %arg1[%c0_17, %c0_18] : memref<512x36xf32, #tpu.memory_space<vmem>>, vector<128x36xf32>
    %cst_19 = arith.constant dense<0.000000e+00> : vector<128x128xf32>
    %8 = tpu.matmul %7, %6, %cst_19 {dimension_numbers = #tpu.dot_dimension_numbers<[1], [0], [0], [1], [0, 0, 1, 1], [], []>} : vector<128x36xf32>, vector<36x128xf32>, vector<128x128xf32> -> vector<128x128xf32>
    %cst_20 = arith.constant 0.000000e+00 : f32
    %9 = vector.broadcast %cst_20 : f32 to vector<128x128xf32>
    %10 = arith.maximumf %8, %9 : vector<128x128xf32>
    %11 = vector.shape_cast %10 : vector<128x128xf32> to vector<1x8x16x128xf32>
    %c0_21 = arith.constant 0 : index
    %c1 = arith.constant 1 : index
    %c1_22 = arith.constant 1 : index
    %c0_23 = arith.constant 0 : index
    %12 = vector.load %arg5[%c0_21, %c1, %c1_22, %c0_23] : memref<2x18x18x128xf32, #tpu.memory_space<vmem>>, vector<1x8x16x128xf32>
    tpu.vector_store %arg5[%c0_21, %c1, %c1_22, %c0_23], %11 {strides = array<i32>} : memref<2x18x18x128xf32, #tpu.memory_space<vmem>>, vector<1x8x16x128xf32>,
    %c128 = arith.constant 128 : index
    %c0_24 = arith.constant 0 : index
    %13 = vector.load %arg1[%c128, %c0_24] : memref<512x36xf32, #tpu.memory_space<vmem>>, vector<128x36xf32>
    %cst_25 = arith.constant dense<0.000000e+00> : vector<128x128xf32>
    %14 = tpu.matmul %13, %6, %cst_25 {dimension_numbers = #tpu.dot_dimension_numbers<[1], [0], [0], [1], [0, 0, 1, 1], [], []>} : vector<128x36xf32>, vector<36x128xf32>, vector<128x128xf32> -> vector<128x128xf32>
    %cst_26 = arith.constant 0.000000e+00 : f32
    %15 = vector.broadcast %cst_26 : f32 to vector<128x128xf32>
    %16 = arith.maximumf %14, %15 : vector<128x128xf32>
    %17 = vector.shape_cast %16 : vector<128x128xf32> to vector<1x8x16x128xf32>
    %c0_27 = arith.constant 0 : index
    %c9 = arith.constant 9 : index
    %c1_28 = arith.constant 1 : index
    %c0_29 = arith.constant 0 : index
    %18 = vector.load %arg5[%c0_27, %c9, %c1_28, %c0_29] : memref<2x18x18x128xf32, #tpu.memory_space<vmem>>, vector<1x8x16x128xf32>
    tpu.vector_store %arg5[%c0_27, %c9, %c1_28, %c0_29], %17 {strides = array<i32>} : memref<2x18x18x128xf32, #tpu.memory_space<vmem>>, vector<1x8x16x128xf32>,
    %c256 = arith.constant 256 : index
    %c0_30 = arith.constant 0 : index
    %19 = vector.load %arg1[%c256, %c0_30] : memref<512x36xf32, #tpu.memory_space<vmem>>, vector<128x36xf32>
    %cst_31 = arith.constant dense<0.000000e+00> : vector<128x128xf32>
    %20 = tpu.matmul %19, %6, %cst_31 {dimension_numbers = #tpu.dot_dimension_numbers<[1], [0], [0], [1], [0, 0, 1, 1], [], []>} : vector<128x36xf32>, vector<36x128xf32>, vector<128x128xf32> -> vector<128x128xf32>
    %cst_32 = arith.constant 0.000000e+00 : f32
    %21 = vector.broadcast %cst_32 : f32 to vector<128x128xf32>
    %22 = arith.maximumf %20, %21 : vector<128x128xf32>
    %23 = vector.shape_cast %22 : vector<128x128xf32> to vector<1x8x16x128xf32>
    %c1_33 = arith.constant 1 : index
    %c1_34 = arith.constant 1 : index
    %c1_35 = arith.constant 1 : index
    %c0_36 = arith.constant 0 : index
    %24 = vector.load %arg5[%c1_33, %c1_34, %c1_35, %c0_36] : memref<2x18x18x128xf32, #tpu.memory_space<vmem>>, vector<1x8x16x128xf32>
    tpu.vector_store %arg5[%c1_33, %c1_34, %c1_35, %c0_36], %23 {strides = array<i32>} : memref<2x18x18x128xf32, #tpu.memory_space<vmem>>, vector<1x8x16x128xf32>,
    %c384 = arith.constant 384 : index
    %c0_37 = arith.constant 0 : index
    %25 = vector.load %arg1[%c384, %c0_37] : memref<512x36xf32, #tpu.memory_space<vmem>>, vector<128x36xf32>
    %cst_38 = arith.constant dense<0.000000e+00> : vector<128x128xf32>
    %26 = tpu.matmul %25, %6, %cst_38 {dimension_numbers = #tpu.dot_dimension_numbers<[1], [0], [0], [1], [0, 0, 1, 1], [], []>} : vector<128x36xf32>, vector<36x128xf32>, vector<128x128xf32> -> vector<128x128xf32>
    %cst_39 = arith.constant 0.000000e+00 : f32
    %27 = vector.broadcast %cst_39 : f32 to vector<128x128xf32>
    %28 = arith.maximumf %26, %27 : vector<128x128xf32>
    %29 = vector.shape_cast %28 : vector<128x128xf32> to vector<1x8x16x128xf32>
    %c1_40 = arith.constant 1 : index
    %c9_41 = arith.constant 9 : index
    %c1_42 = arith.constant 1 : index
    %c0_43 = arith.constant 0 : index
    %30 = vector.load %arg5[%c1_40, %c9_41, %c1_42, %c0_43] : memref<2x18x18x128xf32, #tpu.memory_space<vmem>>, vector<1x8x16x128xf32>
    tpu.vector_store %arg5[%c1_40, %c9_41, %c1_42, %c0_43], %29 {strides = array<i32>} : memref<2x18x18x128xf32, #tpu.memory_space<vmem>>, vector<1x8x16x128xf32>,
    %cst_44 = arith.constant 0.000000e+00 : f32
    %31 = vector.broadcast %cst_44 : f32 to vector<128x128xf32>
    %c0_45 = arith.constant 0 : index
    %c0_46 = arith.constant 0 : index
    %c0_47 = arith.constant 0 : index
    %c0_48 = arith.constant 0 : index
    %32 = vector.load %arg5[%c0_45, %c0_46, %c0_47, %c0_48] : memref<2x18x18x128xf32, #tpu.memory_space<vmem>>, vector<1x8x16x128xf32>
    %33 = vector.shape_cast %32 : vector<1x8x16x128xf32> to vector<128x128xf32>
    %c0_49 = arith.constant 0 : index
    %c0_50 = arith.constant 0 : index
    %c0_51 = arith.constant 0 : index
    %c0_52 = arith.constant 0 : index
    %34 = vector.load %arg3[%c0_49, %c0_50, %c0_51, %c0_52] : memref<3x3x128x128xf32, #tpu.memory_space<vmem>>, vector<1x1x128x128xf32>
    %35 = vector.shape_cast %34 : vector<1x1x128x128xf32> to vector<128x128xf32>
    %cst_53 = arith.constant dense<0.000000e+00> : vector<128x128xf32>
    %36 = tpu.matmul %33, %35, %cst_53 {dimension_numbers = #tpu.dot_dimension_numbers<[1], [0], [0], [1], [0, 0, 1, 1], [], []>} : vector<128x128xf32>, vector<128x128xf32>, vector<128x128xf32> -> vector<128x128xf32>
    %37 = arith.addf %31, %36 : vector<128x128xf32>
    %c0_54 = arith.constant 0 : index
    %c0_55 = arith.constant 0 : index
    %c1_56 = arith.constant 1 : index
    %c0_57 = arith.constant 0 : index
    %38 = vector.load %arg5[%c0_54, %c0_55, %c1_56, %c0_57] : memref<2x18x18x128xf32, #tpu.memory_space<vmem>>, vector<1x8x16x128xf32>
    %39 = vector.shape_cast %38 : vector<1x8x16x128xf32> to vector<128x128xf32>
    %c0_58 = arith.constant 0 : index
    %c1_59 = arith.constant 1 : index
    %c0_60 = arith.constant 0 : index
    %c0_61 = arith.constant 0 : index
    %40 = vector.load %arg3[%c0_58, %c1_59, %c0_60, %c0_61] : memref<3x3x128x128xf32, #tpu.memory_space<vmem>>, vector<1x1x128x128xf32>
    %41 = vector.shape_cast %40 : vector<1x1x128x128xf32> to vector<128x128xf32>
    %cst_62 = arith.constant dense<0.000000e+00> : vector<128x128xf32>
    %42 = tpu.matmul %39, %41, %cst_62 {dimension_numbers = #tpu.dot_dimension_numbers<[1], [0], [0], [1], [0, 0, 1, 1], [], []>} : vector<128x128xf32>, vector<128x128xf32>, vector<128x128xf32> -> vector<128x128xf32>
    %43 = arith.addf %37, %42 : vector<128x128xf32>
    %c0_63 = arith.constant 0 : index
    %c0_64 = arith.constant 0 : index
    %c2 = arith.constant 2 : index
    %c0_65 = arith.constant 0 : index
    %44 = vector.load %arg5[%c0_63, %c0_64, %c2, %c0_65] : memref<2x18x18x128xf32, #tpu.memory_space<vmem>>, vector<1x8x16x128xf32>
    %45 = vector.shape_cast %44 : vector<1x8x16x128xf32> to vector<128x128xf32>
    %c0_66 = arith.constant 0 : index
    %c2_67 = arith.constant 2 : index
    %c0_68 = arith.constant 0 : index
    %c0_69 = arith.constant 0 : index
    %46 = vector.load %arg3[%c0_66, %c2_67, %c0_68, %c0_69] : memref<3x3x128x128xf32, #tpu.memory_space<vmem>>, vector<1x1x128x128xf32>
    %47 = vector.shape_cast %46 : vector<1x1x128x128xf32> to vector<128x128xf32>
    %cst_70 = arith.constant dense<0.000000e+00> : vector<128x128xf32>
    %48 = tpu.matmul %45, %47, %cst_70 {dimension_numbers = #tpu.dot_dimension_numbers<[1], [0], [0], [1], [0, 0, 1, 1], [], []>} : vector<128x128xf32>, vector<128x128xf32>, vector<128x128xf32> -> vector<128x128xf32>
    %49 = arith.addf %43, %48 : vector<128x128xf32>
    %c0_71 = arith.constant 0 : index
    %c1_72 = arith.constant 1 : index
    %c0_73 = arith.constant 0 : index
    %c0_74 = arith.constant 0 : index
    %50 = vector.load %arg5[%c0_71, %c1_72, %c0_73, %c0_74] : memref<2x18x18x128xf32, #tpu.memory_space<vmem>>, vector<1x8x16x128xf32>
    %51 = vector.shape_cast %50 : vector<1x8x16x128xf32> to vector<128x128xf32>
    %c1_75 = arith.constant 1 : index
    %c0_76 = arith.constant 0 : index
    %c0_77 = arith.constant 0 : index
    %c0_78 = arith.constant 0 : index
    %52 = vector.load %arg3[%c1_75, %c0_76, %c0_77, %c0_78] : memref<3x3x128x128xf32, #tpu.memory_space<vmem>>, vector<1x1x128x128xf32>
    %53 = vector.shape_cast %52 : vector<1x1x128x128xf32> to vector<128x128xf32>
    %cst_79 = arith.constant dense<0.000000e+00> : vector<128x128xf32>
    %54 = tpu.matmul %51, %53, %cst_79 {dimension_numbers = #tpu.dot_dimension_numbers<[1], [0], [0], [1], [0, 0, 1, 1], [], []>} : vector<128x128xf32>, vector<128x128xf32>, vector<128x128xf32> -> vector<128x128xf32>
    %55 = arith.addf %49, %54 : vector<128x128xf32>
    %c0_80 = arith.constant 0 : index
    %c1_81 = arith.constant 1 : index
    %c1_82 = arith.constant 1 : index
    %c0_83 = arith.constant 0 : index
    %56 = vector.load %arg5[%c0_80, %c1_81, %c1_82, %c0_83] : memref<2x18x18x128xf32, #tpu.memory_space<vmem>>, vector<1x8x16x128xf32>
    %57 = vector.shape_cast %56 : vector<1x8x16x128xf32> to vector<128x128xf32>
    %c1_84 = arith.constant 1 : index
    %c1_85 = arith.constant 1 : index
    %c0_86 = arith.constant 0 : index
    %c0_87 = arith.constant 0 : index
    %58 = vector.load %arg3[%c1_84, %c1_85, %c0_86, %c0_87] : memref<3x3x128x128xf32, #tpu.memory_space<vmem>>, vector<1x1x128x128xf32>
    %59 = vector.shape_cast %58 : vector<1x1x128x128xf32> to vector<128x128xf32>
    %cst_88 = arith.constant dense<0.000000e+00> : vector<128x128xf32>
    %60 = tpu.matmul %57, %59, %cst_88 {dimension_numbers = #tpu.dot_dimension_numbers<[1], [0], [0], [1], [0, 0, 1, 1], [], []>} : vector<128x128xf32>, vector<128x128xf32>, vector<128x128xf32> -> vector<128x128xf32>
    %61 = arith.addf %55, %60 : vector<128x128xf32>
    %c0_89 = arith.constant 0 : index
    %c1_90 = arith.constant 1 : index
    %c2_91 = arith.constant 2 : index
    %c0_92 = arith.constant 0 : index
    %62 = vector.load %arg5[%c0_89, %c1_90, %c2_91, %c0_92] : memref<2x18x18x128xf32, #tpu.memory_space<vmem>>, vector<1x8x16x128xf32>
    %63 = vector.shape_cast %62 : vector<1x8x16x128xf32> to vector<128x128xf32>
    %c1_93 = arith.constant 1 : index
    %c2_94 = arith.constant 2 : index
    %c0_95 = arith.constant 0 : index
    %c0_96 = arith.constant 0 : index
    %64 = vector.load %arg3[%c1_93, %c2_94, %c0_95, %c0_96] : memref<3x3x128x128xf32, #tpu.memory_space<vmem>>, vector<1x1x128x128xf32>
    %65 = vector.shape_cast %64 : vector<1x1x128x128xf32> to vector<128x128xf32>
    %cst_97 = arith.constant dense<0.000000e+00> : vector<128x128xf32>
    %66 = tpu.matmul %63, %65, %cst_97 {dimension_numbers = #tpu.dot_dimension_numbers<[1], [0], [0], [1], [0, 0, 1, 1], [], []>} : vector<128x128xf32>, vector<128x128xf32>, vector<128x128xf32> -> vector<128x128xf32>
    %67 = arith.addf %61, %66 : vector<128x128xf32>
    %c0_98 = arith.constant 0 : index
    %c2_99 = arith.constant 2 : index
    %c0_100 = arith.constant 0 : index
    %c0_101 = arith.constant 0 : index
    %68 = vector.load %arg5[%c0_98, %c2_99, %c0_100, %c0_101] : memref<2x18x18x128xf32, #tpu.memory_space<vmem>>, vector<1x8x16x128xf32>
    %69 = vector.shape_cast %68 : vector<1x8x16x128xf32> to vector<128x128xf32>
    %c2_102 = arith.constant 2 : index
    %c0_103 = arith.constant 0 : index
    %c0_104 = arith.constant 0 : index
    %c0_105 = arith.constant 0 : index
    %70 = vector.load %arg3[%c2_102, %c0_103, %c0_104, %c0_105] : memref<3x3x128x128xf32, #tpu.memory_space<vmem>>, vector<1x1x128x128xf32>
    %71 = vector.shape_cast %70 : vector<1x1x128x128xf32> to vector<128x128xf32>
    %cst_106 = arith.constant dense<0.000000e+00> : vector<128x128xf32>
    %72 = tpu.matmul %69, %71, %cst_106 {dimension_numbers = #tpu.dot_dimension_numbers<[1], [0], [0], [1], [0, 0, 1, 1], [], []>} : vector<128x128xf32>, vector<128x128xf32>, vector<128x128xf32> -> vector<128x128xf32>
    %73 = arith.addf %67, %72 : vector<128x128xf32>
    %c0_107 = arith.constant 0 : index
    %c2_108 = arith.constant 2 : index
    %c1_109 = arith.constant 1 : index
    %c0_110 = arith.constant 0 : index
    %74 = vector.load %arg5[%c0_107, %c2_108, %c1_109, %c0_110] : memref<2x18x18x128xf32, #tpu.memory_space<vmem>>, vector<1x8x16x128xf32>
    %75 = vector.shape_cast %74 : vector<1x8x16x128xf32> to vector<128x128xf32>
    %c2_111 = arith.constant 2 : index
    %c1_112 = arith.constant 1 : index
    %c0_113 = arith.constant 0 : index
    %c0_114 = arith.constant 0 : index
    %76 = vector.load %arg3[%c2_111, %c1_112, %c0_113, %c0_114] : memref<3x3x128x128xf32, #tpu.memory_space<vmem>>, vector<1x1x128x128xf32>
    %77 = vector.shape_cast %76 : vector<1x1x128x128xf32> to vector<128x128xf32>
    %cst_115 = arith.constant dense<0.000000e+00> : vector<128x128xf32>
    %78 = tpu.matmul %75, %77, %cst_115 {dimension_numbers = #tpu.dot_dimension_numbers<[1], [0], [0], [1], [0, 0, 1, 1], [], []>} : vector<128x128xf32>, vector<128x128xf32>, vector<128x128xf32> -> vector<128x128xf32>
    %79 = arith.addf %73, %78 : vector<128x128xf32>
    %c0_116 = arith.constant 0 : index
    %c2_117 = arith.constant 2 : index
    %c2_118 = arith.constant 2 : index
    %c0_119 = arith.constant 0 : index
    %80 = vector.load %arg5[%c0_116, %c2_117, %c2_118, %c0_119] : memref<2x18x18x128xf32, #tpu.memory_space<vmem>>, vector<1x8x16x128xf32>
    %81 = vector.shape_cast %80 : vector<1x8x16x128xf32> to vector<128x128xf32>
    %c2_120 = arith.constant 2 : index
    %c2_121 = arith.constant 2 : index
    %c0_122 = arith.constant 0 : index
    %c0_123 = arith.constant 0 : index
    %82 = vector.load %arg3[%c2_120, %c2_121, %c0_122, %c0_123] : memref<3x3x128x128xf32, #tpu.memory_space<vmem>>, vector<1x1x128x128xf32>
    %83 = vector.shape_cast %82 : vector<1x1x128x128xf32> to vector<128x128xf32>
    %cst_124 = arith.constant dense<0.000000e+00> : vector<128x128xf32>
    %84 = tpu.matmul %81, %83, %cst_124 {dimension_numbers = #tpu.dot_dimension_numbers<[1], [0], [0], [1], [0, 0, 1, 1], [], []>} : vector<128x128xf32>, vector<128x128xf32>, vector<128x128xf32> -> vector<128x128xf32>
    %85 = arith.addf %79, %84 : vector<128x128xf32>
    %86 = tpu.transpose %85, [1, 0] : vector<128x128xf32> -> vector<128x128xf32>
    %87 = vector.shape_cast %86 : vector<128x128xf32> to vector<1x128x128xf32>
    %c0_125 = arith.constant 0 : index
    %c0_126 = arith.constant 0 : index
    %c0_127 = arith.constant 0 : index
    %88 = vector.load %arg4[%c0_125, %c0_126, %c0_127] : memref<2x128x256xf32, #tpu.memory_space<vmem>>, vector<1x128x128xf32>
    tpu.vector_store %arg4[%c0_125, %c0_126, %c0_127], %87 {strides = array<i32>} : memref<2x128x256xf32, #tpu.memory_space<vmem>>, vector<1x128x128xf32>,
    %cst_128 = arith.constant 0.000000e+00 : f32
    %89 = vector.broadcast %cst_128 : f32 to vector<128x128xf32>
    %c0_129 = arith.constant 0 : index
    %c8 = arith.constant 8 : index
    %c0_130 = arith.constant 0 : index
    %c0_131 = arith.constant 0 : index
    %90 = vector.load %arg5[%c0_129, %c8, %c0_130, %c0_131] : memref<2x18x18x128xf32, #tpu.memory_space<vmem>>, vector<1x8x16x128xf32>
    %91 = vector.shape_cast %90 : vector<1x8x16x128xf32> to vector<128x128xf32>
    %c0_132 = arith.constant 0 : index
    %c0_133 = arith.constant 0 : index
    %c0_134 = arith.constant 0 : index
    %c0_135 = arith.constant 0 : index
    %92 = vector.load %arg3[%c0_132, %c0_133, %c0_134, %c0_135] : memref<3x3x128x128xf32, #tpu.memory_space<vmem>>, vector<1x1x128x128xf32>
    %93 = vector.shape_cast %92 : vector<1x1x128x128xf32> to vector<128x128xf32>
    %cst_136 = arith.constant dense<0.000000e+00> : vector<128x128xf32>
    %94 = tpu.matmul %91, %93, %cst_136 {dimension_numbers = #tpu.dot_dimension_numbers<[1], [0], [0], [1], [0, 0, 1, 1], [], []>} : vector<128x128xf32>, vector<128x128xf32>, vector<128x128xf32> -> vector<128x128xf32>
    %95 = arith.addf %89, %94 : vector<128x128xf32>
    %c0_137 = arith.constant 0 : index
    %c8_138 = arith.constant 8 : index
    %c1_139 = arith.constant 1 : index
    %c0_140 = arith.constant 0 : index
    %96 = vector.load %arg5[%c0_137, %c8_138, %c1_139, %c0_140] : memref<2x18x18x128xf32, #tpu.memory_space<vmem>>, vector<1x8x16x128xf32>
    %97 = vector.shape_cast %96 : vector<1x8x16x128xf32> to vector<128x128xf32>
    %c0_141 = arith.constant 0 : index
    %c1_142 = arith.constant 1 : index
    %c0_143 = arith.constant 0 : index
    %c0_144 = arith.constant 0 : index
    %98 = vector.load %arg3[%c0_141, %c1_142, %c0_143, %c0_144] : memref<3x3x128x128xf32, #tpu.memory_space<vmem>>, vector<1x1x128x128xf32>
    %99 = vector.shape_cast %98 : vector<1x1x128x128xf32> to vector<128x128xf32>
    %cst_145 = arith.constant dense<0.000000e+00> : vector<128x128xf32>
    %100 = tpu.matmul %97, %99, %cst_145 {dimension_numbers = #tpu.dot_dimension_numbers<[1], [0], [0], [1], [0, 0, 1, 1], [], []>} : vector<128x128xf32>, vector<128x128xf32>, vector<128x128xf32> -> vector<128x128xf32>
    %101 = arith.addf %95, %100 : vector<128x128xf32>
    %c0_146 = arith.constant 0 : index
    %c8_147 = arith.constant 8 : index
    %c2_148 = arith.constant 2 : index
    %c0_149 = arith.constant 0 : index
    %102 = vector.load %arg5[%c0_146, %c8_147, %c2_148, %c0_149] : memref<2x18x18x128xf32, #tpu.memory_space<vmem>>, vector<1x8x16x128xf32>
    %103 = vector.shape_cast %102 : vector<1x8x16x128xf32> to vector<128x128xf32>
    %c0_150 = arith.constant 0 : index
    %c2_151 = arith.constant 2 : index
    %c0_152 = arith.constant 0 : index
    %c0_153 = arith.constant 0 : index
    %104 = vector.load %arg3[%c0_150, %c2_151, %c0_152, %c0_153] : memref<3x3x128x128xf32, #tpu.memory_space<vmem>>, vector<1x1x128x128xf32>
    %105 = vector.shape_cast %104 : vector<1x1x128x128xf32> to vector<128x128xf32>
    %cst_154 = arith.constant dense<0.000000e+00> : vector<128x128xf32>
    %106 = tpu.matmul %103, %105, %cst_154 {dimension_numbers = #tpu.dot_dimension_numbers<[1], [0], [0], [1], [0, 0, 1, 1], [], []>} : vector<128x128xf32>, vector<128x128xf32>, vector<128x128xf32> -> vector<128x128xf32>
    %107 = arith.addf %101, %106 : vector<128x128xf32>
    %c0_155 = arith.constant 0 : index
    %c9_156 = arith.constant 9 : index
    %c0_157 = arith.constant 0 : index
    %c0_158 = arith.constant 0 : index
    %108 = vector.load %arg5[%c0_155, %c9_156, %c0_157, %c0_158] : memref<2x18x18x128xf32, #tpu.memory_space<vmem>>, vector<1x8x16x128xf32>
    %109 = vector.shape_cast %108 : vector<1x8x16x128xf32> to vector<128x128xf32>
    %c1_159 = arith.constant 1 : index
    %c0_160 = arith.constant 0 : index
    %c0_161 = arith.constant 0 : index
    %c0_162 = arith.constant 0 : index
    %110 = vector.load %arg3[%c1_159, %c0_160, %c0_161, %c0_162] : memref<3x3x128x128xf32, #tpu.memory_space<vmem>>, vector<1x1x128x128xf32>
    %111 = vector.shape_cast %110 : vector<1x1x128x128xf32> to vector<128x128xf32>
    %cst_163 = arith.constant dense<0.000000e+00> : vector<128x128xf32>
    %112 = tpu.matmul %109, %111, %cst_163 {dimension_numbers = #tpu.dot_dimension_numbers<[1], [0], [0], [1], [0, 0, 1, 1], [], []>} : vector<128x128xf32>, vector<128x128xf32>, vector<128x128xf32> -> vector<128x128xf32>
    %113 = arith.addf %107, %112 : vector<128x128xf32>
    %c0_164 = arith.constant 0 : index
    %c9_165 = arith.constant 9 : index
    %c1_166 = arith.constant 1 : index
    %c0_167 = arith.constant 0 : index
    %114 = vector.load %arg5[%c0_164, %c9_165, %c1_166, %c0_167] : memref<2x18x18x128xf32, #tpu.memory_space<vmem>>, vector<1x8x16x128xf32>
    %115 = vector.shape_cast %114 : vector<1x8x16x128xf32> to vector<128x128xf32>
    %c1_168 = arith.constant 1 : index
    %c1_169 = arith.constant 1 : index
    %c0_170 = arith.constant 0 : index
    %c0_171 = arith.constant 0 : index
    %116 = vector.load %arg3[%c1_168, %c1_169, %c0_170, %c0_171] : memref<3x3x128x128xf32, #tpu.memory_space<vmem>>, vector<1x1x128x128xf32>
    %117 = vector.shape_cast %116 : vector<1x1x128x128xf32> to vector<128x128xf32>
    %cst_172 = arith.constant dense<0.000000e+00> : vector<128x128xf32>
    %118 = tpu.matmul %115, %117, %cst_172 {dimension_numbers = #tpu.dot_dimension_numbers<[1], [0], [0], [1], [0, 0, 1, 1], [], []>} : vector<128x128xf32>, vector<128x128xf32>, vector<128x128xf32> -> vector<128x128xf32>
    %119 = arith.addf %113, %118 : vector<128x128xf32>
    %c0_173 = arith.constant 0 : index
    %c9_174 = arith.constant 9 : index
    %c2_175 = arith.constant 2 : index
    %c0_176 = arith.constant 0 : index
    %120 = vector.load %arg5[%c0_173, %c9_174, %c2_175, %c0_176] : memref<2x18x18x128xf32, #tpu.memory_space<vmem>>, vector<1x8x16x128xf32>
    %121 = vector.shape_cast %120 : vector<1x8x16x128xf32> to vector<128x128xf32>
    %c1_177 = arith.constant 1 : index
    %c2_178 = arith.constant 2 : index
    %c0_179 = arith.constant 0 : index
    %c0_180 = arith.constant 0 : index
    %122 = vector.load %arg3[%c1_177, %c2_178, %c0_179, %c0_180] : memref<3x3x128x128xf32, #tpu.memory_space<vmem>>, vector<1x1x128x128xf32>
    %123 = vector.shape_cast %122 : vector<1x1x128x128xf32> to vector<128x128xf32>
    %cst_181 = arith.constant dense<0.000000e+00> : vector<128x128xf32>
    %124 = tpu.matmul %121, %123, %cst_181 {dimension_numbers = #tpu.dot_dimension_numbers<[1], [0], [0], [1], [0, 0, 1, 1], [], []>} : vector<128x128xf32>, vector<128x128xf32>, vector<128x128xf32> -> vector<128x128xf32>
    %125 = arith.addf %119, %124 : vector<128x128xf32>
    %c0_182 = arith.constant 0 : index
    %c10 = arith.constant 10 : index
    %c0_183 = arith.constant 0 : index
    %c0_184 = arith.constant 0 : index
    %126 = vector.load %arg5[%c0_182, %c10, %c0_183, %c0_184] : memref<2x18x18x128xf32, #tpu.memory_space<vmem>>, vector<1x8x16x128xf32>
    %127 = vector.shape_cast %126 : vector<1x8x16x128xf32> to vector<128x128xf32>
    %c2_185 = arith.constant 2 : index
    %c0_186 = arith.constant 0 : index
    %c0_187 = arith.constant 0 : index
    %c0_188 = arith.constant 0 : index
    %128 = vector.load %arg3[%c2_185, %c0_186, %c0_187, %c0_188] : memref<3x3x128x128xf32, #tpu.memory_space<vmem>>, vector<1x1x128x128xf32>
    %129 = vector.shape_cast %128 : vector<1x1x128x128xf32> to vector<128x128xf32>
    %cst_189 = arith.constant dense<0.000000e+00> : vector<128x128xf32>
    %130 = tpu.matmul %127, %129, %cst_189 {dimension_numbers = #tpu.dot_dimension_numbers<[1], [0], [0], [1], [0, 0, 1, 1], [], []>} : vector<128x128xf32>, vector<128x128xf32>, vector<128x128xf32> -> vector<128x128xf32>
    %131 = arith.addf %125, %130 : vector<128x128xf32>
    %c0_190 = arith.constant 0 : index
    %c10_191 = arith.constant 10 : index
    %c1_192 = arith.constant 1 : index
    %c0_193 = arith.constant 0 : index
    %132 = vector.load %arg5[%c0_190, %c10_191, %c1_192, %c0_193] : memref<2x18x18x128xf32, #tpu.memory_space<vmem>>, vector<1x8x16x128xf32>
    %133 = vector.shape_cast %132 : vector<1x8x16x128xf32> to vector<128x128xf32>
    %c2_194 = arith.constant 2 : index
    %c1_195 = arith.constant 1 : index
    %c0_196 = arith.constant 0 : index
    %c0_197 = arith.constant 0 : index
    %134 = vector.load %arg3[%c2_194, %c1_195, %c0_196, %c0_197] : memref<3x3x128x128xf32, #tpu.memory_space<vmem>>, vector<1x1x128x128xf32>
    %135 = vector.shape_cast %134 : vector<1x1x128x128xf32> to vector<128x128xf32>
    %cst_198 = arith.constant dense<0.000000e+00> : vector<128x128xf32>
    %136 = tpu.matmul %133, %135, %cst_198 {dimension_numbers = #tpu.dot_dimension_numbers<[1], [0], [0], [1], [0, 0, 1, 1], [], []>} : vector<128x128xf32>, vector<128x128xf32>, vector<128x128xf32> -> vector<128x128xf32>
    %137 = arith.addf %131, %136 : vector<128x128xf32>
    %c0_199 = arith.constant 0 : index
    %c10_200 = arith.constant 10 : index
    %c2_201 = arith.constant 2 : index
    %c0_202 = arith.constant 0 : index
    %138 = vector.load %arg5[%c0_199, %c10_200, %c2_201, %c0_202] : memref<2x18x18x128xf32, #tpu.memory_space<vmem>>, vector<1x8x16x128xf32>
    %139 = vector.shape_cast %138 : vector<1x8x16x128xf32> to vector<128x128xf32>
    %c2_203 = arith.constant 2 : index
    %c2_204 = arith.constant 2 : index
    %c0_205 = arith.constant 0 : index
    %c0_206 = arith.constant 0 : index
    %140 = vector.load %arg3[%c2_203, %c2_204, %c0_205, %c0_206] : memref<3x3x128x128xf32, #tpu.memory_space<vmem>>, vector<1x1x128x128xf32>
    %141 = vector.shape_cast %140 : vector<1x1x128x128xf32> to vector<128x128xf32>
    %cst_207 = arith.constant dense<0.000000e+00> : vector<128x128xf32>
    %142 = tpu.matmul %139, %141, %cst_207 {dimension_numbers = #tpu.dot_dimension_numbers<[1], [0], [0], [1], [0, 0, 1, 1], [], []>} : vector<128x128xf32>, vector<128x128xf32>, vector<128x128xf32> -> vector<128x128xf32>
    %143 = arith.addf %137, %142 : vector<128x128xf32>
    %144 = tpu.transpose %143, [1, 0] : vector<128x128xf32> -> vector<128x128xf32>
    %145 = vector.shape_cast %144 : vector<128x128xf32> to vector<1x128x128xf32>
    %c0_208 = arith.constant 0 : index
    %c0_209 = arith.constant 0 : index
    %c128_210 = arith.constant 128 : index
    %146 = vector.load %arg4[%c0_208, %c0_209, %c128_210] : memref<2x128x256xf32, #tpu.memory_space<vmem>>, vector<1x128x128xf32>
    tpu.vector_store %arg4[%c0_208, %c0_209, %c128_210], %145 {strides = array<i32>} : memref<2x128x256xf32, #tpu.memory_space<vmem>>, vector<1x128x128xf32>,
    %cst_211 = arith.constant 0.000000e+00 : f32
    %147 = vector.broadcast %cst_211 : f32 to vector<128x128xf32>
    %c1_212 = arith.constant 1 : index
    %c0_213 = arith.constant 0 : index
    %c0_214 = arith.constant 0 : index
    %c0_215 = arith.constant 0 : index
    %148 = vector.load %arg5[%c1_212, %c0_213, %c0_214, %c0_215] : memref<2x18x18x128xf32, #tpu.memory_space<vmem>>, vector<1x8x16x128xf32>
    %149 = vector.shape_cast %148 : vector<1x8x16x128xf32> to vector<128x128xf32>
    %c0_216 = arith.constant 0 : index
    %c0_217 = arith.constant 0 : index
    %c0_218 = arith.constant 0 : index
    %c0_219 = arith.constant 0 : index
    %150 = vector.load %arg3[%c0_216, %c0_217, %c0_218, %c0_219] : memref<3x3x128x128xf32, #tpu.memory_space<vmem>>, vector<1x1x128x128xf32>
    %151 = vector.shape_cast %150 : vector<1x1x128x128xf32> to vector<128x128xf32>
    %cst_220 = arith.constant dense<0.000000e+00> : vector<128x128xf32>
    %152 = tpu.matmul %149, %151, %cst_220 {dimension_numbers = #tpu.dot_dimension_numbers<[1], [0], [0], [1], [0, 0, 1, 1], [], []>} : vector<128x128xf32>, vector<128x128xf32>, vector<128x128xf32> -> vector<128x128xf32>
    %153 = arith.addf %147, %152 : vector<128x128xf32>
    %c1_221 = arith.constant 1 : index
    %c0_222 = arith.constant 0 : index
    %c1_223 = arith.constant 1 : index
    %c0_224 = arith.constant 0 : index
    %154 = vector.load %arg5[%c1_221, %c0_222, %c1_223, %c0_224] : memref<2x18x18x128xf32, #tpu.memory_space<vmem>>, vector<1x8x16x128xf32>
    %155 = vector.shape_cast %154 : vector<1x8x16x128xf32> to vector<128x128xf32>
    %c0_225 = arith.constant 0 : index
    %c1_226 = arith.constant 1 : index
    %c0_227 = arith.constant 0 : index
    %c0_228 = arith.constant 0 : index
    %156 = vector.load %arg3[%c0_225, %c1_226, %c0_227, %c0_228] : memref<3x3x128x128xf32, #tpu.memory_space<vmem>>, vector<1x1x128x128xf32>
    %157 = vector.shape_cast %156 : vector<1x1x128x128xf32> to vector<128x128xf32>
    %cst_229 = arith.constant dense<0.000000e+00> : vector<128x128xf32>
    %158 = tpu.matmul %155, %157, %cst_229 {dimension_numbers = #tpu.dot_dimension_numbers<[1], [0], [0], [1], [0, 0, 1, 1], [], []>} : vector<128x128xf32>, vector<128x128xf32>, vector<128x128xf32> -> vector<128x128xf32>
    %159 = arith.addf %153, %158 : vector<128x128xf32>
    %c1_230 = arith.constant 1 : index
    %c0_231 = arith.constant 0 : index
    %c2_232 = arith.constant 2 : index
    %c0_233 = arith.constant 0 : index
    %160 = vector.load %arg5[%c1_230, %c0_231, %c2_232, %c0_233] : memref<2x18x18x128xf32, #tpu.memory_space<vmem>>, vector<1x8x16x128xf32>
    %161 = vector.shape_cast %160 : vector<1x8x16x128xf32> to vector<128x128xf32>
    %c0_234 = arith.constant 0 : index
    %c2_235 = arith.constant 2 : index
    %c0_236 = arith.constant 0 : index
    %c0_237 = arith.constant 0 : index
    %162 = vector.load %arg3[%c0_234, %c2_235, %c0_236, %c0_237] : memref<3x3x128x128xf32, #tpu.memory_space<vmem>>, vector<1x1x128x128xf32>
    %163 = vector.shape_cast %162 : vector<1x1x128x128xf32> to vector<128x128xf32>
    %cst_238 = arith.constant dense<0.000000e+00> : vector<128x128xf32>
    %164 = tpu.matmul %161, %163, %cst_238 {dimension_numbers = #tpu.dot_dimension_numbers<[1], [0], [0], [1], [0, 0, 1, 1], [], []>} : vector<128x128xf32>, vector<128x128xf32>, vector<128x128xf32> -> vector<128x128xf32>
    %165 = arith.addf %159, %164 : vector<128x128xf32>
    %c1_239 = arith.constant 1 : index
    %c1_240 = arith.constant 1 : index
    %c0_241 = arith.constant 0 : index
    %c0_242 = arith.constant 0 : index
    %166 = vector.load %arg5[%c1_239, %c1_240, %c0_241, %c0_242] : memref<2x18x18x128xf32, #tpu.memory_space<vmem>>, vector<1x8x16x128xf32>
    %167 = vector.shape_cast %166 : vector<1x8x16x128xf32> to vector<128x128xf32>
    %c1_243 = arith.constant 1 : index
    %c0_244 = arith.constant 0 : index
    %c0_245 = arith.constant 0 : index
    %c0_246 = arith.constant 0 : index
    %168 = vector.load %arg3[%c1_243, %c0_244, %c0_245, %c0_246] : memref<3x3x128x128xf32, #tpu.memory_space<vmem>>, vector<1x1x128x128xf32>
    %169 = vector.shape_cast %168 : vector<1x1x128x128xf32> to vector<128x128xf32>
    %cst_247 = arith.constant dense<0.000000e+00> : vector<128x128xf32>
    %170 = tpu.matmul %167, %169, %cst_247 {dimension_numbers = #tpu.dot_dimension_numbers<[1], [0], [0], [1], [0, 0, 1, 1], [], []>} : vector<128x128xf32>, vector<128x128xf32>, vector<128x128xf32> -> vector<128x128xf32>
    %171 = arith.addf %165, %170 : vector<128x128xf32>
    %c1_248 = arith.constant 1 : index
    %c1_249 = arith.constant 1 : index
    %c1_250 = arith.constant 1 : index
    %c0_251 = arith.constant 0 : index
    %172 = vector.load %arg5[%c1_248, %c1_249, %c1_250, %c0_251] : memref<2x18x18x128xf32, #tpu.memory_space<vmem>>, vector<1x8x16x128xf32>
    %173 = vector.shape_cast %172 : vector<1x8x16x128xf32> to vector<128x128xf32>
    %c1_252 = arith.constant 1 : index
    %c1_253 = arith.constant 1 : index
    %c0_254 = arith.constant 0 : index
    %c0_255 = arith.constant 0 : index
    %174 = vector.load %arg3[%c1_252, %c1_253, %c0_254, %c0_255] : memref<3x3x128x128xf32, #tpu.memory_space<vmem>>, vector<1x1x128x128xf32>
    %175 = vector.shape_cast %174 : vector<1x1x128x128xf32> to vector<128x128xf32>
    %cst_256 = arith.constant dense<0.000000e+00> : vector<128x128xf32>
    %176 = tpu.matmul %173, %175, %cst_256 {dimension_numbers = #tpu.dot_dimension_numbers<[1], [0], [0], [1], [0, 0, 1, 1], [], []>} : vector<128x128xf32>, vector<128x128xf32>, vector<128x128xf32> -> vector<128x128xf32>
    %177 = arith.addf %171, %176 : vector<128x128xf32>
    %c1_257 = arith.constant 1 : index
    %c1_258 = arith.constant 1 : index
    %c2_259 = arith.constant 2 : index
    %c0_260 = arith.constant 0 : index
    %178 = vector.load %arg5[%c1_257, %c1_258, %c2_259, %c0_260] : memref<2x18x18x128xf32, #tpu.memory_space<vmem>>, vector<1x8x16x128xf32>
    %179 = vector.shape_cast %178 : vector<1x8x16x128xf32> to vector<128x128xf32>
    %c1_261 = arith.constant 1 : index
    %c2_262 = arith.constant 2 : index
    %c0_263 = arith.constant 0 : index
    %c0_264 = arith.constant 0 : index
    %180 = vector.load %arg3[%c1_261, %c2_262, %c0_263, %c0_264] : memref<3x3x128x128xf32, #tpu.memory_space<vmem>>, vector<1x1x128x128xf32>
    %181 = vector.shape_cast %180 : vector<1x1x128x128xf32> to vector<128x128xf32>
    %cst_265 = arith.constant dense<0.000000e+00> : vector<128x128xf32>
    %182 = tpu.matmul %179, %181, %cst_265 {dimension_numbers = #tpu.dot_dimension_numbers<[1], [0], [0], [1], [0, 0, 1, 1], [], []>} : vector<128x128xf32>, vector<128x128xf32>, vector<128x128xf32> -> vector<128x128xf32>
    %183 = arith.addf %177, %182 : vector<128x128xf32>
    %c1_266 = arith.constant 1 : index
    %c2_267 = arith.constant 2 : index
    %c0_268 = arith.constant 0 : index
    %c0_269 = arith.constant 0 : index
    %184 = vector.load %arg5[%c1_266, %c2_267, %c0_268, %c0_269] : memref<2x18x18x128xf32, #tpu.memory_space<vmem>>, vector<1x8x16x128xf32>
    %185 = vector.shape_cast %184 : vector<1x8x16x128xf32> to vector<128x128xf32>
    %c2_270 = arith.constant 2 : index
    %c0_271 = arith.constant 0 : index
    %c0_272 = arith.constant 0 : index
    %c0_273 = arith.constant 0 : index
    %186 = vector.load %arg3[%c2_270, %c0_271, %c0_272, %c0_273] : memref<3x3x128x128xf32, #tpu.memory_space<vmem>>, vector<1x1x128x128xf32>
    %187 = vector.shape_cast %186 : vector<1x1x128x128xf32> to vector<128x128xf32>
    %cst_274 = arith.constant dense<0.000000e+00> : vector<128x128xf32>
    %188 = tpu.matmul %185, %187, %cst_274 {dimension_numbers = #tpu.dot_dimension_numbers<[1], [0], [0], [1], [0, 0, 1, 1], [], []>} : vector<128x128xf32>, vector<128x128xf32>, vector<128x128xf32> -> vector<128x128xf32>
    %189 = arith.addf %183, %188 : vector<128x128xf32>
    %c1_275 = arith.constant 1 : index
    %c2_276 = arith.constant 2 : index
    %c1_277 = arith.constant 1 : index
    %c0_278 = arith.constant 0 : index
    %190 = vector.load %arg5[%c1_275, %c2_276, %c1_277, %c0_278] : memref<2x18x18x128xf32, #tpu.memory_space<vmem>>, vector<1x8x16x128xf32>
    %191 = vector.shape_cast %190 : vector<1x8x16x128xf32> to vector<128x128xf32>
    %c2_279 = arith.constant 2 : index
    %c1_280 = arith.constant 1 : index
    %c0_281 = arith.constant 0 : index
    %c0_282 = arith.constant 0 : index
    %192 = vector.load %arg3[%c2_279, %c1_280, %c0_281, %c0_282] : memref<3x3x128x128xf32, #tpu.memory_space<vmem>>, vector<1x1x128x128xf32>
    %193 = vector.shape_cast %192 : vector<1x1x128x128xf32> to vector<128x128xf32>
    %cst_283 = arith.constant dense<0.000000e+00> : vector<128x128xf32>
    %194 = tpu.matmul %191, %193, %cst_283 {dimension_numbers = #tpu.dot_dimension_numbers<[1], [0], [0], [1], [0, 0, 1, 1], [], []>} : vector<128x128xf32>, vector<128x128xf32>, vector<128x128xf32> -> vector<128x128xf32>
    %195 = arith.addf %189, %194 : vector<128x128xf32>
    %c1_284 = arith.constant 1 : index
    %c2_285 = arith.constant 2 : index
    %c2_286 = arith.constant 2 : index
    %c0_287 = arith.constant 0 : index
    %196 = vector.load %arg5[%c1_284, %c2_285, %c2_286, %c0_287] : memref<2x18x18x128xf32, #tpu.memory_space<vmem>>, vector<1x8x16x128xf32>
    %197 = vector.shape_cast %196 : vector<1x8x16x128xf32> to vector<128x128xf32>
    %c2_288 = arith.constant 2 : index
    %c2_289 = arith.constant 2 : index
    %c0_290 = arith.constant 0 : index
    %c0_291 = arith.constant 0 : index
    %198 = vector.load %arg3[%c2_288, %c2_289, %c0_290, %c0_291] : memref<3x3x128x128xf32, #tpu.memory_space<vmem>>, vector<1x1x128x128xf32>
    %199 = vector.shape_cast %198 : vector<1x1x128x128xf32> to vector<128x128xf32>
    %cst_292 = arith.constant dense<0.000000e+00> : vector<128x128xf32>
    %200 = tpu.matmul %197, %199, %cst_292 {dimension_numbers = #tpu.dot_dimension_numbers<[1], [0], [0], [1], [0, 0, 1, 1], [], []>} : vector<128x128xf32>, vector<128x128xf32>, vector<128x128xf32> -> vector<128x128xf32>
    %201 = arith.addf %195, %200 : vector<128x128xf32>
    %202 = tpu.transpose %201, [1, 0] : vector<128x128xf32> -> vector<128x128xf32>
    %203 = vector.shape_cast %202 : vector<128x128xf32> to vector<1x128x128xf32>
    %c1_293 = arith.constant 1 : index
    %c0_294 = arith.constant 0 : index
    %c0_295 = arith.constant 0 : index
    %204 = vector.load %arg4[%c1_293, %c0_294, %c0_295] : memref<2x128x256xf32, #tpu.memory_space<vmem>>, vector<1x128x128xf32>
    tpu.vector_store %arg4[%c1_293, %c0_294, %c0_295], %203 {strides = array<i32>} : memref<2x128x256xf32, #tpu.memory_space<vmem>>, vector<1x128x128xf32>,
    %cst_296 = arith.constant 0.000000e+00 : f32
    %205 = vector.broadcast %cst_296 : f32 to vector<128x128xf32>
    %c1_297 = arith.constant 1 : index
    %c8_298 = arith.constant 8 : index
    %c0_299 = arith.constant 0 : index
    %c0_300 = arith.constant 0 : index
    %206 = vector.load %arg5[%c1_297, %c8_298, %c0_299, %c0_300] : memref<2x18x18x128xf32, #tpu.memory_space<vmem>>, vector<1x8x16x128xf32>
    %207 = vector.shape_cast %206 : vector<1x8x16x128xf32> to vector<128x128xf32>
    %c0_301 = arith.constant 0 : index
    %c0_302 = arith.constant 0 : index
    %c0_303 = arith.constant 0 : index
    %c0_304 = arith.constant 0 : index
    %208 = vector.load %arg3[%c0_301, %c0_302, %c0_303, %c0_304] : memref<3x3x128x128xf32, #tpu.memory_space<vmem>>, vector<1x1x128x128xf32>
    %209 = vector.shape_cast %208 : vector<1x1x128x128xf32> to vector<128x128xf32>
    %cst_305 = arith.constant dense<0.000000e+00> : vector<128x128xf32>
    %210 = tpu.matmul %207, %209, %cst_305 {dimension_numbers = #tpu.dot_dimension_numbers<[1], [0], [0], [1], [0, 0, 1, 1], [], []>} : vector<128x128xf32>, vector<128x128xf32>, vector<128x128xf32> -> vector<128x128xf32>
    %211 = arith.addf %205, %210 : vector<128x128xf32>
    %c1_306 = arith.constant 1 : index
    %c8_307 = arith.constant 8 : index
    %c1_308 = arith.constant 1 : index
    %c0_309 = arith.constant 0 : index
    %212 = vector.load %arg5[%c1_306, %c8_307, %c1_308, %c0_309] : memref<2x18x18x128xf32, #tpu.memory_space<vmem>>, vector<1x8x16x128xf32>
    %213 = vector.shape_cast %212 : vector<1x8x16x128xf32> to vector<128x128xf32>
    %c0_310 = arith.constant 0 : index
    %c1_311 = arith.constant 1 : index
    %c0_312 = arith.constant 0 : index
    %c0_313 = arith.constant 0 : index
    %214 = vector.load %arg3[%c0_310, %c1_311, %c0_312, %c0_313] : memref<3x3x128x128xf32, #tpu.memory_space<vmem>>, vector<1x1x128x128xf32>
    %215 = vector.shape_cast %214 : vector<1x1x128x128xf32> to vector<128x128xf32>
    %cst_314 = arith.constant dense<0.000000e+00> : vector<128x128xf32>
    %216 = tpu.matmul %213, %215, %cst_314 {dimension_numbers = #tpu.dot_dimension_numbers<[1], [0], [0], [1], [0, 0, 1, 1], [], []>} : vector<128x128xf32>, vector<128x128xf32>, vector<128x128xf32> -> vector<128x128xf32>
    %217 = arith.addf %211, %216 : vector<128x128xf32>
    %c1_315 = arith.constant 1 : index
    %c8_316 = arith.constant 8 : index
    %c2_317 = arith.constant 2 : index
    %c0_318 = arith.constant 0 : index
    %218 = vector.load %arg5[%c1_315, %c8_316, %c2_317, %c0_318] : memref<2x18x18x128xf32, #tpu.memory_space<vmem>>, vector<1x8x16x128xf32>
    %219 = vector.shape_cast %218 : vector<1x8x16x128xf32> to vector<128x128xf32>
    %c0_319 = arith.constant 0 : index
    %c2_320 = arith.constant 2 : index
    %c0_321 = arith.constant 0 : index
    %c0_322 = arith.constant 0 : index
    %220 = vector.load %arg3[%c0_319, %c2_320, %c0_321, %c0_322] : memref<3x3x128x128xf32, #tpu.memory_space<vmem>>, vector<1x1x128x128xf32>
    %221 = vector.shape_cast %220 : vector<1x1x128x128xf32> to vector<128x128xf32>
    %cst_323 = arith.constant dense<0.000000e+00> : vector<128x128xf32>
    %222 = tpu.matmul %219, %221, %cst_323 {dimension_numbers = #tpu.dot_dimension_numbers<[1], [0], [0], [1], [0, 0, 1, 1], [], []>} : vector<128x128xf32>, vector<128x128xf32>, vector<128x128xf32> -> vector<128x128xf32>
    %223 = arith.addf %217, %222 : vector<128x128xf32>
    %c1_324 = arith.constant 1 : index
    %c9_325 = arith.constant 9 : index
    %c0_326 = arith.constant 0 : index
    %c0_327 = arith.constant 0 : index
    %224 = vector.load %arg5[%c1_324, %c9_325, %c0_326, %c0_327] : memref<2x18x18x128xf32, #tpu.memory_space<vmem>>, vector<1x8x16x128xf32>
    %225 = vector.shape_cast %224 : vector<1x8x16x128xf32> to vector<128x128xf32>
    %c1_328 = arith.constant 1 : index
    %c0_329 = arith.constant 0 : index
    %c0_330 = arith.constant 0 : index
    %c0_331 = arith.constant 0 : index
    %226 = vector.load %arg3[%c1_328, %c0_329, %c0_330, %c0_331] : memref<3x3x128x128xf32, #tpu.memory_space<vmem>>, vector<1x1x128x128xf32>
    %227 = vector.shape_cast %226 : vector<1x1x128x128xf32> to vector<128x128xf32>
    %cst_332 = arith.constant dense<0.000000e+00> : vector<128x128xf32>
    %228 = tpu.matmul %225, %227, %cst_332 {dimension_numbers = #tpu.dot_dimension_numbers<[1], [0], [0], [1], [0, 0, 1, 1], [], []>} : vector<128x128xf32>, vector<128x128xf32>, vector<128x128xf32> -> vector<128x128xf32>
    %229 = arith.addf %223, %228 : vector<128x128xf32>
    %c1_333 = arith.constant 1 : index
    %c9_334 = arith.constant 9 : index
    %c1_335 = arith.constant 1 : index
    %c0_336 = arith.constant 0 : index
    %230 = vector.load %arg5[%c1_333, %c9_334, %c1_335, %c0_336] : memref<2x18x18x128xf32, #tpu.memory_space<vmem>>, vector<1x8x16x128xf32>
    %231 = vector.shape_cast %230 : vector<1x8x16x128xf32> to vector<128x128xf32>
    %c1_337 = arith.constant 1 : index
    %c1_338 = arith.constant 1 : index
    %c0_339 = arith.constant 0 : index
    %c0_340 = arith.constant 0 : index
    %232 = vector.load %arg3[%c1_337, %c1_338, %c0_339, %c0_340] : memref<3x3x128x128xf32, #tpu.memory_space<vmem>>, vector<1x1x128x128xf32>
    %233 = vector.shape_cast %232 : vector<1x1x128x128xf32> to vector<128x128xf32>
    %cst_341 = arith.constant dense<0.000000e+00> : vector<128x128xf32>
    %234 = tpu.matmul %231, %233, %cst_341 {dimension_numbers = #tpu.dot_dimension_numbers<[1], [0], [0], [1], [0, 0, 1, 1], [], []>} : vector<128x128xf32>, vector<128x128xf32>, vector<128x128xf32> -> vector<128x128xf32>
    %235 = arith.addf %229, %234 : vector<128x128xf32>
    %c1_342 = arith.constant 1 : index
    %c9_343 = arith.constant 9 : index
    %c2_344 = arith.constant 2 : index
    %c0_345 = arith.constant 0 : index
    %236 = vector.load %arg5[%c1_342, %c9_343, %c2_344, %c0_345] : memref<2x18x18x128xf32, #tpu.memory_space<vmem>>, vector<1x8x16x128xf32>
    %237 = vector.shape_cast %236 : vector<1x8x16x128xf32> to vector<128x128xf32>
    %c1_346 = arith.constant 1 : index
    %c2_347 = arith.constant 2 : index
    %c0_348 = arith.constant 0 : index
    %c0_349 = arith.constant 0 : index
    %238 = vector.load %arg3[%c1_346, %c2_347, %c0_348, %c0_349] : memref<3x3x128x128xf32, #tpu.memory_space<vmem>>, vector<1x1x128x128xf32>
    %239 = vector.shape_cast %238 : vector<1x1x128x128xf32> to vector<128x128xf32>
    %cst_350 = arith.constant dense<0.000000e+00> : vector<128x128xf32>
    %240 = tpu.matmul %237, %239, %cst_350 {dimension_numbers = #tpu.dot_dimension_numbers<[1], [0], [0], [1], [0, 0, 1, 1], [], []>} : vector<128x128xf32>, vector<128x128xf32>, vector<128x128xf32> -> vector<128x128xf32>
    %241 = arith.addf %235, %240 : vector<128x128xf32>
    %c1_351 = arith.constant 1 : index
    %c10_352 = arith.constant 10 : index
    %c0_353 = arith.constant 0 : index
    %c0_354 = arith.constant 0 : index
    %242 = vector.load %arg5[%c1_351, %c10_352, %c0_353, %c0_354] : memref<2x18x18x128xf32, #tpu.memory_space<vmem>>, vector<1x8x16x128xf32>
    %243 = vector.shape_cast %242 : vector<1x8x16x128xf32> to vector<128x128xf32>
    %c2_355 = arith.constant 2 : index
    %c0_356 = arith.constant 0 : index
    %c0_357 = arith.constant 0 : index
    %c0_358 = arith.constant 0 : index
    %244 = vector.load %arg3[%c2_355, %c0_356, %c0_357, %c0_358] : memref<3x3x128x128xf32, #tpu.memory_space<vmem>>, vector<1x1x128x128xf32>
    %245 = vector.shape_cast %244 : vector<1x1x128x128xf32> to vector<128x128xf32>
    %cst_359 = arith.constant dense<0.000000e+00> : vector<128x128xf32>
    %246 = tpu.matmul %243, %245, %cst_359 {dimension_numbers = #tpu.dot_dimension_numbers<[1], [0], [0], [1], [0, 0, 1, 1], [], []>} : vector<128x128xf32>, vector<128x128xf32>, vector<128x128xf32> -> vector<128x128xf32>
    %247 = arith.addf %241, %246 : vector<128x128xf32>
    %c1_360 = arith.constant 1 : index
    %c10_361 = arith.constant 10 : index
    %c1_362 = arith.constant 1 : index
    %c0_363 = arith.constant 0 : index
    %248 = vector.load %arg5[%c1_360, %c10_361, %c1_362, %c0_363] : memref<2x18x18x128xf32, #tpu.memory_space<vmem>>, vector<1x8x16x128xf32>
    %249 = vector.shape_cast %248 : vector<1x8x16x128xf32> to vector<128x128xf32>
    %c2_364 = arith.constant 2 : index
    %c1_365 = arith.constant 1 : index
    %c0_366 = arith.constant 0 : index
    %c0_367 = arith.constant 0 : index
    %250 = vector.load %arg3[%c2_364, %c1_365, %c0_366, %c0_367] : memref<3x3x128x128xf32, #tpu.memory_space<vmem>>, vector<1x1x128x128xf32>
    %251 = vector.shape_cast %250 : vector<1x1x128x128xf32> to vector<128x128xf32>
    %cst_368 = arith.constant dense<0.000000e+00> : vector<128x128xf32>
    %252 = tpu.matmul %249, %251, %cst_368 {dimension_numbers = #tpu.dot_dimension_numbers<[1], [0], [0], [1], [0, 0, 1, 1], [], []>} : vector<128x128xf32>, vector<128x128xf32>, vector<128x128xf32> -> vector<128x128xf32>
    %253 = arith.addf %247, %252 : vector<128x128xf32>
    %c1_369 = arith.constant 1 : index
    %c10_370 = arith.constant 10 : index
    %c2_371 = arith.constant 2 : index
    %c0_372 = arith.constant 0 : index
    %254 = vector.load %arg5[%c1_369, %c10_370, %c2_371, %c0_372] : memref<2x18x18x128xf32, #tpu.memory_space<vmem>>, vector<1x8x16x128xf32>
    %255 = vector.shape_cast %254 : vector<1x8x16x128xf32> to vector<128x128xf32>
    %c2_373 = arith.constant 2 : index
    %c2_374 = arith.constant 2 : index
    %c0_375 = arith.constant 0 : index
    %c0_376 = arith.constant 0 : index
    %256 = vector.load %arg3[%c2_373, %c2_374, %c0_375, %c0_376] : memref<3x3x128x128xf32, #tpu.memory_space<vmem>>, vector<1x1x128x128xf32>
    %257 = vector.shape_cast %256 : vector<1x1x128x128xf32> to vector<128x128xf32>
    %cst_377 = arith.constant dense<0.000000e+00> : vector<128x128xf32>
    %258 = tpu.matmul %255, %257, %cst_377 {dimension_numbers = #tpu.dot_dimension_numbers<[1], [0], [0], [1], [0, 0, 1, 1], [], []>} : vector<128x128xf32>, vector<128x128xf32>, vector<128x128xf32> -> vector<128x128xf32>
    %259 = arith.addf %253, %258 : vector<128x128xf32>
    %260 = tpu.transpose %259, [1, 0] : vector<128x128xf32> -> vector<128x128xf32>
    %261 = vector.shape_cast %260 : vector<128x128xf32> to vector<1x128x128xf32>
    %c1_378 = arith.constant 1 : index
    %c0_379 = arith.constant 0 : index
    %c128_380 = arith.constant 128 : index
    %262 = vector.load %arg4[%c1_378, %c0_379, %c128_380] : memref<2x128x256xf32, #tpu.memory_space<vmem>>, vector<1x128x128xf32>
    tpu.vector_store %arg4[%c1_378, %c0_379, %c128_380], %261 {strides = array<i32>} : memref<2x128x256xf32, #tpu.memory_space<vmem>>, vector<1x128x128xf32>,
    return
  }
  func.func @transform_0(%arg0: i32) -> (i32, i32) {
    %c0_i32 = arith.constant 0 : i32
    %c0_i32_0 = arith.constant 0 : i32
    return %arg0, %c0_i32 : i32, i32
  }
  func.func @transform_1(%arg0: i32) -> (i32, i32) {
    %c0_i32 = arith.constant 0 : i32
    %c0_i32_0 = arith.constant 0 : i32
    %c0_i32_1 = arith.constant 0 : i32
    return %c0_i32, %c0_i32_0 : i32, i32
  }
  func.func @transform_2(%arg0: i32) -> (i32, i32, i32, i32) {
    %c0_i32 = arith.constant 0 : i32
    %c0_i32_0 = arith.constant 0 : i32
    %c0_i32_1 = arith.constant 0 : i32
    %c0_i32_2 = arith.constant 0 : i32
    %c0_i32_3 = arith.constant 0 : i32
    return %c0_i32, %c0_i32_0, %c0_i32_1, %c0_i32_2 : i32, i32, i32, i32
  }
  func.func @transform_3(%arg0: i32) -> (i32, i32, i32) {
    %c0_i32 = arith.constant 0 : i32
    %c0_i32_0 = arith.constant 0 : i32
    %c0_i32_1 = arith.constant 0 : i32
    return %arg0, %c0_i32, %c0_i32_0 : i32, i32, i32
  }
}

</mosaic_0001>

<llo_original>
// kernel: base_block.1
$region0: #{base_block.1}
  #allocation0 [shape = 'u32[]', space=smem, size = 0x4, offset = 0x4, fixed_abs, tag = 'smem constant byte address 0x4 - core index']
  #allocation1 [shape = 'u32[144,128]{1,0:T(1,128)}', space=vmem, size = 0x12000, scoped, tag = 'internal scratch']
  #allocation2 [shape = 'f32[2,18,18,128]{3,2,1,0:T(8,128)}', space=vmem, size = 0x6c000, scoped, tag = 'scratch operand']
  %s0 = inlined_call_operand.vmem [shape: f32[512,36], index: 0, kind: input, shape index: {}]
  %s1 = inlined_call_operand.vmem [shape: f32[36,128], index: 1, kind: input, shape index: {}]
  %s2 = inlined_call_operand.vmem [shape: f32[3,3,128,128], index: 2, kind: input, shape index: {}]
  %s3 = inlined_call_operand.vmem [shape: f32[2,128,256], index: 3, kind: output, shape index: {}]
  %s4 = sld [smem:[#allocation0]]
  $region22: #{base_block.1} parent=0
    _
  %s6 = ssub.s32 1, %s4
  %s7 = scalar_select 0, %s6, %s4
  // Predicated region
  $region2: #{base_block.1} parent=0 // pred_check
    _
  $region3: #{base_block.1} parent=0 // pred_check_branch
    %9 = sbr.rel (0) target = $region5
  $region4: #{base_block.1} parent=0 // pred_region
    _
  $region5: #{base_block.1} parent=0 // pred_fallthru
    _
  // Predicated region
  $region6: #{base_block.1} parent=0 // pred_check
    _
  $region7: #{base_block.1} parent=0 // pred_check_branch
    %11 = sbr.rel (0) target = $region9
  $region8: #{base_block.1} parent=0 // pred_region
    _
  $region9: #{base_block.1} parent=0 // pred_fallthru
    _
  // Predicated region
  $region10: #{base_block.1} parent=0 // pred_check
    _
  $region11: #{base_block.1} parent=0 // pred_check_branch
    %13 = sbr.rel (0) target = $region13
  $region12: #{base_block.1} parent=0 // pred_region
    _
  $region13: #{base_block.1} parent=0 // pred_fallthru
    _
  %14 = vst [vmem:[#allocation2] sm:$0xff] 0.0
  %15 = vst [vmem:[#allocation2 + $0x8] sm:$0xff] 0.0
  %16 = vst [vmem:[#allocation2 + $0x10] sm:$0x3] 0.0
  %17 = vst [vmem:[#allocation2 + $0x1b0] sm:$0xff] 0.0
  %18 = vst [vmem:[#allocation2 + $0x1b8] sm:$0xff] 0.0
  %19 = vst [vmem:[#allocation2 + $0x1c0] sm:$0x3] 0.0
  %s20 = scalar_lea.vmem [#allocation2], 408
  %21 = vst [vmem:[%s20] sm:$0xff] 0.0
  %22 = vst [vmem:[%s20 + $0x8] sm:$0xff] 0.0
  %23 = vst [vmem:[%s20 + $0x10] sm:$0x3] 0.0
  %24 = vst [vmem:[%s20 + $0x1b0] sm:$0xff] 0.0
  %25 = vst [vmem:[%s20 + $0x1b8] sm:$0xff] 0.0
  %26 = vst [vmem:[%s20 + $0x1c0] sm:$0x3] 0.0
  %27 = vst [vmem:[#allocation2] sm:$0x1] 0.0
  %28 = vst [vmem:[#allocation2 + $0x18] sm:$0x1] 0.0
  %29 = vst [vmem:[#allocation2 + $0x30] sm:$0x1] 0.0
  %30 = vst [vmem:[#allocation2 + $0x48] sm:$0x1] 0.0
  %31 = vst [vmem:[#allocation2 + $0x60] sm:$0x1] 0.0
  %32 = vst [vmem:[#allocation2 + $0x78] sm:$0x1] 0.0
  %33 = vst [vmem:[#allocation2 + $0x90] sm:$0x1] 0.0
  %34 = vst [vmem:[#allocation2 + $0xa8] sm:$0x1] 0.0
  %35 = vst [vmem:[#allocation2 + $0xc0] sm:$0x1] 0.0
  %36 = vst [vmem:[#allocation2 + $0xd8] sm:$0x1] 0.0
  %37 = vst [vmem:[#allocation2 + $0xf0] sm:$0x1] 0.0
  %38 = vst [vmem:[#allocation2 + $0x108] sm:$0x1] 0.0
  %39 = vst [vmem:[#allocation2 + $0x120] sm:$0x1] 0.0
  %40 = vst [vmem:[#allocation2 + $0x138] sm:$0x1] 0.0
  %41 = vst [vmem:[#allocation2 + $0x150] sm:$0x1] 0.0
  %42 = vst [vmem:[#allocation2 + $0x168] sm:$0x1] 0.0
  %43 = vst [vmem:[#allocation2 + $0x180] sm:$0x1] 0.0
  %44 = vst [vmem:[#allocation2 + $0x198] sm:$0x1] 0.0
  %45 = vst [vmem:[#allocation2 + $0x1b0] sm:$0x1] 0.0
  %46 = vst [vmem:[#allocation2 + $0x1c8] sm:$0x1] 0.0
  %47 = vst [vmem:[#allocation2 + $0x1e0] sm:$0x1] 0.0
  %48 = vst [vmem:[#allocation2 + $0x1f8] sm:$0x1] 0.0
  %49 = vst [vmem:[#allocation2 + $0x210] sm:$0x1] 0.0
  %50 = vst [vmem:[#allocation2 + $0x228] sm:$0x1] 0.0
  %51 = vst [vmem:[#allocation2 + $0x240] sm:$0x1] 0.0
  %52 = vst [vmem:[#allocation2 + $0x258] sm:$0x1] 0.0
  %53 = vst [vmem:[#allocation2 + $0x270] sm:$0x1] 0.0
  %54 = vst [vmem:[#allocation2 + $0x288] sm:$0x1] 0.0
  %55 = vst [vmem:[#allocation2 + $0x2a0] sm:$0x1] 0.0
  %56 = vst [vmem:[#allocation2 + $0x2b8] sm:$0x1] 0.0
  %57 = vst [vmem:[#allocation2 + $0x2d0] sm:$0x1] 0.0
  %58 = vst [vmem:[#allocation2 + $0x2e8] sm:$0x1] 0.0
  %59 = vst [vmem:[#allocation2 + $0x300] sm:$0x1] 0.0
  %60 = vst [vmem:[#allocation2 + $0x318] sm:$0x1] 0.0
  %61 = vst [vmem:[#allocation2 + $0x330] sm:$0x1] 0.0
  %62 = vst [vmem:[#allocation2 + $0x348] sm:$0x1] 0.0
  %63 = vst [vmem:[#allocation2 + $0x11] sm:$0x1] 0.0
  %64 = vst [vmem:[#allocation2 + $0x29] sm:$0x1] 0.0
  %65 = vst [vmem:[#allocation2 + $0x41] sm:$0x1] 0.0
  %66 = vst [vmem:[#allocation2 + $0x59] sm:$0x1] 0.0
  %67 = vst [vmem:[#allocation2 + $0x71] sm:$0x1] 0.0
  %68 = vst [vmem:[#allocation2 + $0x89] sm:$0x1] 0.0
  %69 = vst [vmem:[#allocation2 + $0xa1] sm:$0x1] 0.0
  %70 = vst [vmem:[#allocation2 + $0xb9] sm:$0x1] 0.0
  %71 = vst [vmem:[#allocation2 + $0xd1] sm:$0x1] 0.0
  %72 = vst [vmem:[#allocation2 + $0xe9] sm:$0x1] 0.0
  %73 = vst [vmem:[#allocation2 + $0x101] sm:$0x1] 0.0
  %74 = vst [vmem:[#allocation2 + $0x119] sm:$0x1] 0.0
  %75 = vst [vmem:[#allocation2 + $0x131] sm:$0x1] 0.0
  %76 = vst [vmem:[#allocation2 + $0x149] sm:$0x1] 0.0
  %77 = vst [vmem:[#allocation2 + $0x161] sm:$0x1] 0.0
  %78 = vst [vmem:[#allocation2 + $0x179] sm:$0x1] 0.0
  %79 = vst [vmem:[#allocation2 + $0x191] sm:$0x1] 0.0
  %80 = vst [vmem:[#allocation2 + $0x1a9] sm:$0x1] 0.0
  %81 = vst [vmem:[#allocation2 + $0x1c1] sm:$0x1] 0.0
  %82 = vst [vmem:[#allocation2 + $0x1d9] sm:$0x1] 0.0
  %83 = vst [vmem:[#allocation2 + $0x1f1] sm:$0x1] 0.0
  %84 = vst [vmem:[#allocation2 + $0x209] sm:$0x1] 0.0
  %85 = vst [vmem:[#allocation2 + $0x221] sm:$0x1] 0.0
  %86 = vst [vmem:[#allocation2 + $0x239] sm:$0x1] 0.0
  %87 = vst [vmem:[#allocation2 + $0x251] sm:$0x1] 0.0
  %88 = vst [vmem:[#allocation2 + $0x269] sm:$0x1] 0.0
  %89 = vst [vmem:[#allocation2 + $0x281] sm:$0x1] 0.0
  %90 = vst [vmem:[#allocation2 + $0x299] sm:$0x1] 0.0
  %91 = vst [vmem:[#allocation2 + $0x2b1] sm:$0x1] 0.0
  %92 = vst [vmem:[#allocation2 + $0x2c9] sm:$0x1] 0.0
  %93 = vst [vmem:[#allocation2 + $0x2e1] sm:$0x1] 0.0
  %94 = vst [vmem:[#allocation2 + $0x2f9] sm:$0x1] 0.0
  %95 = vst [vmem:[#allocation2 + $0x311] sm:$0x1] 0.0
  %96 = vst [vmem:[#allocation2 + $0x329] sm:$0x1] 0.0
  %97 = vst [vmem:[#allocation2 + $0x341] sm:$0x1] 0.0
  %98 = vst [vmem:[#allocation2 + $0x359] sm:$0x1] 0.0
  %v99 = vld [vmem:[%s1] sm:$0xff]
  %v100 = vld [vmem:[%s1 + $0x8] sm:$0xff]
  %v101 = vld [vmem:[%s1 + $0x10] sm:$0xff]
  %v102 = vld [vmem:[%s1 + $0x18] sm:$0xff]
  %v103 = vld [vmem:[%s1 + $0x20] sm:$0xf]
  %v104 = vld [vmem:[%s0] sm:$0xff]
  %v105 = vld [vmem:[%s0 + $0x8] sm:$0xff]
  %v106 = vld [vmem:[%s0 + $0x10] sm:$0xff]
  %v107 = vld [vmem:[%s0 + $0x18] sm:$0xff]
  %v108 = vld [vmem:[%s0 + $0x20] sm:$0xff]
  %v109 = vld [vmem:[%s0 + $0x28] sm:$0xff]
  %v110 = vld [vmem:[%s0 + $0x30] sm:$0xff]
  %v111 = vld [vmem:[%s0 + $0x38] sm:$0xff]
  %v112 = vld [vmem:[%s0 + $0x40] sm:$0xff]
  %v113 = vld [vmem:[%s0 + $0x48] sm:$0xff]
  %v114 = vld [vmem:[%s0 + $0x50] sm:$0xff]
  %v115 = vld [vmem:[%s0 + $0x58] sm:$0xff]
  %v116 = vld [vmem:[%s0 + $0x60] sm:$0xff]
  %v117 = vld [vmem:[%s0 + $0x68] sm:$0xff]
  %v118 = vld [vmem:[%s0 + $0x70] sm:$0xff]
  %v119 = vld [vmem:[%s0 + $0x78] sm:$0xff]
  %vm120 = vcmask 293888
  %v122 = vsel %vm120, %v104, 0
  %v125 = vsel %vm120, %v105, 0
  %v128 = vsel %vm120, %v106, 0
  %v131 = vsel %vm120, %v107, 0
  %v134 = vsel %vm120, %v108, 0
  %v137 = vsel %vm120, %v109, 0
  %v140 = vsel %vm120, %v110, 0
  %v143 = vsel %vm120, %v111, 0
  %v146 = vsel %vm120, %v112, 0
  %v149 = vsel %vm120, %v113, 0
  %v152 = vsel %vm120, %v114, 0
  %v155 = vsel %vm120, %v115, 0
  %v158 = vsel %vm120, %v116, 0
  %v161 = vsel %vm120, %v117, 0
  %v164 = vsel %vm120, %v118, 0
  %v167 = vsel %vm120, %v119, 0
  %vm169 = vcmask 1043456
  %v171 = vsel %vm169, %v103, 0
  %173 = vmatprep.subr.mxu0 0.0
  %174 = vmatpush1.msra.mxu0 %v99
  %175 = vmatprep.subr.mxu0 0.0
  %176 = vmatpush1.msra.mxu0 %v100
  %177 = vmatprep.subr.mxu0 0.0
  %178 = vmatpush1.msra.mxu0 %v101
  %179 = vmatprep.subr.mxu0 0.0
  %180 = vmatpush1.msra.mxu0 %v102
  %181 = vmatprep.subr.mxu0 0.0
  %182 = vmatpush1.msra.mxu0 %v171
  %183 = vmatprep.subr.mxu0 0.0
  %184 = vmatpush1.msra.mxu0 0.0
  %185 = vmatprep.subr.mxu0 0.0
  %186 = vmatpush1.msra.mxu0 0.0
  %187 = vmatprep.subr.mxu0 0.0
  %188 = vmatpush1.msra.mxu0 0.0
  %189 = vmatprep.subr.mxu0 0.0
  %190 = vmatpush1.msra.mxu0 0.0
  %191 = vmatprep.subr.mxu0 0.0
  %192 = vmatpush1.msra.mxu0 0.0
  %193 = vmatprep.subr.mxu0 0.0
  %194 = vmatpush1.msra.mxu0 0.0
  %195 = vmatprep.subr.mxu0 0.0
  %196 = vmatpush1.msra.mxu0 0.0
  %197 = vmatprep.subr.mxu0 0.0
  %198 = vmatpush1.msra.mxu0 0.0
  %199 = vmatprep.subr.mxu0 0.0
  %200 = vmatpush1.msra.mxu0 0.0
  %201 = vmatprep.subr.mxu0 0.0
  %202 = vmatpush1.msra.mxu0 0.0
  %203 = vmatprep.subr.mxu0 0.0
  %204 = vmatpush1.msra.mxu0 0.0
  %205 = vmatprep.subr.mxu0 0.0
  %206 = vmatpush1.msra.mxu0 0.0
  %207 = vmatprep.subr.mxu0 0.0
  %208 = vmatpush1.msra.mxu0 0.0
  %209 = vmatprep.subr.mxu0 0.0
  %210 = vmatpush1.msra.mxu0 0.0
  %211 = vmatprep.subr.mxu0 0.0
  %212 = vmatpush1.msra.mxu0 0.0
  %213 = vmatprep.subr.mxu0 0.0
  %214 = vmatpush1.msra.mxu0 0.0
  %215 = vmatprep.subr.mxu0 0.0
  %216 = vmatpush1.msra.mxu0 0.0
  %217 = vmatprep.subr.mxu0 0.0
  %218 = vmatpush1.msra.mxu0 0.0
  %219 = vmatprep.subr.mxu0 0.0
  %220 = vmatpush1.msra.mxu0 0.0
  %221 = vmatprep.subr.mxu0 0.0
  %222 = vmatpush1.msra.mxu0 0.0
  %223 = vmatprep.subr.mxu0 0.0
  %224 = vmatpush1.msra.mxu0 0.0
  %225 = vmatprep.subr.mxu0 0.0
  %226 = vmatpush1.msra.mxu0 0.0
  %227 = vmatprep.subr.mxu0 0.0
  %228 = vmatpush1.msra.mxu0 0.0
  %229 = vmatprep.subr.mxu0 0.0
  %230 = vmatpush1.msra.mxu0 0.0
  %231 = vmatprep.subr.mxu0 0.0
  %232 = vmatpush1.msra.mxu0 0.0
  %233 = vmatprep.subr.mxu0 0.0
  %234 = vmatpush1.msra.mxu0 0.0
  %235 = vmatprep.subr.mxu0 0.0
  %236 = vmatpush1.msra.mxu0 0.0
  %237 = vmatprep.mubr.f32.mxu0 0.0
  %238 = vmatmul.mubr.f32.gmra.mrb[0].mxu0 %v122
  %v239 = vpop.f32.mrb[0].mxu0
  %v240 = vadd.f32 0.0, %v239
  %v241 = vpop.f32.mrb[0].mxu0
  %242 = vmatprep.mubr.f32.mxu0 0.0
  %243 = vmatmul.mubr.f32.gmra.mrb[0].mxu0 %v125
  %v244 = vpop.f32.mrb[0].mxu0
  %v245 = vadd.f32 0.0, %v244
  %v246 = vpop.f32.mrb[0].mxu0
  %247 = vmatprep.mubr.f32.mxu0 0.0
  %248 = vmatmul.mubr.f32.gmra.mrb[0].mxu0 %v128
  %v249 = vpop.f32.mrb[0].mxu0
  %v250 = vadd.f32 0.0, %v249
  %v251 = vpop.f32.mrb[0].mxu0
  %252 = vmatprep.mubr.f32.mxu0 0.0
  %253 = vmatmul.mubr.f32.gmra.mrb[0].mxu0 %v131
  %v254 = vpop.f32.mrb[0].mxu0
  %v255 = vadd.f32 0.0, %v254
  %v256 = vpop.f32.mrb[0].mxu0
  %257 = vmatprep.mubr.f32.mxu0 0.0
  %258 = vmatmul.mubr.f32.gmra.mrb[0].mxu0 %v134
  %v259 = vpop.f32.mrb[0].mxu0
  %v260 = vadd.f32 0.0, %v259
  %v261 = vpop.f32.mrb[0].mxu0
  %262 = vmatprep.mubr.f32.mxu0 0.0
  %263 = vmatmul.mubr.f32.gmra.mrb[0].mxu0 %v137
  %v264 = vpop.f32.mrb[0].mxu0
  %v265 = vadd.f32 0.0, %v264
  %v266 = vpop.f32.mrb[0].mxu0
  %267 = vmatprep.mubr.f32.mxu0 0.0
  %268 = vmatmul.mubr.f32.gmra.mrb[0].mxu0 %v140
  %v269 = vpop.f32.mrb[0].mxu0
  %v270 = vadd.f32 0.0, %v269
  %v271 = vpop.f32.mrb[0].mxu0
  %272 = vmatprep.mubr.f32.mxu0 0.0
  %273 = vmatmul.mubr.f32.gmra.mrb[0].mxu0 %v143
  %v274 = vpop.f32.mrb[0].mxu0
  %v275 = vadd.f32 0.0, %v274
  %v276 = vpop.f32.mrb[0].mxu0
  %277 = vmatprep.mubr.f32.mxu0 0.0
  %278 = vmatmul.mubr.f32.gmra.mrb[0].mxu0 %v146
  %v279 = vpop.f32.mrb[0].mxu0
  %v280 = vadd.f32 0.0, %v279
  %v281 = vpop.f32.mrb[0].mxu0
  %282 = vmatprep.mubr.f32.mxu0 0.0
  %283 = vmatmul.mubr.f32.gmra.mrb[0].mxu0 %v149
  %v284 = vpop.f32.mrb[0].mxu0
  %v285 = vadd.f32 0.0, %v284
  %v286 = vpop.f32.mrb[0].mxu0
  %287 = vmatprep.mubr.f32.mxu0 0.0
  %288 = vmatmul.mubr.f32.gmra.mrb[0].mxu0 %v152
  %v289 = vpop.f32.mrb[0].mxu0
  %v290 = vadd.f32 0.0, %v289
  %v291 = vpop.f32.mrb[0].mxu0
  %292 = vmatprep.mubr.f32.mxu0 0.0
  %293 = vmatmul.mubr.f32.gmra.mrb[0].mxu0 %v155
  %v294 = vpop.f32.mrb[0].mxu0
  %v295 = vadd.f32 0.0, %v294
  %v296 = vpop.f32.mrb[0].mxu0
  %297 = vmatprep.mubr.f32.mxu0 0.0
  %298 = vmatmul.mubr.f32.gmra.mrb[0].mxu0 %v158
  %v299 = vpop.f32.mrb[0].mxu0
  %v300 = vadd.f32 0.0, %v299
  %v301 = vpop.f32.mrb[0].mxu0
  %302 = vmatprep.mubr.f32.mxu0 0.0
  %303 = vmatmul.mubr.f32.gmra.mrb[0].mxu0 %v161
  %v304 = vpop.f32.mrb[0].mxu0
  %v305 = vadd.f32 0.0, %v304
  %v306 = vpop.f32.mrb[0].mxu0
  %307 = vmatprep.mubr.f32.mxu0 0.0
  %308 = vmatmul.mubr.f32.gmra.mrb[0].mxu0 %v164
  %v309 = vpop.f32.mrb[0].mxu0
  %v310 = vadd.f32 0.0, %v309
  %v311 = vpop.f32.mrb[0].mxu0
  %312 = vmatprep.mubr.f32.mxu0 0.0
  %313 = vmatmul.mubr.f32.gmra.mrb[0].mxu0 %v167
  %v314 = vpop.f32.mrb[0].mxu0
  %v315 = vadd.f32 0.0, %v314
  %v316 = vpop.f32.mrb[0].mxu0
  %317 = vdwg.mxu0
  %v318 = vmax.f32 %v240, 0.0
  %v319 = vmax.f32 %v245, 0.0
  %v320 = vmax.f32 %v250, 0.0
  %v321 = vmax.f32 %v255, 0.0
  %v322 = vmax.f32 %v260, 0.0
  %v323 = vmax.f32 %v265, 0.0
  %v324 = vmax.f32 %v270, 0.0
  %v325 = vmax.f32 %v275, 0.0
  %v326 = vmax.f32 %v280, 0.0
  %v327 = vmax.f32 %v285, 0.0
  %v328 = vmax.f32 %v290, 0.0
  %v329 = vmax.f32 %v295, 0.0
  %v330 = vmax.f32 %v300, 0.0
  %v331 = vmax.f32 %v305, 0.0
  %v332 = vmax.f32 %v310, 0.0
  %v333 = vmax.f32 %v315, 0.0
  %s334 = scalar_lea.vmem [#allocation2], 24
  %335 = vst [vmem:[%s334 + $0x1] sm:$0xff] %v318
  %336 = vst [vmem:[%s334 + $0x9] sm:$0xff] %v319
  %337 = vst [vmem:[%s334 + $0x19] sm:$0xff] %v320
  %338 = vst [vmem:[%s334 + $0x21] sm:$0xff] %v321
  %339 = vst [vmem:[%s334 + $0x31] sm:$0xff] %v322
  %340 = vst [vmem:[%s334 + $0x39] sm:$0xff] %v323
  %341 = vst [vmem:[%s334 + $0x49] sm:$0xff] %v324
  %342 = vst [vmem:[%s334 + $0x51] sm:$0xff] %v325
  %343 = vst [vmem:[%s334 + $0x61] sm:$0xff] %v326
  %344 = vst [vmem:[%s334 + $0x69] sm:$0xff] %v327
  %345 = vst [vmem:[%s334 + $0x79] sm:$0xff] %v328
  %346 = vst [vmem:[%s334 + $0x81] sm:$0xff] %v329
  %347 = vst [vmem:[%s334 + $0x91] sm:$0xff] %v330
  %348 = vst [vmem:[%s334 + $0x99] sm:$0xff] %v331
  %349 = vst [vmem:[%s334 + $0xa9] sm:$0xff] %v332
  %350 = vst [vmem:[%s334 + $0xb1] sm:$0xff] %v333
  %v351 = vld [vmem:[%s0 + $0x80] sm:$0xff]
  %v352 = vld [vmem:[%s0 + $0x88] sm:$0xff]
  %v353 = vld [vmem:[%s0 + $0x90] sm:$0xff]
  %v354 = vld [vmem:[%s0 + $0x98] sm:$0xff]
  %v355 = vld [vmem:[%s0 + $0xa0] sm:$0xff]
  %v356 = vld [vmem:[%s0 + $0xa8] sm:$0xff]
  %v357 = vld [vmem:[%s0 + $0xb0] sm:$0xff]
  %v358 = vld [vmem:[%s0 + $0xb8] sm:$0xff]
  %v359 = vld [vmem:[%s0 + $0xc0] sm:$0xff]
  %v360 = vld [vmem:[%s0 + $0xc8] sm:$0xff]
  %v361 = vld [vmem:[%s0 + $0xd0] sm:$0xff]
  %v362 = vld [vmem:[%s0 + $0xd8] sm:$0xff]
  %v363 = vld [vmem:[%s0 + $0xe0] sm:$0xff]
  %v364 = vld [vmem:[%s0 + $0xe8] sm:$0xff]
  %v365 = vld [vmem:[%s0 + $0xf0] sm:$0xff]
  %v366 = vld [vmem:[%s0 + $0xf8] sm:$0xff]
  %v368 = vsel %vm120, %v351, 0
  %v371 = vsel %vm120, %v352, 0
  %v374 = vsel %vm120, %v353, 0
  %v377 = vsel %vm120, %v354, 0
  %v380 = vsel %vm120, %v355, 0
  %v383 = vsel %vm120, %v356, 0
  %v386 = vsel %vm120, %v357, 0
  %v389 = vsel %vm120, %v358, 0
  %v392 = vsel %vm120, %v359, 0
  %v395 = vsel %vm120, %v360, 0
  %v398 = vsel %vm120, %v361, 0
  %v401 = vsel %vm120, %v362, 0
  %v404 = vsel %vm120, %v363, 0
  %v407 = vsel %vm120, %v364, 0
  %v410 = vsel %vm120, %v365, 0
  %v413 = vsel %vm120, %v366, 0
  %415 = vmatprep.subr.mxu0 0.0
  %416 = vmatpush1.msra.mxu0 %v99
  %417 = vmatprep.subr.mxu0 0.0
  %418 = vmatpush1.msra.mxu0 %v100
  %419 = vmatprep.subr.mxu0 0.0
  %420 = vmatpush1.msra.mxu0 %v101
  %421 = vmatprep.subr.mxu0 0.0
  %422 = vmatpush1.msra.mxu0 %v102
  %423 = vmatprep.subr.mxu0 0.0
  %424 = vmatpush1.msra.mxu0 %v171
  %425 = vmatprep.subr.mxu0 0.0
  %426 = vmatpush1.msra.mxu0 0.0
  %427 = vmatprep.subr.mxu0 0.0
  %428 = vmatpush1.msra.mxu0 0.0
  %429 = vmatprep.subr.mxu0 0.0
  %430 = vmatpush1.msra.mxu0 0.0
  %431 = vmatprep.subr.mxu0 0.0
  %432 = vmatpush1.msra.mxu0 0.0
  %433 = vmatprep.subr.mxu0 0.0
  %434 = vmatpush1.msra.mxu0 0.0
  %435 = vmatprep.subr.mxu0 0.0
  %436 = vmatpush1.msra.mxu0 0.0
  %437 = vmatprep.subr.mxu0 0.0
  %438 = vmatpush1.msra.mxu0 0.0
  %439 = vmatprep.subr.mxu0 0.0
  %440 = vmatpush1.msra.mxu0 0.0
  %441 = vmatprep.subr.mxu0 0.0
  %442 = vmatpush1.msra.mxu0 0.0
  %443 = vmatprep.subr.mxu0 0.0
  %444 = vmatpush1.msra.mxu0 0.0
  %445 = vmatprep.subr.mxu0 0.0
  %446 = vmatpush1.msra.mxu0 0.0
  %447 = vmatprep.subr.mxu0 0.0
  %448 = vmatpush1.msra.mxu0 0.0
  %449 = vmatprep.subr.mxu0 0.0
  %450 = vmatpush1.msra.mxu0 0.0
  %451 = vmatprep.subr.mxu0 0.0
  %452 = vmatpush1.msra.mxu0 0.0
  %453 = vmatprep.subr.mxu0 0.0
  %454 = vmatpush1.msra.mxu0 0.0
  %455 = vmatprep.subr.mxu0 0.0
  %456 = vmatpush1.msra.mxu0 0.0
  %457 = vmatprep.subr.mxu0 0.0
  %458 = vmatpush1.msra.mxu0 0.0
  %459 = vmatprep.subr.mxu0 0.0
  %460 = vmatpush1.msra.mxu0 0.0
  %461 = vmatprep.subr.mxu0 0.0
  %462 = vmatpush1.msra.mxu0 0.0
  %463 = vmatprep.subr.mxu0 0.0
  %464 = vmatpush1.msra.mxu0 0.0
  %465 = vmatprep.subr.mxu0 0.0
  %466 = vmatpush1.msra.mxu0 0.0
  %467 = vmatprep.subr.mxu0 0.0
  %468 = vmatpush1.msra.mxu0 0.0
  %469 = vmatprep.subr.mxu0 0.0
  %470 = vmatpush1.msra.mxu0 0.0
  %471 = vmatprep.subr.mxu0 0.0
  %472 = vmatpush1.msra.mxu0 0.0
  %473 = vmatprep.subr.mxu0 0.0
  %474 = vmatpush1.msra.mxu0 0.0
  %475 = vmatprep.subr.mxu0 0.0
  %476 = vmatpush1.msra.mxu0 0.0
  %477 = vmatprep.subr.mxu0 0.0
  %478 = vmatpush1.msra.mxu0 0.0
  %479 = vmatprep.mubr.f32.mxu0 0.0
  %480 = vmatmul.mubr.f32.gmra.mrb[0].mxu0 %v368
  %v481 = vpop.f32.mrb[0].mxu0
  %v482 = vadd.f32 0.0, %v481
  %v483 = vpop.f32.mrb[0].mxu0
  %484 = vmatprep.mubr.f32.mxu0 0.0
  %485 = vmatmul.mubr.f32.gmra.mrb[0].mxu0 %v371
  %v486 = vpop.f32.mrb[0].mxu0
  %v487 = vadd.f32 0.0, %v486
  %v488 = vpop.f32.mrb[0].mxu0
  %489 = vmatprep.mubr.f32.mxu0 0.0
  %490 = vmatmul.mubr.f32.gmra.mrb[0].mxu0 %v374
  %v491 = vpop.f32.mrb[0].mxu0
  %v492 = vadd.f32 0.0, %v491
  %v493 = vpop.f32.mrb[0].mxu0
  %494 = vmatprep.mubr.f32.mxu0 0.0
  %495 = vmatmul.mubr.f32.gmra.mrb[0].mxu0 %v377
  %v496 = vpop.f32.mrb[0].mxu0
  %v497 = vadd.f32 0.0, %v496
  %v498 = vpop.f32.mrb[0].mxu0
  %499 = vmatprep.mubr.f32.mxu0 0.0
  %500 = vmatmul.mubr.f32.gmra.mrb[0].mxu0 %v380
  %v501 = vpop.f32.mrb[0].mxu0
  %v502 = vadd.f32 0.0, %v501
  %v503 = vpop.f32.mrb[0].mxu0
  %504 = vmatprep.mubr.f32.mxu0 0.0
  %505 = vmatmul.mubr.f32.gmra.mrb[0].mxu0 %v383
  %v506 = vpop.f32.mrb[0].mxu0
  %v507 = vadd.f32 0.0, %v506
  %v508 = vpop.f32.mrb[0].mxu0
  %509 = vmatprep.mubr.f32.mxu0 0.0
  %510 = vmatmul.mubr.f32.gmra.mrb[0].mxu0 %v386
  %v511 = vpop.f32.mrb[0].mxu0
  %v512 = vadd.f32 0.0, %v511
  %v513 = vpop.f32.mrb[0].mxu0
  %514 = vmatprep.mubr.f32.mxu0 0.0
  %515 = vmatmul.mubr.f32.gmra.mrb[0].mxu0 %v389
  %v516 = vpop.f32.mrb[0].mxu0
  %v517 = vadd.f32 0.0, %v516
  %v518 = vpop.f32.mrb[0].mxu0
  %519 = vmatprep.mubr.f32.mxu0 0.0
  %520 = vmatmul.mubr.f32.gmra.mrb[0].mxu0 %v392
  %v521 = vpop.f32.mrb[0].mxu0
  %v522 = vadd.f32 0.0, %v521
  %v523 = vpop.f32.mrb[0].mxu0
  %524 = vmatprep.mubr.f32.mxu0 0.0
  %525 = vmatmul.mubr.f32.gmra.mrb[0].mxu0 %v395
  %v526 = vpop.f32.mrb[0].mxu0
  %v527 = vadd.f32 0.0, %v526
  %v528 = vpop.f32.mrb[0].mxu0
  %529 = vmatprep.mubr.f32.mxu0 0.0
  %530 = vmatmul.mubr.f32.gmra.mrb[0].mxu0 %v398
  %v531 = vpop.f32.mrb[0].mxu0
  %v532 = vadd.f32 0.0, %v531
  %v533 = vpop.f32.mrb[0].mxu0
  %534 = vmatprep.mubr.f32.mxu0 0.0
  %535 = vmatmul.mubr.f32.gmra.mrb[0].mxu0 %v401
  %v536 = vpop.f32.mrb[0].mxu0
  %v537 = vadd.f32 0.0, %v536
  %v538 = vpop.f32.mrb[0].mxu0
  %539 = vmatprep.mubr.f32.mxu0 0.0
  %540 = vmatmul.mubr.f32.gmra.mrb[0].mxu0 %v404
  %v541 = vpop.f32.mrb[0].mxu0
  %v542 = vadd.f32 0.0, %v541
  %v543 = vpop.f32.mrb[0].mxu0
  %544 = vmatprep.mubr.f32.mxu0 0.0
  %545 = vmatmul.mubr.f32.gmra.mrb[0].mxu0 %v407
  %v546 = vpop.f32.mrb[0].mxu0
  %v547 = vadd.f32 0.0, %v546
  %v548 = vpop.f32.mrb[0].mxu0
  %549 = vmatprep.mubr.f32.mxu0 0.0
  %550 = vmatmul.mubr.f32.gmra.mrb[0].mxu0 %v410
  %v551 = vpop.f32.mrb[0].mxu0
  %v552 = vadd.f32 0.0, %v551
  %v553 = vpop.f32.mrb[0].mxu0
  %554 = vmatprep.mubr.f32.mxu0 0.0
  %555 = vmatmul.mubr.f32.gmra.mrb[0].mxu0 %v413
  %v556 = vpop.f32.mrb[0].mxu0
  %v557 = vadd.f32 0.0, %v556
  %v558 = vpop.f32.mrb[0].mxu0
  %559 = vdwg.mxu0
  %v560 = vmax.f32 %v482, 0.0
  %v561 = vmax.f32 %v487, 0.0
  %v562 = vmax.f32 %v492, 0.0
  %v563 = vmax.f32 %v497, 0.0
  %v564 = vmax.f32 %v502, 0.0
  %v565 = vmax.f32 %v507, 0.0
  %v566 = vmax.f32 %v512, 0.0
  %v567 = vmax.f32 %v517, 0.0
  %v568 = vmax.f32 %v522, 0.0
  %v569 = vmax.f32 %v527, 0.0
  %v570 = vmax.f32 %v532, 0.0
  %v571 = vmax.f32 %v537, 0.0
  %v572 = vmax.f32 %v542, 0.0
  %v573 = vmax.f32 %v547, 0.0
  %v574 = vmax.f32 %v552, 0.0
  %v575 = vmax.f32 %v557, 0.0
  %s576 = scalar_lea.vmem [#allocation2], 216
  %577 = vst [vmem:[%s576 + $0x1] sm:$0xff] %v560
  %578 = vst [vmem:[%s576 + $0x9] sm:$0xff] %v561
  %579 = vst [vmem:[%s576 + $0x19] sm:$0xff] %v562
  %580 = vst [vmem:[%s576 + $0x21] sm:$0xff] %v563
  %581 = vst [vmem:[%s576 + $0x31] sm:$0xff] %v564
  %582 = vst [vmem:[%s576 + $0x39] sm:$0xff] %v565
  %583 = vst [vmem:[%s576 + $0x49] sm:$0xff] %v566
  %584 = vst [vmem:[%s576 + $0x51] sm:$0xff] %v567
  %585 = vst [vmem:[%s576 + $0x61] sm:$0xff] %v568
  %586 = vst [vmem:[%s576 + $0x69] sm:$0xff] %v569
  %587 = vst [vmem:[%s576 + $0x79] sm:$0xff] %v570
  %588 = vst [vmem:[%s576 + $0x81] sm:$0xff] %v571
  %589 = vst [vmem:[%s576 + $0x91] sm:$0xff] %v572
  %590 = vst [vmem:[%s576 + $0x99] sm:$0xff] %v573
  %591 = vst [vmem:[%s576 + $0xa9] sm:$0xff] %v574
  %592 = vst [vmem:[%s576 + $0xb1] sm:$0xff] %v575
  %v593 = vld [vmem:[%s0 + $0x100] sm:$0xff]
  %v594 = vld [vmem:[%s0 + $0x108] sm:$0xff]
  %v595 = vld [vmem:[%s0 + $0x110] sm:$0xff]
  %v596 = vld [vmem:[%s0 + $0x118] sm:$0xff]
  %v597 = vld [vmem:[%s0 + $0x120] sm:$0xff]
  %v598 = vld [vmem:[%s0 + $0x128] sm:$0xff]
  %v599 = vld [vmem:[%s0 + $0x130] sm:$0xff]
  %v600 = vld [vmem:[%s0 + $0x138] sm:$0xff]
  %v601 = vld [vmem:[%s0 + $0x140] sm:$0xff]
  %v602 = vld [vmem:[%s0 + $0x148] sm:$0xff]
  %v603 = vld [vmem:[%s0 + $0x150] sm:$0xff]
  %v604 = vld [vmem:[%s0 + $0x158] sm:$0xff]
  %v605 = vld [vmem:[%s0 + $0x160] sm:$0xff]
  %v606 = vld [vmem:[%s0 + $0x168] sm:$0xff]
  %v607 = vld [vmem:[%s0 + $0x170] sm:$0xff]
  %v608 = vld [vmem:[%s0 + $0x178] sm:$0xff]
  %v610 = vsel %vm120, %v593, 0
  %v613 = vsel %vm120, %v594, 0
  %v616 = vsel %vm120, %v595, 0
  %v619 = vsel %vm120, %v596, 0
  %v622 = vsel %vm120, %v597, 0
  %v625 = vsel %vm120, %v598, 0
  %v628 = vsel %vm120, %v599, 0
  %v631 = vsel %vm120, %v600, 0
  %v634 = vsel %vm120, %v601, 0
  %v637 = vsel %vm120, %v602, 0
  %v640 = vsel %vm120, %v603, 0
  %v643 = vsel %vm120, %v604, 0
  %v646 = vsel %vm120, %v605, 0
  %v649 = vsel %vm120, %v606, 0
  %v652 = vsel %vm120, %v607, 0
  %v655 = vsel %vm120, %v608, 0
  %657 = vmatprep.subr.mxu0 0.0
  %658 = vmatpush1.msra.mxu0 %v99
  %659 = vmatprep.subr.mxu0 0.0
  %660 = vmatpush1.msra.mxu0 %v100
  %661 = vmatprep.subr.mxu0 0.0
  %662 = vmatpush1.msra.mxu0 %v101
  %663 = vmatprep.subr.mxu0 0.0
  %664 = vmatpush1.msra.mxu0 %v102
  %665 = vmatprep.subr.mxu0 0.0
  %666 = vmatpush1.msra.mxu0 %v171
  %667 = vmatprep.subr.mxu0 0.0
  %668 = vmatpush1.msra.mxu0 0.0
  %669 = vmatprep.subr.mxu0 0.0
  %670 = vmatpush1.msra.mxu0 0.0
  %671 = vmatprep.subr.mxu0 0.0
  %672 = vmatpush1.msra.mxu0 0.0
  %673 = vmatprep.subr.mxu0 0.0
  %674 = vmatpush1.msra.mxu0 0.0
  %675 = vmatprep.subr.mxu0 0.0
  %676 = vmatpush1.msra.mxu0 0.0
  %677 = vmatprep.subr.mxu0 0.0
  %678 = vmatpush1.msra.mxu0 0.0
  %679 = vmatprep.subr.mxu0 0.0
  %680 = vmatpush1.msra.mxu0 0.0
  %681 = vmatprep.subr.mxu0 0.0
  %682 = vmatpush1.msra.mxu0 0.0
  %683 = vmatprep.subr.mxu0 0.0
  %684 = vmatpush1.msra.mxu0 0.0
  %685 = vmatprep.subr.mxu0 0.0
  %686 = vmatpush1.msra.mxu0 0.0
  %687 = vmatprep.subr.mxu0 0.0
  %688 = vmatpush1.msra.mxu0 0.0
  %689 = vmatprep.subr.mxu0 0.0
  %690 = vmatpush1.msra.mxu0 0.0
  %691 = vmatprep.subr.mxu0 0.0
  %692 = vmatpush1.msra.mxu0 0.0
  %693 = vmatprep.subr.mxu0 0.0
  %694 = vmatpush1.msra.mxu0 0.0
  %695 = vmatprep.subr.mxu0 0.0
  %696 = vmatpush1.msra.mxu0 0.0
  %697 = vmatprep.subr.mxu0 0.0
  %698 = vmatpush1.msra.mxu0 0.0
  %699 = vmatprep.subr.mxu0 0.0
  %700 = vmatpush1.msra.mxu0 0.0
  %701 = vmatprep.subr.mxu0 0.0
  %702 = vmatpush1.msra.mxu0 0.0
  %703 = vmatprep.subr.mxu0 0.0
  %704 = vmatpush1.msra.mxu0 0.0
  %705 = vmatprep.subr.mxu0 0.0
  %706 = vmatpush1.msra.mxu0 0.0
  %707 = vmatprep.subr.mxu0 0.0
  %708 = vmatpush1.msra.mxu0 0.0
  %709 = vmatprep.subr.mxu0 0.0
  %710 = vmatpush1.msra.mxu0 0.0
  %711 = vmatprep.subr.mxu0 0.0
  %712 = vmatpush1.msra.mxu0 0.0
  %713 = vmatprep.subr.mxu0 0.0
  %714 = vmatpush1.msra.mxu0 0.0
  %715 = vmatprep.subr.mxu0 0.0
  %716 = vmatpush1.msra.mxu0 0.0
  %717 = vmatprep.subr.mxu0 0.0
  %718 = vmatpush1.msra.mxu0 0.0
  %719 = vmatprep.subr.mxu0 0.0
  %720 = vmatpush1.msra.mxu0 0.0
  %721 = vmatprep.mubr.f32.mxu0 0.0
  %722 = vmatmul.mubr.f32.gmra.mrb[0].mxu0 %v610
  %v723 = vpop.f32.mrb[0].mxu0
  %v724 = vadd.f32 0.0, %v723
  %v725 = vpop.f32.mrb[0].mxu0
  %726 = vmatprep.mubr.f32.mxu0 0.0
  %727 = vmatmul.mubr.f32.gmra.mrb[0].mxu0 %v613
  %v728 = vpop.f32.mrb[0].mxu0
  %v729 = vadd.f32 0.0, %v728
  %v730 = vpop.f32.mrb[0].mxu0
  %731 = vmatprep.mubr.f32.mxu0 0.0
  %732 = vmatmul.mubr.f32.gmra.mrb[0].mxu0 %v616
  %v733 = vpop.f32.mrb[0].mxu0
  %v734 = vadd.f32 0.0, %v733
  %v735 = vpop.f32.mrb[0].mxu0
  %736 = vmatprep.mubr.f32.mxu0 0.0
  %737 = vmatmul.mubr.f32.gmra.mrb[0].mxu0 %v619
  %v738 = vpop.f32.mrb[0].mxu0
  %v739 = vadd.f32 0.0, %v738
  %v740 = vpop.f32.mrb[0].mxu0
  %741 = vmatprep.mubr.f32.mxu0 0.0
  %742 = vmatmul.mubr.f32.gmra.mrb[0].mxu0 %v622
  %v743 = vpop.f32.mrb[0].mxu0
  %v744 = vadd.f32 0.0, %v743
  %v745 = vpop.f32.mrb[0].mxu0
  %746 = vmatprep.mubr.f32.mxu0 0.0
  %747 = vmatmul.mubr.f32.gmra.mrb[0].mxu0 %v625
  %v748 = vpop.f32.mrb[0].mxu0
  %v749 = vadd.f32 0.0, %v748
  %v750 = vpop.f32.mrb[0].mxu0
  %751 = vmatprep.mubr.f32.mxu0 0.0
  %752 = vmatmul.mubr.f32.gmra.mrb[0].mxu0 %v628
  %v753 = vpop.f32.mrb[0].mxu0
  %v754 = vadd.f32 0.0, %v753
  %v755 = vpop.f32.mrb[0].mxu0
  %756 = vmatprep.mubr.f32.mxu0 0.0
  %757 = vmatmul.mubr.f32.gmra.mrb[0].mxu0 %v631
  %v758 = vpop.f32.mrb[0].mxu0
  %v759 = vadd.f32 0.0, %v758
  %v760 = vpop.f32.mrb[0].mxu0
  %761 = vmatprep.mubr.f32.mxu0 0.0
  %762 = vmatmul.mubr.f32.gmra.mrb[0].mxu0 %v634
  %v763 = vpop.f32.mrb[0].mxu0
  %v764 = vadd.f32 0.0, %v763
  %v765 = vpop.f32.mrb[0].mxu0
  %766 = vmatprep.mubr.f32.mxu0 0.0
  %767 = vmatmul.mubr.f32.gmra.mrb[0].mxu0 %v637
  %v768 = vpop.f32.mrb[0].mxu0
  %v769 = vadd.f32 0.0, %v768
  %v770 = vpop.f32.mrb[0].mxu0
  %771 = vmatprep.mubr.f32.mxu0 0.0
  %772 = vmatmul.mubr.f32.gmra.mrb[0].mxu0 %v640
  %v773 = vpop.f32.mrb[0].mxu0
  %v774 = vadd.f32 0.0, %v773
  %v775 = vpop.f32.mrb[0].mxu0
  %776 = vmatprep.mubr.f32.mxu0 0.0
  %777 = vmatmul.mubr.f32.gmra.mrb[0].mxu0 %v643
  %v778 = vpop.f32.mrb[0].mxu0
  %v779 = vadd.f32 0.0, %v778
  %v780 = vpop.f32.mrb[0].mxu0
  %781 = vmatprep.mubr.f32.mxu0 0.0
  %782 = vmatmul.mubr.f32.gmra.mrb[0].mxu0 %v646
  %v783 = vpop.f32.mrb[0].mxu0
  %v784 = vadd.f32 0.0, %v783
  %v785 = vpop.f32.mrb[0].mxu0
  %786 = vmatprep.mubr.f32.mxu0 0.0
  %787 = vmatmul.mubr.f32.gmra.mrb[0].mxu0 %v649
  %v788 = vpop.f32.mrb[0].mxu0
  %v789 = vadd.f32 0.0, %v788
  %v790 = vpop.f32.mrb[0].mxu0
  %791 = vmatprep.mubr.f32.mxu0 0.0
  %792 = vmatmul.mubr.f32.gmra.mrb[0].mxu0 %v652
  %v793 = vpop.f32.mrb[0].mxu0
  %v794 = vadd.f32 0.0, %v793
  %v795 = vpop.f32.mrb[0].mxu0
  %796 = vmatprep.mubr.f32.mxu0 0.0
  %797 = vmatmul.mubr.f32.gmra.mrb[0].mxu0 %v655
  %v798 = vpop.f32.mrb[0].mxu0
  %v799 = vadd.f32 0.0, %v798
  %v800 = vpop.f32.mrb[0].mxu0
  %801 = vdwg.mxu0
  %v802 = vmax.f32 %v724, 0.0
  %v803 = vmax.f32 %v729, 0.0
  %v804 = vmax.f32 %v734, 0.0
  %v805 = vmax.f32 %v739, 0.0
  %v806 = vmax.f32 %v744, 0.0
  %v807 = vmax.f32 %v749, 0.0
  %v808 = vmax.f32 %v754, 0.0
  %v809 = vmax.f32 %v759, 0.0
  %v810 = vmax.f32 %v764, 0.0
  %v811 = vmax.f32 %v769, 0.0
  %v812 = vmax.f32 %v774, 0.0
  %v813 = vmax.f32 %v779, 0.0
  %v814 = vmax.f32 %v784, 0.0
  %v815 = vmax.f32 %v789, 0.0
  %v816 = vmax.f32 %v794, 0.0
  %v817 = vmax.f32 %v799, 0.0
  %s818 = scalar_lea.vmem [#allocation2], 456
  %819 = vst [vmem:[%s818 + $0x1] sm:$0xff] %v802
  %820 = vst [vmem:[%s818 + $0x9] sm:$0xff] %v803
  %821 = vst [vmem:[%s818 + $0x19] sm:$0xff] %v804
  %822 = vst [vmem:[%s818 + $0x21] sm:$0xff] %v805
  %823 = vst [vmem:[%s818 + $0x31] sm:$0xff] %v806
  %824 = vst [vmem:[%s818 + $0x39] sm:$0xff] %v807
  %825 = vst [vmem:[%s818 + $0x49] sm:$0xff] %v808
  %826 = vst [vmem:[%s818 + $0x51] sm:$0xff] %v809
  %827 = vst [vmem:[%s818 + $0x61] sm:$0xff] %v810
  %828 = vst [vmem:[%s818 + $0x69] sm:$0xff] %v811
  %829 = vst [vmem:[%s818 + $0x79] sm:$0xff] %v812
  %830 = vst [vmem:[%s818 + $0x81] sm:$0xff] %v813
  %831 = vst [vmem:[%s818 + $0x91] sm:$0xff] %v814
  %832 = vst [vmem:[%s818 + $0x99] sm:$0xff] %v815
  %833 = vst [vmem:[%s818 + $0xa9] sm:$0xff] %v816
  %834 = vst [vmem:[%s818 + $0xb1] sm:$0xff] %v817
  %v835 = vld [vmem:[%s0 + $0x180] sm:$0xff]
  %v836 = vld [vmem:[%s0 + $0x188] sm:$0xff]
  %v837 = vld [vmem:[%s0 + $0x190] sm:$0xff]
  %v838 = vld [vmem:[%s0 + $0x198] sm:$0xff]
  %v839 = vld [vmem:[%s0 + $0x1a0] sm:$0xff]
  %v840 = vld [vmem:[%s0 + $0x1a8] sm:$0xff]
  %v841 = vld [vmem:[%s0 + $0x1b0] sm:$0xff]
  %v842 = vld [vmem:[%s0 + $0x1b8] sm:$0xff]
  %v843 = vld [vmem:[%s0 + $0x1c0] sm:$0xff]
  %v844 = vld [vmem:[%s0 + $0x1c8] sm:$0xff]
  %v845 = vld [vmem:[%s0 + $0x1d0] sm:$0xff]
  %v846 = vld [vmem:[%s0 + $0x1d8] sm:$0xff]
  %v847 = vld [vmem:[%s0 + $0x1e0] sm:$0xff]
  %v848 = vld [vmem:[%s0 + $0x1e8] sm:$0xff]
  %v849 = vld [vmem:[%s0 + $0x1f0] sm:$0xff]
  %v850 = vld [vmem:[%s0 + $0x1f8] sm:$0xff]
  %v852 = vsel %vm120, %v835, 0
  %v855 = vsel %vm120, %v836, 0
  %v858 = vsel %vm120, %v837, 0
  %v861 = vsel %vm120, %v838, 0
  %v864 = vsel %vm120, %v839, 0
  %v867 = vsel %vm120, %v840, 0
  %v870 = vsel %vm120, %v841, 0
  %v873 = vsel %vm120, %v842, 0
  %v876 = vsel %vm120, %v843, 0
  %v879 = vsel %vm120, %v844, 0
  %v882 = vsel %vm120, %v845, 0
  %v885 = vsel %vm120, %v846, 0
  %v888 = vsel %vm120, %v847, 0
  %v891 = vsel %vm120, %v848, 0
  %v894 = vsel %vm120, %v849, 0
  %v897 = vsel %vm120, %v850, 0
  %899 = vmatprep.subr.mxu0 0.0
  %900 = vmatpush1.msra.mxu0 %v99
  %901 = vmatprep.subr.mxu0 0.0
  %902 = vmatpush1.msra.mxu0 %v100
  %903 = vmatprep.subr.mxu0 0.0
  %904 = vmatpush1.msra.mxu0 %v101
  %905 = vmatprep.subr.mxu0 0.0
  %906 = vmatpush1.msra.mxu0 %v102
  %907 = vmatprep.subr.mxu0 0.0
  %908 = vmatpush1.msra.mxu0 %v171
  %909 = vmatprep.subr.mxu0 0.0
  %910 = vmatpush1.msra.mxu0 0.0
  %911 = vmatprep.subr.mxu0 0.0
  %912 = vmatpush1.msra.mxu0 0.0
  %913 = vmatprep.subr.mxu0 0.0
  %914 = vmatpush1.msra.mxu0 0.0
  %915 = vmatprep.subr.mxu0 0.0
  %916 = vmatpush1.msra.mxu0 0.0
  %917 = vmatprep.subr.mxu0 0.0
  %918 = vmatpush1.msra.mxu0 0.0
  %919 = vmatprep.subr.mxu0 0.0
  %920 = vmatpush1.msra.mxu0 0.0
  %921 = vmatprep.subr.mxu0 0.0
  %922 = vmatpush1.msra.mxu0 0.0
  %923 = vmatprep.subr.mxu0 0.0
  %924 = vmatpush1.msra.mxu0 0.0
  %925 = vmatprep.subr.mxu0 0.0
  %926 = vmatpush1.msra.mxu0 0.0
  %927 = vmatprep.subr.mxu0 0.0
  %928 = vmatpush1.msra.mxu0 0.0
  %929 = vmatprep.subr.mxu0 0.0
  %930 = vmatpush1.msra.mxu0 0.0
  %931 = vmatprep.subr.mxu0 0.0
  %932 = vmatpush1.msra.mxu0 0.0
  %933 = vmatprep.subr.mxu0 0.0
  %934 = vmatpush1.msra.mxu0 0.0
  %935 = vmatprep.subr.mxu0 0.0
  %936 = vmatpush1.msra.mxu0 0.0
  %937 = vmatprep.subr.mxu0 0.0
  %938 = vmatpush1.msra.mxu0 0.0
  %939 = vmatprep.subr.mxu0 0.0
  %940 = vmatpush1.msra.mxu0 0.0
  %941 = vmatprep.subr.mxu0 0.0
  %942 = vmatpush1.msra.mxu0 0.0
  %943 = vmatprep.subr.mxu0 0.0
  %944 = vmatpush1.msra.mxu0 0.0
  %945 = vmatprep.subr.mxu0 0.0
  %946 = vmatpush1.msra.mxu0 0.0
  %947 = vmatprep.subr.mxu0 0.0
  %948 = vmatpush1.msra.mxu0 0.0
  %949 = vmatprep.subr.mxu0 0.0
  %950 = vmatpush1.msra.mxu0 0.0
  %951 = vmatprep.subr.mxu0 0.0
  %952 = vmatpush1.msra.mxu0 0.0
  %953 = vmatprep.subr.mxu0 0.0
  %954 = vmatpush1.msra.mxu0 0.0
  %955 = vmatprep.subr.mxu0 0.0
  %956 = vmatpush1.msra.mxu0 0.0
  %957 = vmatprep.subr.mxu0 0.0
  %958 = vmatpush1.msra.mxu0 0.0
  %959 = vmatprep.subr.mxu0 0.0
  %960 = vmatpush1.msra.mxu0 0.0
  %961 = vmatprep.subr.mxu0 0.0
  %962 = vmatpush1.msra.mxu0 0.0
  %963 = vmatprep.mubr.f32.mxu0 0.0
  %964 = vmatmul.mubr.f32.gmra.mrb[0].mxu0 %v852
  %v965 = vpop.f32.mrb[0].mxu0
  %v966 = vadd.f32 0.0, %v965
  %v967 = vpop.f32.mrb[0].mxu0
  %968 = vmatprep.mubr.f32.mxu0 0.0
  %969 = vmatmul.mubr.f32.gmra.mrb[0].mxu0 %v855
  %v970 = vpop.f32.mrb[0].mxu0
  %v971 = vadd.f32 0.0, %v970
  %v972 = vpop.f32.mrb[0].mxu0
  %973 = vmatprep.mubr.f32.mxu0 0.0
  %974 = vmatmul.mubr.f32.gmra.mrb[0].mxu0 %v858
  %v975 = vpop.f32.mrb[0].mxu0
  %v976 = vadd.f32 0.0, %v975
  %v977 = vpop.f32.mrb[0].mxu0
  %978 = vmatprep.mubr.f32.mxu0 0.0
  %979 = vmatmul.mubr.f32.gmra.mrb[0].mxu0 %v861
  %v980 = vpop.f32.mrb[0].mxu0
  %v981 = vadd.f32 0.0, %v980
  %v982 = vpop.f32.mrb[0].mxu0
  %983 = vmatprep.mubr.f32.mxu0 0.0
  %984 = vmatmul.mubr.f32.gmra.mrb[0].mxu0 %v864
  %v985 = vpop.f32.mrb[0].mxu0
  %v986 = vadd.f32 0.0, %v985
  %v987 = vpop.f32.mrb[0].mxu0
  %988 = vmatprep.mubr.f32.mxu0 0.0
  %989 = vmatmul.mubr.f32.gmra.mrb[0].mxu0 %v867
  %v990 = vpop.f32.mrb[0].mxu0
  %v991 = vadd.f32 0.0, %v990
  %v992 = vpop.f32.mrb[0].mxu0
  %993 = vmatprep.mubr.f32.mxu0 0.0
  %994 = vmatmul.mubr.f32.gmra.mrb[0].mxu0 %v870
  %v995 = vpop.f32.mrb[0].mxu0
  %v996 = vadd.f32 0.0, %v995
  %v997 = vpop.f32.mrb[0].mxu0
  %998 = vmatprep.mubr.f32.mxu0 0.0
  %999 = vmatmul.mubr.f32.gmra.mrb[0].mxu0 %v873
  %v1000 = vpop.f32.mrb[0].mxu0
  %v1001 = vadd.f32 0.0, %v1000
  %v1002 = vpop.f32.mrb[0].mxu0
  %1003 = vmatprep.mubr.f32.mxu0 0.0
  %1004 = vmatmul.mubr.f32.gmra.mrb[0].mxu0 %v876
  %v1005 = vpop.f32.mrb[0].mxu0
  %v1006 = vadd.f32 0.0, %v1005
  %v1007 = vpop.f32.mrb[0].mxu0
  %1008 = vmatprep.mubr.f32.mxu0 0.0
  %1009 = vmatmul.mubr.f32.gmra.mrb[0].mxu0 %v879
  %v1010 = vpop.f32.mrb[0].mxu0
  %v1011 = vadd.f32 0.0, %v1010
  %v1012 = vpop.f32.mrb[0].mxu0
  %1013 = vmatprep.mubr.f32.mxu0 0.0
  %1014 = vmatmul.mubr.f32.gmra.mrb[0].mxu0 %v882
  %v1015 = vpop.f32.mrb[0].mxu0
  %v1016 = vadd.f32 0.0, %v1015
  %v1017 = vpop.f32.mrb[0].mxu0
  %1018 = vmatprep.mubr.f32.mxu0 0.0
  %1019 = vmatmul.mubr.f32.gmra.mrb[0].mxu0 %v885
  %v1020 = vpop.f32.mrb[0].mxu0
  %v1021 = vadd.f32 0.0, %v1020
  %v1022 = vpop.f32.mrb[0].mxu0
  %1023 = vmatprep.mubr.f32.mxu0 0.0
  %1024 = vmatmul.mubr.f32.gmra.mrb[0].mxu0 %v888
  %v1025 = vpop.f32.mrb[0].mxu0
  %v1026 = vadd.f32 0.0, %v1025
  %v1027 = vpop.f32.mrb[0].mxu0
  %1028 = vmatprep.mubr.f32.mxu0 0.0
  %1029 = vmatmul.mubr.f32.gmra.mrb[0].mxu0 %v891
  %v1030 = vpop.f32.mrb[0].mxu0
  %v1031 = vadd.f32 0.0, %v1030
  %v1032 = vpop.f32.mrb[0].mxu0
  %1033 = vmatprep.mubr.f32.mxu0 0.0
  %1034 = vmatmul.mubr.f32.gmra.mrb[0].mxu0 %v894
  %v1035 = vpop.f32.mrb[0].mxu0
  %v1036 = vadd.f32 0.0, %v1035
  %v1037 = vpop.f32.mrb[0].mxu0
  %1038 = vmatprep.mubr.f32.mxu0 0.0
  %1039 = vmatmul.mubr.f32.gmra.mrb[0].mxu0 %v897
  %v1040 = vpop.f32.mrb[0].mxu0
  %v1041 = vadd.f32 0.0, %v1040
  %v1042 = vpop.f32.mrb[0].mxu0
  %1043 = vdwg.mxu0
  %v1044 = vmax.f32 %v966, 0.0
  %v1045 = vmax.f32 %v971, 0.0
  %v1046 = vmax.f32 %v976, 0.0
  %v1047 = vmax.f32 %v981, 0.0
  %v1048 = vmax.f32 %v986, 0.0
  %v1049 = vmax.f32 %v991, 0.0
  %v1050 = vmax.f32 %v996, 0.0
  %v1051 = vmax.f32 %v1001, 0.0
  %v1052 = vmax.f32 %v1006, 0.0
  %v1053 = vmax.f32 %v1011, 0.0
  %v1054 = vmax.f32 %v1016, 0.0
  %v1055 = vmax.f32 %v1021, 0.0
  %v1056 = vmax.f32 %v1026, 0.0
  %v1057 = vmax.f32 %v1031, 0.0
  %v1058 = vmax.f32 %v1036, 0.0
  %v1059 = vmax.f32 %v1041, 0.0
  %s1060 = scalar_lea.vmem [#allocation2], 648
  %1061 = vst [vmem:[%s1060 + $0x1] sm:$0xff] %v1044
  %1062 = vst [vmem:[%s1060 + $0x9] sm:$0xff] %v1045
  %1063 = vst [vmem:[%s1060 + $0x19] sm:$0xff] %v1046
  %1064 = vst [vmem:[%s1060 + $0x21] sm:$0xff] %v1047
  %1065 = vst [vmem:[%s1060 + $0x31] sm:$0xff] %v1048
  %1066 = vst [vmem:[%s1060 + $0x39] sm:$0xff] %v1049
  %1067 = vst [vmem:[%s1060 + $0x49] sm:$0xff] %v1050
  %1068 = vst [vmem:[%s1060 + $0x51] sm:$0xff] %v1051
  %1069 = vst [vmem:[%s1060 + $0x61] sm:$0xff] %v1052
  %1070 = vst [vmem:[%s1060 + $0x69] sm:$0xff] %v1053
  %1071 = vst [vmem:[%s1060 + $0x79] sm:$0xff] %v1054
  %1072 = vst [vmem:[%s1060 + $0x81] sm:$0xff] %v1055
  %1073 = vst [vmem:[%s1060 + $0x91] sm:$0xff] %v1056
  %1074 = vst [vmem:[%s1060 + $0x99] sm:$0xff] %v1057
  %1075 = vst [vmem:[%s1060 + $0xa9] sm:$0xff] %v1058
  %1076 = vst [vmem:[%s1060 + $0xb1] sm:$0xff] %v1059
  %v1077 = vld [vmem:[#allocation2] sm:$0xff]
  %v1078 = vld [vmem:[#allocation2 + $0x8] sm:$0xff]
  %v1079 = vld [vmem:[#allocation2 + $0x18] sm:$0xff]
  %v1080 = vld [vmem:[#allocation2 + $0x20] sm:$0xff]
  %v1081 = vld [vmem:[#allocation2 + $0x30] sm:$0xff]
  %v1082 = vld [vmem:[#allocation2 + $0x38] sm:$0xff]
  %v1083 = vld [vmem:[#allocation2 + $0x48] sm:$0xff]
  %v1084 = vld [vmem:[#allocation2 + $0x50] sm:$0xff]
  %v1085 = vld [vmem:[#allocation2 + $0x60] sm:$0xff]
  %v1086 = vld [vmem:[#allocation2 + $0x68] sm:$0xff]
  %v1087 = vld [vmem:[#allocation2 + $0x78] sm:$0xff]
  %v1088 = vld [vmem:[#allocation2 + $0x80] sm:$0xff]
  %v1089 = vld [vmem:[#allocation2 + $0x90] sm:$0xff]
  %v1090 = vld [vmem:[#allocation2 + $0x98] sm:$0xff]
  %v1091 = vld [vmem:[#allocation2 + $0xa8] sm:$0xff]
  %v1092 = vld [vmem:[#allocation2 + $0xb0] sm:$0xff]
  %v1093 = vld [vmem:[%s2] sm:$0xff]
  %v1094 = vld [vmem:[%s2 + $0x8] sm:$0xff]
  %v1095 = vld [vmem:[%s2 + $0x10] sm:$0xff]
  %v1096 = vld [vmem:[%s2 + $0x18] sm:$0xff]
  %v1097 = vld [vmem:[%s2 + $0x20] sm:$0xff]
  %v1098 = vld [vmem:[%s2 + $0x28] sm:$0xff]
  %v1099 = vld [vmem:[%s2 + $0x30] sm:$0xff]
  %v1100 = vld [vmem:[%s2 + $0x38] sm:$0xff]
  %v1101 = vld [vmem:[%s2 + $0x40] sm:$0xff]
  %v1102 = vld [vmem:[%s2 + $0x48] sm:$0xff]
  %v1103 = vld [vmem:[%s2 + $0x50] sm:$0xff]
  %v1104 = vld [vmem:[%s2 + $0x58] sm:$0xff]
  %v1105 = vld [vmem:[%s2 + $0x60] sm:$0xff]
  %v1106 = vld [vmem:[%s2 + $0x68] sm:$0xff]
  %v1107 = vld [vmem:[%s2 + $0x70] sm:$0xff]
  %v1108 = vld [vmem:[%s2 + $0x78] sm:$0xff]
  %v1109 = vld [vmem:[#allocation2 + $0x1] sm:$0xff]
  %v1110 = vld [vmem:[#allocation2 + $0x9] sm:$0xff]
  %v1111 = vld [vmem:[#allocation2 + $0x19] sm:$0xff]
  %v1112 = vld [vmem:[#allocation2 + $0x21] sm:$0xff]
  %v1113 = vld [vmem:[#allocation2 + $0x31] sm:$0xff]
  %v1114 = vld [vmem:[#allocation2 + $0x39] sm:$0xff]
  %v1115 = vld [vmem:[#allocation2 + $0x49] sm:$0xff]
  %v1116 = vld [vmem:[#allocation2 + $0x51] sm:$0xff]
  %v1117 = vld [vmem:[#allocation2 + $0x61] sm:$0xff]
  %v1118 = vld [vmem:[#allocation2 + $0x69] sm:$0xff]
  %v1119 = vld [vmem:[#allocation2 + $0x79] sm:$0xff]
  %v1120 = vld [vmem:[#allocation2 + $0x81] sm:$0xff]
  %v1121 = vld [vmem:[#allocation2 + $0x91] sm:$0xff]
  %v1122 = vld [vmem:[#allocation2 + $0x99] sm:$0xff]
  %v1123 = vld [vmem:[#allocation2 + $0xa9] sm:$0xff]
  %v1124 = vld [vmem:[#allocation2 + $0xb1] sm:$0xff]
  %s1125 = scalar_lea.vmem %s2, 128
  %v1126 = vld [vmem:[%s1125] sm:$0xff]
  %v1127 = vld [vmem:[%s1125 + $0x8] sm:$0xff]
  %v1128 = vld [vmem:[%s1125 + $0x10] sm:$0xff]
  %v1129 = vld [vmem:[%s1125 + $0x18] sm:$0xff]
  %v1130 = vld [vmem:[%s1125 + $0x20] sm:$0xff]
  %v1131 = vld [vmem:[%s1125 + $0x28] sm:$0xff]
  %v1132 = vld [vmem:[%s1125 + $0x30] sm:$0xff]
  %v1133 = vld [vmem:[%s1125 + $0x38] sm:$0xff]
  %v1134 = vld [vmem:[%s1125 + $0x40] sm:$0xff]
  %v1135 = vld [vmem:[%s1125 + $0x48] sm:$0xff]
  %v1136 = vld [vmem:[%s1125 + $0x50] sm:$0xff]
  %v1137 = vld [vmem:[%s1125 + $0x58] sm:$0xff]
  %v1138 = vld [vmem:[%s1125 + $0x60] sm:$0xff]
  %v1139 = vld [vmem:[%s1125 + $0x68] sm:$0xff]
  %v1140 = vld [vmem:[%s1125 + $0x70] sm:$0xff]
  %v1141 = vld [vmem:[%s1125 + $0x78] sm:$0xff]
  %1142 = vmatprep.subr.mxu0 0.0
  %1143 = vmatpush1.msra.mxu0 %v1126
  %1144 = vmatprep.subr.mxu0 0.0
  %1145 = vmatpush1.msra.mxu0 %v1127
  %1146 = vmatprep.subr.mxu0 0.0
  %1147 = vmatpush1.msra.mxu0 %v1128
  %1148 = vmatprep.subr.mxu0 0.0
  %1149 = vmatpush1.msra.mxu0 %v1129
  %1150 = vmatprep.subr.mxu0 0.0
  %1151 = vmatpush1.msra.mxu0 %v1130
  %1152 = vmatprep.subr.mxu0 0.0
  %1153 = vmatpush1.msra.mxu0 %v1131
  %1154 = vmatprep.subr.mxu0 0.0
  %1155 = vmatpush1.msra.mxu0 %v1132
  %1156 = vmatprep.subr.mxu0 0.0
  %1157 = vmatpush1.msra.mxu0 %v1133
  %1158 = vmatprep.subr.mxu0 0.0
  %1159 = vmatpush1.msra.mxu0 %v1134
  %1160 = vmatprep.subr.mxu0 0.0
  %1161 = vmatpush1.msra.mxu0 %v1135
  %1162 = vmatprep.subr.mxu0 0.0
  %1163 = vmatpush1.msra.mxu0 %v1136
  %1164 = vmatprep.subr.mxu0 0.0
  %1165 = vmatpush1.msra.mxu0 %v1137
  %1166 = vmatprep.subr.mxu0 0.0
  %1167 = vmatpush1.msra.mxu0 %v1138
  %1168 = vmatprep.subr.mxu0 0.0
  %1169 = vmatpush1.msra.mxu0 %v1139
  %1170 = vmatprep.subr.mxu0 0.0
  %1171 = vmatpush1.msra.mxu0 %v1140
  %1172 = vmatprep.subr.mxu0 0.0
  %1173 = vmatpush1.msra.mxu0 %v1141
  %1174 = vmatprep.subr.mxu0 0.0
  %1175 = vmatpush1.msra.mxu0 0.0
  %1176 = vmatprep.subr.mxu0 0.0
  %1177 = vmatpush1.msra.mxu0 0.0
  %1178 = vmatprep.subr.mxu0 0.0
  %1179 = vmatpush1.msra.mxu0 0.0
  %1180 = vmatprep.subr.mxu0 0.0
  %1181 = vmatpush1.msra.mxu0 0.0
  %1182 = vmatprep.subr.mxu0 0.0
  %1183 = vmatpush1.msra.mxu0 0.0
  %1184 = vmatprep.subr.mxu0 0.0
  %1185 = vmatpush1.msra.mxu0 0.0
  %1186 = vmatprep.subr.mxu0 0.0
  %1187 = vmatpush1.msra.mxu0 0.0
  %1188 = vmatprep.subr.mxu0 0.0
  %1189 = vmatpush1.msra.mxu0 0.0
  %1190 = vmatprep.subr.mxu0 0.0
  %1191 = vmatpush1.msra.mxu0 0.0
  %1192 = vmatprep.subr.mxu0 0.0
  %1193 = vmatpush1.msra.mxu0 0.0
  %1194 = vmatprep.subr.mxu0 0.0
  %1195 = vmatpush1.msra.mxu0 0.0
  %1196 = vmatprep.subr.mxu0 0.0
  %1197 = vmatpush1.msra.mxu0 0.0
  %1198 = vmatprep.subr.mxu0 0.0
  %1199 = vmatpush1.msra.mxu0 0.0
  %1200 = vmatprep.subr.mxu0 0.0
  %1201 = vmatpush1.msra.mxu0 0.0
  %1202 = vmatprep.subr.mxu0 0.0
  %1203 = vmatpush1.msra.mxu0 0.0
  %1204 = vmatprep.subr.mxu0 0.0
  %1205 = vmatpush1.msra.mxu0 0.0
  %1206 = vmatprep.mubr.f32.mxu0 0.0
  %1207 = vmatmul.mubr.f32.gmra.mrb[0].mxu0 %v1109
  %v1208 = vpop.f32.mrb[0].mxu0
  %v1209 = vadd.f32 0.0, %v1208
  %v1210 = vpop.f32.mrb[0].mxu0
  %1211 = vmatprep.mubr.f32.mxu0 0.0
  %1212 = vmatmul.mubr.f32.gmra.mrb[0].mxu0 %v1110
  %v1213 = vpop.f32.mrb[0].mxu0
  %v1214 = vadd.f32 0.0, %v1213
  %v1215 = vpop.f32.mrb[0].mxu0
  %1216 = vmatprep.mubr.f32.mxu0 0.0
  %1217 = vmatmul.mubr.f32.gmra.mrb[0].mxu0 %v1111
  %v1218 = vpop.f32.mrb[0].mxu0
  %v1219 = vadd.f32 0.0, %v1218
  %v1220 = vpop.f32.mrb[0].mxu0
  %1221 = vmatprep.mubr.f32.mxu0 0.0
  %1222 = vmatmul.mubr.f32.gmra.mrb[0].mxu0 %v1112
  %v1223 = vpop.f32.mrb[0].mxu0
  %v1224 = vadd.f32 0.0, %v1223
  %v1225 = vpop.f32.mrb[0].mxu0
  %1226 = vmatprep.mubr.f32.mxu0 0.0
  %1227 = vmatmul.mubr.f32.gmra.mrb[0].mxu0 %v1113
  %v1228 = vpop.f32.mrb[0].mxu0
  %v1229 = vadd.f32 0.0, %v1228
  %v1230 = vpop.f32.mrb[0].mxu0
  %1231 = vmatprep.mubr.f32.mxu0 0.0
  %1232 = vmatmul.mubr.f32.gmra.mrb[0].mxu0 %v1114
  %v1233 = vpop.f32.mrb[0].mxu0
  %v1234 = vadd.f32 0.0, %v1233
  %v1235 = vpop.f32.mrb[0].mxu0
  %1236 = vmatprep.mubr.f32.mxu0 0.0
  %1237 = vmatmul.mubr.f32.gmra.mrb[0].mxu0 %v1115
  %v1238 = vpop.f32.mrb[0].mxu0
  %v1239 = vadd.f32 0.0, %v1238
  %v1240 = vpop.f32.mrb[0].mxu0
  %1241 = vmatprep.mubr.f32.mxu0 0.0
  %1242 = vmatmul.mubr.f32.gmra.mrb[0].mxu0 %v1116
  %v1243 = vpop.f32.mrb[0].mxu0
  %v1244 = vadd.f32 0.0, %v1243
  %v1245 = vpop.f32.mrb[0].mxu0
  %1246 = vmatprep.mubr.f32.mxu0 0.0
  %1247 = vmatmul.mubr.f32.gmra.mrb[0].mxu0 %v1117
  %v1248 = vpop.f32.mrb[0].mxu0
  %v1249 = vadd.f32 0.0, %v1248
  %v1250 = vpop.f32.mrb[0].mxu0
  %1251 = vmatprep.mubr.f32.mxu0 0.0
  %1252 = vmatmul.mubr.f32.gmra.mrb[0].mxu0 %v1118
  %v1253 = vpop.f32.mrb[0].mxu0
  %v1254 = vadd.f32 0.0, %v1253
  %v1255 = vpop.f32.mrb[0].mxu0
  %1256 = vmatprep.mubr.f32.mxu0 0.0
  %1257 = vmatmul.mubr.f32.gmra.mrb[0].mxu0 %v1119
  %v1258 = vpop.f32.mrb[0].mxu0
  %v1259 = vadd.f32 0.0, %v1258
  %v1260 = vpop.f32.mrb[0].mxu0
  %1261 = vmatprep.mubr.f32.mxu0 0.0
  %1262 = vmatmul.mubr.f32.gmra.mrb[0].mxu0 %v1120
  %v1263 = vpop.f32.mrb[0].mxu0
  %v1264 = vadd.f32 0.0, %v1263
  %v1265 = vpop.f32.mrb[0].mxu0
  %1266 = vmatprep.mubr.f32.mxu0 0.0
  %1267 = vmatmul.mubr.f32.gmra.mrb[0].mxu0 %v1121
  %v1268 = vpop.f32.mrb[0].mxu0
  %v1269 = vadd.f32 0.0, %v1268
  %v1270 = vpop.f32.mrb[0].mxu0
  %1271 = vmatprep.mubr.f32.mxu0 0.0
  %1272 = vmatmul.mubr.f32.gmra.mrb[0].mxu0 %v1122
  %v1273 = vpop.f32.mrb[0].mxu0
  %v1274 = vadd.f32 0.0, %v1273
  %v1275 = vpop.f32.mrb[0].mxu0
  %1276 = vmatprep.mubr.f32.mxu0 0.0
  %1277 = vmatmul.mubr.f32.gmra.mrb[0].mxu0 %v1123
  %v1278 = vpop.f32.mrb[0].mxu0
  %v1279 = vadd.f32 0.0, %v1278
  %v1280 = vpop.f32.mrb[0].mxu0
  %1281 = vmatprep.mubr.f32.mxu0 0.0
  %1282 = vmatmul.mubr.f32.gmra.mrb[0].mxu0 %v1124
  %v1283 = vpop.f32.mrb[0].mxu0
  %v1284 = vadd.f32 0.0, %v1283
  %v1285 = vpop.f32.mrb[0].mxu0
  %1286 = vdwg.mxu0
  %1287 = vmatprep.subr.mxu0 0.0
  %1288 = vmatpush1.msra.mxu0 %v1093
  %1289 = vmatprep.subr.mxu0 0.0
  %1290 = vmatpush1.msra.mxu0 %v1094
  %1291 = vmatprep.subr.mxu0 0.0
  %1292 = vmatpush1.msra.mxu0 %v1095
  %1293 = vmatprep.subr.mxu0 0.0
  %1294 = vmatpush1.msra.mxu0 %v1096
  %1295 = vmatprep.subr.mxu0 0.0
  %1296 = vmatpush1.msra.mxu0 %v1097
  %1297 = vmatprep.subr.mxu0 0.0
  %1298 = vmatpush1.msra.mxu0 %v1098
  %1299 = vmatprep.subr.mxu0 0.0
  %1300 = vmatpush1.msra.mxu0 %v1099
  %1301 = vmatprep.subr.mxu0 0.0
  %1302 = vmatpush1.msra.mxu0 %v1100
  %1303 = vmatprep.subr.mxu0 0.0
  %1304 = vmatpush1.msra.mxu0 %v1101
  %1305 = vmatprep.subr.mxu0 0.0
  %1306 = vmatpush1.msra.mxu0 %v1102
  %1307 = vmatprep.subr.mxu0 0.0
  %1308 = vmatpush1.msra.mxu0 %v1103
  %1309 = vmatprep.subr.mxu0 0.0
  %1310 = vmatpush1.msra.mxu0 %v1104
  %1311 = vmatprep.subr.mxu0 0.0
  %1312 = vmatpush1.msra.mxu0 %v1105
  %1313 = vmatprep.subr.mxu0 0.0
  %1314 = vmatpush1.msra.mxu0 %v1106
  %1315 = vmatprep.subr.mxu0 0.0
  %1316 = vmatpush1.msra.mxu0 %v1107
  %1317 = vmatprep.subr.mxu0 0.0
  %1318 = vmatpush1.msra.mxu0 %v1108
  %1319 = vmatprep.subr.mxu0 0.0
  %1320 = vmatpush1.msra.mxu0 0.0
  %1321 = vmatprep.subr.mxu0 0.0
  %1322 = vmatpush1.msra.mxu0 0.0
  %1323 = vmatprep.subr.mxu0 0.0
  %1324 = vmatpush1.msra.mxu0 0.0
  %1325 = vmatprep.subr.mxu0 0.0
  %1326 = vmatpush1.msra.mxu0 0.0
  %1327 = vmatprep.subr.mxu0 0.0
  %1328 = vmatpush1.msra.mxu0 0.0
  %1329 = vmatprep.subr.mxu0 0.0
  %1330 = vmatpush1.msra.mxu0 0.0
  %1331 = vmatprep.subr.mxu0 0.0
  %1332 = vmatpush1.msra.mxu0 0.0
  %1333 = vmatprep.subr.mxu0 0.0
  %1334 = vmatpush1.msra.mxu0 0.0
  %1335 = vmatprep.subr.mxu0 0.0
  %1336 = vmatpush1.msra.mxu0 0.0
  %1337 = vmatprep.subr.mxu0 0.0
  %1338 = vmatpush1.msra.mxu0 0.0
  %1339 = vmatprep.subr.mxu0 0.0
  %1340 = vmatpush1.msra.mxu0 0.0
  %1341 = vmatprep.subr.mxu0 0.0
  %1342 = vmatpush1.msra.mxu0 0.0
  %1343 = vmatprep.subr.mxu0 0.0
  %1344 = vmatpush1.msra.mxu0 0.0
  %1345 = vmatprep.subr.mxu0 0.0
  %1346 = vmatpush1.msra.mxu0 0.0
  %1347 = vmatprep.subr.mxu0 0.0
  %1348 = vmatpush1.msra.mxu0 0.0
  %1349 = vmatprep.subr.mxu0 0.0
  %1350 = vmatpush1.msra.mxu0 0.0
  %1351 = vmatprep.mubr.f32.mxu0 0.0
  %1352 = vmatmul.mubr.f32.gmra.mrb[0].mxu0 %v1077
  %v1353 = vpop.f32.mrb[0].mxu0
  %v1354 = vadd.f32 %v1209, %v1353
  %v1355 = vpop.f32.mrb[0].mxu0
  %1356 = vmatprep.mubr.f32.mxu0 0.0
  %1357 = vmatmul.mubr.f32.gmra.mrb[0].mxu0 %v1078
  %v1358 = vpop.f32.mrb[0].mxu0
  %v1359 = vadd.f32 %v1214, %v1358
  %v1360 = vpop.f32.mrb[0].mxu0
  %1361 = vmatprep.mubr.f32.mxu0 0.0
  %1362 = vmatmul.mubr.f32.gmra.mrb[0].mxu0 %v1079
  %v1363 = vpop.f32.mrb[0].mxu0
  %v1364 = vadd.f32 %v1219, %v1363
  %v1365 = vpop.f32.mrb[0].mxu0
  %1366 = vmatprep.mubr.f32.mxu0 0.0
  %1367 = vmatmul.mubr.f32.gmra.mrb[0].mxu0 %v1080
  %v1368 = vpop.f32.mrb[0].mxu0
  %v1369 = vadd.f32 %v1224, %v1368
  %v1370 = vpop.f32.mrb[0].mxu0
  %1371 = vmatprep.mubr.f32.mxu0 0.0
  %1372 = vmatmul.mubr.f32.gmra.mrb[0].mxu0 %v1081
  %v1373 = vpop.f32.mrb[0].mxu0
  %v1374 = vadd.f32 %v1229, %v1373
  %v1375 = vpop.f32.mrb[0].mxu0
  %1376 = vmatprep.mubr.f32.mxu0 0.0
  %1377 = vmatmul.mubr.f32.gmra.mrb[0].mxu0 %v1082
  %v1378 = vpop.f32.mrb[0].mxu0
  %v1379 = vadd.f32 %v1234, %v1378
  %v1380 = vpop.f32.mrb[0].mxu0
  %1381 = vmatprep.mubr.f32.mxu0 0.0
  %1382 = vmatmul.mubr.f32.gmra.mrb[0].mxu0 %v1083
  %v1383 = vpop.f32.mrb[0].mxu0
  %v1384 = vadd.f32 %v1239, %v1383
  %v1385 = vpop.f32.mrb[0].mxu0
  %1386 = vmatprep.mubr.f32.mxu0 0.0
  %1387 = vmatmul.mubr.f32.gmra.mrb[0].mxu0 %v1084
  %v1388 = vpop.f32.mrb[0].mxu0
  %v1389 = vadd.f32 %v1244, %v1388
  %v1390 = vpop.f32.mrb[0].mxu0
  %1391 = vmatprep.mubr.f32.mxu0 0.0
  %1392 = vmatmul.mubr.f32.gmra.mrb[0].mxu0 %v1085
  %v1393 = vpop.f32.mrb[0].mxu0
  %v1394 = vadd.f32 %v1249, %v1393
  %v1395 = vpop.f32.mrb[0].mxu0
  %1396 = vmatprep.mubr.f32.mxu0 0.0
  %1397 = vmatmul.mubr.f32.gmra.mrb[0].mxu0 %v1086
  %v1398 = vpop.f32.mrb[0].mxu0
  %v1399 = vadd.f32 %v1254, %v1398
  %v1400 = vpop.f32.mrb[0].mxu0
  %1401 = vmatprep.mubr.f32.mxu0 0.0
  %1402 = vmatmul.mubr.f32.gmra.mrb[0].mxu0 %v1087
  %v1403 = vpop.f32.mrb[0].mxu0
  %v1404 = vadd.f32 %v1259, %v1403
  %v1405 = vpop.f32.mrb[0].mxu0
  %1406 = vmatprep.mubr.f32.mxu0 0.0
  %1407 = vmatmul.mubr.f32.gmra.mrb[0].mxu0 %v1088
  %v1408 = vpop.f32.mrb[0].mxu0
  %v1409 = vadd.f32 %v1264, %v1408
  %v1410 = vpop.f32.mrb[0].mxu0
  %1411 = vmatprep.mubr.f32.mxu0 0.0
  %1412 = vmatmul.mubr.f32.gmra.mrb[0].mxu0 %v1089
  %v1413 = vpop.f32.mrb[0].mxu0
  %v1414 = vadd.f32 %v1269, %v1413
  %v1415 = vpop.f32.mrb[0].mxu0
  %1416 = vmatprep.mubr.f32.mxu0 0.0
  %1417 = vmatmul.mubr.f32.gmra.mrb[0].mxu0 %v1090
  %v1418 = vpop.f32.mrb[0].mxu0
  %v1419 = vadd.f32 %v1274, %v1418
  %v1420 = vpop.f32.mrb[0].mxu0
  %1421 = vmatprep.mubr.f32.mxu0 0.0
  %1422 = vmatmul.mubr.f32.gmra.mrb[0].mxu0 %v1091
  %v1423 = vpop.f32.mrb[0].mxu0
  %v1424 = vadd.f32 %v1279, %v1423
  %v1425 = vpop.f32.mrb[0].mxu0
  %1426 = vmatprep.mubr.f32.mxu0 0.0
  %1427 = vmatmul.mubr.f32.gmra.mrb[0].mxu0 %v1092
  %v1428 = vpop.f32.mrb[0].mxu0
  %v1429 = vadd.f32 %v1284, %v1428
  %v1430 = vpop.f32.mrb[0].mxu0
  %1431 = vdwg.mxu0
  %v1432 = vld [vmem:[#allocation2 + $0x2] sm:$0xff]
  %v1433 = vld [vmem:[#allocation2 + $0xa] sm:$0xff]
  %v1434 = vld [vmem:[#allocation2 + $0x1a] sm:$0xff]
  %v1435 = vld [vmem:[#allocation2 + $0x22] sm:$0xff]
  %v1436 = vld [vmem:[#allocation2 + $0x32] sm:$0xff]
  %v1437 = vld [vmem:[#allocation2 + $0x3a] sm:$0xff]
  %v1438 = vld [vmem:[#allocation2 + $0x4a] sm:$0xff]
  %v1439 = vld [vmem:[#allocation2 + $0x52] sm:$0xff]
  %v1440 = vld [vmem:[#allocation2 + $0x62] sm:$0xff]
  %v1441 = vld [vmem:[#allocation2 + $0x6a] sm:$0xff]
  %v1442 = vld [vmem:[#allocation2 + $0x7a] sm:$0xff]
  %v1443 = vld [vmem:[#allocation2 + $0x82] sm:$0xff]
  %v1444 = vld [vmem:[#allocation2 + $0x92] sm:$0xff]
  %v1445 = vld [vmem:[#allocation2 + $0x9a] sm:$0xff]
  %v1446 = vld [vmem:[#allocation2 + $0xaa] sm:$0xff]
  %v1447 = vld [vmem:[#allocation2 + $0xb2] sm:$0xff]
  %s1448 = scalar_lea.vmem %s2, 256
  %v1449 = vld [vmem:[%s1448] sm:$0xff]
  %v1450 = vld [vmem:[%s1448 + $0x8] sm:$0xff]
  %v1451 = vld [vmem:[%s1448 + $0x10] sm:$0xff]
  %v1452 = vld [vmem:[%s1448 + $0x18] sm:$0xff]
  %v1453 = vld [vmem:[%s1448 + $0x20] sm:$0xff]
  %v1454 = vld [vmem:[%s1448 + $0x28] sm:$0xff]
  %v1455 = vld [vmem:[%s1448 + $0x30] sm:$0xff]
  %v1456 = vld [vmem:[%s1448 + $0x38] sm:$0xff]
  %v1457 = vld [vmem:[%s1448 + $0x40] sm:$0xff]
  %v1458 = vld [vmem:[%s1448 + $0x48] sm:$0xff]
  %v1459 = vld [vmem:[%s1448 + $0x50] sm:$0xff]
  %v1460 = vld [vmem:[%s1448 + $0x58] sm:$0xff]
  %v1461 = vld [vmem:[%s1448 + $0x60] sm:$0xff]
  %v1462 = vld [vmem:[%s1448 + $0x68] sm:$0xff]
  %v1463 = vld [vmem:[%s1448 + $0x70] sm:$0xff]
  %v1464 = vld [vmem:[%s1448 + $0x78] sm:$0xff]
  %1465 = vmatprep.subr.mxu0 0.0
  %1466 = vmatpush1.msra.mxu0 %v1449
  %1467 = vmatprep.subr.mxu0 0.0
  %1468 = vmatpush1.msra.mxu0 %v1450
  %1469 = vmatprep.subr.mxu0 0.0
  %1470 = vmatpush1.msra.mxu0 %v1451
  %1471 = vmatprep.subr.mxu0 0.0
  %1472 = vmatpush1.msra.mxu0 %v1452
  %1473 = vmatprep.subr.mxu0 0.0
  %1474 = vmatpush1.msra.mxu0 %v1453
  %1475 = vmatprep.subr.mxu0 0.0
  %1476 = vmatpush1.msra.mxu0 %v1454
  %1477 = vmatprep.subr.mxu0 0.0
  %1478 = vmatpush1.msra.mxu0 %v1455
  %1479 = vmatprep.subr.mxu0 0.0
  %1480 = vmatpush1.msra.mxu0 %v1456
  %1481 = vmatprep.subr.mxu0 0.0
  %1482 = vmatpush1.msra.mxu0 %v1457
  %1483 = vmatprep.subr.mxu0 0.0
  %1484 = vmatpush1.msra.mxu0 %v1458
  %1485 = vmatprep.subr.mxu0 0.0
  %1486 = vmatpush1.msra.mxu0 %v1459
  %1487 = vmatprep.subr.mxu0 0.0
  %1488 = vmatpush1.msra.mxu0 %v1460
  %1489 = vmatprep.subr.mxu0 0.0
  %1490 = vmatpush1.msra.mxu0 %v1461
  %1491 = vmatprep.subr.mxu0 0.0
  %1492 = vmatpush1.msra.mxu0 %v1462
  %1493 = vmatprep.subr.mxu0 0.0
  %1494 = vmatpush1.msra.mxu0 %v1463
  %1495 = vmatprep.subr.mxu0 0.0
  %1496 = vmatpush1.msra.mxu0 %v1464
  %1497 = vmatprep.subr.mxu0 0.0
  %1498 = vmatpush1.msra.mxu0 0.0
  %1499 = vmatprep.subr.mxu0 0.0
  %1500 = vmatpush1.msra.mxu0 0.0
  %1501 = vmatprep.subr.mxu0 0.0
  %1502 = vmatpush1.msra.mxu0 0.0
  %1503 = vmatprep.subr.mxu0 0.0
  %1504 = vmatpush1.msra.mxu0 0.0
  %1505 = vmatprep.subr.mxu0 0.0
  %1506 = vmatpush1.msra.mxu0 0.0
  %1507 = vmatprep.subr.mxu0 0.0
  %1508 = vmatpush1.msra.mxu0 0.0
  %1509 = vmatprep.subr.mxu0 0.0
  %1510 = vmatpush1.msra.mxu0 0.0
  %1511 = vmatprep.subr.mxu0 0.0
  %1512 = vmatpush1.msra.mxu0 0.0
  %1513 = vmatprep.subr.mxu0 0.0
  %1514 = vmatpush1.msra.mxu0 0.0
  %1515 = vmatprep.subr.mxu0 0.0
  %1516 = vmatpush1.msra.mxu0 0.0
  %1517 = vmatprep.subr.mxu0 0.0
  %1518 = vmatpush1.msra.mxu0 0.0
  %1519 = vmatprep.subr.mxu0 0.0
  %1520 = vmatpush1.msra.mxu0 0.0
  %1521 = vmatprep.subr.mxu0 0.0
  %1522 = vmatpush1.msra.mxu0 0.0
  %1523 = vmatprep.subr.mxu0 0.0
  %1524 = vmatpush1.msra.mxu0 0.0
  %1525 = vmatprep.subr.mxu0 0.0
  %1526 = vmatpush1.msra.mxu0 0.0
  %1527 = vmatprep.subr.mxu0 0.0
  %1528 = vmatpush1.msra.mxu0 0.0
  %1529 = vmatprep.mubr.f32.mxu0 0.0
  %1530 = vmatmul.mubr.f32.gmra.mrb[0].mxu0 %v1432
  %v1531 = vpop.f32.mrb[0].mxu0
  %v1532 = vadd.f32 0.0, %v1531
  %v1533 = vpop.f32.mrb[0].mxu0
  %1534 = vmatprep.mubr.f32.mxu0 0.0
  %1535 = vmatmul.mubr.f32.gmra.mrb[0].mxu0 %v1433
  %v1536 = vpop.f32.mrb[0].mxu0
  %v1537 = vadd.f32 0.0, %v1536
  %v1538 = vpop.f32.mrb[0].mxu0
  %1539 = vmatprep.mubr.f32.mxu0 0.0
  %1540 = vmatmul.mubr.f32.gmra.mrb[0].mxu0 %v1434
  %v1541 = vpop.f32.mrb[0].mxu0
  %v1542 = vadd.f32 0.0, %v1541
  %v1543 = vpop.f32.mrb[0].mxu0
  %1544 = vmatprep.mubr.f32.mxu0 0.0
  %1545 = vmatmul.mubr.f32.gmra.mrb[0].mxu0 %v1435
  %v1546 = vpop.f32.mrb[0].mxu0
  %v1547 = vadd.f32 0.0, %v1546
  %v1548 = vpop.f32.mrb[0].mxu0
  %1549 = vmatprep.mubr.f32.mxu0 0.0
  %1550 = vmatmul.mubr.f32.gmra.mrb[0].mxu0 %v1436
  %v1551 = vpop.f32.mrb[0].mxu0
  %v1552 = vadd.f32 0.0, %v1551
  %v1553 = vpop.f32.mrb[0].mxu0
  %1554 = vmatprep.mubr.f32.mxu0 0.0
  %1555 = vmatmul.mubr.f32.gmra.mrb[0].mxu0 %v1437
  %v1556 = vpop.f32.mrb[0].mxu0
  %v1557 = vadd.f32 0.0, %v1556
  %v1558 = vpop.f32.mrb[0].mxu0
  %1559 = vmatprep.mubr.f32.mxu0 0.0
  %1560 = vmatmul.mubr.f32.gmra.mrb[0].mxu0 %v1438
  %v1561 = vpop.f32.mrb[0].mxu0
  %v1562 = vadd.f32 0.0, %v1561
  %v1563 = vpop.f32.mrb[0].mxu0
  %1564 = vmatprep.mubr.f32.mxu0 0.0
  %1565 = vmatmul.mubr.f32.gmra.mrb[0].mxu0 %v1439
  %v1566 = vpop.f32.mrb[0].mxu0
  %v1567 = vadd.f32 0.0, %v1566
  %v1568 = vpop.f32.mrb[0].mxu0
  %1569 = vmatprep.mubr.f32.mxu0 0.0
  %1570 = vmatmul.mubr.f32.gmra.mrb[0].mxu0 %v1440
  %v1571 = vpop.f32.mrb[0].mxu0
  %v1572 = vadd.f32 0.0, %v1571
  %v1573 = vpop.f32.mrb[0].mxu0
  %1574 = vmatprep.mubr.f32.mxu0 0.0
  %1575 = vmatmul.mubr.f32.gmra.mrb[0].mxu0 %v1441
  %v1576 = vpop.f32.mrb[0].mxu0
  %v1577 = vadd.f32 0.0, %v1576
  %v1578 = vpop.f32.mrb[0].mxu0
  %1579 = vmatprep.mubr.f32.mxu0 0.0
  %1580 = vmatmul.mubr.f32.gmra.mrb[0].mxu0 %v1442
  %v1581 = vpop.f32.mrb[0].mxu0
  %v1582 = vadd.f32 0.0, %v1581
  %v1583 = vpop.f32.mrb[0].mxu0
  %1584 = vmatprep.mubr.f32.mxu0 0.0
  %1585 = vmatmul.mubr.f32.gmra.mrb[0].mxu0 %v1443
  %v1586 = vpop.f32.mrb[0].mxu0
  %v1587 = vadd.f32 0.0, %v1586
  %v1588 = vpop.f32.mrb[0].mxu0
  %1589 = vmatprep.mubr.f32.mxu0 0.0
  %1590 = vmatmul.mubr.f32.gmra.mrb[0].mxu0 %v1444
  %v1591 = vpop.f32.mrb[0].mxu0
  %v1592 = vadd.f32 0.0, %v1591
  %v1593 = vpop.f32.mrb[0].mxu0
  %1594 = vmatprep.mubr.f32.mxu0 0.0
  %1595 = vmatmul.mubr.f32.gmra.mrb[0].mxu0 %v1445
  %v1596 = vpop.f32.mrb[0].mxu0
  %v1597 = vadd.f32 0.0, %v1596
  %v1598 = vpop.f32.mrb[0].mxu0
  %1599 = vmatprep.mubr.f32.mxu0 0.0
  %1600 = vmatmul.mubr.f32.gmra.mrb[0].mxu0 %v1446
  %v1601 = vpop.f32.mrb[0].mxu0
  %v1602 = vadd.f32 0.0, %v1601
  %v1603 = vpop.f32.mrb[0].mxu0
  %1604 = vmatprep.mubr.f32.mxu0 0.0
  %1605 = vmatmul.mubr.f32.gmra.mrb[0].mxu0 %v1447
  %v1606 = vpop.f32.mrb[0].mxu0
  %v1607 = vadd.f32 0.0, %v1606
  %v1608 = vpop.f32.mrb[0].mxu0
  %1609 = vdwg.mxu0
  %v1610 = vadd.f32 %v1354, %v1532
  %v1611 = vadd.f32 %v1359, %v1537
  %v1612 = vadd.f32 %v1364, %v1542
  %v1613 = vadd.f32 %v1369, %v1547
  %v1614 = vadd.f32 %v1374, %v1552
  %v1615 = vadd.f32 %v1379, %v1557
  %v1616 = vadd.f32 %v1384, %v1562
  %v1617 = vadd.f32 %v1389, %v1567
  %v1618 = vadd.f32 %v1394, %v1572
  %v1619 = vadd.f32 %v1399, %v1577
  %v1620 = vadd.f32 %v1404, %v1582
  %v1621 = vadd.f32 %v1409, %v1587
  %v1622 = vadd.f32 %v1414, %v1592
  %v1623 = vadd.f32 %v1419, %v1597
  %v1624 = vadd.f32 %v1424, %v1602
  %v1625 = vadd.f32 %v1429, %v1607
  %v1626 = vld [vmem:[%s334] sm:$0xff]
  %v1627 = vld [vmem:[%s334 + $0x8] sm:$0xff]
  %v1628 = vld [vmem:[%s334 + $0x18] sm:$0xff]
  %v1629 = vld [vmem:[%s334 + $0x20] sm:$0xff]
  %v1630 = vld [vmem:[%s334 + $0x30] sm:$0xff]
  %v1631 = vld [vmem:[%s334 + $0x38] sm:$0xff]
  %v1632 = vld [vmem:[%s334 + $0x48] sm:$0xff]
  %v1633 = vld [vmem:[%s334 + $0x50] sm:$0xff]
  %v1634 = vld [vmem:[%s334 + $0x60] sm:$0xff]
  %v1635 = vld [vmem:[%s334 + $0x68] sm:$0xff]
  %v1636 = vld [vmem:[%s334 + $0x78] sm:$0xff]
  %v1637 = vld [vmem:[%s334 + $0x80] sm:$0xff]
  %v1638 = vld [vmem:[%s334 + $0x90] sm:$0xff]
  %v1639 = vld [vmem:[%s334 + $0x98] sm:$0xff]
  %v1640 = vld [vmem:[%s334 + $0xa8] sm:$0xff]
  %v1641 = vld [vmem:[%s334 + $0xb0] sm:$0xff]
  %s1642 = scalar_lea.vmem %s2, 384
  %v1643 = vld [vmem:[%s1642] sm:$0xff]
  %v1644 = vld [vmem:[%s1642 + $0x8] sm:$0xff]
  %v1645 = vld [vmem:[%s1642 + $0x10] sm:$0xff]
  %v1646 = vld [vmem:[%s1642 + $0x18] sm:$0xff]
  %v1647 = vld [vmem:[%s1642 + $0x20] sm:$0xff]
  %v1648 = vld [vmem:[%s1642 + $0x28] sm:$0xff]
  %v1649 = vld [vmem:[%s1642 + $0x30] sm:$0xff]
  %v1650 = vld [vmem:[%s1642 + $0x38] sm:$0xff]
  %v1651 = vld [vmem:[%s1642 + $0x40] sm:$0xff]
  %v1652 = vld [vmem:[%s1642 + $0x48] sm:$0xff]
  %v1653 = vld [vmem:[%s1642 + $0x50] sm:$0xff]
  %v1654 = vld [vmem:[%s1642 + $0x58] sm:$0xff]
  %v1655 = vld [vmem:[%s1642 + $0x60] sm:$0xff]
  %v1656 = vld [vmem:[%s1642 + $0x68] sm:$0xff]
  %v1657 = vld [vmem:[%s1642 + $0x70] sm:$0xff]
  %v1658 = vld [vmem:[%s1642 + $0x78] sm:$0xff]
  %1659 = vmatprep.subr.mxu0 0.0
  %1660 = vmatpush1.msra.mxu0 %v1643
  %1661 = vmatprep.subr.mxu0 0.0
  %1662 = vmatpush1.msra.mxu0 %v1644
  %1663 = vmatprep.subr.mxu0 0.0
  %1664 = vmatpush1.msra.mxu0 %v1645
  %1665 = vmatprep.subr.mxu0 0.0
  %1666 = vmatpush1.msra.mxu0 %v1646
  %1667 = vmatprep.subr.mxu0 0.0
  %1668 = vmatpush1.msra.mxu0 %v1647
  %1669 = vmatprep.subr.mxu0 0.0
  %1670 = vmatpush1.msra.mxu0 %v1648
  %1671 = vmatprep.subr.mxu0 0.0
  %1672 = vmatpush1.msra.mxu0 %v1649
  %1673 = vmatprep.subr.mxu0 0.0
  %1674 = vmatpush1.msra.mxu0 %v1650
  %1675 = vmatprep.subr.mxu0 0.0
  %1676 = vmatpush1.msra.mxu0 %v1651
  %1677 = vmatprep.subr.mxu0 0.0
  %1678 = vmatpush1.msra.mxu0 %v1652
  %1679 = vmatprep.subr.mxu0 0.0
  %1680 = vmatpush1.msra.mxu0 %v1653
  %1681 = vmatprep.subr.mxu0 0.0
  %1682 = vmatpush1.msra.mxu0 %v1654
  %1683 = vmatprep.subr.mxu0 0.0
  %1684 = vmatpush1.msra.mxu0 %v1655
  %1685 = vmatprep.subr.mxu0 0.0
  %1686 = vmatpush1.msra.mxu0 %v1656
  %1687 = vmatprep.subr.mxu0 0.0
  %1688 = vmatpush1.msra.mxu0 %v1657
  %1689 = vmatprep.subr.mxu0 0.0
  %1690 = vmatpush1.msra.mxu0 %v1658
  %1691 = vmatprep.subr.mxu0 0.0
  %1692 = vmatpush1.msra.mxu0 0.0
  %1693 = vmatprep.subr.mxu0 0.0
  %1694 = vmatpush1.msra.mxu0 0.0
  %1695 = vmatprep.subr.mxu0 0.0
  %1696 = vmatpush1.msra.mxu0 0.0
  %1697 = vmatprep.subr.mxu0 0.0
  %1698 = vmatpush1.msra.mxu0 0.0
  %1699 = vmatprep.subr.mxu0 0.0
  %1700 = vmatpush1.msra.mxu0 0.0
  %1701 = vmatprep.subr.mxu0 0.0
  %1702 = vmatpush1.msra.mxu0 0.0
  %1703 = vmatprep.subr.mxu0 0.0
  %1704 = vmatpush1.msra.mxu0 0.0
  %1705 = vmatprep.subr.mxu0 0.0
  %1706 = vmatpush1.msra.mxu0 0.0
  %1707 = vmatprep.subr.mxu0 0.0
  %1708 = vmatpush1.msra.mxu0 0.0
  %1709 = vmatprep.subr.mxu0 0.0
  %1710 = vmatpush1.msra.mxu0 0.0
  %1711 = vmatprep.subr.mxu0 0.0
  %1712 = vmatpush1.msra.mxu0 0.0
  %1713 = vmatprep.subr.mxu0 0.0
  %1714 = vmatpush1.msra.mxu0 0.0
  %1715 = vmatprep.subr.mxu0 0.0
  %1716 = vmatpush1.msra.mxu0 0.0
  %1717 = vmatprep.subr.mxu0 0.0
  %1718 = vmatpush1.msra.mxu0 0.0
  %1719 = vmatprep.subr.mxu0 0.0
  %1720 = vmatpush1.msra.mxu0 0.0
  %1721 = vmatprep.subr.mxu0 0.0
  %1722 = vmatpush1.msra.mxu0 0.0
  %1723 = vmatprep.mubr.f32.mxu0 0.0
  %1724 = vmatmul.mubr.f32.gmra.mrb[0].mxu0 %v1626
  %v1725 = vpop.f32.mrb[0].mxu0
  %v1726 = vadd.f32 0.0, %v1725
  %v1727 = vpop.f32.mrb[0].mxu0
  %1728 = vmatprep.mubr.f32.mxu0 0.0
  %1729 = vmatmul.mubr.f32.gmra.mrb[0].mxu0 %v1627
  %v1730 = vpop.f32.mrb[0].mxu0
  %v1731 = vadd.f32 0.0, %v1730
  %v1732 = vpop.f32.mrb[0].mxu0
  %1733 = vmatprep.mubr.f32.mxu0 0.0
  %1734 = vmatmul.mubr.f32.gmra.mrb[0].mxu0 %v1628
  %v1735 = vpop.f32.mrb[0].mxu0
  %v1736 = vadd.f32 0.0, %v1735
  %v1737 = vpop.f32.mrb[0].mxu0
  %1738 = vmatprep.mubr.f32.mxu0 0.0
  %1739 = vmatmul.mubr.f32.gmra.mrb[0].mxu0 %v1629
  %v1740 = vpop.f32.mrb[0].mxu0
  %v1741 = vadd.f32 0.0, %v1740
  %v1742 = vpop.f32.mrb[0].mxu0
  %1743 = vmatprep.mubr.f32.mxu0 0.0
  %1744 = vmatmul.mubr.f32.gmra.mrb[0].mxu0 %v1630
  %v1745 = vpop.f32.mrb[0].mxu0
  %v1746 = vadd.f32 0.0, %v1745
  %v1747 = vpop.f32.mrb[0].mxu0
  %1748 = vmatprep.mubr.f32.mxu0 0.0
  %1749 = vmatmul.mubr.f32.gmra.mrb[0].mxu0 %v1631
  %v1750 = vpop.f32.mrb[0].mxu0
  %v1751 = vadd.f32 0.0, %v1750
  %v1752 = vpop.f32.mrb[0].mxu0
  %1753 = vmatprep.mubr.f32.mxu0 0.0
  %1754 = vmatmul.mubr.f32.gmra.mrb[0].mxu0 %v1632
  %v1755 = vpop.f32.mrb[0].mxu0
  %v1756 = vadd.f32 0.0, %v1755
  %v1757 = vpop.f32.mrb[0].mxu0
  %1758 = vmatprep.mubr.f32.mxu0 0.0
  %1759 = vmatmul.mubr.f32.gmra.mrb[0].mxu0 %v1633
  %v1760 = vpop.f32.mrb[0].mxu0
  %v1761 = vadd.f32 0.0, %v1760
  %v1762 = vpop.f32.mrb[0].mxu0
  %1763 = vmatprep.mubr.f32.mxu0 0.0
  %1764 = vmatmul.mubr.f32.gmra.mrb[0].mxu0 %v1634
  %v1765 = vpop.f32.mrb[0].mxu0
  %v1766 = vadd.f32 0.0, %v1765
  %v1767 = vpop.f32.mrb[0].mxu0
  %1768 = vmatprep.mubr.f32.mxu0 0.0
  %1769 = vmatmul.mubr.f32.gmra.mrb[0].mxu0 %v1635
  %v1770 = vpop.f32.mrb[0].mxu0
  %v1771 = vadd.f32 0.0, %v1770
  %v1772 = vpop.f32.mrb[0].mxu0
  %1773 = vmatprep.mubr.f32.mxu0 0.0
  %1774 = vmatmul.mubr.f32.gmra.mrb[0].mxu0 %v1636
  %v1775 = vpop.f32.mrb[0].mxu0
  %v1776 = vadd.f32 0.0, %v1775
  %v1777 = vpop.f32.mrb[0].mxu0
  %1778 = vmatprep.mubr.f32.mxu0 0.0
  %1779 = vmatmul.mubr.f32.gmra.mrb[0].mxu0 %v1637
  %v1780 = vpop.f32.mrb[0].mxu0
  %v1781 = vadd.f32 0.0, %v1780
  %v1782 = vpop.f32.mrb[0].mxu0
  %1783 = vmatprep.mubr.f32.mxu0 0.0
  %1784 = vmatmul.mubr.f32.gmra.mrb[0].mxu0 %v1638
  %v1785 = vpop.f32.mrb[0].mxu0
  %v1786 = vadd.f32 0.0, %v1785
  %v1787 = vpop.f32.mrb[0].mxu0
  %1788 = vmatprep.mubr.f32.mxu0 0.0
  %1789 = vmatmul.mubr.f32.gmra.mrb[0].mxu0 %v1639
  %v1790 = vpop.f32.mrb[0].mxu0
  %v1791 = vadd.f32 0.0, %v1790
  %v1792 = vpop.f32.mrb[0].mxu0
  %1793 = vmatprep.mubr.f32.mxu0 0.0
  %1794 = vmatmul.mubr.f32.gmra.mrb[0].mxu0 %v1640
  %v1795 = vpop.f32.mrb[0].mxu0
  %v1796 = vadd.f32 0.0, %v1795
  %v1797 = vpop.f32.mrb[0].mxu0
  %1798 = vmatprep.mubr.f32.mxu0 0.0
  %1799 = vmatmul.mubr.f32.gmra.mrb[0].mxu0 %v1641
  %v1800 = vpop.f32.mrb[0].mxu0
  %v1801 = vadd.f32 0.0, %v1800
  %v1802 = vpop.f32.mrb[0].mxu0
  %1803 = vdwg.mxu0
  %v1804 = vadd.f32 %v1610, %v1726
  %v1805 = vadd.f32 %v1611, %v1731
  %v1806 = vadd.f32 %v1612, %v1736
  %v1807 = vadd.f32 %v1613, %v1741
  %v1808 = vadd.f32 %v1614, %v1746
  %v1809 = vadd.f32 %v1615, %v1751
  %v1810 = vadd.f32 %v1616, %v1756
  %v1811 = vadd.f32 %v1617, %v1761
  %v1812 = vadd.f32 %v1618, %v1766
  %v1813 = vadd.f32 %v1619, %v1771
  %v1814 = vadd.f32 %v1620, %v1776
  %v1815 = vadd.f32 %v1621, %v1781
  %v1816 = vadd.f32 %v1622, %v1786
  %v1817 = vadd.f32 %v1623, %v1791
  %v1818 = vadd.f32 %v1624, %v1796
  %v1819 = vadd.f32 %v1625, %v1801
  %v1820 = vld [vmem:[%s334 + $0x1] sm:$0xff]
  %v1821 = vld [vmem:[%s334 + $0x9] sm:$0xff]
  %v1822 = vld [vmem:[%s334 + $0x19] sm:$0xff]
  %v1823 = vld [vmem:[%s334 + $0x21] sm:$0xff]
  %v1824 = vld [vmem:[%s334 + $0x31] sm:$0xff]
  %v1825 = vld [vmem:[%s334 + $0x39] sm:$0xff]
  %v1826 = vld [vmem:[%s334 + $0x49] sm:$0xff]
  %v1827 = vld [vmem:[%s334 + $0x51] sm:$0xff]
  %v1828 = vld [vmem:[%s334 + $0x61] sm:$0xff]
  %v1829 = vld [vmem:[%s334 + $0x69] sm:$0xff]
  %v1830 = vld [vmem:[%s334 + $0x79] sm:$0xff]
  %v1831 = vld [vmem:[%s334 + $0x81] sm:$0xff]
  %v1832 = vld [vmem:[%s334 + $0x91] sm:$0xff]
  %v1833 = vld [vmem:[%s334 + $0x99] sm:$0xff]
  %v1834 = vld [vmem:[%s334 + $0xa9] sm:$0xff]
  %v1835 = vld [vmem:[%s334 + $0xb1] sm:$0xff]
  %s1836 = scalar_lea.vmem %s2, 512
  %v1837 = vld [vmem:[%s1836] sm:$0xff]
  %v1838 = vld [vmem:[%s1836 + $0x8] sm:$0xff]
  %v1839 = vld [vmem:[%s1836 + $0x10] sm:$0xff]
  %v1840 = vld [vmem:[%s1836 + $0x18] sm:$0xff]
  %v1841 = vld [vmem:[%s1836 + $0x20] sm:$0xff]
  %v1842 = vld [vmem:[%s1836 + $0x28] sm:$0xff]
  %v1843 = vld [vmem:[%s1836 + $0x30] sm:$0xff]
  %v1844 = vld [vmem:[%s1836 + $0x38] sm:$0xff]
  %v1845 = vld [vmem:[%s1836 + $0x40] sm:$0xff]
  %v1846 = vld [vmem:[%s1836 + $0x48] sm:$0xff]
  %v1847 = vld [vmem:[%s1836 + $0x50] sm:$0xff]
  %v1848 = vld [vmem:[%s1836 + $0x58] sm:$0xff]
  %v1849 = vld [vmem:[%s1836 + $0x60] sm:$0xff]
  %v1850 = vld [vmem:[%s1836 + $0x68] sm:$0xff]
  %v1851 = vld [vmem:[%s1836 + $0x70] sm:$0xff]
  %v1852 = vld [vmem:[%s1836 + $0x78] sm:$0xff]
  %1853 = vmatprep.subr.mxu0 0.0
  %1854 = vmatpush1.msra.mxu0 %v1837
  %1855 = vmatprep.subr.mxu0 0.0
  %1856 = vmatpush1.msra.mxu0 %v1838
  %1857 = vmatprep.subr.mxu0 0.0
  %1858 = vmatpush1.msra.mxu0 %v1839
  %1859 = vmatprep.subr.mxu0 0.0
  %1860 = vmatpush1.msra.mxu0 %v1840
  %1861 = vmatprep.subr.mxu0 0.0
  %1862 = vmatpush1.msra.mxu0 %v1841
  %1863 = vmatprep.subr.mxu0 0.0
  %1864 = vmatpush1.msra.mxu0 %v1842
  %1865 = vmatprep.subr.mxu0 0.0
  %1866 = vmatpush1.msra.mxu0 %v1843
  %1867 = vmatprep.subr.mxu0 0.0
  %1868 = vmatpush1.msra.mxu0 %v1844
  %1869 = vmatprep.subr.mxu0 0.0
  %1870 = vmatpush1.msra.mxu0 %v1845
  %1871 = vmatprep.subr.mxu0 0.0
  %1872 = vmatpush1.msra.mxu0 %v1846
  %1873 = vmatprep.subr.mxu0 0.0
  %1874 = vmatpush1.msra.mxu0 %v1847
  %1875 = vmatprep.subr.mxu0 0.0
  %1876 = vmatpush1.msra.mxu0 %v1848
  %1877 = vmatprep.subr.mxu0 0.0
  %1878 = vmatpush1.msra.mxu0 %v1849
  %1879 = vmatprep.subr.mxu0 0.0
  %1880 = vmatpush1.msra.mxu0 %v1850
  %1881 = vmatprep.subr.mxu0 0.0
  %1882 = vmatpush1.msra.mxu0 %v1851
  %1883 = vmatprep.subr.mxu0 0.0
  %1884 = vmatpush1.msra.mxu0 %v1852
  %1885 = vmatprep.subr.mxu0 0.0
  %1886 = vmatpush1.msra.mxu0 0.0
  %1887 = vmatprep.subr.mxu0 0.0
  %1888 = vmatpush1.msra.mxu0 0.0
  %1889 = vmatprep.subr.mxu0 0.0
  %1890 = vmatpush1.msra.mxu0 0.0
  %1891 = vmatprep.subr.mxu0 0.0
  %1892 = vmatpush1.msra.mxu0 0.0
  %1893 = vmatprep.subr.mxu0 0.0
  %1894 = vmatpush1.msra.mxu0 0.0
  %1895 = vmatprep.subr.mxu0 0.0
  %1896 = vmatpush1.msra.mxu0 0.0
  %1897 = vmatprep.subr.mxu0 0.0
  %1898 = vmatpush1.msra.mxu0 0.0
  %1899 = vmatprep.subr.mxu0 0.0
  %1900 = vmatpush1.msra.mxu0 0.0
  %1901 = vmatprep.subr.mxu0 0.0
  %1902 = vmatpush1.msra.mxu0 0.0
  %1903 = vmatprep.subr.mxu0 0.0
  %1904 = vmatpush1.msra.mxu0 0.0
  %1905 = vmatprep.subr.mxu0 0.0
  %1906 = vmatpush1.msra.mxu0 0.0
  %1907 = vmatprep.subr.mxu0 0.0
  %1908 = vmatpush1.msra.mxu0 0.0
  %1909 = vmatprep.subr.mxu0 0.0
  %1910 = vmatpush1.msra.mxu0 0.0
  %1911 = vmatprep.subr.mxu0 0.0
  %1912 = vmatpush1.msra.mxu0 0.0
  %1913 = vmatprep.subr.mxu0 0.0
  %1914 = vmatpush1.msra.mxu0 0.0
  %1915 = vmatprep.subr.mxu0 0.0
  %1916 = vmatpush1.msra.mxu0 0.0
  %1917 = vmatprep.mubr.f32.mxu0 0.0
  %1918 = vmatmul.mubr.f32.gmra.mrb[0].mxu0 %v1820
  %v1919 = vpop.f32.mrb[0].mxu0
  %v1920 = vadd.f32 0.0, %v1919
  %v1921 = vpop.f32.mrb[0].mxu0
  %1922 = vmatprep.mubr.f32.mxu0 0.0
  %1923 = vmatmul.mubr.f32.gmra.mrb[0].mxu0 %v1821
  %v1924 = vpop.f32.mrb[0].mxu0
  %v1925 = vadd.f32 0.0, %v1924
  %v1926 = vpop.f32.mrb[0].mxu0
  %1927 = vmatprep.mubr.f32.mxu0 0.0
  %1928 = vmatmul.mubr.f32.gmra.mrb[0].mxu0 %v1822
  %v1929 = vpop.f32.mrb[0].mxu0
  %v1930 = vadd.f32 0.0, %v1929
  %v1931 = vpop.f32.mrb[0].mxu0
  %1932 = vmatprep.mubr.f32.mxu0 0.0
  %1933 = vmatmul.mubr.f32.gmra.mrb[0].mxu0 %v1823
  %v1934 = vpop.f32.mrb[0].mxu0
  %v1935 = vadd.f32 0.0, %v1934
  %v1936 = vpop.f32.mrb[0].mxu0
  %1937 = vmatprep.mubr.f32.mxu0 0.0
  %1938 = vmatmul.mubr.f32.gmra.mrb[0].mxu0 %v1824
  %v1939 = vpop.f32.mrb[0].mxu0
  %v1940 = vadd.f32 0.0, %v1939
  %v1941 = vpop.f32.mrb[0].mxu0
  %1942 = vmatprep.mubr.f32.mxu0 0.0
  %1943 = vmatmul.mubr.f32.gmra.mrb[0].mxu0 %v1825
  %v1944 = vpop.f32.mrb[0].mxu0
  %v1945 = vadd.f32 0.0, %v1944
  %v1946 = vpop.f32.mrb[0].mxu0
  %1947 = vmatprep.mubr.f32.mxu0 0.0
  %1948 = vmatmul.mubr.f32.gmra.mrb[0].mxu0 %v1826
  %v1949 = vpop.f32.mrb[0].mxu0
  %v1950 = vadd.f32 0.0, %v1949
  %v1951 = vpop.f32.mrb[0].mxu0
  %1952 = vmatprep.mubr.f32.mxu0 0.0
  %1953 = vmatmul.mubr.f32.gmra.mrb[0].mxu0 %v1827
  %v1954 = vpop.f32.mrb[0].mxu0
  %v1955 = vadd.f32 0.0, %v1954
  %v1956 = vpop.f32.mrb[0].mxu0
  %1957 = vmatprep.mubr.f32.mxu0 0.0
  %1958 = vmatmul.mubr.f32.gmra.mrb[0].mxu0 %v1828
  %v1959 = vpop.f32.mrb[0].mxu0
  %v1960 = vadd.f32 0.0, %v1959
  %v1961 = vpop.f32.mrb[0].mxu0
  %1962 = vmatprep.mubr.f32.mxu0 0.0
  %1963 = vmatmul.mubr.f32.gmra.mrb[0].mxu0 %v1829
  %v1964 = vpop.f32.mrb[0].mxu0
  %v1965 = vadd.f32 0.0, %v1964
  %v1966 = vpop.f32.mrb[0].mxu0
  %1967 = vmatprep.mubr.f32.mxu0 0.0
  %1968 = vmatmul.mubr.f32.gmra.mrb[0].mxu0 %v1830
  %v1969 = vpop.f32.mrb[0].mxu0
  %v1970 = vadd.f32 0.0, %v1969
  %v1971 = vpop.f32.mrb[0].mxu0
  %1972 = vmatprep.mubr.f32.mxu0 0.0
  %1973 = vmatmul.mubr.f32.gmra.mrb[0].mxu0 %v1831
  %v1974 = vpop.f32.mrb[0].mxu0
  %v1975 = vadd.f32 0.0, %v1974
  %v1976 = vpop.f32.mrb[0].mxu0
  %1977 = vmatprep.mubr.f32.mxu0 0.0
  %1978 = vmatmul.mubr.f32.gmra.mrb[0].mxu0 %v1832
  %v1979 = vpop.f32.mrb[0].mxu0
  %v1980 = vadd.f32 0.0, %v1979
  %v1981 = vpop.f32.mrb[0].mxu0
  %1982 = vmatprep.mubr.f32.mxu0 0.0
  %1983 = vmatmul.mubr.f32.gmra.mrb[0].mxu0 %v1833
  %v1984 = vpop.f32.mrb[0].mxu0
  %v1985 = vadd.f32 0.0, %v1984
  %v1986 = vpop.f32.mrb[0].mxu0
  %1987 = vmatprep.mubr.f32.mxu0 0.0
  %1988 = vmatmul.mubr.f32.gmra.mrb[0].mxu0 %v1834
  %v1989 = vpop.f32.mrb[0].mxu0
  %v1990 = vadd.f32 0.0, %v1989
  %v1991 = vpop.f32.mrb[0].mxu0
  %1992 = vmatprep.mubr.f32.mxu0 0.0
  %1993 = vmatmul.mubr.f32.gmra.mrb[0].mxu0 %v1835
  %v1994 = vpop.f32.mrb[0].mxu0
  %v1995 = vadd.f32 0.0, %v1994
  %v1996 = vpop.f32.mrb[0].mxu0
  %1997 = vdwg.mxu0
  %v1998 = vadd.f32 %v1804, %v1920
  %v1999 = vadd.f32 %v1805, %v1925
  %v2000 = vadd.f32 %v1806, %v1930
  %v2001 = vadd.f32 %v1807, %v1935
  %v2002 = vadd.f32 %v1808, %v1940
  %v2003 = vadd.f32 %v1809, %v1945
  %v2004 = vadd.f32 %v1810, %v1950
  %v2005 = vadd.f32 %v1811, %v1955
  %v2006 = vadd.f32 %v1812, %v1960
  %v2007 = vadd.f32 %v1813, %v1965
  %v2008 = vadd.f32 %v1814, %v1970
  %v2009 = vadd.f32 %v1815, %v1975
  %v2010 = vadd.f32 %v1816, %v1980
  %v2011 = vadd.f32 %v1817, %v1985
  %v2012 = vadd.f32 %v1818, %v1990
  %v2013 = vadd.f32 %v1819, %v1995
  %v2014 = vld [vmem:[%s334 + $0x2] sm:$0xff]
  %v2015 = vld [vmem:[%s334 + $0xa] sm:$0xff]
  %v2016 = vld [vmem:[%s334 + $0x1a] sm:$0xff]
  %v2017 = vld [vmem:[%s334 + $0x22] sm:$0xff]
  %v2018 = vld [vmem:[%s334 + $0x32] sm:$0xff]
  %v2019 = vld [vmem:[%s334 + $0x3a] sm:$0xff]
  %v2020 = vld [vmem:[%s334 + $0x4a] sm:$0xff]
  %v2021 = vld [vmem:[%s334 + $0x52] sm:$0xff]
  %v2022 = vld [vmem:[%s334 + $0x62] sm:$0xff]
  %v2023 = vld [vmem:[%s334 + $0x6a] sm:$0xff]
  %v2024 = vld [vmem:[%s334 + $0x7a] sm:$0xff]
  %v2025 = vld [vmem:[%s334 + $0x82] sm:$0xff]
  %v2026 = vld [vmem:[%s334 + $0x92] sm:$0xff]
  %v2027 = vld [vmem:[%s334 + $0x9a] sm:$0xff]
  %v2028 = vld [vmem:[%s334 + $0xaa] sm:$0xff]
  %v2029 = vld [vmem:[%s334 + $0xb2] sm:$0xff]
  %s2030 = scalar_lea.vmem %s2, 640
  %v2031 = vld [vmem:[%s2030] sm:$0xff]
  %v2032 = vld [vmem:[%s2030 + $0x8] sm:$0xff]
  %v2033 = vld [vmem:[%s2030 + $0x10] sm:$0xff]
  %v2034 = vld [vmem:[%s2030 + $0x18] sm:$0xff]
  %v2035 = vld [vmem:[%s2030 + $0x20] sm:$0xff]
  %v2036 = vld [vmem:[%s2030 + $0x28] sm:$0xff]
  %v2037 = vld [vmem:[%s2030 + $0x30] sm:$0xff]
  %v2038 = vld [vmem:[%s2030 + $0x38] sm:$0xff]
  %v2039 = vld [vmem:[%s2030 + $0x40] sm:$0xff]
  %v2040 = vld [vmem:[%s2030 + $0x48] sm:$0xff]
  %v2041 = vld [vmem:[%s2030 + $0x50] sm:$0xff]
  %v2042 = vld [vmem:[%s2030 + $0x58] sm:$0xff]
  %v2043 = vld [vmem:[%s2030 + $0x60] sm:$0xff]
  %v2044 = vld [vmem:[%s2030 + $0x68] sm:$0xff]
  %v2045 = vld [vmem:[%s2030 + $0x70] sm:$0xff]
  %v2046 = vld [vmem:[%s2030 + $0x78] sm:$0xff]
  %2047 = vmatprep.subr.mxu0 0.0
  %2048 = vmatpush1.msra.mxu0 %v2031
  %2049 = vmatprep.subr.mxu0 0.0
  %2050 = vmatpush1.msra.mxu0 %v2032
  %2051 = vmatprep.subr.mxu0 0.0
  %2052 = vmatpush1.msra.mxu0 %v2033
  %2053 = vmatprep.subr.mxu0 0.0
  %2054 = vmatpush1.msra.mxu0 %v2034
  %2055 = vmatprep.subr.mxu0 0.0
  %2056 = vmatpush1.msra.mxu0 %v2035
  %2057 = vmatprep.subr.mxu0 0.0
  %2058 = vmatpush1.msra.mxu0 %v2036
  %2059 = vmatprep.subr.mxu0 0.0
  %2060 = vmatpush1.msra.mxu0 %v2037
  %2061 = vmatprep.subr.mxu0 0.0
  %2062 = vmatpush1.msra.mxu0 %v2038
  %2063 = vmatprep.subr.mxu0 0.0
  %2064 = vmatpush1.msra.mxu0 %v2039
  %2065 = vmatprep.subr.mxu0 0.0
  %2066 = vmatpush1.msra.mxu0 %v2040
  %2067 = vmatprep.subr.mxu0 0.0
  %2068 = vmatpush1.msra.mxu0 %v2041
  %2069 = vmatprep.subr.mxu0 0.0
  %2070 = vmatpush1.msra.mxu0 %v2042
  %2071 = vmatprep.subr.mxu0 0.0
  %2072 = vmatpush1.msra.mxu0 %v2043
  %2073 = vmatprep.subr.mxu0 0.0
  %2074 = vmatpush1.msra.mxu0 %v2044
  %2075 = vmatprep.subr.mxu0 0.0
  %2076 = vmatpush1.msra.mxu0 %v2045
  %2077 = vmatprep.subr.mxu0 0.0
  %2078 = vmatpush1.msra.mxu0 %v2046
  %2079 = vmatprep.subr.mxu0 0.0
  %2080 = vmatpush1.msra.mxu0 0.0
  %2081 = vmatprep.subr.mxu0 0.0
  %2082 = vmatpush1.msra.mxu0 0.0
  %2083 = vmatprep.subr.mxu0 0.0
  %2084 = vmatpush1.msra.mxu0 0.0
  %2085 = vmatprep.subr.mxu0 0.0
  %2086 = vmatpush1.msra.mxu0 0.0
  %2087 = vmatprep.subr.mxu0 0.0
  %2088 = vmatpush1.msra.mxu0 0.0
  %2089 = vmatprep.subr.mxu0 0.0
  %2090 = vmatpush1.msra.mxu0 0.0
  %2091 = vmatprep.subr.mxu0 0.0
  %2092 = vmatpush1.msra.mxu0 0.0
  %2093 = vmatprep.subr.mxu0 0.0
  %2094 = vmatpush1.msra.mxu0 0.0
  %2095 = vmatprep.subr.mxu0 0.0
  %2096 = vmatpush1.msra.mxu0 0.0
  %2097 = vmatprep.subr.mxu0 0.0
  %2098 = vmatpush1.msra.mxu0 0.0
  %2099 = vmatprep.subr.mxu0 0.0
  %2100 = vmatpush1.msra.mxu0 0.0
  %2101 = vmatprep.subr.mxu0 0.0
  %2102 = vmatpush1.msra.mxu0 0.0
  %2103 = vmatprep.subr.mxu0 0.0
  %2104 = vmatpush1.msra.mxu0 0.0
  %2105 = vmatprep.subr.mxu0 0.0
  %2106 = vmatpush1.msra.mxu0 0.0
  %2107 = vmatprep.subr.mxu0 0.0
  %2108 = vmatpush1.msra.mxu0 0.0
  %2109 = vmatprep.subr.mxu0 0.0
  %2110 = vmatpush1.msra.mxu0 0.0
  %2111 = vmatprep.mubr.f32.mxu0 0.0
  %2112 = vmatmul.mubr.f32.gmra.mrb[0].mxu0 %v2014
  %v2113 = vpop.f32.mrb[0].mxu0
  %v2114 = vadd.f32 0.0, %v2113
  %v2115 = vpop.f32.mrb[0].mxu0
  %2116 = vmatprep.mubr.f32.mxu0 0.0
  %2117 = vmatmul.mubr.f32.gmra.mrb[0].mxu0 %v2015
  %v2118 = vpop.f32.mrb[0].mxu0
  %v2119 = vadd.f32 0.0, %v2118
  %v2120 = vpop.f32.mrb[0].mxu0
  %2121 = vmatprep.mubr.f32.mxu0 0.0
  %2122 = vmatmul.mubr.f32.gmra.mrb[0].mxu0 %v2016
  %v2123 = vpop.f32.mrb[0].mxu0
  %v2124 = vadd.f32 0.0, %v2123
  %v2125 = vpop.f32.mrb[0].mxu0
  %2126 = vmatprep.mubr.f32.mxu0 0.0
  %2127 = vmatmul.mubr.f32.gmra.mrb[0].mxu0 %v2017
  %v2128 = vpop.f32.mrb[0].mxu0
  %v2129 = vadd.f32 0.0, %v2128
  %v2130 = vpop.f32.mrb[0].mxu0
  %2131 = vmatprep.mubr.f32.mxu0 0.0
  %2132 = vmatmul.mubr.f32.gmra.mrb[0].mxu0 %v2018
  %v2133 = vpop.f32.mrb[0].mxu0
  %v2134 = vadd.f32 0.0, %v2133
  %v2135 = vpop.f32.mrb[0].mxu0
  %2136 = vmatprep.mubr.f32.mxu0 0.0
  %2137 = vmatmul.mubr.f32.gmra.mrb[0].mxu0 %v2019
  %v2138 = vpop.f32.mrb[0].mxu0
  %v2139 = vadd.f32 0.0, %v2138
  %v2140 = vpop.f32.mrb[0].mxu0
  %2141 = vmatprep.mubr.f32.mxu0 0.0
  %2142 = vmatmul.mubr.f32.gmra.mrb[0].mxu0 %v2020
  %v2143 = vpop.f32.mrb[0].mxu0
  %v2144 = vadd.f32 0.0, %v2143
  %v2145 = vpop.f32.mrb[0].mxu0
  %2146 = vmatprep.mubr.f32.mxu0 0.0
  %2147 = vmatmul.mubr.f32.gmra.mrb[0].mxu0 %v2021
  %v2148 = vpop.f32.mrb[0].mxu0
  %v2149 = vadd.f32 0.0, %v2148
  %v2150 = vpop.f32.mrb[0].mxu0
  %2151 = vmatprep.mubr.f32.mxu0 0.0
  %2152 = vmatmul.mubr.f32.gmra.mrb[0].mxu0 %v2022
  %v2153 = vpop.f32.mrb[0].mxu0
  %v2154 = vadd.f32 0.0, %v2153
  %v2155 = vpop.f32.mrb[0].mxu0
  %2156 = vmatprep.mubr.f32.mxu0 0.0
  %2157 = vmatmul.mubr.f32.gmra.mrb[0].mxu0 %v2023
  %v2158 = vpop.f32.mrb[0].mxu0
  %v2159 = vadd.f32 0.0, %v2158
  %v2160 = vpop.f32.mrb[0].mxu0
  %2161 = vmatprep.mubr.f32.mxu0 0.0
  %2162 = vmatmul.mubr.f32.gmra.mrb[0].mxu0 %v2024
  %v2163 = vpop.f32.mrb[0].mxu0
  %v2164 = vadd.f32 0.0, %v2163
  %v2165 = vpop.f32.mrb[0].mxu0
  %2166 = vmatprep.mubr.f32.mxu0 0.0
  %2167 = vmatmul.mubr.f32.gmra.mrb[0].mxu0 %v2025
  %v2168 = vpop.f32.mrb[0].mxu0
  %v2169 = vadd.f32 0.0, %v2168
  %v2170 = vpop.f32.mrb[0].mxu0
  %2171 = vmatprep.mubr.f32.mxu0 0.0
  %2172 = vmatmul.mubr.f32.gmra.mrb[0].mxu0 %v2026
  %v2173 = vpop.f32.mrb[0].mxu0
  %v2174 = vadd.f32 0.0, %v2173
  %v2175 = vpop.f32.mrb[0].mxu0
  %2176 = vmatprep.mubr.f32.mxu0 0.0
  %2177 = vmatmul.mubr.f32.gmra.mrb[0].mxu0 %v2027
  %v2178 = vpop.f32.mrb[0].mxu0
  %v2179 = vadd.f32 0.0, %v2178
  %v2180 = vpop.f32.mrb[0].mxu0
  %2181 = vmatprep.mubr.f32.mxu0 0.0
  %2182 = vmatmul.mubr.f32.gmra.mrb[0].mxu0 %v2028
  %v2183 = vpop.f32.mrb[0].mxu0
  %v2184 = vadd.f32 0.0, %v2183
  %v2185 = vpop.f32.mrb[0].mxu0
  %2186 = vmatprep.mubr.f32.mxu0 0.0
  %2187 = vmatmul.mubr.f32.gmra.mrb[0].mxu0 %v2029
  %v2188 = vpop.f32.mrb[0].mxu0
  %v2189 = vadd.f32 0.0, %v2188
  %v2190 = vpop.f32.mrb[0].mxu0
  %2191 = vdwg.mxu0
  %v2192 = vadd.f32 %v1998, %v2114
  %v2193 = vadd.f32 %v1999, %v2119
  %v2194 = vadd.f32 %v2000, %v2124
  %v2195 = vadd.f32 %v2001, %v2129
  %v2196 = vadd.f32 %v2002, %v2134
  %v2197 = vadd.f32 %v2003, %v2139
  %v2198 = vadd.f32 %v2004, %v2144
  %v2199 = vadd.f32 %v2005, %v2149
  %v2200 = vadd.f32 %v2006, %v2154
  %v2201 = vadd.f32 %v2007, %v2159
  %v2202 = vadd.f32 %v2008, %v2164
  %v2203 = vadd.f32 %v2009, %v2169
  %v2204 = vadd.f32 %v2010, %v2174
  %v2205 = vadd.f32 %v2011, %v2179
  %v2206 = vadd.f32 %v2012, %v2184
  %v2207 = vadd.f32 %v2013, %v2189
  %s2208 = scalar_lea.vmem [#allocation2], 48
  %v2209 = vld [vmem:[%s2208] sm:$0xff]
  %v2210 = vld [vmem:[%s2208 + $0x8] sm:$0xff]
  %v2211 = vld [vmem:[%s2208 + $0x18] sm:$0xff]
  %v2212 = vld [vmem:[%s2208 + $0x20] sm:$0xff]
  %v2213 = vld [vmem:[%s2208 + $0x30] sm:$0xff]
  %v2214 = vld [vmem:[%s2208 + $0x38] sm:$0xff]
  %v2215 = vld [vmem:[%s2208 + $0x48] sm:$0xff]
  %v2216 = vld [vmem:[%s2208 + $0x50] sm:$0xff]
  %v2217 = vld [vmem:[%s2208 + $0x60] sm:$0xff]
  %v2218 = vld [vmem:[%s2208 + $0x68] sm:$0xff]
  %v2219 = vld [vmem:[%s2208 + $0x78] sm:$0xff]
  %v2220 = vld [vmem:[%s2208 + $0x80] sm:$0xff]
  %v2221 = vld [vmem:[%s2208 + $0x90] sm:$0xff]
  %v2222 = vld [vmem:[%s2208 + $0x98] sm:$0xff]
  %v2223 = vld [vmem:[%s2208 + $0xa8] sm:$0xff]
  %v2224 = vld [vmem:[%s2208 + $0xb0] sm:$0xff]
  %s2225 = scalar_lea.vmem %s2, 768
  %v2226 = vld [vmem:[%s2225] sm:$0xff]
  %v2227 = vld [vmem:[%s2225 + $0x8] sm:$0xff]
  %v2228 = vld [vmem:[%s2225 + $0x10] sm:$0xff]
  %v2229 = vld [vmem:[%s2225 + $0x18] sm:$0xff]
  %v2230 = vld [vmem:[%s2225 + $0x20] sm:$0xff]
  %v2231 = vld [vmem:[%s2225 + $0x28] sm:$0xff]
  %v2232 = vld [vmem:[%s2225 + $0x30] sm:$0xff]
  %v2233 = vld [vmem:[%s2225 + $0x38] sm:$0xff]
  %v2234 = vld [vmem:[%s2225 + $0x40] sm:$0xff]
  %v2235 = vld [vmem:[%s2225 + $0x48] sm:$0xff]
  %v2236 = vld [vmem:[%s2225 + $0x50] sm:$0xff]
  %v2237 = vld [vmem:[%s2225 + $0x58] sm:$0xff]
  %v2238 = vld [vmem:[%s2225 + $0x60] sm:$0xff]
  %v2239 = vld [vmem:[%s2225 + $0x68] sm:$0xff]
  %v2240 = vld [vmem:[%s2225 + $0x70] sm:$0xff]
  %v2241 = vld [vmem:[%s2225 + $0x78] sm:$0xff]
  %2242 = vmatprep.subr.mxu0 0.0
  %2243 = vmatpush1.msra.mxu0 %v2226
  %2244 = vmatprep.subr.mxu0 0.0
  %2245 = vmatpush1.msra.mxu0 %v2227
  %2246 = vmatprep.subr.mxu0 0.0
  %2247 = vmatpush1.msra.mxu0 %v2228
  %2248 = vmatprep.subr.mxu0 0.0
  %2249 = vmatpush1.msra.mxu0 %v2229
  %2250 = vmatprep.subr.mxu0 0.0
  %2251 = vmatpush1.msra.mxu0 %v2230
  %2252 = vmatprep.subr.mxu0 0.0
  %2253 = vmatpush1.msra.mxu0 %v2231
  %2254 = vmatprep.subr.mxu0 0.0
  %2255 = vmatpush1.msra.mxu0 %v2232
  %2256 = vmatprep.subr.mxu0 0.0
  %2257 = vmatpush1.msra.mxu0 %v2233
  %2258 = vmatprep.subr.mxu0 0.0
  %2259 = vmatpush1.msra.mxu0 %v2234
  %2260 = vmatprep.subr.mxu0 0.0
  %2261 = vmatpush1.msra.mxu0 %v2235
  %2262 = vmatprep.subr.mxu0 0.0
  %2263 = vmatpush1.msra.mxu0 %v2236
  %2264 = vmatprep.subr.mxu0 0.0
  %2265 = vmatpush1.msra.mxu0 %v2237
  %2266 = vmatprep.subr.mxu0 0.0
  %2267 = vmatpush1.msra.mxu0 %v2238
  %2268 = vmatprep.subr.mxu0 0.0
  %2269 = vmatpush1.msra.mxu0 %v2239
  %2270 = vmatprep.subr.mxu0 0.0
  %2271 = vmatpush1.msra.mxu0 %v2240
  %2272 = vmatprep.subr.mxu0 0.0
  %2273 = vmatpush1.msra.mxu0 %v2241
  %2274 = vmatprep.subr.mxu0 0.0
  %2275 = vmatpush1.msra.mxu0 0.0
  %2276 = vmatprep.subr.mxu0 0.0
  %2277 = vmatpush1.msra.mxu0 0.0
  %2278 = vmatprep.subr.mxu0 0.0
  %2279 = vmatpush1.msra.mxu0 0.0
  %2280 = vmatprep.subr.mxu0 0.0
  %2281 = vmatpush1.msra.mxu0 0.0
  %2282 = vmatprep.subr.mxu0 0.0
  %2283 = vmatpush1.msra.mxu0 0.0
  %2284 = vmatprep.subr.mxu0 0.0
  %2285 = vmatpush1.msra.mxu0 0.0
  %2286 = vmatprep.subr.mxu0 0.0
  %2287 = vmatpush1.msra.mxu0 0.0
  %2288 = vmatprep.subr.mxu0 0.0
  %2289 = vmatpush1.msra.mxu0 0.0
  %2290 = vmatprep.subr.mxu0 0.0
  %2291 = vmatpush1.msra.mxu0 0.0
  %2292 = vmatprep.subr.mxu0 0.0
  %2293 = vmatpush1.msra.mxu0 0.0
  %2294 = vmatprep.subr.mxu0 0.0
  %2295 = vmatpush1.msra.mxu0 0.0
  %2296 = vmatprep.subr.mxu0 0.0
  %2297 = vmatpush1.msra.mxu0 0.0
  %2298 = vmatprep.subr.mxu0 0.0
  %2299 = vmatpush1.msra.mxu0 0.0
  %2300 = vmatprep.subr.mxu0 0.0
  %2301 = vmatpush1.msra.mxu0 0.0
  %2302 = vmatprep.subr.mxu0 0.0
  %2303 = vmatpush1.msra.mxu0 0.0
  %2304 = vmatprep.subr.mxu0 0.0
  %2305 = vmatpush1.msra.mxu0 0.0
  %2306 = vmatprep.mubr.f32.mxu0 0.0
  %2307 = vmatmul.mubr.f32.gmra.mrb[0].mxu0 %v2209
  %v2308 = vpop.f32.mrb[0].mxu0
  %v2309 = vadd.f32 0.0, %v2308
  %v2310 = vpop.f32.mrb[0].mxu0
  %2311 = vmatprep.mubr.f32.mxu0 0.0
  %2312 = vmatmul.mubr.f32.gmra.mrb[0].mxu0 %v2210
  %v2313 = vpop.f32.mrb[0].mxu0
  %v2314 = vadd.f32 0.0, %v2313
  %v2315 = vpop.f32.mrb[0].mxu0
  %2316 = vmatprep.mubr.f32.mxu0 0.0
  %2317 = vmatmul.mubr.f32.gmra.mrb[0].mxu0 %v2211
  %v2318 = vpop.f32.mrb[0].mxu0
  %v2319 = vadd.f32 0.0, %v2318
  %v2320 = vpop.f32.mrb[0].mxu0
  %2321 = vmatprep.mubr.f32.mxu0 0.0
  %2322 = vmatmul.mubr.f32.gmra.mrb[0].mxu0 %v2212
  %v2323 = vpop.f32.mrb[0].mxu0
  %v2324 = vadd.f32 0.0, %v2323
  %v2325 = vpop.f32.mrb[0].mxu0
  %2326 = vmatprep.mubr.f32.mxu0 0.0
  %2327 = vmatmul.mubr.f32.gmra.mrb[0].mxu0 %v2213
  %v2328 = vpop.f32.mrb[0].mxu0
  %v2329 = vadd.f32 0.0, %v2328
  %v2330 = vpop.f32.mrb[0].mxu0
  %2331 = vmatprep.mubr.f32.mxu0 0.0
  %2332 = vmatmul.mubr.f32.gmra.mrb[0].mxu0 %v2214
  %v2333 = vpop.f32.mrb[0].mxu0
  %v2334 = vadd.f32 0.0, %v2333
  %v2335 = vpop.f32.mrb[0].mxu0
  %2336 = vmatprep.mubr.f32.mxu0 0.0
  %2337 = vmatmul.mubr.f32.gmra.mrb[0].mxu0 %v2215
  %v2338 = vpop.f32.mrb[0].mxu0
  %v2339 = vadd.f32 0.0, %v2338
  %v2340 = vpop.f32.mrb[0].mxu0
  %2341 = vmatprep.mubr.f32.mxu0 0.0
  %2342 = vmatmul.mubr.f32.gmra.mrb[0].mxu0 %v2216
  %v2343 = vpop.f32.mrb[0].mxu0
  %v2344 = vadd.f32 0.0, %v2343
  %v2345 = vpop.f32.mrb[0].mxu0
  %2346 = vmatprep.mubr.f32.mxu0 0.0
  %2347 = vmatmul.mubr.f32.gmra.mrb[0].mxu0 %v2217
  %v2348 = vpop.f32.mrb[0].mxu0
  %v2349 = vadd.f32 0.0, %v2348
  %v2350 = vpop.f32.mrb[0].mxu0
  %2351 = vmatprep.mubr.f32.mxu0 0.0
  %2352 = vmatmul.mubr.f32.gmra.mrb[0].mxu0 %v2218
  %v2353 = vpop.f32.mrb[0].mxu0
  %v2354 = vadd.f32 0.0, %v2353
  %v2355 = vpop.f32.mrb[0].mxu0
  %2356 = vmatprep.mubr.f32.mxu0 0.0
  %2357 = vmatmul.mubr.f32.gmra.mrb[0].mxu0 %v2219
  %v2358 = vpop.f32.mrb[0].mxu0
  %v2359 = vadd.f32 0.0, %v2358
  %v2360 = vpop.f32.mrb[0].mxu0
  %2361 = vmatprep.mubr.f32.mxu0 0.0
  %2362 = vmatmul.mubr.f32.gmra.mrb[0].mxu0 %v2220
  %v2363 = vpop.f32.mrb[0].mxu0
  %v2364 = vadd.f32 0.0, %v2363
  %v2365 = vpop.f32.mrb[0].mxu0
  %2366 = vmatprep.mubr.f32.mxu0 0.0
  %2367 = vmatmul.mubr.f32.gmra.mrb[0].mxu0 %v2221
  %v2368 = vpop.f32.mrb[0].mxu0
  %v2369 = vadd.f32 0.0, %v2368
  %v2370 = vpop.f32.mrb[0].mxu0
  %2371 = vmatprep.mubr.f32.mxu0 0.0
  %2372 = vmatmul.mubr.f32.gmra.mrb[0].mxu0 %v2222
  %v2373 = vpop.f32.mrb[0].mxu0
  %v2374 = vadd.f32 0.0, %v2373
  %v2375 = vpop.f32.mrb[0].mxu0
  %2376 = vmatprep.mubr.f32.mxu0 0.0
  %2377 = vmatmul.mubr.f32.gmra.mrb[0].mxu0 %v2223
  %v2378 = vpop.f32.mrb[0].mxu0
  %v2379 = vadd.f32 0.0, %v2378
  %v2380 = vpop.f32.mrb[0].mxu0
  %2381 = vmatprep.mubr.f32.mxu0 0.0
  %2382 = vmatmul.mubr.f32.gmra.mrb[0].mxu0 %v2224
  %v2383 = vpop.f32.mrb[0].mxu0
  %v2384 = vadd.f32 0.0, %v2383
  %v2385 = vpop.f32.mrb[0].mxu0
  %2386 = vdwg.mxu0
  %v2387 = vadd.f32 %v2192, %v2309
  %v2388 = vadd.f32 %v2193, %v2314
  %v2389 = vadd.f32 %v2194, %v2319
  %v2390 = vadd.f32 %v2195, %v2324
  %v2391 = vadd.f32 %v2196, %v2329
  %v2392 = vadd.f32 %v2197, %v2334
  %v2393 = vadd.f32 %v2198, %v2339
  %v2394 = vadd.f32 %v2199, %v2344
  %v2395 = vadd.f32 %v2200, %v2349
  %v2396 = vadd.f32 %v2201, %v2354
  %v2397 = vadd.f32 %v2202, %v2359
  %v2398 = vadd.f32 %v2203, %v2364
  %v2399 = vadd.f32 %v2204, %v2369
  %v2400 = vadd.f32 %v2205, %v2374
  %v2401 = vadd.f32 %v2206, %v2379
  %v2402 = vadd.f32 %v2207, %v2384
  %v2403 = vld [vmem:[%s2208 + $0x1] sm:$0xff]
  %v2404 = vld [vmem:[%s2208 + $0x9] sm:$0xff]
  %v2405 = vld [vmem:[%s2208 + $0x19] sm:$0xff]
  %v2406 = vld [vmem:[%s2208 + $0x21] sm:$0xff]
  %v2407 = vld [vmem:[%s2208 + $0x31] sm:$0xff]
  %v2408 = vld [vmem:[%s2208 + $0x39] sm:$0xff]
  %v2409 = vld [vmem:[%s2208 + $0x49] sm:$0xff]
  %v2410 = vld [vmem:[%s2208 + $0x51] sm:$0xff]
  %v2411 = vld [vmem:[%s2208 + $0x61] sm:$0xff]
  %v2412 = vld [vmem:[%s2208 + $0x69] sm:$0xff]
  %v2413 = vld [vmem:[%s2208 + $0x79] sm:$0xff]
  %v2414 = vld [vmem:[%s2208 + $0x81] sm:$0xff]
  %v2415 = vld [vmem:[%s2208 + $0x91] sm:$0xff]
  %v2416 = vld [vmem:[%s2208 + $0x99] sm:$0xff]
  %v2417 = vld [vmem:[%s2208 + $0xa9] sm:$0xff]
  %v2418 = vld [vmem:[%s2208 + $0xb1] sm:$0xff]
  %s2419 = scalar_lea.vmem %s2, 896
  %v2420 = vld [vmem:[%s2419] sm:$0xff]
  %v2421 = vld [vmem:[%s2419 + $0x8] sm:$0xff]
  %v2422 = vld [vmem:[%s2419 + $0x10] sm:$0xff]
  %v2423 = vld [vmem:[%s2419 + $0x18] sm:$0xff]
  %v2424 = vld [vmem:[%s2419 + $0x20] sm:$0xff]
  %v2425 = vld [vmem:[%s2419 + $0x28] sm:$0xff]
  %v2426 = vld [vmem:[%s2419 + $0x30] sm:$0xff]
  %v2427 = vld [vmem:[%s2419 + $0x38] sm:$0xff]
  %v2428 = vld [vmem:[%s2419 + $0x40] sm:$0xff]
  %v2429 = vld [vmem:[%s2419 + $0x48] sm:$0xff]
  %v2430 = vld [vmem:[%s2419 + $0x50] sm:$0xff]
  %v2431 = vld [vmem:[%s2419 + $0x58] sm:$0xff]
  %v2432 = vld [vmem:[%s2419 + $0x60] sm:$0xff]
  %v2433 = vld [vmem:[%s2419 + $0x68] sm:$0xff]
  %v2434 = vld [vmem:[%s2419 + $0x70] sm:$0xff]
  %v2435 = vld [vmem:[%s2419 + $0x78] sm:$0xff]
  %2436 = vmatprep.subr.mxu0 0.0
  %2437 = vmatpush1.msra.mxu0 %v2420
  %2438 = vmatprep.subr.mxu0 0.0
  %2439 = vmatpush1.msra.mxu0 %v2421
  %2440 = vmatprep.subr.mxu0 0.0
  %2441 = vmatpush1.msra.mxu0 %v2422
  %2442 = vmatprep.subr.mxu0 0.0
  %2443 = vmatpush1.msra.mxu0 %v2423
  %2444 = vmatprep.subr.mxu0 0.0
  %2445 = vmatpush1.msra.mxu0 %v2424
  %2446 = vmatprep.subr.mxu0 0.0
  %2447 = vmatpush1.msra.mxu0 %v2425
  %2448 = vmatprep.subr.mxu0 0.0
  %2449 = vmatpush1.msra.mxu0 %v2426
  %2450 = vmatprep.subr.mxu0 0.0
  %2451 = vmatpush1.msra.mxu0 %v2427
  %2452 = vmatprep.subr.mxu0 0.0
  %2453 = vmatpush1.msra.mxu0 %v2428
  %2454 = vmatprep.subr.mxu0 0.0
  %2455 = vmatpush1.msra.mxu0 %v2429
  %2456 = vmatprep.subr.mxu0 0.0
  %2457 = vmatpush1.msra.mxu0 %v2430
  %2458 = vmatprep.subr.mxu0 0.0
  %2459 = vmatpush1.msra.mxu0 %v2431
  %2460 = vmatprep.subr.mxu0 0.0
  %2461 = vmatpush1.msra.mxu0 %v2432
  %2462 = vmatprep.subr.mxu0 0.0
  %2463 = vmatpush1.msra.mxu0 %v2433
  %2464 = vmatprep.subr.mxu0 0.0
  %2465 = vmatpush1.msra.mxu0 %v2434
  %2466 = vmatprep.subr.mxu0 0.0
  %2467 = vmatpush1.msra.mxu0 %v2435
  %2468 = vmatprep.subr.mxu0 0.0
  %2469 = vmatpush1.msra.mxu0 0.0
  %2470 = vmatprep.subr.mxu0 0.0
  %2471 = vmatpush1.msra.mxu0 0.0
  %2472 = vmatprep.subr.mxu0 0.0
  %2473 = vmatpush1.msra.mxu0 0.0
  %2474 = vmatprep.subr.mxu0 0.0
  %2475 = vmatpush1.msra.mxu0 0.0
  %2476 = vmatprep.subr.mxu0 0.0
  %2477 = vmatpush1.msra.mxu0 0.0
  %2478 = vmatprep.subr.mxu0 0.0
  %2479 = vmatpush1.msra.mxu0 0.0
  %2480 = vmatprep.subr.mxu0 0.0
  %2481 = vmatpush1.msra.mxu0 0.0
  %2482 = vmatprep.subr.mxu0 0.0
  %2483 = vmatpush1.msra.mxu0 0.0
  %2484 = vmatprep.subr.mxu0 0.0
  %2485 = vmatpush1.msra.mxu0 0.0
  %2486 = vmatprep.subr.mxu0 0.0
  %2487 = vmatpush1.msra.mxu0 0.0
  %2488 = vmatprep.subr.mxu0 0.0
  %2489 = vmatpush1.msra.mxu0 0.0
  %2490 = vmatprep.subr.mxu0 0.0
  %2491 = vmatpush1.msra.mxu0 0.0
  %2492 = vmatprep.subr.mxu0 0.0
  %2493 = vmatpush1.msra.mxu0 0.0
  %2494 = vmatprep.subr.mxu0 0.0
  %2495 = vmatpush1.msra.mxu0 0.0
  %2496 = vmatprep.subr.mxu0 0.0
  %2497 = vmatpush1.msra.mxu0 0.0
  %2498 = vmatprep.subr.mxu0 0.0
  %2499 = vmatpush1.msra.mxu0 0.0
  %2500 = vmatprep.mubr.f32.mxu0 0.0
  %2501 = vmatmul.mubr.f32.gmra.mrb[0].mxu0 %v2403
  %v2502 = vpop.f32.mrb[0].mxu0
  %v2503 = vadd.f32 0.0, %v2502
  %v2504 = vpop.f32.mrb[0].mxu0
  %2505 = vmatprep.mubr.f32.mxu0 0.0
  %2506 = vmatmul.mubr.f32.gmra.mrb[0].mxu0 %v2404
  %v2507 = vpop.f32.mrb[0].mxu0
  %v2508 = vadd.f32 0.0, %v2507
  %v2509 = vpop.f32.mrb[0].mxu0
  %2510 = vmatprep.mubr.f32.mxu0 0.0
  %2511 = vmatmul.mubr.f32.gmra.mrb[0].mxu0 %v2405
  %v2512 = vpop.f32.mrb[0].mxu0
  %v2513 = vadd.f32 0.0, %v2512
  %v2514 = vpop.f32.mrb[0].mxu0
  %2515 = vmatprep.mubr.f32.mxu0 0.0
  %2516 = vmatmul.mubr.f32.gmra.mrb[0].mxu0 %v2406
  %v2517 = vpop.f32.mrb[0].mxu0
  %v2518 = vadd.f32 0.0, %v2517
  %v2519 = vpop.f32.mrb[0].mxu0
  %2520 = vmatprep.mubr.f32.mxu0 0.0
  %2521 = vmatmul.mubr.f32.gmra.mrb[0].mxu0 %v2407
  %v2522 = vpop.f32.mrb[0].mxu0
  %v2523 = vadd.f32 0.0, %v2522
  %v2524 = vpop.f32.mrb[0].mxu0
  %2525 = vmatprep.mubr.f32.mxu0 0.0
  %2526 = vmatmul.mubr.f32.gmra.mrb[0].mxu0 %v2408
  %v2527 = vpop.f32.mrb[0].mxu0
  %v2528 = vadd.f32 0.0, %v2527
  %v2529 = vpop.f32.mrb[0].mxu0
  %2530 = vmatprep.mubr.f32.mxu0 0.0
  %2531 = vmatmul.mubr.f32.gmra.mrb[0].mxu0 %v2409
  %v2532 = vpop.f32.mrb[0].mxu0
  %v2533 = vadd.f32 0.0, %v2532
  %v2534 = vpop.f32.mrb[0].mxu0
  %2535 = vmatprep.mubr.f32.mxu0 0.0
  %2536 = vmatmul.mubr.f32.gmra.mrb[0].mxu0 %v2410
  %v2537 = vpop.f32.mrb[0].mxu0
  %v2538 = vadd.f32 0.0, %v2537
  %v2539 = vpop.f32.mrb[0].mxu0
  %2540 = vmatprep.mubr.f32.mxu0 0.0
  %2541 = vmatmul.mubr.f32.gmra.mrb[0].mxu0 %v2411
  %v2542 = vpop.f32.mrb[0].mxu0
  %v2543 = vadd.f32 0.0, %v2542
  %v2544 = vpop.f32.mrb[0].mxu0
  %2545 = vmatprep.mubr.f32.mxu0 0.0
  %2546 = vmatmul.mubr.f32.gmra.mrb[0].mxu0 %v2412
  %v2547 = vpop.f32.mrb[0].mxu0
  %v2548 = vadd.f32 0.0, %v2547
  %v2549 = vpop.f32.mrb[0].mxu0
  %2550 = vmatprep.mubr.f32.mxu0 0.0
  %2551 = vmatmul.mubr.f32.gmra.mrb[0].mxu0 %v2413
  %v2552 = vpop.f32.mrb[0].mxu0
  %v2553 = vadd.f32 0.0, %v2552
  %v2554 = vpop.f32.mrb[0].mxu0
  %2555 = vmatprep.mubr.f32.mxu0 0.0
  %2556 = vmatmul.mubr.f32.gmra.mrb[0].mxu0 %v2414
  %v2557 = vpop.f32.mrb[0].mxu0
  %v2558 = vadd.f32 0.0, %v2557
  %v2559 = vpop.f32.mrb[0].mxu0
  %2560 = vmatprep.mubr.f32.mxu0 0.0
  %2561 = vmatmul.mubr.f32.gmra.mrb[0].mxu0 %v2415
  %v2562 = vpop.f32.mrb[0].mxu0
  %v2563 = vadd.f32 0.0, %v2562
  %v2564 = vpop.f32.mrb[0].mxu0
  %2565 = vmatprep.mubr.f32.mxu0 0.0
  %2566 = vmatmul.mubr.f32.gmra.mrb[0].mxu0 %v2416
  %v2567 = vpop.f32.mrb[0].mxu0
  %v2568 = vadd.f32 0.0, %v2567
  %v2569 = vpop.f32.mrb[0].mxu0
  %2570 = vmatprep.mubr.f32.mxu0 0.0
  %2571 = vmatmul.mubr.f32.gmra.mrb[0].mxu0 %v2417
  %v2572 = vpop.f32.mrb[0].mxu0
  %v2573 = vadd.f32 0.0, %v2572
  %v2574 = vpop.f32.mrb[0].mxu0
  %2575 = vmatprep.mubr.f32.mxu0 0.0
  %2576 = vmatmul.mubr.f32.gmra.mrb[0].mxu0 %v2418
  %v2577 = vpop.f32.mrb[0].mxu0
  %v2578 = vadd.f32 0.0, %v2577
  %v2579 = vpop.f32.mrb[0].mxu0
  %2580 = vdwg.mxu0
  %v2581 = vadd.f32 %v2387, %v2503
  %v2582 = vadd.f32 %v2388, %v2508
  %v2583 = vadd.f32 %v2389, %v2513
  %v2584 = vadd.f32 %v2390, %v2518
  %v2585 = vadd.f32 %v2391, %v2523
  %v2586 = vadd.f32 %v2392, %v2528
  %v2587 = vadd.f32 %v2393, %v2533
  %v2588 = vadd.f32 %v2394, %v2538
  %v2589 = vadd.f32 %v2395, %v2543
  %v2590 = vadd.f32 %v2396, %v2548
  %v2591 = vadd.f32 %v2397, %v2553
  %v2592 = vadd.f32 %v2398, %v2558
  %v2593 = vadd.f32 %v2399, %v2563
  %v2594 = vadd.f32 %v2400, %v2568
  %v2595 = vadd.f32 %v2401, %v2573
  %v2596 = vadd.f32 %v2402, %v2578
  %v2597 = vld [vmem:[%s2208 + $0x2] sm:$0xff]
  %v2598 = vld [vmem:[%s2208 + $0xa] sm:$0xff]
  %v2599 = vld [vmem:[%s2208 + $0x1a] sm:$0xff]
  %v2600 = vld [vmem:[%s2208 + $0x22] sm:$0xff]
  %v2601 = vld [vmem:[%s2208 + $0x32] sm:$0xff]
  %v2602 = vld [vmem:[%s2208 + $0x3a] sm:$0xff]
  %v2603 = vld [vmem:[%s2208 + $0x4a] sm:$0xff]
  %v2604 = vld [vmem:[%s2208 + $0x52] sm:$0xff]
  %v2605 = vld [vmem:[%s2208 + $0x62] sm:$0xff]
  %v2606 = vld [vmem:[%s2208 + $0x6a] sm:$0xff]
  %v2607 = vld [vmem:[%s2208 + $0x7a] sm:$0xff]
  %v2608 = vld [vmem:[%s2208 + $0x82] sm:$0xff]
  %v2609 = vld [vmem:[%s2208 + $0x92] sm:$0xff]
  %v2610 = vld [vmem:[%s2208 + $0x9a] sm:$0xff]
  %v2611 = vld [vmem:[%s2208 + $0xaa] sm:$0xff]
  %v2612 = vld [vmem:[%s2208 + $0xb2] sm:$0xff]
  %s2613 = scalar_lea.vmem %s2, 1024
  %v2614 = vld [vmem:[%s2613] sm:$0xff]
  %v2615 = vld [vmem:[%s2613 + $0x8] sm:$0xff]
  %v2616 = vld [vmem:[%s2613 + $0x10] sm:$0xff]
  %v2617 = vld [vmem:[%s2613 + $0x18] sm:$0xff]
  %v2618 = vld [vmem:[%s2613 + $0x20] sm:$0xff]
  %v2619 = vld [vmem:[%s2613 + $0x28] sm:$0xff]
  %v2620 = vld [vmem:[%s2613 + $0x30] sm:$0xff]
  %v2621 = vld [vmem:[%s2613 + $0x38] sm:$0xff]
  %v2622 = vld [vmem:[%s2613 + $0x40] sm:$0xff]
  %v2623 = vld [vmem:[%s2613 + $0x48] sm:$0xff]
  %v2624 = vld [vmem:[%s2613 + $0x50] sm:$0xff]
  %v2625 = vld [vmem:[%s2613 + $0x58] sm:$0xff]
  %v2626 = vld [vmem:[%s2613 + $0x60] sm:$0xff]
  %v2627 = vld [vmem:[%s2613 + $0x68] sm:$0xff]
  %v2628 = vld [vmem:[%s2613 + $0x70] sm:$0xff]
  %v2629 = vld [vmem:[%s2613 + $0x78] sm:$0xff]
  %2630 = vmatprep.subr.mxu0 0.0
  %2631 = vmatpush1.msra.mxu0 %v2614
  %2632 = vmatprep.subr.mxu0 0.0
  %2633 = vmatpush1.msra.mxu0 %v2615
  %2634 = vmatprep.subr.mxu0 0.0
  %2635 = vmatpush1.msra.mxu0 %v2616
  %2636 = vmatprep.subr.mxu0 0.0
  %2637 = vmatpush1.msra.mxu0 %v2617
  %2638 = vmatprep.subr.mxu0 0.0
  %2639 = vmatpush1.msra.mxu0 %v2618
  %2640 = vmatprep.subr.mxu0 0.0
  %2641 = vmatpush1.msra.mxu0 %v2619
  %2642 = vmatprep.subr.mxu0 0.0
  %2643 = vmatpush1.msra.mxu0 %v2620
  %2644 = vmatprep.subr.mxu0 0.0
  %2645 = vmatpush1.msra.mxu0 %v2621
  %2646 = vmatprep.subr.mxu0 0.0
  %2647 = vmatpush1.msra.mxu0 %v2622
  %2648 = vmatprep.subr.mxu0 0.0
  %2649 = vmatpush1.msra.mxu0 %v2623
  %2650 = vmatprep.subr.mxu0 0.0
  %2651 = vmatpush1.msra.mxu0 %v2624
  %2652 = vmatprep.subr.mxu0 0.0
  %2653 = vmatpush1.msra.mxu0 %v2625
  %2654 = vmatprep.subr.mxu0 0.0
  %2655 = vmatpush1.msra.mxu0 %v2626
  %2656 = vmatprep.subr.mxu0 0.0
  %2657 = vmatpush1.msra.mxu0 %v2627
  %2658 = vmatprep.subr.mxu0 0.0
  %2659 = vmatpush1.msra.mxu0 %v2628
  %2660 = vmatprep.subr.mxu0 0.0
  %2661 = vmatpush1.msra.mxu0 %v2629
  %2662 = vmatprep.subr.mxu0 0.0
  %2663 = vmatpush1.msra.mxu0 0.0
  %2664 = vmatprep.subr.mxu0 0.0
  %2665 = vmatpush1.msra.mxu0 0.0
  %2666 = vmatprep.subr.mxu0 0.0
  %2667 = vmatpush1.msra.mxu0 0.0
  %2668 = vmatprep.subr.mxu0 0.0
  %2669 = vmatpush1.msra.mxu0 0.0
  %2670 = vmatprep.subr.mxu0 0.0
  %2671 = vmatpush1.msra.mxu0 0.0
  %2672 = vmatprep.subr.mxu0 0.0
  %2673 = vmatpush1.msra.mxu0 0.0
  %2674 = vmatprep.subr.mxu0 0.0
  %2675 = vmatpush1.msra.mxu0 0.0
  %2676 = vmatprep.subr.mxu0 0.0
  %2677 = vmatpush1.msra.mxu0 0.0
  %2678 = vmatprep.subr.mxu0 0.0
  %2679 = vmatpush1.msra.mxu0 0.0
  %2680 = vmatprep.subr.mxu0 0.0
  %2681 = vmatpush1.msra.mxu0 0.0
  %2682 = vmatprep.subr.mxu0 0.0
  %2683 = vmatpush1.msra.mxu0 0.0
  %2684 = vmatprep.subr.mxu0 0.0
  %2685 = vmatpush1.msra.mxu0 0.0
  %2686 = vmatprep.subr.mxu0 0.0
  %2687 = vmatpush1.msra.mxu0 0.0
  %2688 = vmatprep.subr.mxu0 0.0
  %2689 = vmatpush1.msra.mxu0 0.0
  %2690 = vmatprep.subr.mxu0 0.0
  %2691 = vmatpush1.msra.mxu0 0.0
  %2692 = vmatprep.subr.mxu0 0.0
  %2693 = vmatpush1.msra.mxu0 0.0
  %2694 = vmatprep.mubr.f32.mxu0 0.0
  %2695 = vmatmul.mubr.f32.gmra.mrb[0].mxu0 %v2597
  %v2696 = vpop.f32.mrb[0].mxu0
  %v2697 = vadd.f32 0.0, %v2696
  %v2698 = vpop.f32.mrb[0].mxu0
  %2699 = vmatprep.mubr.f32.mxu0 0.0
  %2700 = vmatmul.mubr.f32.gmra.mrb[0].mxu0 %v2598
  %v2701 = vpop.f32.mrb[0].mxu0
  %v2702 = vadd.f32 0.0, %v2701
  %v2703 = vpop.f32.mrb[0].mxu0
  %2704 = vmatprep.mubr.f32.mxu0 0.0
  %2705 = vmatmul.mubr.f32.gmra.mrb[0].mxu0 %v2599
  %v2706 = vpop.f32.mrb[0].mxu0
  %v2707 = vadd.f32 0.0, %v2706
  %v2708 = vpop.f32.mrb[0].mxu0
  %2709 = vmatprep.mubr.f32.mxu0 0.0
  %2710 = vmatmul.mubr.f32.gmra.mrb[0].mxu0 %v2600
  %v2711 = vpop.f32.mrb[0].mxu0
  %v2712 = vadd.f32 0.0, %v2711
  %v2713 = vpop.f32.mrb[0].mxu0
  %2714 = vmatprep.mubr.f32.mxu0 0.0
  %2715 = vmatmul.mubr.f32.gmra.mrb[0].mxu0 %v2601
  %v2716 = vpop.f32.mrb[0].mxu0
  %v2717 = vadd.f32 0.0, %v2716
  %v2718 = vpop.f32.mrb[0].mxu0
  %2719 = vmatprep.mubr.f32.mxu0 0.0
  %2720 = vmatmul.mubr.f32.gmra.mrb[0].mxu0 %v2602
  %v2721 = vpop.f32.mrb[0].mxu0
  %v2722 = vadd.f32 0.0, %v2721
  %v2723 = vpop.f32.mrb[0].mxu0
  %2724 = vmatprep.mubr.f32.mxu0 0.0
  %2725 = vmatmul.mubr.f32.gmra.mrb[0].mxu0 %v2603
  %v2726 = vpop.f32.mrb[0].mxu0
  %v2727 = vadd.f32 0.0, %v2726
  %v2728 = vpop.f32.mrb[0].mxu0
  %2729 = vmatprep.mubr.f32.mxu0 0.0
  %2730 = vmatmul.mubr.f32.gmra.mrb[0].mxu0 %v2604
  %v2731 = vpop.f32.mrb[0].mxu0
  %v2732 = vadd.f32 0.0, %v2731
  %v2733 = vpop.f32.mrb[0].mxu0
  %2734 = vmatprep.mubr.f32.mxu0 0.0
  %2735 = vmatmul.mubr.f32.gmra.mrb[0].mxu0 %v2605
  %v2736 = vpop.f32.mrb[0].mxu0
  %v2737 = vadd.f32 0.0, %v2736
  %v2738 = vpop.f32.mrb[0].mxu0
  %2739 = vmatprep.mubr.f32.mxu0 0.0
  %2740 = vmatmul.mubr.f32.gmra.mrb[0].mxu0 %v2606
  %v2741 = vpop.f32.mrb[0].mxu0
  %v2742 = vadd.f32 0.0, %v2741
  %v2743 = vpop.f32.mrb[0].mxu0
  %2744 = vmatprep.mubr.f32.mxu0 0.0
  %2745 = vmatmul.mubr.f32.gmra.mrb[0].mxu0 %v2607
  %v2746 = vpop.f32.mrb[0].mxu0
  %v2747 = vadd.f32 0.0, %v2746
  %v2748 = vpop.f32.mrb[0].mxu0
  %2749 = vmatprep.mubr.f32.mxu0 0.0
  %2750 = vmatmul.mubr.f32.gmra.mrb[0].mxu0 %v2608
  %v2751 = vpop.f32.mrb[0].mxu0
  %v2752 = vadd.f32 0.0, %v2751
  %v2753 = vpop.f32.mrb[0].mxu0
  %2754 = vmatprep.mubr.f32.mxu0 0.0
  %2755 = vmatmul.mubr.f32.gmra.mrb[0].mxu0 %v2609
  %v2756 = vpop.f32.mrb[0].mxu0
  %v2757 = vadd.f32 0.0, %v2756
  %v2758 = vpop.f32.mrb[0].mxu0
  %2759 = vmatprep.mubr.f32.mxu0 0.0
  %2760 = vmatmul.mubr.f32.gmra.mrb[0].mxu0 %v2610
  %v2761 = vpop.f32.mrb[0].mxu0
  %v2762 = vadd.f32 0.0, %v2761
  %v2763 = vpop.f32.mrb[0].mxu0
  %2764 = vmatprep.mubr.f32.mxu0 0.0
  %2765 = vmatmul.mubr.f32.gmra.mrb[0].mxu0 %v2611
  %v2766 = vpop.f32.mrb[0].mxu0
  %v2767 = vadd.f32 0.0, %v2766
  %v2768 = vpop.f32.mrb[0].mxu0
  %2769 = vmatprep.mubr.f32.mxu0 0.0
  %2770 = vmatmul.mubr.f32.gmra.mrb[0].mxu0 %v2612
  %v2771 = vpop.f32.mrb[0].mxu0
  %v2772 = vadd.f32 0.0, %v2771
  %v2773 = vpop.f32.mrb[0].mxu0
  %2774 = vdwg.mxu0
  %v2775 = vadd.f32 %v2581, %v2697
  %v2776 = vadd.f32 %v2582, %v2702
  %v2777 = vadd.f32 %v2583, %v2707
  %v2778 = vadd.f32 %v2584, %v2712
  %v2779 = vadd.f32 %v2585, %v2717
  %v2780 = vadd.f32 %v2586, %v2722
  %v2781 = vadd.f32 %v2587, %v2727
  %v2782 = vadd.f32 %v2588, %v2732
  %v2783 = vadd.f32 %v2589, %v2737
  %v2784 = vadd.f32 %v2590, %v2742
  %v2785 = vadd.f32 %v2591, %v2747
  %v2786 = vadd.f32 %v2592, %v2752
  %v2787 = vadd.f32 %v2593, %v2757
  %v2788 = vadd.f32 %v2594, %v2762
  %v2789 = vadd.f32 %v2595, %v2767
  %v2790 = vadd.f32 %v2596, %v2772
  %2791 = vxpose.xlu0.b32.start [1/16] %v2775, 128
  %2792 = vxpose.xlu0.b32.cont [2/16] %v2776, 128
  %2793 = vxpose.xlu0.b32.cont [3/16] %v2777, 128
  %2794 = vxpose.xlu0.b32.cont [4/16] %v2778, 128
  %2795 = vxpose.xlu0.b32.cont [5/16] %v2779, 128
  %2796 = vxpose.xlu0.b32.cont [6/16] %v2780, 128
  %2797 = vxpose.xlu0.b32.cont [7/16] %v2781, 128
  %2798 = vxpose.xlu0.b32.cont [8/16] %v2782, 128
  %2799 = vxpose.xlu0.b32.cont [9/16] %v2783, 128
  %2800 = vxpose.xlu0.b32.cont [10/16] %v2784, 128
  %2801 = vxpose.xlu0.b32.cont [11/16] %v2785, 128
  %2802 = vxpose.xlu0.b32.cont [12/16] %v2786, 128
  %2803 = vxpose.xlu0.b32.cont [13/16] %v2787, 128
  %2804 = vxpose.xlu0.b32.cont [14/16] %v2788, 128
  %2805 = vxpose.xlu0.b32.cont [15/16] %v2789, 128
  %2806 = vxpose.xlu0.b32.end [16/16] %v2790, 128
  %v2807 = vpop.trf.xlu0
  %v2808 = vpop.trf.xlu0
  %v2809 = vpop.trf.xlu0
  %v2810 = vpop.trf.xlu0
  %v2811 = vpop.trf.xlu0
  %v2812 = vpop.trf.xlu0
  %v2813 = vpop.trf.xlu0
  %v2814 = vpop.trf.xlu0
  %v2815 = vpop.trf.xlu0
  %v2816 = vpop.trf.xlu0
  %v2817 = vpop.trf.xlu0
  %v2818 = vpop.trf.xlu0
  %v2819 = vpop.trf.xlu0
  %v2820 = vpop.trf.xlu0
  %v2821 = vpop.trf.xlu0
  %v2822 = vpop.trf.xlu0
  %2823 = vst [vmem:[%s3] sm:$0xff] %v2807
  %2824 = vst [vmem:[%s3 + $0x10] sm:$0xff] %v2808
  %2825 = vst [vmem:[%s3 + $0x20] sm:$0xff] %v2809
  %2826 = vst [vmem:[%s3 + $0x30] sm:$0xff] %v2810
  %2827 = vst [vmem:[%s3 + $0x40] sm:$0xff] %v2811
  %2828 = vst [vmem:[%s3 + $0x50] sm:$0xff] %v2812
  %2829 = vst [vmem:[%s3 + $0x60] sm:$0xff] %v2813
  %2830 = vst [vmem:[%s3 + $0x70] sm:$0xff] %v2814
  %2831 = vst [vmem:[%s3 + $0x80] sm:$0xff] %v2815
  %2832 = vst [vmem:[%s3 + $0x90] sm:$0xff] %v2816
  %2833 = vst [vmem:[%s3 + $0xa0] sm:$0xff] %v2817
  %2834 = vst [vmem:[%s3 + $0xb0] sm:$0xff] %v2818
  %2835 = vst [vmem:[%s3 + $0xc0] sm:$0xff] %v2819
  %2836 = vst [vmem:[%s3 + $0xd0] sm:$0xff] %v2820
  %2837 = vst [vmem:[%s3 + $0xe0] sm:$0xff] %v2821
  %2838 = vst [vmem:[%s3 + $0xf0] sm:$0xff] %v2822
  %s2839 = scalar_lea.vmem [#allocation2], 192
  %v2840 = vld [vmem:[%s2839] sm:$0xff]
  %v2841 = vld [vmem:[%s2839 + $0x8] sm:$0xff]
  %v2842 = vld [vmem:[%s2839 + $0x18] sm:$0xff]
  %v2843 = vld [vmem:[%s2839 + $0x20] sm:$0xff]
  %v2844 = vld [vmem:[%s2839 + $0x30] sm:$0xff]
  %v2845 = vld [vmem:[%s2839 + $0x38] sm:$0xff]
  %v2846 = vld [vmem:[%s2839 + $0x48] sm:$0xff]
  %v2847 = vld [vmem:[%s2839 + $0x50] sm:$0xff]
  %v2848 = vld [vmem:[%s2839 + $0x60] sm:$0xff]
  %v2849 = vld [vmem:[%s2839 + $0x68] sm:$0xff]
  %v2850 = vld [vmem:[%s2839 + $0x78] sm:$0xff]
  %v2851 = vld [vmem:[%s2839 + $0x80] sm:$0xff]
  %v2852 = vld [vmem:[%s2839 + $0x90] sm:$0xff]
  %v2853 = vld [vmem:[%s2839 + $0x98] sm:$0xff]
  %v2854 = vld [vmem:[%s2839 + $0xa8] sm:$0xff]
  %v2855 = vld [vmem:[%s2839 + $0xb0] sm:$0xff]
  %v2856 = vld [vmem:[%s2] sm:$0xff]
  %v2857 = vld [vmem:[%s2 + $0x8] sm:$0xff]
  %v2858 = vld [vmem:[%s2 + $0x10] sm:$0xff]
  %v2859 = vld [vmem:[%s2 + $0x18] sm:$0xff]
  %v2860 = vld [vmem:[%s2 + $0x20] sm:$0xff]
  %v2861 = vld [vmem:[%s2 + $0x28] sm:$0xff]
  %v2862 = vld [vmem:[%s2 + $0x30] sm:$0xff]
  %v2863 = vld [vmem:[%s2 + $0x38] sm:$0xff]
  %v2864 = vld [vmem:[%s2 + $0x40] sm:$0xff]
  %v2865 = vld [vmem:[%s2 + $0x48] sm:$0xff]
  %v2866 = vld [vmem:[%s2 + $0x50] sm:$0xff]
  %v2867 = vld [vmem:[%s2 + $0x58] sm:$0xff]
  %v2868 = vld [vmem:[%s2 + $0x60] sm:$0xff]
  %v2869 = vld [vmem:[%s2 + $0x68] sm:$0xff]
  %v2870 = vld [vmem:[%s2 + $0x70] sm:$0xff]
  %v2871 = vld [vmem:[%s2 + $0x78] sm:$0xff]
  %v2872 = vld [vmem:[%s2839 + $0x1] sm:$0xff]
  %v2873 = vld [vmem:[%s2839 + $0x9] sm:$0xff]
  %v2874 = vld [vmem:[%s2839 + $0x19] sm:$0xff]
  %v2875 = vld [vmem:[%s2839 + $0x21] sm:$0xff]
  %v2876 = vld [vmem:[%s2839 + $0x31] sm:$0xff]
  %v2877 = vld [vmem:[%s2839 + $0x39] sm:$0xff]
  %v2878 = vld [vmem:[%s2839 + $0x49] sm:$0xff]
  %v2879 = vld [vmem:[%s2839 + $0x51] sm:$0xff]
  %v2880 = vld [vmem:[%s2839 + $0x61] sm:$0xff]
  %v2881 = vld [vmem:[%s2839 + $0x69] sm:$0xff]
  %v2882 = vld [vmem:[%s2839 + $0x79] sm:$0xff]
  %v2883 = vld [vmem:[%s2839 + $0x81] sm:$0xff]
  %v2884 = vld [vmem:[%s2839 + $0x91] sm:$0xff]
  %v2885 = vld [vmem:[%s2839 + $0x99] sm:$0xff]
  %v2886 = vld [vmem:[%s2839 + $0xa9] sm:$0xff]
  %v2887 = vld [vmem:[%s2839 + $0xb1] sm:$0xff]
  %v2888 = vld [vmem:[%s1125] sm:$0xff]
  %v2889 = vld [vmem:[%s1125 + $0x8] sm:$0xff]
  %v2890 = vld [vmem:[%s1125 + $0x10] sm:$0xff]
  %v2891 = vld [vmem:[%s1125 + $0x18] sm:$0xff]
  %v2892 = vld [vmem:[%s1125 + $0x20] sm:$0xff]
  %v2893 = vld [vmem:[%s1125 + $0x28] sm:$0xff]
  %v2894 = vld [vmem:[%s1125 + $0x30] sm:$0xff]
  %v2895 = vld [vmem:[%s1125 + $0x38] sm:$0xff]
  %v2896 = vld [vmem:[%s1125 + $0x40] sm:$0xff]
  %v2897 = vld [vmem:[%s1125 + $0x48] sm:$0xff]
  %v2898 = vld [vmem:[%s1125 + $0x50] sm:$0xff]
  %v2899 = vld [vmem:[%s1125 + $0x58] sm:$0xff]
  %v2900 = vld [vmem:[%s1125 + $0x60] sm:$0xff]
  %v2901 = vld [vmem:[%s1125 + $0x68] sm:$0xff]
  %v2902 = vld [vmem:[%s1125 + $0x70] sm:$0xff]
  %v2903 = vld [vmem:[%s1125 + $0x78] sm:$0xff]
  %2904 = vmatprep.subr.mxu0 0.0
  %2905 = vmatpush1.msra.mxu0 %v2888
  %2906 = vmatprep.subr.mxu0 0.0
  %2907 = vmatpush1.msra.mxu0 %v2889
  %2908 = vmatprep.subr.mxu0 0.0
  %2909 = vmatpush1.msra.mxu0 %v2890
  %2910 = vmatprep.subr.mxu0 0.0
  %2911 = vmatpush1.msra.mxu0 %v2891
  %2912 = vmatprep.subr.mxu0 0.0
  %2913 = vmatpush1.msra.mxu0 %v2892
  %2914 = vmatprep.subr.mxu0 0.0
  %2915 = vmatpush1.msra.mxu0 %v2893
  %2916 = vmatprep.subr.mxu0 0.0
  %2917 = vmatpush1.msra.mxu0 %v2894
  %2918 = vmatprep.subr.mxu0 0.0
  %2919 = vmatpush1.msra.mxu0 %v2895
  %2920 = vmatprep.subr.mxu0 0.0
  %2921 = vmatpush1.msra.mxu0 %v2896
  %2922 = vmatprep.subr.mxu0 0.0
  %2923 = vmatpush1.msra.mxu0 %v2897
  %2924 = vmatprep.subr.mxu0 0.0
  %2925 = vmatpush1.msra.mxu0 %v2898
  %2926 = vmatprep.subr.mxu0 0.0
  %2927 = vmatpush1.msra.mxu0 %v2899
  %2928 = vmatprep.subr.mxu0 0.0
  %2929 = vmatpush1.msra.mxu0 %v2900
  %2930 = vmatprep.subr.mxu0 0.0
  %2931 = vmatpush1.msra.mxu0 %v2901
  %2932 = vmatprep.subr.mxu0 0.0
  %2933 = vmatpush1.msra.mxu0 %v2902
  %2934 = vmatprep.subr.mxu0 0.0
  %2935 = vmatpush1.msra.mxu0 %v2903
  %2936 = vmatprep.subr.mxu0 0.0
  %2937 = vmatpush1.msra.mxu0 0.0
  %2938 = vmatprep.subr.mxu0 0.0
  %2939 = vmatpush1.msra.mxu0 0.0
  %2940 = vmatprep.subr.mxu0 0.0
  %2941 = vmatpush1.msra.mxu0 0.0
  %2942 = vmatprep.subr.mxu0 0.0
  %2943 = vmatpush1.msra.mxu0 0.0
  %2944 = vmatprep.subr.mxu0 0.0
  %2945 = vmatpush1.msra.mxu0 0.0
  %2946 = vmatprep.subr.mxu0 0.0
  %2947 = vmatpush1.msra.mxu0 0.0
  %2948 = vmatprep.subr.mxu0 0.0
  %2949 = vmatpush1.msra.mxu0 0.0
  %2950 = vmatprep.subr.mxu0 0.0
  %2951 = vmatpush1.msra.mxu0 0.0
  %2952 = vmatprep.subr.mxu0 0.0
  %2953 = vmatpush1.msra.mxu0 0.0
  %2954 = vmatprep.subr.mxu0 0.0
  %2955 = vmatpush1.msra.mxu0 0.0
  %2956 = vmatprep.subr.mxu0 0.0
  %2957 = vmatpush1.msra.mxu0 0.0
  %2958 = vmatprep.subr.mxu0 0.0
  %2959 = vmatpush1.msra.mxu0 0.0
  %2960 = vmatprep.subr.mxu0 0.0
  %2961 = vmatpush1.msra.mxu0 0.0
  %2962 = vmatprep.subr.mxu0 0.0
  %2963 = vmatpush1.msra.mxu0 0.0
  %2964 = vmatprep.subr.mxu0 0.0
  %2965 = vmatpush1.msra.mxu0 0.0
  %2966 = vmatprep.subr.mxu0 0.0
  %2967 = vmatpush1.msra.mxu0 0.0
  %2968 = vmatprep.mubr.f32.mxu0 0.0
  %2969 = vmatmul.mubr.f32.gmra.mrb[0].mxu0 %v2872
  %v2970 = vpop.f32.mrb[0].mxu0
  %v2971 = vadd.f32 0.0, %v2970
  %v2972 = vpop.f32.mrb[0].mxu0
  %2973 = vmatprep.mubr.f32.mxu0 0.0
  %2974 = vmatmul.mubr.f32.gmra.mrb[0].mxu0 %v2873
  %v2975 = vpop.f32.mrb[0].mxu0
  %v2976 = vadd.f32 0.0, %v2975
  %v2977 = vpop.f32.mrb[0].mxu0
  %2978 = vmatprep.mubr.f32.mxu0 0.0
  %2979 = vmatmul.mubr.f32.gmra.mrb[0].mxu0 %v2874
  %v2980 = vpop.f32.mrb[0].mxu0
  %v2981 = vadd.f32 0.0, %v2980
  %v2982 = vpop.f32.mrb[0].mxu0
  %2983 = vmatprep.mubr.f32.mxu0 0.0
  %2984 = vmatmul.mubr.f32.gmra.mrb[0].mxu0 %v2875
  %v2985 = vpop.f32.mrb[0].mxu0
  %v2986 = vadd.f32 0.0, %v2985
  %v2987 = vpop.f32.mrb[0].mxu0
  %2988 = vmatprep.mubr.f32.mxu0 0.0
  %2989 = vmatmul.mubr.f32.gmra.mrb[0].mxu0 %v2876
  %v2990 = vpop.f32.mrb[0].mxu0
  %v2991 = vadd.f32 0.0, %v2990
  %v2992 = vpop.f32.mrb[0].mxu0
  %2993 = vmatprep.mubr.f32.mxu0 0.0
  %2994 = vmatmul.mubr.f32.gmra.mrb[0].mxu0 %v2877
  %v2995 = vpop.f32.mrb[0].mxu0
  %v2996 = vadd.f32 0.0, %v2995
  %v2997 = vpop.f32.mrb[0].mxu0
  %2998 = vmatprep.mubr.f32.mxu0 0.0
  %2999 = vmatmul.mubr.f32.gmra.mrb[0].mxu0 %v2878
  %v3000 = vpop.f32.mrb[0].mxu0
  %v3001 = vadd.f32 0.0, %v3000
  %v3002 = vpop.f32.mrb[0].mxu0
  %3003 = vmatprep.mubr.f32.mxu0 0.0
  %3004 = vmatmul.mubr.f32.gmra.mrb[0].mxu0 %v2879
  %v3005 = vpop.f32.mrb[0].mxu0
  %v3006 = vadd.f32 0.0, %v3005
  %v3007 = vpop.f32.mrb[0].mxu0
  %3008 = vmatprep.mubr.f32.mxu0 0.0
  %3009 = vmatmul.mubr.f32.gmra.mrb[0].mxu0 %v2880
  %v3010 = vpop.f32.mrb[0].mxu0
  %v3011 = vadd.f32 0.0, %v3010
  %v3012 = vpop.f32.mrb[0].mxu0
  %3013 = vmatprep.mubr.f32.mxu0 0.0
  %3014 = vmatmul.mubr.f32.gmra.mrb[0].mxu0 %v2881
  %v3015 = vpop.f32.mrb[0].mxu0
  %v3016 = vadd.f32 0.0, %v3015
  %v3017 = vpop.f32.mrb[0].mxu0
  %3018 = vmatprep.mubr.f32.mxu0 0.0
  %3019 = vmatmul.mubr.f32.gmra.mrb[0].mxu0 %v2882
  %v3020 = vpop.f32.mrb[0].mxu0
  %v3021 = vadd.f32 0.0, %v3020
  %v3022 = vpop.f32.mrb[0].mxu0
  %3023 = vmatprep.mubr.f32.mxu0 0.0
  %3024 = vmatmul.mubr.f32.gmra.mrb[0].mxu0 %v2883
  %v3025 = vpop.f32.mrb[0].mxu0
  %v3026 = vadd.f32 0.0, %v3025
  %v3027 = vpop.f32.mrb[0].mxu0
  %3028 = vmatprep.mubr.f32.mxu0 0.0
  %3029 = vmatmul.mubr.f32.gmra.mrb[0].mxu0 %v2884
  %v3030 = vpop.f32.mrb[0].mxu0
  %v3031 = vadd.f32 0.0, %v3030
  %v3032 = vpop.f32.mrb[0].mxu0
  %3033 = vmatprep.mubr.f32.mxu0 0.0
  %3034 = vmatmul.mubr.f32.gmra.mrb[0].mxu0 %v2885
  %v3035 = vpop.f32.mrb[0].mxu0
  %v3036 = vadd.f32 0.0, %v3035
  %v3037 = vpop.f32.mrb[0].mxu0
  %3038 = vmatprep.mubr.f32.mxu0 0.0
  %3039 = vmatmul.mubr.f32.gmra.mrb[0].mxu0 %v2886
  %v3040 = vpop.f32.mrb[0].mxu0
  %v3041 = vadd.f32 0.0, %v3040
  %v3042 = vpop.f32.mrb[0].mxu0
  %3043 = vmatprep.mubr.f32.mxu0 0.0
  %3044 = vmatmul.mubr.f32.gmra.mrb[0].mxu0 %v2887
  %v3045 = vpop.f32.mrb[0].mxu0
  %v3046 = vadd.f32 0.0, %v3045
  %v3047 = vpop.f32.mrb[0].mxu0
  %3048 = vdwg.mxu0
  %3049 = vmatprep.subr.mxu0 0.0
  %3050 = vmatpush1.msra.mxu0 %v2856
  %3051 = vmatprep.subr.mxu0 0.0
  %3052 = vmatpush1.msra.mxu0 %v2857
  %3053 = vmatprep.subr.mxu0 0.0
  %3054 = vmatpush1.msra.mxu0 %v2858
  %3055 = vmatprep.subr.mxu0 0.0
  %3056 = vmatpush1.msra.mxu0 %v2859
  %3057 = vmatprep.subr.mxu0 0.0
  %3058 = vmatpush1.msra.mxu0 %v2860
  %3059 = vmatprep.subr.mxu0 0.0
  %3060 = vmatpush1.msra.mxu0 %v2861
  %3061 = vmatprep.subr.mxu0 0.0
  %3062 = vmatpush1.msra.mxu0 %v2862
  %3063 = vmatprep.subr.mxu0 0.0
  %3064 = vmatpush1.msra.mxu0 %v2863
  %3065 = vmatprep.subr.mxu0 0.0
  %3066 = vmatpush1.msra.mxu0 %v2864
  %3067 = vmatprep.subr.mxu0 0.0
  %3068 = vmatpush1.msra.mxu0 %v2865
  %3069 = vmatprep.subr.mxu0 0.0
  %3070 = vmatpush1.msra.mxu0 %v2866
  %3071 = vmatprep.subr.mxu0 0.0
  %3072 = vmatpush1.msra.mxu0 %v2867
  %3073 = vmatprep.subr.mxu0 0.0
  %3074 = vmatpush1.msra.mxu0 %v2868
  %3075 = vmatprep.subr.mxu0 0.0
  %3076 = vmatpush1.msra.mxu0 %v2869
  %3077 = vmatprep.subr.mxu0 0.0
  %3078 = vmatpush1.msra.mxu0 %v2870
  %3079 = vmatprep.subr.mxu0 0.0
  %3080 = vmatpush1.msra.mxu0 %v2871
  %3081 = vmatprep.subr.mxu0 0.0
  %3082 = vmatpush1.msra.mxu0 0.0
  %3083 = vmatprep.subr.mxu0 0.0
  %3084 = vmatpush1.msra.mxu0 0.0
  %3085 = vmatprep.subr.mxu0 0.0
  %3086 = vmatpush1.msra.mxu0 0.0
  %3087 = vmatprep.subr.mxu0 0.0
  %3088 = vmatpush1.msra.mxu0 0.0
  %3089 = vmatprep.subr.mxu0 0.0
  %3090 = vmatpush1.msra.mxu0 0.0
  %3091 = vmatprep.subr.mxu0 0.0
  %3092 = vmatpush1.msra.mxu0 0.0
  %3093 = vmatprep.subr.mxu0 0.0
  %3094 = vmatpush1.msra.mxu0 0.0
  %3095 = vmatprep.subr.mxu0 0.0
  %3096 = vmatpush1.msra.mxu0 0.0
  %3097 = vmatprep.subr.mxu0 0.0
  %3098 = vmatpush1.msra.mxu0 0.0
  %3099 = vmatprep.subr.mxu0 0.0
  %3100 = vmatpush1.msra.mxu0 0.0
  %3101 = vmatprep.subr.mxu0 0.0
  %3102 = vmatpush1.msra.mxu0 0.0
  %3103 = vmatprep.subr.mxu0 0.0
  %3104 = vmatpush1.msra.mxu0 0.0
  %3105 = vmatprep.subr.mxu0 0.0
  %3106 = vmatpush1.msra.mxu0 0.0
  %3107 = vmatprep.subr.mxu0 0.0
  %3108 = vmatpush1.msra.mxu0 0.0
  %3109 = vmatprep.subr.mxu0 0.0
  %3110 = vmatpush1.msra.mxu0 0.0
  %3111 = vmatprep.subr.mxu0 0.0
  %3112 = vmatpush1.msra.mxu0 0.0
  %3113 = vmatprep.mubr.f32.mxu0 0.0
  %3114 = vmatmul.mubr.f32.gmra.mrb[0].mxu0 %v2840
  %v3115 = vpop.f32.mrb[0].mxu0
  %v3116 = vadd.f32 %v2971, %v3115
  %v3117 = vpop.f32.mrb[0].mxu0
  %3118 = vmatprep.mubr.f32.mxu0 0.0
  %3119 = vmatmul.mubr.f32.gmra.mrb[0].mxu0 %v2841
  %v3120 = vpop.f32.mrb[0].mxu0
  %v3121 = vadd.f32 %v2976, %v3120
  %v3122 = vpop.f32.mrb[0].mxu0
  %3123 = vmatprep.mubr.f32.mxu0 0.0
  %3124 = vmatmul.mubr.f32.gmra.mrb[0].mxu0 %v2842
  %v3125 = vpop.f32.mrb[0].mxu0
  %v3126 = vadd.f32 %v2981, %v3125
  %v3127 = vpop.f32.mrb[0].mxu0
  %3128 = vmatprep.mubr.f32.mxu0 0.0
  %3129 = vmatmul.mubr.f32.gmra.mrb[0].mxu0 %v2843
  %v3130 = vpop.f32.mrb[0].mxu0
  %v3131 = vadd.f32 %v2986, %v3130
  %v3132 = vpop.f32.mrb[0].mxu0
  %3133 = vmatprep.mubr.f32.mxu0 0.0
  %3134 = vmatmul.mubr.f32.gmra.mrb[0].mxu0 %v2844
  %v3135 = vpop.f32.mrb[0].mxu0
  %v3136 = vadd.f32 %v2991, %v3135
  %v3137 = vpop.f32.mrb[0].mxu0
  %3138 = vmatprep.mubr.f32.mxu0 0.0
  %3139 = vmatmul.mubr.f32.gmra.mrb[0].mxu0 %v2845
  %v3140 = vpop.f32.mrb[0].mxu0
  %v3141 = vadd.f32 %v2996, %v3140
  %v3142 = vpop.f32.mrb[0].mxu0
  %3143 = vmatprep.mubr.f32.mxu0 0.0
  %3144 = vmatmul.mubr.f32.gmra.mrb[0].mxu0 %v2846
  %v3145 = vpop.f32.mrb[0].mxu0
  %v3146 = vadd.f32 %v3001, %v3145
  %v3147 = vpop.f32.mrb[0].mxu0
  %3148 = vmatprep.mubr.f32.mxu0 0.0
  %3149 = vmatmul.mubr.f32.gmra.mrb[0].mxu0 %v2847
  %v3150 = vpop.f32.mrb[0].mxu0
  %v3151 = vadd.f32 %v3006, %v3150
  %v3152 = vpop.f32.mrb[0].mxu0
  %3153 = vmatprep.mubr.f32.mxu0 0.0
  %3154 = vmatmul.mubr.f32.gmra.mrb[0].mxu0 %v2848
  %v3155 = vpop.f32.mrb[0].mxu0
  %v3156 = vadd.f32 %v3011, %v3155
  %v3157 = vpop.f32.mrb[0].mxu0
  %3158 = vmatprep.mubr.f32.mxu0 0.0
  %3159 = vmatmul.mubr.f32.gmra.mrb[0].mxu0 %v2849
  %v3160 = vpop.f32.mrb[0].mxu0
  %v3161 = vadd.f32 %v3016, %v3160
  %v3162 = vpop.f32.mrb[0].mxu0
  %3163 = vmatprep.mubr.f32.mxu0 0.0
  %3164 = vmatmul.mubr.f32.gmra.mrb[0].mxu0 %v2850
  %v3165 = vpop.f32.mrb[0].mxu0
  %v3166 = vadd.f32 %v3021, %v3165
  %v3167 = vpop.f32.mrb[0].mxu0
  %3168 = vmatprep.mubr.f32.mxu0 0.0
  %3169 = vmatmul.mubr.f32.gmra.mrb[0].mxu0 %v2851
  %v3170 = vpop.f32.mrb[0].mxu0
  %v3171 = vadd.f32 %v3026, %v3170
  %v3172 = vpop.f32.mrb[0].mxu0
  %3173 = vmatprep.mubr.f32.mxu0 0.0
  %3174 = vmatmul.mubr.f32.gmra.mrb[0].mxu0 %v2852
  %v3175 = vpop.f32.mrb[0].mxu0
  %v3176 = vadd.f32 %v3031, %v3175
  %v3177 = vpop.f32.mrb[0].mxu0
  %3178 = vmatprep.mubr.f32.mxu0 0.0
  %3179 = vmatmul.mubr.f32.gmra.mrb[0].mxu0 %v2853
  %v3180 = vpop.f32.mrb[0].mxu0
  %v3181 = vadd.f32 %v3036, %v3180
  %v3182 = vpop.f32.mrb[0].mxu0
  %3183 = vmatprep.mubr.f32.mxu0 0.0
  %3184 = vmatmul.mubr.f32.gmra.mrb[0].mxu0 %v2854
  %v3185 = vpop.f32.mrb[0].mxu0
  %v3186 = vadd.f32 %v3041, %v3185
  %v3187 = vpop.f32.mrb[0].mxu0
  %3188 = vmatprep.mubr.f32.mxu0 0.0
  %3189 = vmatmul.mubr.f32.gmra.mrb[0].mxu0 %v2855
  %v3190 = vpop.f32.mrb[0].mxu0
  %v3191 = vadd.f32 %v3046, %v3190
  %v3192 = vpop.f32.mrb[0].mxu0
  %3193 = vdwg.mxu0
  %v3194 = vld [vmem:[%s2839 + $0x2] sm:$0xff]
  %v3195 = vld [vmem:[%s2839 + $0xa] sm:$0xff]
  %v3196 = vld [vmem:[%s2839 + $0x1a] sm:$0xff]
  %v3197 = vld [vmem:[%s2839 + $0x22] sm:$0xff]
  %v3198 = vld [vmem:[%s2839 + $0x32] sm:$0xff]
  %v3199 = vld [vmem:[%s2839 + $0x3a] sm:$0xff]
  %v3200 = vld [vmem:[%s2839 + $0x4a] sm:$0xff]
  %v3201 = vld [vmem:[%s2839 + $0x52] sm:$0xff]
  %v3202 = vld [vmem:[%s2839 + $0x62] sm:$0xff]
  %v3203 = vld [vmem:[%s2839 + $0x6a] sm:$0xff]
  %v3204 = vld [vmem:[%s2839 + $0x7a] sm:$0xff]
  %v3205 = vld [vmem:[%s2839 + $0x82] sm:$0xff]
  %v3206 = vld [vmem:[%s2839 + $0x92] sm:$0xff]
  %v3207 = vld [vmem:[%s2839 + $0x9a] sm:$0xff]
  %v3208 = vld [vmem:[%s2839 + $0xaa] sm:$0xff]
  %v3209 = vld [vmem:[%s2839 + $0xb2] sm:$0xff]
  %v3210 = vld [vmem:[%s1448] sm:$0xff]
  %v3211 = vld [vmem:[%s1448 + $0x8] sm:$0xff]
  %v3212 = vld [vmem:[%s1448 + $0x10] sm:$0xff]
  %v3213 = vld [vmem:[%s1448 + $0x18] sm:$0xff]
  %v3214 = vld [vmem:[%s1448 + $0x20] sm:$0xff]
  %v3215 = vld [vmem:[%s1448 + $0x28] sm:$0xff]
  %v3216 = vld [vmem:[%s1448 + $0x30] sm:$0xff]
  %v3217 = vld [vmem:[%s1448 + $0x38] sm:$0xff]
  %v3218 = vld [vmem:[%s1448 + $0x40] sm:$0xff]
  %v3219 = vld [vmem:[%s1448 + $0x48] sm:$0xff]
  %v3220 = vld [vmem:[%s1448 + $0x50] sm:$0xff]
  %v3221 = vld [vmem:[%s1448 + $0x58] sm:$0xff]
  %v3222 = vld [vmem:[%s1448 + $0x60] sm:$0xff]
  %v3223 = vld [vmem:[%s1448 + $0x68] sm:$0xff]
  %v3224 = vld [vmem:[%s1448 + $0x70] sm:$0xff]
  %v3225 = vld [vmem:[%s1448 + $0x78] sm:$0xff]
  %3226 = vmatprep.subr.mxu0 0.0
  %3227 = vmatpush1.msra.mxu0 %v3210
  %3228 = vmatprep.subr.mxu0 0.0
  %3229 = vmatpush1.msra.mxu0 %v3211
  %3230 = vmatprep.subr.mxu0 0.0
  %3231 = vmatpush1.msra.mxu0 %v3212
  %3232 = vmatprep.subr.mxu0 0.0
  %3233 = vmatpush1.msra.mxu0 %v3213
  %3234 = vmatprep.subr.mxu0 0.0
  %3235 = vmatpush1.msra.mxu0 %v3214
  %3236 = vmatprep.subr.mxu0 0.0
  %3237 = vmatpush1.msra.mxu0 %v3215
  %3238 = vmatprep.subr.mxu0 0.0
  %3239 = vmatpush1.msra.mxu0 %v3216
  %3240 = vmatprep.subr.mxu0 0.0
  %3241 = vmatpush1.msra.mxu0 %v3217
  %3242 = vmatprep.subr.mxu0 0.0
  %3243 = vmatpush1.msra.mxu0 %v3218
  %3244 = vmatprep.subr.mxu0 0.0
  %3245 = vmatpush1.msra.mxu0 %v3219
  %3246 = vmatprep.subr.mxu0 0.0
  %3247 = vmatpush1.msra.mxu0 %v3220
  %3248 = vmatprep.subr.mxu0 0.0
  %3249 = vmatpush1.msra.mxu0 %v3221
  %3250 = vmatprep.subr.mxu0 0.0
  %3251 = vmatpush1.msra.mxu0 %v3222
  %3252 = vmatprep.subr.mxu0 0.0
  %3253 = vmatpush1.msra.mxu0 %v3223
  %3254 = vmatprep.subr.mxu0 0.0
  %3255 = vmatpush1.msra.mxu0 %v3224
  %3256 = vmatprep.subr.mxu0 0.0
  %3257 = vmatpush1.msra.mxu0 %v3225
  %3258 = vmatprep.subr.mxu0 0.0
  %3259 = vmatpush1.msra.mxu0 0.0
  %3260 = vmatprep.subr.mxu0 0.0
  %3261 = vmatpush1.msra.mxu0 0.0
  %3262 = vmatprep.subr.mxu0 0.0
  %3263 = vmatpush1.msra.mxu0 0.0
  %3264 = vmatprep.subr.mxu0 0.0
  %3265 = vmatpush1.msra.mxu0 0.0
  %3266 = vmatprep.subr.mxu0 0.0
  %3267 = vmatpush1.msra.mxu0 0.0
  %3268 = vmatprep.subr.mxu0 0.0
  %3269 = vmatpush1.msra.mxu0 0.0
  %3270 = vmatprep.subr.mxu0 0.0
  %3271 = vmatpush1.msra.mxu0 0.0
  %3272 = vmatprep.subr.mxu0 0.0
  %3273 = vmatpush1.msra.mxu0 0.0
  %3274 = vmatprep.subr.mxu0 0.0
  %3275 = vmatpush1.msra.mxu0 0.0
  %3276 = vmatprep.subr.mxu0 0.0
  %3277 = vmatpush1.msra.mxu0 0.0
  %3278 = vmatprep.subr.mxu0 0.0
  %3279 = vmatpush1.msra.mxu0 0.0
  %3280 = vmatprep.subr.mxu0 0.0
  %3281 = vmatpush1.msra.mxu0 0.0
  %3282 = vmatprep.subr.mxu0 0.0
  %3283 = vmatpush1.msra.mxu0 0.0
  %3284 = vmatprep.subr.mxu0 0.0
  %3285 = vmatpush1.msra.mxu0 0.0
  %3286 = vmatprep.subr.mxu0 0.0
  %3287 = vmatpush1.msra.mxu0 0.0
  %3288 = vmatprep.subr.mxu0 0.0
  %3289 = vmatpush1.msra.mxu0 0.0
  %3290 = vmatprep.mubr.f32.mxu0 0.0
  %3291 = vmatmul.mubr.f32.gmra.mrb[0].mxu0 %v3194
  %v3292 = vpop.f32.mrb[0].mxu0
  %v3293 = vadd.f32 0.0, %v3292
  %v3294 = vpop.f32.mrb[0].mxu0
  %3295 = vmatprep.mubr.f32.mxu0 0.0
  %3296 = vmatmul.mubr.f32.gmra.mrb[0].mxu0 %v3195
  %v3297 = vpop.f32.mrb[0].mxu0
  %v3298 = vadd.f32 0.0, %v3297
  %v3299 = vpop.f32.mrb[0].mxu0
  %3300 = vmatprep.mubr.f32.mxu0 0.0
  %3301 = vmatmul.mubr.f32.gmra.mrb[0].mxu0 %v3196
  %v3302 = vpop.f32.mrb[0].mxu0
  %v3303 = vadd.f32 0.0, %v3302
  %v3304 = vpop.f32.mrb[0].mxu0
  %3305 = vmatprep.mubr.f32.mxu0 0.0
  %3306 = vmatmul.mubr.f32.gmra.mrb[0].mxu0 %v3197
  %v3307 = vpop.f32.mrb[0].mxu0
  %v3308 = vadd.f32 0.0, %v3307
  %v3309 = vpop.f32.mrb[0].mxu0
  %3310 = vmatprep.mubr.f32.mxu0 0.0
  %3311 = vmatmul.mubr.f32.gmra.mrb[0].mxu0 %v3198
  %v3312 = vpop.f32.mrb[0].mxu0
  %v3313 = vadd.f32 0.0, %v3312
  %v3314 = vpop.f32.mrb[0].mxu0
  %3315 = vmatprep.mubr.f32.mxu0 0.0
  %3316 = vmatmul.mubr.f32.gmra.mrb[0].mxu0 %v3199
  %v3317 = vpop.f32.mrb[0].mxu0
  %v3318 = vadd.f32 0.0, %v3317
  %v3319 = vpop.f32.mrb[0].mxu0
  %3320 = vmatprep.mubr.f32.mxu0 0.0
  %3321 = vmatmul.mubr.f32.gmra.mrb[0].mxu0 %v3200
  %v3322 = vpop.f32.mrb[0].mxu0
  %v3323 = vadd.f32 0.0, %v3322
  %v3324 = vpop.f32.mrb[0].mxu0
  %3325 = vmatprep.mubr.f32.mxu0 0.0
  %3326 = vmatmul.mubr.f32.gmra.mrb[0].mxu0 %v3201
  %v3327 = vpop.f32.mrb[0].mxu0
  %v3328 = vadd.f32 0.0, %v3327
  %v3329 = vpop.f32.mrb[0].mxu0
  %3330 = vmatprep.mubr.f32.mxu0 0.0
  %3331 = vmatmul.mubr.f32.gmra.mrb[0].mxu0 %v3202
  %v3332 = vpop.f32.mrb[0].mxu0
  %v3333 = vadd.f32 0.0, %v3332
  %v3334 = vpop.f32.mrb[0].mxu0
  %3335 = vmatprep.mubr.f32.mxu0 0.0
  %3336 = vmatmul.mubr.f32.gmra.mrb[0].mxu0 %v3203
  %v3337 = vpop.f32.mrb[0].mxu0
  %v3338 = vadd.f32 0.0, %v3337
  %v3339 = vpop.f32.mrb[0].mxu0
  %3340 = vmatprep.mubr.f32.mxu0 0.0
  %3341 = vmatmul.mubr.f32.gmra.mrb[0].mxu0 %v3204
  %v3342 = vpop.f32.mrb[0].mxu0
  %v3343 = vadd.f32 0.0, %v3342
  %v3344 = vpop.f32.mrb[0].mxu0
  %3345 = vmatprep.mubr.f32.mxu0 0.0
  %3346 = vmatmul.mubr.f32.gmra.mrb[0].mxu0 %v3205
  %v3347 = vpop.f32.mrb[0].mxu0
  %v3348 = vadd.f32 0.0, %v3347
  %v3349 = vpop.f32.mrb[0].mxu0
  %3350 = vmatprep.mubr.f32.mxu0 0.0
  %3351 = vmatmul.mubr.f32.gmra.mrb[0].mxu0 %v3206
  %v3352 = vpop.f32.mrb[0].mxu0
  %v3353 = vadd.f32 0.0, %v3352
  %v3354 = vpop.f32.mrb[0].mxu0
  %3355 = vmatprep.mubr.f32.mxu0 0.0
  %3356 = vmatmul.mubr.f32.gmra.mrb[0].mxu0 %v3207
  %v3357 = vpop.f32.mrb[0].mxu0
  %v3358 = vadd.f32 0.0, %v3357
  %v3359 = vpop.f32.mrb[0].mxu0
  %3360 = vmatprep.mubr.f32.mxu0 0.0
  %3361 = vmatmul.mubr.f32.gmra.mrb[0].mxu0 %v3208
  %v3362 = vpop.f32.mrb[0].mxu0
  %v3363 = vadd.f32 0.0, %v3362
  %v3364 = vpop.f32.mrb[0].mxu0
  %3365 = vmatprep.mubr.f32.mxu0 0.0
  %3366 = vmatmul.mubr.f32.gmra.mrb[0].mxu0 %v3209
  %v3367 = vpop.f32.mrb[0].mxu0
  %v3368 = vadd.f32 0.0, %v3367
  %v3369 = vpop.f32.mrb[0].mxu0
  %3370 = vdwg.mxu0
  %v3371 = vadd.f32 %v3116, %v3293
  %v3372 = vadd.f32 %v3121, %v3298
  %v3373 = vadd.f32 %v3126, %v3303
  %v3374 = vadd.f32 %v3131, %v3308
  %v3375 = vadd.f32 %v3136, %v3313
  %v3376 = vadd.f32 %v3141, %v3318
  %v3377 = vadd.f32 %v3146, %v3323
  %v3378 = vadd.f32 %v3151, %v3328
  %v3379 = vadd.f32 %v3156, %v3333
  %v3380 = vadd.f32 %v3161, %v3338
  %v3381 = vadd.f32 %v3166, %v3343
  %v3382 = vadd.f32 %v3171, %v3348
  %v3383 = vadd.f32 %v3176, %v3353
  %v3384 = vadd.f32 %v3181, %v3358
  %v3385 = vadd.f32 %v3186, %v3363
  %v3386 = vadd.f32 %v3191, %v3368
  %v3387 = vld [vmem:[%s576] sm:$0xff]
  %v3388 = vld [vmem:[%s576 + $0x8] sm:$0xff]
  %v3389 = vld [vmem:[%s576 + $0x18] sm:$0xff]
  %v3390 = vld [vmem:[%s576 + $0x20] sm:$0xff]
  %v3391 = vld [vmem:[%s576 + $0x30] sm:$0xff]
  %v3392 = vld [vmem:[%s576 + $0x38] sm:$0xff]
  %v3393 = vld [vmem:[%s576 + $0x48] sm:$0xff]
  %v3394 = vld [vmem:[%s576 + $0x50] sm:$0xff]
  %v3395 = vld [vmem:[%s576 + $0x60] sm:$0xff]
  %v3396 = vld [vmem:[%s576 + $0x68] sm:$0xff]
  %v3397 = vld [vmem:[%s576 + $0x78] sm:$0xff]
  %v3398 = vld [vmem:[%s576 + $0x80] sm:$0xff]
  %v3399 = vld [vmem:[%s576 + $0x90] sm:$0xff]
  %v3400 = vld [vmem:[%s576 + $0x98] sm:$0xff]
  %v3401 = vld [vmem:[%s576 + $0xa8] sm:$0xff]
  %v3402 = vld [vmem:[%s576 + $0xb0] sm:$0xff]
  %v3403 = vld [vmem:[%s1642] sm:$0xff]
  %v3404 = vld [vmem:[%s1642 + $0x8] sm:$0xff]
  %v3405 = vld [vmem:[%s1642 + $0x10] sm:$0xff]
  %v3406 = vld [vmem:[%s1642 + $0x18] sm:$0xff]
  %v3407 = vld [vmem:[%s1642 + $0x20] sm:$0xff]
  %v3408 = vld [vmem:[%s1642 + $0x28] sm:$0xff]
  %v3409 = vld [vmem:[%s1642 + $0x30] sm:$0xff]
  %v3410 = vld [vmem:[%s1642 + $0x38] sm:$0xff]
  %v3411 = vld [vmem:[%s1642 + $0x40] sm:$0xff]
  %v3412 = vld [vmem:[%s1642 + $0x48] sm:$0xff]
  %v3413 = vld [vmem:[%s1642 + $0x50] sm:$0xff]
  %v3414 = vld [vmem:[%s1642 + $0x58] sm:$0xff]
  %v3415 = vld [vmem:[%s1642 + $0x60] sm:$0xff]
  %v3416 = vld [vmem:[%s1642 + $0x68] sm:$0xff]
  %v3417 = vld [vmem:[%s1642 + $0x70] sm:$0xff]
  %v3418 = vld [vmem:[%s1642 + $0x78] sm:$0xff]
  %3419 = vmatprep.subr.mxu0 0.0
  %3420 = vmatpush1.msra.mxu0 %v3403
  %3421 = vmatprep.subr.mxu0 0.0
  %3422 = vmatpush1.msra.mxu0 %v3404
  %3423 = vmatprep.subr.mxu0 0.0
  %3424 = vmatpush1.msra.mxu0 %v3405
  %3425 = vmatprep.subr.mxu0 0.0
  %3426 = vmatpush1.msra.mxu0 %v3406
  %3427 = vmatprep.subr.mxu0 0.0
  %3428 = vmatpush1.msra.mxu0 %v3407
  %3429 = vmatprep.subr.mxu0 0.0
  %3430 = vmatpush1.msra.mxu0 %v3408
  %3431 = vmatprep.subr.mxu0 0.0
  %3432 = vmatpush1.msra.mxu0 %v3409
  %3433 = vmatprep.subr.mxu0 0.0
  %3434 = vmatpush1.msra.mxu0 %v3410
  %3435 = vmatprep.subr.mxu0 0.0
  %3436 = vmatpush1.msra.mxu0 %v3411
  %3437 = vmatprep.subr.mxu0 0.0
  %3438 = vmatpush1.msra.mxu0 %v3412
  %3439 = vmatprep.subr.mxu0 0.0
  %3440 = vmatpush1.msra.mxu0 %v3413
  %3441 = vmatprep.subr.mxu0 0.0
  %3442 = vmatpush1.msra.mxu0 %v3414
  %3443 = vmatprep.subr.mxu0 0.0
  %3444 = vmatpush1.msra.mxu0 %v3415
  %3445 = vmatprep.subr.mxu0 0.0
  %3446 = vmatpush1.msra.mxu0 %v3416
  %3447 = vmatprep.subr.mxu0 0.0
  %3448 = vmatpush1.msra.mxu0 %v3417
  %3449 = vmatprep.subr.mxu0 0.0
  %3450 = vmatpush1.msra.mxu0 %v3418
  %3451 = vmatprep.subr.mxu0 0.0
  %3452 = vmatpush1.msra.mxu0 0.0
  %3453 = vmatprep.subr.mxu0 0.0
  %3454 = vmatpush1.msra.mxu0 0.0
  %3455 = vmatprep.subr.mxu0 0.0
  %3456 = vmatpush1.msra.mxu0 0.0
  %3457 = vmatprep.subr.mxu0 0.0
  %3458 = vmatpush1.msra.mxu0 0.0
  %3459 = vmatprep.subr.mxu0 0.0
  %3460 = vmatpush1.msra.mxu0 0.0
  %3461 = vmatprep.subr.mxu0 0.0
  %3462 = vmatpush1.msra.mxu0 0.0
  %3463 = vmatprep.subr.mxu0 0.0
  %3464 = vmatpush1.msra.mxu0 0.0
  %3465 = vmatprep.subr.mxu0 0.0
  %3466 = vmatpush1.msra.mxu0 0.0
  %3467 = vmatprep.subr.mxu0 0.0
  %3468 = vmatpush1.msra.mxu0 0.0
  %3469 = vmatprep.subr.mxu0 0.0
  %3470 = vmatpush1.msra.mxu0 0.0
  %3471 = vmatprep.subr.mxu0 0.0
  %3472 = vmatpush1.msra.mxu0 0.0
  %3473 = vmatprep.subr.mxu0 0.0
  %3474 = vmatpush1.msra.mxu0 0.0
  %3475 = vmatprep.subr.mxu0 0.0
  %3476 = vmatpush1.msra.mxu0 0.0
  %3477 = vmatprep.subr.mxu0 0.0
  %3478 = vmatpush1.msra.mxu0 0.0
  %3479 = vmatprep.subr.mxu0 0.0
  %3480 = vmatpush1.msra.mxu0 0.0
  %3481 = vmatprep.subr.mxu0 0.0
  %3482 = vmatpush1.msra.mxu0 0.0
  %3483 = vmatprep.mubr.f32.mxu0 0.0
  %3484 = vmatmul.mubr.f32.gmra.mrb[0].mxu0 %v3387
  %v3485 = vpop.f32.mrb[0].mxu0
  %v3486 = vadd.f32 0.0, %v3485
  %v3487 = vpop.f32.mrb[0].mxu0
  %3488 = vmatprep.mubr.f32.mxu0 0.0
  %3489 = vmatmul.mubr.f32.gmra.mrb[0].mxu0 %v3388
  %v3490 = vpop.f32.mrb[0].mxu0
  %v3491 = vadd.f32 0.0, %v3490
  %v3492 = vpop.f32.mrb[0].mxu0
  %3493 = vmatprep.mubr.f32.mxu0 0.0
  %3494 = vmatmul.mubr.f32.gmra.mrb[0].mxu0 %v3389
  %v3495 = vpop.f32.mrb[0].mxu0
  %v3496 = vadd.f32 0.0, %v3495
  %v3497 = vpop.f32.mrb[0].mxu0
  %3498 = vmatprep.mubr.f32.mxu0 0.0
  %3499 = vmatmul.mubr.f32.gmra.mrb[0].mxu0 %v3390
  %v3500 = vpop.f32.mrb[0].mxu0
  %v3501 = vadd.f32 0.0, %v3500
  %v3502 = vpop.f32.mrb[0].mxu0
  %3503 = vmatprep.mubr.f32.mxu0 0.0
  %3504 = vmatmul.mubr.f32.gmra.mrb[0].mxu0 %v3391
  %v3505 = vpop.f32.mrb[0].mxu0
  %v3506 = vadd.f32 0.0, %v3505
  %v3507 = vpop.f32.mrb[0].mxu0
  %3508 = vmatprep.mubr.f32.mxu0 0.0
  %3509 = vmatmul.mubr.f32.gmra.mrb[0].mxu0 %v3392
  %v3510 = vpop.f32.mrb[0].mxu0
  %v3511 = vadd.f32 0.0, %v3510
  %v3512 = vpop.f32.mrb[0].mxu0
  %3513 = vmatprep.mubr.f32.mxu0 0.0
  %3514 = vmatmul.mubr.f32.gmra.mrb[0].mxu0 %v3393
  %v3515 = vpop.f32.mrb[0].mxu0
  %v3516 = vadd.f32 0.0, %v3515
  %v3517 = vpop.f32.mrb[0].mxu0
  %3518 = vmatprep.mubr.f32.mxu0 0.0
  %3519 = vmatmul.mubr.f32.gmra.mrb[0].mxu0 %v3394
  %v3520 = vpop.f32.mrb[0].mxu0
  %v3521 = vadd.f32 0.0, %v3520
  %v3522 = vpop.f32.mrb[0].mxu0
  %3523 = vmatprep.mubr.f32.mxu0 0.0
  %3524 = vmatmul.mubr.f32.gmra.mrb[0].mxu0 %v3395
  %v3525 = vpop.f32.mrb[0].mxu0
  %v3526 = vadd.f32 0.0, %v3525
  %v3527 = vpop.f32.mrb[0].mxu0
  %3528 = vmatprep.mubr.f32.mxu0 0.0
  %3529 = vmatmul.mubr.f32.gmra.mrb[0].mxu0 %v3396
  %v3530 = vpop.f32.mrb[0].mxu0
  %v3531 = vadd.f32 0.0, %v3530
  %v3532 = vpop.f32.mrb[0].mxu0
  %3533 = vmatprep.mubr.f32.mxu0 0.0
  %3534 = vmatmul.mubr.f32.gmra.mrb[0].mxu0 %v3397
  %v3535 = vpop.f32.mrb[0].mxu0
  %v3536 = vadd.f32 0.0, %v3535
  %v3537 = vpop.f32.mrb[0].mxu0
  %3538 = vmatprep.mubr.f32.mxu0 0.0
  %3539 = vmatmul.mubr.f32.gmra.mrb[0].mxu0 %v3398
  %v3540 = vpop.f32.mrb[0].mxu0
  %v3541 = vadd.f32 0.0, %v3540
  %v3542 = vpop.f32.mrb[0].mxu0
  %3543 = vmatprep.mubr.f32.mxu0 0.0
  %3544 = vmatmul.mubr.f32.gmra.mrb[0].mxu0 %v3399
  %v3545 = vpop.f32.mrb[0].mxu0
  %v3546 = vadd.f32 0.0, %v3545
  %v3547 = vpop.f32.mrb[0].mxu0
  %3548 = vmatprep.mubr.f32.mxu0 0.0
  %3549 = vmatmul.mubr.f32.gmra.mrb[0].mxu0 %v3400
  %v3550 = vpop.f32.mrb[0].mxu0
  %v3551 = vadd.f32 0.0, %v3550
  %v3552 = vpop.f32.mrb[0].mxu0
  %3553 = vmatprep.mubr.f32.mxu0 0.0
  %3554 = vmatmul.mubr.f32.gmra.mrb[0].mxu0 %v3401
  %v3555 = vpop.f32.mrb[0].mxu0
  %v3556 = vadd.f32 0.0, %v3555
  %v3557 = vpop.f32.mrb[0].mxu0
  %3558 = vmatprep.mubr.f32.mxu0 0.0
  %3559 = vmatmul.mubr.f32.gmra.mrb[0].mxu0 %v3402
  %v3560 = vpop.f32.mrb[0].mxu0
  %v3561 = vadd.f32 0.0, %v3560
  %v3562 = vpop.f32.mrb[0].mxu0
  %3563 = vdwg.mxu0
  %v3564 = vadd.f32 %v3371, %v3486
  %v3565 = vadd.f32 %v3372, %v3491
  %v3566 = vadd.f32 %v3373, %v3496
  %v3567 = vadd.f32 %v3374, %v3501
  %v3568 = vadd.f32 %v3375, %v3506
  %v3569 = vadd.f32 %v3376, %v3511
  %v3570 = vadd.f32 %v3377, %v3516
  %v3571 = vadd.f32 %v3378, %v3521
  %v3572 = vadd.f32 %v3379, %v3526
  %v3573 = vadd.f32 %v3380, %v3531
  %v3574 = vadd.f32 %v3381, %v3536
  %v3575 = vadd.f32 %v3382, %v3541
  %v3576 = vadd.f32 %v3383, %v3546
  %v3577 = vadd.f32 %v3384, %v3551
  %v3578 = vadd.f32 %v3385, %v3556
  %v3579 = vadd.f32 %v3386, %v3561
  %v3580 = vld [vmem:[%s576 + $0x1] sm:$0xff]
  %v3581 = vld [vmem:[%s576 + $0x9] sm:$0xff]
  %v3582 = vld [vmem:[%s576 + $0x19] sm:$0xff]
  %v3583 = vld [vmem:[%s576 + $0x21] sm:$0xff]
  %v3584 = vld [vmem:[%s576 + $0x31] sm:$0xff]
  %v3585 = vld [vmem:[%s576 + $0x39] sm:$0xff]
  %v3586 = vld [vmem:[%s576 + $0x49] sm:$0xff]
  %v3587 = vld [vmem:[%s576 + $0x51] sm:$0xff]
  %v3588 = vld [vmem:[%s576 + $0x61] sm:$0xff]
  %v3589 = vld [vmem:[%s576 + $0x69] sm:$0xff]
  %v3590 = vld [vmem:[%s576 + $0x79] sm:$0xff]
  %v3591 = vld [vmem:[%s576 + $0x81] sm:$0xff]
  %v3592 = vld [vmem:[%s576 + $0x91] sm:$0xff]
  %v3593 = vld [vmem:[%s576 + $0x99] sm:$0xff]
  %v3594 = vld [vmem:[%s576 + $0xa9] sm:$0xff]
  %v3595 = vld [vmem:[%s576 + $0xb1] sm:$0xff]
  %v3596 = vld [vmem:[%s1836] sm:$0xff]
  %v3597 = vld [vmem:[%s1836 + $0x8] sm:$0xff]
  %v3598 = vld [vmem:[%s1836 + $0x10] sm:$0xff]
  %v3599 = vld [vmem:[%s1836 + $0x18] sm:$0xff]
  %v3600 = vld [vmem:[%s1836 + $0x20] sm:$0xff]
  %v3601 = vld [vmem:[%s1836 + $0x28] sm:$0xff]
  %v3602 = vld [vmem:[%s1836 + $0x30] sm:$0xff]
  %v3603 = vld [vmem:[%s1836 + $0x38] sm:$0xff]
  %v3604 = vld [vmem:[%s1836 + $0x40] sm:$0xff]
  %v3605 = vld [vmem:[%s1836 + $0x48] sm:$0xff]
  %v3606 = vld [vmem:[%s1836 + $0x50] sm:$0xff]
  %v3607 = vld [vmem:[%s1836 + $0x58] sm:$0xff]
  %v3608 = vld [vmem:[%s1836 + $0x60] sm:$0xff]
  %v3609 = vld [vmem:[%s1836 + $0x68] sm:$0xff]
  %v3610 = vld [vmem:[%s1836 + $0x70] sm:$0xff]
  %v3611 = vld [vmem:[%s1836 + $0x78] sm:$0xff]
  %3612 = vmatprep.subr.mxu0 0.0
  %3613 = vmatpush1.msra.mxu0 %v3596
  %3614 = vmatprep.subr.mxu0 0.0
  %3615 = vmatpush1.msra.mxu0 %v3597
  %3616 = vmatprep.subr.mxu0 0.0
  %3617 = vmatpush1.msra.mxu0 %v3598
  %3618 = vmatprep.subr.mxu0 0.0
  %3619 = vmatpush1.msra.mxu0 %v3599
  %3620 = vmatprep.subr.mxu0 0.0
  %3621 = vmatpush1.msra.mxu0 %v3600
  %3622 = vmatprep.subr.mxu0 0.0
  %3623 = vmatpush1.msra.mxu0 %v3601
  %3624 = vmatprep.subr.mxu0 0.0
  %3625 = vmatpush1.msra.mxu0 %v3602
  %3626 = vmatprep.subr.mxu0 0.0
  %3627 = vmatpush1.msra.mxu0 %v3603
  %3628 = vmatprep.subr.mxu0 0.0
  %3629 = vmatpush1.msra.mxu0 %v3604
  %3630 = vmatprep.subr.mxu0 0.0
  %3631 = vmatpush1.msra.mxu0 %v3605
  %3632 = vmatprep.subr.mxu0 0.0
  %3633 = vmatpush1.msra.mxu0 %v3606
  %3634 = vmatprep.subr.mxu0 0.0
  %3635 = vmatpush1.msra.mxu0 %v3607
  %3636 = vmatprep.subr.mxu0 0.0
  %3637 = vmatpush1.msra.mxu0 %v3608
  %3638 = vmatprep.subr.mxu0 0.0
  %3639 = vmatpush1.msra.mxu0 %v3609
  %3640 = vmatprep.subr.mxu0 0.0
  %3641 = vmatpush1.msra.mxu0 %v3610
  %3642 = vmatprep.subr.mxu0 0.0
  %3643 = vmatpush1.msra.mxu0 %v3611
  %3644 = vmatprep.subr.mxu0 0.0
  %3645 = vmatpush1.msra.mxu0 0.0
  %3646 = vmatprep.subr.mxu0 0.0
  %3647 = vmatpush1.msra.mxu0 0.0
  %3648 = vmatprep.subr.mxu0 0.0
  %3649 = vmatpush1.msra.mxu0 0.0
  %3650 = vmatprep.subr.mxu0 0.0
  %3651 = vmatpush1.msra.mxu0 0.0
  %3652 = vmatprep.subr.mxu0 0.0
  %3653 = vmatpush1.msra.mxu0 0.0
  %3654 = vmatprep.subr.mxu0 0.0
  %3655 = vmatpush1.msra.mxu0 0.0
  %3656 = vmatprep.subr.mxu0 0.0
  %3657 = vmatpush1.msra.mxu0 0.0
  %3658 = vmatprep.subr.mxu0 0.0
  %3659 = vmatpush1.msra.mxu0 0.0
  %3660 = vmatprep.subr.mxu0 0.0
  %3661 = vmatpush1.msra.mxu0 0.0
  %3662 = vmatprep.subr.mxu0 0.0
  %3663 = vmatpush1.msra.mxu0 0.0
  %3664 = vmatprep.subr.mxu0 0.0
  %3665 = vmatpush1.msra.mxu0 0.0
  %3666 = vmatprep.subr.mxu0 0.0
  %3667 = vmatpush1.msra.mxu0 0.0
  %3668 = vmatprep.subr.mxu0 0.0
  %3669 = vmatpush1.msra.mxu0 0.0
  %3670 = vmatprep.subr.mxu0 0.0
  %3671 = vmatpush1.msra.mxu0 0.0
  %3672 = vmatprep.subr.mxu0 0.0
  %3673 = vmatpush1.msra.mxu0 0.0
  %3674 = vmatprep.subr.mxu0 0.0
  %3675 = vmatpush1.msra.mxu0 0.0
  %3676 = vmatprep.mubr.f32.mxu0 0.0
  %3677 = vmatmul.mubr.f32.gmra.mrb[0].mxu0 %v3580
  %v3678 = vpop.f32.mrb[0].mxu0
  %v3679 = vadd.f32 0.0, %v3678
  %v3680 = vpop.f32.mrb[0].mxu0
  %3681 = vmatprep.mubr.f32.mxu0 0.0
  %3682 = vmatmul.mubr.f32.gmra.mrb[0].mxu0 %v3581
  %v3683 = vpop.f32.mrb[0].mxu0
  %v3684 = vadd.f32 0.0, %v3683
  %v3685 = vpop.f32.mrb[0].mxu0
  %3686 = vmatprep.mubr.f32.mxu0 0.0
  %3687 = vmatmul.mubr.f32.gmra.mrb[0].mxu0 %v3582
  %v3688 = vpop.f32.mrb[0].mxu0
  %v3689 = vadd.f32 0.0, %v3688
  %v3690 = vpop.f32.mrb[0].mxu0
  %3691 = vmatprep.mubr.f32.mxu0 0.0
  %3692 = vmatmul.mubr.f32.gmra.mrb[0].mxu0 %v3583
  %v3693 = vpop.f32.mrb[0].mxu0
  %v3694 = vadd.f32 0.0, %v3693
  %v3695 = vpop.f32.mrb[0].mxu0
  %3696 = vmatprep.mubr.f32.mxu0 0.0
  %3697 = vmatmul.mubr.f32.gmra.mrb[0].mxu0 %v3584
  %v3698 = vpop.f32.mrb[0].mxu0
  %v3699 = vadd.f32 0.0, %v3698
  %v3700 = vpop.f32.mrb[0].mxu0
  %3701 = vmatprep.mubr.f32.mxu0 0.0
  %3702 = vmatmul.mubr.f32.gmra.mrb[0].mxu0 %v3585
  %v3703 = vpop.f32.mrb[0].mxu0
  %v3704 = vadd.f32 0.0, %v3703
  %v3705 = vpop.f32.mrb[0].mxu0
  %3706 = vmatprep.mubr.f32.mxu0 0.0
  %3707 = vmatmul.mubr.f32.gmra.mrb[0].mxu0 %v3586
  %v3708 = vpop.f32.mrb[0].mxu0
  %v3709 = vadd.f32 0.0, %v3708
  %v3710 = vpop.f32.mrb[0].mxu0
  %3711 = vmatprep.mubr.f32.mxu0 0.0
  %3712 = vmatmul.mubr.f32.gmra.mrb[0].mxu0 %v3587
  %v3713 = vpop.f32.mrb[0].mxu0
  %v3714 = vadd.f32 0.0, %v3713
  %v3715 = vpop.f32.mrb[0].mxu0
  %3716 = vmatprep.mubr.f32.mxu0 0.0
  %3717 = vmatmul.mubr.f32.gmra.mrb[0].mxu0 %v3588
  %v3718 = vpop.f32.mrb[0].mxu0
  %v3719 = vadd.f32 0.0, %v3718
  %v3720 = vpop.f32.mrb[0].mxu0
  %3721 = vmatprep.mubr.f32.mxu0 0.0
  %3722 = vmatmul.mubr.f32.gmra.mrb[0].mxu0 %v3589
  %v3723 = vpop.f32.mrb[0].mxu0
  %v3724 = vadd.f32 0.0, %v3723
  %v3725 = vpop.f32.mrb[0].mxu0
  %3726 = vmatprep.mubr.f32.mxu0 0.0
  %3727 = vmatmul.mubr.f32.gmra.mrb[0].mxu0 %v3590
  %v3728 = vpop.f32.mrb[0].mxu0
  %v3729 = vadd.f32 0.0, %v3728
  %v3730 = vpop.f32.mrb[0].mxu0
  %3731 = vmatprep.mubr.f32.mxu0 0.0
  %3732 = vmatmul.mubr.f32.gmra.mrb[0].mxu0 %v3591
  %v3733 = vpop.f32.mrb[0].mxu0
  %v3734 = vadd.f32 0.0, %v3733
  %v3735 = vpop.f32.mrb[0].mxu0
  %3736 = vmatprep.mubr.f32.mxu0 0.0
  %3737 = vmatmul.mubr.f32.gmra.mrb[0].mxu0 %v3592
  %v3738 = vpop.f32.mrb[0].mxu0
  %v3739 = vadd.f32 0.0, %v3738
  %v3740 = vpop.f32.mrb[0].mxu0
  %3741 = vmatprep.mubr.f32.mxu0 0.0
  %3742 = vmatmul.mubr.f32.gmra.mrb[0].mxu0 %v3593
  %v3743 = vpop.f32.mrb[0].mxu0
  %v3744 = vadd.f32 0.0, %v3743
  %v3745 = vpop.f32.mrb[0].mxu0
  %3746 = vmatprep.mubr.f32.mxu0 0.0
  %3747 = vmatmul.mubr.f32.gmra.mrb[0].mxu0 %v3594
  %v3748 = vpop.f32.mrb[0].mxu0
  %v3749 = vadd.f32 0.0, %v3748
  %v3750 = vpop.f32.mrb[0].mxu0
  %3751 = vmatprep.mubr.f32.mxu0 0.0
  %3752 = vmatmul.mubr.f32.gmra.mrb[0].mxu0 %v3595
  %v3753 = vpop.f32.mrb[0].mxu0
  %v3754 = vadd.f32 0.0, %v3753
  %v3755 = vpop.f32.mrb[0].mxu0
  %3756 = vdwg.mxu0
  %v3757 = vadd.f32 %v3564, %v3679
  %v3758 = vadd.f32 %v3565, %v3684
  %v3759 = vadd.f32 %v3566, %v3689
  %v3760 = vadd.f32 %v3567, %v3694
  %v3761 = vadd.f32 %v3568, %v3699
  %v3762 = vadd.f32 %v3569, %v3704
  %v3763 = vadd.f32 %v3570, %v3709
  %v3764 = vadd.f32 %v3571, %v3714
  %v3765 = vadd.f32 %v3572, %v3719
  %v3766 = vadd.f32 %v3573, %v3724
  %v3767 = vadd.f32 %v3574, %v3729
  %v3768 = vadd.f32 %v3575, %v3734
  %v3769 = vadd.f32 %v3576, %v3739
  %v3770 = vadd.f32 %v3577, %v3744
  %v3771 = vadd.f32 %v3578, %v3749
  %v3772 = vadd.f32 %v3579, %v3754
  %v3773 = vld [vmem:[%s576 + $0x2] sm:$0xff]
  %v3774 = vld [vmem:[%s576 + $0xa] sm:$0xff]
  %v3775 = vld [vmem:[%s576 + $0x1a] sm:$0xff]
  %v3776 = vld [vmem:[%s576 + $0x22] sm:$0xff]
  %v3777 = vld [vmem:[%s576 + $0x32] sm:$0xff]
  %v3778 = vld [vmem:[%s576 + $0x3a] sm:$0xff]
  %v3779 = vld [vmem:[%s576 + $0x4a] sm:$0xff]
  %v3780 = vld [vmem:[%s576 + $0x52] sm:$0xff]
  %v3781 = vld [vmem:[%s576 + $0x62] sm:$0xff]
  %v3782 = vld [vmem:[%s576 + $0x6a] sm:$0xff]
  %v3783 = vld [vmem:[%s576 + $0x7a] sm:$0xff]
  %v3784 = vld [vmem:[%s576 + $0x82] sm:$0xff]
  %v3785 = vld [vmem:[%s576 + $0x92] sm:$0xff]
  %v3786 = vld [vmem:[%s576 + $0x9a] sm:$0xff]
  %v3787 = vld [vmem:[%s576 + $0xaa] sm:$0xff]
  %v3788 = vld [vmem:[%s576 + $0xb2] sm:$0xff]
  %v3789 = vld [vmem:[%s2030] sm:$0xff]
  %v3790 = vld [vmem:[%s2030 + $0x8] sm:$0xff]
  %v3791 = vld [vmem:[%s2030 + $0x10] sm:$0xff]
  %v3792 = vld [vmem:[%s2030 + $0x18] sm:$0xff]
  %v3793 = vld [vmem:[%s2030 + $0x20] sm:$0xff]
  %v3794 = vld [vmem:[%s2030 + $0x28] sm:$0xff]
  %v3795 = vld [vmem:[%s2030 + $0x30] sm:$0xff]
  %v3796 = vld [vmem:[%s2030 + $0x38] sm:$0xff]
  %v3797 = vld [vmem:[%s2030 + $0x40] sm:$0xff]
  %v3798 = vld [vmem:[%s2030 + $0x48] sm:$0xff]
  %v3799 = vld [vmem:[%s2030 + $0x50] sm:$0xff]
  %v3800 = vld [vmem:[%s2030 + $0x58] sm:$0xff]
  %v3801 = vld [vmem:[%s2030 + $0x60] sm:$0xff]
  %v3802 = vld [vmem:[%s2030 + $0x68] sm:$0xff]
  %v3803 = vld [vmem:[%s2030 + $0x70] sm:$0xff]
  %v3804 = vld [vmem:[%s2030 + $0x78] sm:$0xff]
  %3805 = vmatprep.subr.mxu0 0.0
  %3806 = vmatpush1.msra.mxu0 %v3789
  %3807 = vmatprep.subr.mxu0 0.0
  %3808 = vmatpush1.msra.mxu0 %v3790
  %3809 = vmatprep.subr.mxu0 0.0
  %3810 = vmatpush1.msra.mxu0 %v3791
  %3811 = vmatprep.subr.mxu0 0.0
  %3812 = vmatpush1.msra.mxu0 %v3792
  %3813 = vmatprep.subr.mxu0 0.0
  %3814 = vmatpush1.msra.mxu0 %v3793
  %3815 = vmatprep.subr.mxu0 0.0
  %3816 = vmatpush1.msra.mxu0 %v3794
  %3817 = vmatprep.subr.mxu0 0.0
  %3818 = vmatpush1.msra.mxu0 %v3795
  %3819 = vmatprep.subr.mxu0 0.0
  %3820 = vmatpush1.msra.mxu0 %v3796
  %3821 = vmatprep.subr.mxu0 0.0
  %3822 = vmatpush1.msra.mxu0 %v3797
  %3823 = vmatprep.subr.mxu0 0.0
  %3824 = vmatpush1.msra.mxu0 %v3798
  %3825 = vmatprep.subr.mxu0 0.0
  %3826 = vmatpush1.msra.mxu0 %v3799
  %3827 = vmatprep.subr.mxu0 0.0
  %3828 = vmatpush1.msra.mxu0 %v3800
  %3829 = vmatprep.subr.mxu0 0.0
  %3830 = vmatpush1.msra.mxu0 %v3801
  %3831 = vmatprep.subr.mxu0 0.0
  %3832 = vmatpush1.msra.mxu0 %v3802
  %3833 = vmatprep.subr.mxu0 0.0
  %3834 = vmatpush1.msra.mxu0 %v3803
  %3835 = vmatprep.subr.mxu0 0.0
  %3836 = vmatpush1.msra.mxu0 %v3804
  %3837 = vmatprep.subr.mxu0 0.0
  %3838 = vmatpush1.msra.mxu0 0.0
  %3839 = vmatprep.subr.mxu0 0.0
  %3840 = vmatpush1.msra.mxu0 0.0
  %3841 = vmatprep.subr.mxu0 0.0
  %3842 = vmatpush1.msra.mxu0 0.0
  %3843 = vmatprep.subr.mxu0 0.0
  %3844 = vmatpush1.msra.mxu0 0.0
  %3845 = vmatprep.subr.mxu0 0.0
  %3846 = vmatpush1.msra.mxu0 0.0
  %3847 = vmatprep.subr.mxu0 0.0
  %3848 = vmatpush1.msra.mxu0 0.0
  %3849 = vmatprep.subr.mxu0 0.0
  %3850 = vmatpush1.msra.mxu0 0.0
  %3851 = vmatprep.subr.mxu0 0.0
  %3852 = vmatpush1.msra.mxu0 0.0
  %3853 = vmatprep.subr.mxu0 0.0
  %3854 = vmatpush1.msra.mxu0 0.0
  %3855 = vmatprep.subr.mxu0 0.0
  %3856 = vmatpush1.msra.mxu0 0.0
  %3857 = vmatprep.subr.mxu0 0.0
  %3858 = vmatpush1.msra.mxu0 0.0
  %3859 = vmatprep.subr.mxu0 0.0
  %3860 = vmatpush1.msra.mxu0 0.0
  %3861 = vmatprep.subr.mxu0 0.0
  %3862 = vmatpush1.msra.mxu0 0.0
  %3863 = vmatprep.subr.mxu0 0.0
  %3864 = vmatpush1.msra.mxu0 0.0
  %3865 = vmatprep.subr.mxu0 0.0
  %3866 = vmatpush1.msra.mxu0 0.0
  %3867 = vmatprep.subr.mxu0 0.0
  %3868 = vmatpush1.msra.mxu0 0.0
  %3869 = vmatprep.mubr.f32.mxu0 0.0
  %3870 = vmatmul.mubr.f32.gmra.mrb[0].mxu0 %v3773
  %v3871 = vpop.f32.mrb[0].mxu0
  %v3872 = vadd.f32 0.0, %v3871
  %v3873 = vpop.f32.mrb[0].mxu0
  %3874 = vmatprep.mubr.f32.mxu0 0.0
  %3875 = vmatmul.mubr.f32.gmra.mrb[0].mxu0 %v3774
  %v3876 = vpop.f32.mrb[0].mxu0
  %v3877 = vadd.f32 0.0, %v3876
  %v3878 = vpop.f32.mrb[0].mxu0
  %3879 = vmatprep.mubr.f32.mxu0 0.0
  %3880 = vmatmul.mubr.f32.gmra.mrb[0].mxu0 %v3775
  %v3881 = vpop.f32.mrb[0].mxu0
  %v3882 = vadd.f32 0.0, %v3881
  %v3883 = vpop.f32.mrb[0].mxu0
  %3884 = vmatprep.mubr.f32.mxu0 0.0
  %3885 = vmatmul.mubr.f32.gmra.mrb[0].mxu0 %v3776
  %v3886 = vpop.f32.mrb[0].mxu0
  %v3887 = vadd.f32 0.0, %v3886
  %v3888 = vpop.f32.mrb[0].mxu0
  %3889 = vmatprep.mubr.f32.mxu0 0.0
  %3890 = vmatmul.mubr.f32.gmra.mrb[0].mxu0 %v3777
  %v3891 = vpop.f32.mrb[0].mxu0
  %v3892 = vadd.f32 0.0, %v3891
  %v3893 = vpop.f32.mrb[0].mxu0
  %3894 = vmatprep.mubr.f32.mxu0 0.0
  %3895 = vmatmul.mubr.f32.gmra.mrb[0].mxu0 %v3778
  %v3896 = vpop.f32.mrb[0].mxu0
  %v3897 = vadd.f32 0.0, %v3896
  %v3898 = vpop.f32.mrb[0].mxu0
  %3899 = vmatprep.mubr.f32.mxu0 0.0
  %3900 = vmatmul.mubr.f32.gmra.mrb[0].mxu0 %v3779
  %v3901 = vpop.f32.mrb[0].mxu0
  %v3902 = vadd.f32 0.0, %v3901
  %v3903 = vpop.f32.mrb[0].mxu0
  %3904 = vmatprep.mubr.f32.mxu0 0.0
  %3905 = vmatmul.mubr.f32.gmra.mrb[0].mxu0 %v3780
  %v3906 = vpop.f32.mrb[0].mxu0
  %v3907 = vadd.f32 0.0, %v3906
  %v3908 = vpop.f32.mrb[0].mxu0
  %3909 = vmatprep.mubr.f32.mxu0 0.0
  %3910 = vmatmul.mubr.f32.gmra.mrb[0].mxu0 %v3781
  %v3911 = vpop.f32.mrb[0].mxu0
  %v3912 = vadd.f32 0.0, %v3911
  %v3913 = vpop.f32.mrb[0].mxu0
  %3914 = vmatprep.mubr.f32.mxu0 0.0
  %3915 = vmatmul.mubr.f32.gmra.mrb[0].mxu0 %v3782
  %v3916 = vpop.f32.mrb[0].mxu0
  %v3917 = vadd.f32 0.0, %v3916
  %v3918 = vpop.f32.mrb[0].mxu0
  %3919 = vmatprep.mubr.f32.mxu0 0.0
  %3920 = vmatmul.mubr.f32.gmra.mrb[0].mxu0 %v3783
  %v3921 = vpop.f32.mrb[0].mxu0
  %v3922 = vadd.f32 0.0, %v3921
  %v3923 = vpop.f32.mrb[0].mxu0
  %3924 = vmatprep.mubr.f32.mxu0 0.0
  %3925 = vmatmul.mubr.f32.gmra.mrb[0].mxu0 %v3784
  %v3926 = vpop.f32.mrb[0].mxu0
  %v3927 = vadd.f32 0.0, %v3926
  %v3928 = vpop.f32.mrb[0].mxu0
  %3929 = vmatprep.mubr.f32.mxu0 0.0
  %3930 = vmatmul.mubr.f32.gmra.mrb[0].mxu0 %v3785
  %v3931 = vpop.f32.mrb[0].mxu0
  %v3932 = vadd.f32 0.0, %v3931
  %v3933 = vpop.f32.mrb[0].mxu0
  %3934 = vmatprep.mubr.f32.mxu0 0.0
  %3935 = vmatmul.mubr.f32.gmra.mrb[0].mxu0 %v3786
  %v3936 = vpop.f32.mrb[0].mxu0
  %v3937 = vadd.f32 0.0, %v3936
  %v3938 = vpop.f32.mrb[0].mxu0
  %3939 = vmatprep.mubr.f32.mxu0 0.0
  %3940 = vmatmul.mubr.f32.gmra.mrb[0].mxu0 %v3787
  %v3941 = vpop.f32.mrb[0].mxu0
  %v3942 = vadd.f32 0.0, %v3941
  %v3943 = vpop.f32.mrb[0].mxu0
  %3944 = vmatprep.mubr.f32.mxu0 0.0
  %3945 = vmatmul.mubr.f32.gmra.mrb[0].mxu0 %v3788
  %v3946 = vpop.f32.mrb[0].mxu0
  %v3947 = vadd.f32 0.0, %v3946
  %v3948 = vpop.f32.mrb[0].mxu0
  %3949 = vdwg.mxu0
  %v3950 = vadd.f32 %v3757, %v3872
  %v3951 = vadd.f32 %v3758, %v3877
  %v3952 = vadd.f32 %v3759, %v3882
  %v3953 = vadd.f32 %v3760, %v3887
  %v3954 = vadd.f32 %v3761, %v3892
  %v3955 = vadd.f32 %v3762, %v3897
  %v3956 = vadd.f32 %v3763, %v3902
  %v3957 = vadd.f32 %v3764, %v3907
  %v3958 = vadd.f32 %v3765, %v3912
  %v3959 = vadd.f32 %v3766, %v3917
  %v3960 = vadd.f32 %v3767, %v3922
  %v3961 = vadd.f32 %v3768, %v3927
  %v3962 = vadd.f32 %v3769, %v3932
  %v3963 = vadd.f32 %v3770, %v3937
  %v3964 = vadd.f32 %v3771, %v3942
  %v3965 = vadd.f32 %v3772, %v3947
  %s3966 = scalar_lea.vmem [#allocation2], 240
  %v3967 = vld [vmem:[%s3966] sm:$0xff]
  %v3968 = vld [vmem:[%s3966 + $0x8] sm:$0xff]
  %v3969 = vld [vmem:[%s3966 + $0x18] sm:$0xff]
  %v3970 = vld [vmem:[%s3966 + $0x20] sm:$0xff]
  %v3971 = vld [vmem:[%s3966 + $0x30] sm:$0xff]
  %v3972 = vld [vmem:[%s3966 + $0x38] sm:$0xff]
  %v3973 = vld [vmem:[%s3966 + $0x48] sm:$0xff]
  %v3974 = vld [vmem:[%s3966 + $0x50] sm:$0xff]
  %v3975 = vld [vmem:[%s3966 + $0x60] sm:$0xff]
  %v3976 = vld [vmem:[%s3966 + $0x68] sm:$0xff]
  %v3977 = vld [vmem:[%s3966 + $0x78] sm:$0xff]
  %v3978 = vld [vmem:[%s3966 + $0x80] sm:$0xff]
  %v3979 = vld [vmem:[%s3966 + $0x90] sm:$0xff]
  %v3980 = vld [vmem:[%s3966 + $0x98] sm:$0xff]
  %v3981 = vld [vmem:[%s3966 + $0xa8] sm:$0xff]
  %v3982 = vld [vmem:[%s3966 + $0xb0] sm:$0xff]
  %v3983 = vld [vmem:[%s2225] sm:$0xff]
  %v3984 = vld [vmem:[%s2225 + $0x8] sm:$0xff]
  %v3985 = vld [vmem:[%s2225 + $0x10] sm:$0xff]
  %v3986 = vld [vmem:[%s2225 + $0x18] sm:$0xff]
  %v3987 = vld [vmem:[%s2225 + $0x20] sm:$0xff]
  %v3988 = vld [vmem:[%s2225 + $0x28] sm:$0xff]
  %v3989 = vld [vmem:[%s2225 + $0x30] sm:$0xff]
  %v3990 = vld [vmem:[%s2225 + $0x38] sm:$0xff]
  %v3991 = vld [vmem:[%s2225 + $0x40] sm:$0xff]
  %v3992 = vld [vmem:[%s2225 + $0x48] sm:$0xff]
  %v3993 = vld [vmem:[%s2225 + $0x50] sm:$0xff]
  %v3994 = vld [vmem:[%s2225 + $0x58] sm:$0xff]
  %v3995 = vld [vmem:[%s2225 + $0x60] sm:$0xff]
  %v3996 = vld [vmem:[%s2225 + $0x68] sm:$0xff]
  %v3997 = vld [vmem:[%s2225 + $0x70] sm:$0xff]
  %v3998 = vld [vmem:[%s2225 + $0x78] sm:$0xff]
  %3999 = vmatprep.subr.mxu0 0.0
  %4000 = vmatpush1.msra.mxu0 %v3983
  %4001 = vmatprep.subr.mxu0 0.0
  %4002 = vmatpush1.msra.mxu0 %v3984
  %4003 = vmatprep.subr.mxu0 0.0
  %4004 = vmatpush1.msra.mxu0 %v3985
  %4005 = vmatprep.subr.mxu0 0.0
  %4006 = vmatpush1.msra.mxu0 %v3986
  %4007 = vmatprep.subr.mxu0 0.0
  %4008 = vmatpush1.msra.mxu0 %v3987
  %4009 = vmatprep.subr.mxu0 0.0
  %4010 = vmatpush1.msra.mxu0 %v3988
  %4011 = vmatprep.subr.mxu0 0.0
  %4012 = vmatpush1.msra.mxu0 %v3989
  %4013 = vmatprep.subr.mxu0 0.0
  %4014 = vmatpush1.msra.mxu0 %v3990
  %4015 = vmatprep.subr.mxu0 0.0
  %4016 = vmatpush1.msra.mxu0 %v3991
  %4017 = vmatprep.subr.mxu0 0.0
  %4018 = vmatpush1.msra.mxu0 %v3992
  %4019 = vmatprep.subr.mxu0 0.0
  %4020 = vmatpush1.msra.mxu0 %v3993
  %4021 = vmatprep.subr.mxu0 0.0
  %4022 = vmatpush1.msra.mxu0 %v3994
  %4023 = vmatprep.subr.mxu0 0.0
  %4024 = vmatpush1.msra.mxu0 %v3995
  %4025 = vmatprep.subr.mxu0 0.0
  %4026 = vmatpush1.msra.mxu0 %v3996
  %4027 = vmatprep.subr.mxu0 0.0
  %4028 = vmatpush1.msra.mxu0 %v3997
  %4029 = vmatprep.subr.mxu0 0.0
  %4030 = vmatpush1.msra.mxu0 %v3998
  %4031 = vmatprep.subr.mxu0 0.0
  %4032 = vmatpush1.msra.mxu0 0.0
  %4033 = vmatprep.subr.mxu0 0.0
  %4034 = vmatpush1.msra.mxu0 0.0
  %4035 = vmatprep.subr.mxu0 0.0
  %4036 = vmatpush1.msra.mxu0 0.0
  %4037 = vmatprep.subr.mxu0 0.0
  %4038 = vmatpush1.msra.mxu0 0.0
  %4039 = vmatprep.subr.mxu0 0.0
  %4040 = vmatpush1.msra.mxu0 0.0
  %4041 = vmatprep.subr.mxu0 0.0
  %4042 = vmatpush1.msra.mxu0 0.0
  %4043 = vmatprep.subr.mxu0 0.0
  %4044 = vmatpush1.msra.mxu0 0.0
  %4045 = vmatprep.subr.mxu0 0.0
  %4046 = vmatpush1.msra.mxu0 0.0
  %4047 = vmatprep.subr.mxu0 0.0
  %4048 = vmatpush1.msra.mxu0 0.0
  %4049 = vmatprep.subr.mxu0 0.0
  %4050 = vmatpush1.msra.mxu0 0.0
  %4051 = vmatprep.subr.mxu0 0.0
  %4052 = vmatpush1.msra.mxu0 0.0
  %4053 = vmatprep.subr.mxu0 0.0
  %4054 = vmatpush1.msra.mxu0 0.0
  %4055 = vmatprep.subr.mxu0 0.0
  %4056 = vmatpush1.msra.mxu0 0.0
  %4057 = vmatprep.subr.mxu0 0.0
  %4058 = vmatpush1.msra.mxu0 0.0
  %4059 = vmatprep.subr.mxu0 0.0
  %4060 = vmatpush1.msra.mxu0 0.0
  %4061 = vmatprep.subr.mxu0 0.0
  %4062 = vmatpush1.msra.mxu0 0.0
  %4063 = vmatprep.mubr.f32.mxu0 0.0
  %4064 = vmatmul.mubr.f32.gmra.mrb[0].mxu0 %v3967
  %v4065 = vpop.f32.mrb[0].mxu0
  %v4066 = vadd.f32 0.0, %v4065
  %v4067 = vpop.f32.mrb[0].mxu0
  %4068 = vmatprep.mubr.f32.mxu0 0.0
  %4069 = vmatmul.mubr.f32.gmra.mrb[0].mxu0 %v3968
  %v4070 = vpop.f32.mrb[0].mxu0
  %v4071 = vadd.f32 0.0, %v4070
  %v4072 = vpop.f32.mrb[0].mxu0
  %4073 = vmatprep.mubr.f32.mxu0 0.0
  %4074 = vmatmul.mubr.f32.gmra.mrb[0].mxu0 %v3969
  %v4075 = vpop.f32.mrb[0].mxu0
  %v4076 = vadd.f32 0.0, %v4075
  %v4077 = vpop.f32.mrb[0].mxu0
  %4078 = vmatprep.mubr.f32.mxu0 0.0
  %4079 = vmatmul.mubr.f32.gmra.mrb[0].mxu0 %v3970
  %v4080 = vpop.f32.mrb[0].mxu0
  %v4081 = vadd.f32 0.0, %v4080
  %v4082 = vpop.f32.mrb[0].mxu0
  %4083 = vmatprep.mubr.f32.mxu0 0.0
  %4084 = vmatmul.mubr.f32.gmra.mrb[0].mxu0 %v3971
  %v4085 = vpop.f32.mrb[0].mxu0
  %v4086 = vadd.f32 0.0, %v4085
  %v4087 = vpop.f32.mrb[0].mxu0
  %4088 = vmatprep.mubr.f32.mxu0 0.0
  %4089 = vmatmul.mubr.f32.gmra.mrb[0].mxu0 %v3972
  %v4090 = vpop.f32.mrb[0].mxu0
  %v4091 = vadd.f32 0.0, %v4090
  %v4092 = vpop.f32.mrb[0].mxu0
  %4093 = vmatprep.mubr.f32.mxu0 0.0
  %4094 = vmatmul.mubr.f32.gmra.mrb[0].mxu0 %v3973
  %v4095 = vpop.f32.mrb[0].mxu0
  %v4096 = vadd.f32 0.0, %v4095
  %v4097 = vpop.f32.mrb[0].mxu0
  %4098 = vmatprep.mubr.f32.mxu0 0.0
  %4099 = vmatmul.mubr.f32.gmra.mrb[0].mxu0 %v3974
  %v4100 = vpop.f32.mrb[0].mxu0
  %v4101 = vadd.f32 0.0, %v4100
  %v4102 = vpop.f32.mrb[0].mxu0
  %4103 = vmatprep.mubr.f32.mxu0 0.0
  %4104 = vmatmul.mubr.f32.gmra.mrb[0].mxu0 %v3975
  %v4105 = vpop.f32.mrb[0].mxu0
  %v4106 = vadd.f32 0.0, %v4105
  %v4107 = vpop.f32.mrb[0].mxu0
  %4108 = vmatprep.mubr.f32.mxu0 0.0
  %4109 = vmatmul.mubr.f32.gmra.mrb[0].mxu0 %v3976
  %v4110 = vpop.f32.mrb[0].mxu0
  %v4111 = vadd.f32 0.0, %v4110
  %v4112 = vpop.f32.mrb[0].mxu0
  %4113 = vmatprep.mubr.f32.mxu0 0.0
  %4114 = vmatmul.mubr.f32.gmra.mrb[0].mxu0 %v3977
  %v4115 = vpop.f32.mrb[0].mxu0
  %v4116 = vadd.f32 0.0, %v4115
  %v4117 = vpop.f32.mrb[0].mxu0
  %4118 = vmatprep.mubr.f32.mxu0 0.0
  %4119 = vmatmul.mubr.f32.gmra.mrb[0].mxu0 %v3978
  %v4120 = vpop.f32.mrb[0].mxu0
  %v4121 = vadd.f32 0.0, %v4120
  %v4122 = vpop.f32.mrb[0].mxu0
  %4123 = vmatprep.mubr.f32.mxu0 0.0
  %4124 = vmatmul.mubr.f32.gmra.mrb[0].mxu0 %v3979
  %v4125 = vpop.f32.mrb[0].mxu0
  %v4126 = vadd.f32 0.0, %v4125
  %v4127 = vpop.f32.mrb[0].mxu0
  %4128 = vmatprep.mubr.f32.mxu0 0.0
  %4129 = vmatmul.mubr.f32.gmra.mrb[0].mxu0 %v3980
  %v4130 = vpop.f32.mrb[0].mxu0
  %v4131 = vadd.f32 0.0, %v4130
  %v4132 = vpop.f32.mrb[0].mxu0
  %4133 = vmatprep.mubr.f32.mxu0 0.0
  %4134 = vmatmul.mubr.f32.gmra.mrb[0].mxu0 %v3981
  %v4135 = vpop.f32.mrb[0].mxu0
  %v4136 = vadd.f32 0.0, %v4135
  %v4137 = vpop.f32.mrb[0].mxu0
  %4138 = vmatprep.mubr.f32.mxu0 0.0
  %4139 = vmatmul.mubr.f32.gmra.mrb[0].mxu0 %v3982
  %v4140 = vpop.f32.mrb[0].mxu0
  %v4141 = vadd.f32 0.0, %v4140
  %v4142 = vpop.f32.mrb[0].mxu0
  %4143 = vdwg.mxu0
  %v4144 = vadd.f32 %v3950, %v4066
  %v4145 = vadd.f32 %v3951, %v4071
  %v4146 = vadd.f32 %v3952, %v4076
  %v4147 = vadd.f32 %v3953, %v4081
  %v4148 = vadd.f32 %v3954, %v4086
  %v4149 = vadd.f32 %v3955, %v4091
  %v4150 = vadd.f32 %v3956, %v4096
  %v4151 = vadd.f32 %v3957, %v4101
  %v4152 = vadd.f32 %v3958, %v4106
  %v4153 = vadd.f32 %v3959, %v4111
  %v4154 = vadd.f32 %v3960, %v4116
  %v4155 = vadd.f32 %v3961, %v4121
  %v4156 = vadd.f32 %v3962, %v4126
  %v4157 = vadd.f32 %v3963, %v4131
  %v4158 = vadd.f32 %v3964, %v4136
  %v4159 = vadd.f32 %v3965, %v4141
  %v4160 = vld [vmem:[%s3966 + $0x1] sm:$0xff]
  %v4161 = vld [vmem:[%s3966 + $0x9] sm:$0xff]
  %v4162 = vld [vmem:[%s3966 + $0x19] sm:$0xff]
  %v4163 = vld [vmem:[%s3966 + $0x21] sm:$0xff]
  %v4164 = vld [vmem:[%s3966 + $0x31] sm:$0xff]
  %v4165 = vld [vmem:[%s3966 + $0x39] sm:$0xff]
  %v4166 = vld [vmem:[%s3966 + $0x49] sm:$0xff]
  %v4167 = vld [vmem:[%s3966 + $0x51] sm:$0xff]
  %v4168 = vld [vmem:[%s3966 + $0x61] sm:$0xff]
  %v4169 = vld [vmem:[%s3966 + $0x69] sm:$0xff]
  %v4170 = vld [vmem:[%s3966 + $0x79] sm:$0xff]
  %v4171 = vld [vmem:[%s3966 + $0x81] sm:$0xff]
  %v4172 = vld [vmem:[%s3966 + $0x91] sm:$0xff]
  %v4173 = vld [vmem:[%s3966 + $0x99] sm:$0xff]
  %v4174 = vld [vmem:[%s3966 + $0xa9] sm:$0xff]
  %v4175 = vld [vmem:[%s3966 + $0xb1] sm:$0xff]
  %v4176 = vld [vmem:[%s2419] sm:$0xff]
  %v4177 = vld [vmem:[%s2419 + $0x8] sm:$0xff]
  %v4178 = vld [vmem:[%s2419 + $0x10] sm:$0xff]
  %v4179 = vld [vmem:[%s2419 + $0x18] sm:$0xff]
  %v4180 = vld [vmem:[%s2419 + $0x20] sm:$0xff]
  %v4181 = vld [vmem:[%s2419 + $0x28] sm:$0xff]
  %v4182 = vld [vmem:[%s2419 + $0x30] sm:$0xff]
  %v4183 = vld [vmem:[%s2419 + $0x38] sm:$0xff]
  %v4184 = vld [vmem:[%s2419 + $0x40] sm:$0xff]
  %v4185 = vld [vmem:[%s2419 + $0x48] sm:$0xff]
  %v4186 = vld [vmem:[%s2419 + $0x50] sm:$0xff]
  %v4187 = vld [vmem:[%s2419 + $0x58] sm:$0xff]
  %v4188 = vld [vmem:[%s2419 + $0x60] sm:$0xff]
  %v4189 = vld [vmem:[%s2419 + $0x68] sm:$0xff]
  %v4190 = vld [vmem:[%s2419 + $0x70] sm:$0xff]
  %v4191 = vld [vmem:[%s2419 + $0x78] sm:$0xff]
  %4192 = vmatprep.subr.mxu0 0.0
  %4193 = vmatpush1.msra.mxu0 %v4176
  %4194 = vmatprep.subr.mxu0 0.0
  %4195 = vmatpush1.msra.mxu0 %v4177
  %4196 = vmatprep.subr.mxu0 0.0
  %4197 = vmatpush1.msra.mxu0 %v4178
  %4198 = vmatprep.subr.mxu0 0.0
  %4199 = vmatpush1.msra.mxu0 %v4179
  %4200 = vmatprep.subr.mxu0 0.0
  %4201 = vmatpush1.msra.mxu0 %v4180
  %4202 = vmatprep.subr.mxu0 0.0
  %4203 = vmatpush1.msra.mxu0 %v4181
  %4204 = vmatprep.subr.mxu0 0.0
  %4205 = vmatpush1.msra.mxu0 %v4182
  %4206 = vmatprep.subr.mxu0 0.0
  %4207 = vmatpush1.msra.mxu0 %v4183
  %4208 = vmatprep.subr.mxu0 0.0
  %4209 = vmatpush1.msra.mxu0 %v4184
  %4210 = vmatprep.subr.mxu0 0.0
  %4211 = vmatpush1.msra.mxu0 %v4185
  %4212 = vmatprep.subr.mxu0 0.0
  %4213 = vmatpush1.msra.mxu0 %v4186
  %4214 = vmatprep.subr.mxu0 0.0
  %4215 = vmatpush1.msra.mxu0 %v4187
  %4216 = vmatprep.subr.mxu0 0.0
  %4217 = vmatpush1.msra.mxu0 %v4188
  %4218 = vmatprep.subr.mxu0 0.0
  %4219 = vmatpush1.msra.mxu0 %v4189
  %4220 = vmatprep.subr.mxu0 0.0
  %4221 = vmatpush1.msra.mxu0 %v4190
  %4222 = vmatprep.subr.mxu0 0.0
  %4223 = vmatpush1.msra.mxu0 %v4191
  %4224 = vmatprep.subr.mxu0 0.0
  %4225 = vmatpush1.msra.mxu0 0.0
  %4226 = vmatprep.subr.mxu0 0.0
  %4227 = vmatpush1.msra.mxu0 0.0
  %4228 = vmatprep.subr.mxu0 0.0
  %4229 = vmatpush1.msra.mxu0 0.0
  %4230 = vmatprep.subr.mxu0 0.0
  %4231 = vmatpush1.msra.mxu0 0.0
  %4232 = vmatprep.subr.mxu0 0.0
  %4233 = vmatpush1.msra.mxu0 0.0
  %4234 = vmatprep.subr.mxu0 0.0
  %4235 = vmatpush1.msra.mxu0 0.0
  %4236 = vmatprep.subr.mxu0 0.0
  %4237 = vmatpush1.msra.mxu0 0.0
  %4238 = vmatprep.subr.mxu0 0.0
  %4239 = vmatpush1.msra.mxu0 0.0
  %4240 = vmatprep.subr.mxu0 0.0
  %4241 = vmatpush1.msra.mxu0 0.0
  %4242 = vmatprep.subr.mxu0 0.0
  %4243 = vmatpush1.msra.mxu0 0.0
  %4244 = vmatprep.subr.mxu0 0.0
  %4245 = vmatpush1.msra.mxu0 0.0
  %4246 = vmatprep.subr.mxu0 0.0
  %4247 = vmatpush1.msra.mxu0 0.0
  %4248 = vmatprep.subr.mxu0 0.0
  %4249 = vmatpush1.msra.mxu0 0.0
  %4250 = vmatprep.subr.mxu0 0.0
  %4251 = vmatpush1.msra.mxu0 0.0
  %4252 = vmatprep.subr.mxu0 0.0
  %4253 = vmatpush1.msra.mxu0 0.0
  %4254 = vmatprep.subr.mxu0 0.0
  %4255 = vmatpush1.msra.mxu0 0.0
  %4256 = vmatprep.mubr.f32.mxu0 0.0
  %4257 = vmatmul.mubr.f32.gmra.mrb[0].mxu0 %v4160
  %v4258 = vpop.f32.mrb[0].mxu0
  %v4259 = vadd.f32 0.0, %v4258
  %v4260 = vpop.f32.mrb[0].mxu0
  %4261 = vmatprep.mubr.f32.mxu0 0.0
  %4262 = vmatmul.mubr.f32.gmra.mrb[0].mxu0 %v4161
  %v4263 = vpop.f32.mrb[0].mxu0
  %v4264 = vadd.f32 0.0, %v4263
  %v4265 = vpop.f32.mrb[0].mxu0
  %4266 = vmatprep.mubr.f32.mxu0 0.0
  %4267 = vmatmul.mubr.f32.gmra.mrb[0].mxu0 %v4162
  %v4268 = vpop.f32.mrb[0].mxu0
  %v4269 = vadd.f32 0.0, %v4268
  %v4270 = vpop.f32.mrb[0].mxu0
  %4271 = vmatprep.mubr.f32.mxu0 0.0
  %4272 = vmatmul.mubr.f32.gmra.mrb[0].mxu0 %v4163
  %v4273 = vpop.f32.mrb[0].mxu0
  %v4274 = vadd.f32 0.0, %v4273
  %v4275 = vpop.f32.mrb[0].mxu0
  %4276 = vmatprep.mubr.f32.mxu0 0.0
  %4277 = vmatmul.mubr.f32.gmra.mrb[0].mxu0 %v4164
  %v4278 = vpop.f32.mrb[0].mxu0
  %v4279 = vadd.f32 0.0, %v4278
  %v4280 = vpop.f32.mrb[0].mxu0
  %4281 = vmatprep.mubr.f32.mxu0 0.0
  %4282 = vmatmul.mubr.f32.gmra.mrb[0].mxu0 %v4165
  %v4283 = vpop.f32.mrb[0].mxu0
  %v4284 = vadd.f32 0.0, %v4283
  %v4285 = vpop.f32.mrb[0].mxu0
  %4286 = vmatprep.mubr.f32.mxu0 0.0
  %4287 = vmatmul.mubr.f32.gmra.mrb[0].mxu0 %v4166
  %v4288 = vpop.f32.mrb[0].mxu0
  %v4289 = vadd.f32 0.0, %v4288
  %v4290 = vpop.f32.mrb[0].mxu0
  %4291 = vmatprep.mubr.f32.mxu0 0.0
  %4292 = vmatmul.mubr.f32.gmra.mrb[0].mxu0 %v4167
  %v4293 = vpop.f32.mrb[0].mxu0
  %v4294 = vadd.f32 0.0, %v4293
  %v4295 = vpop.f32.mrb[0].mxu0
  %4296 = vmatprep.mubr.f32.mxu0 0.0
  %4297 = vmatmul.mubr.f32.gmra.mrb[0].mxu0 %v4168
  %v4298 = vpop.f32.mrb[0].mxu0
  %v4299 = vadd.f32 0.0, %v4298
  %v4300 = vpop.f32.mrb[0].mxu0
  %4301 = vmatprep.mubr.f32.mxu0 0.0
  %4302 = vmatmul.mubr.f32.gmra.mrb[0].mxu0 %v4169
  %v4303 = vpop.f32.mrb[0].mxu0
  %v4304 = vadd.f32 0.0, %v4303
  %v4305 = vpop.f32.mrb[0].mxu0
  %4306 = vmatprep.mubr.f32.mxu0 0.0
  %4307 = vmatmul.mubr.f32.gmra.mrb[0].mxu0 %v4170
  %v4308 = vpop.f32.mrb[0].mxu0
  %v4309 = vadd.f32 0.0, %v4308
  %v4310 = vpop.f32.mrb[0].mxu0
  %4311 = vmatprep.mubr.f32.mxu0 0.0
  %4312 = vmatmul.mubr.f32.gmra.mrb[0].mxu0 %v4171
  %v4313 = vpop.f32.mrb[0].mxu0
  %v4314 = vadd.f32 0.0, %v4313
  %v4315 = vpop.f32.mrb[0].mxu0
  %4316 = vmatprep.mubr.f32.mxu0 0.0
  %4317 = vmatmul.mubr.f32.gmra.mrb[0].mxu0 %v4172
  %v4318 = vpop.f32.mrb[0].mxu0
  %v4319 = vadd.f32 0.0, %v4318
  %v4320 = vpop.f32.mrb[0].mxu0
  %4321 = vmatprep.mubr.f32.mxu0 0.0
  %4322 = vmatmul.mubr.f32.gmra.mrb[0].mxu0 %v4173
  %v4323 = vpop.f32.mrb[0].mxu0
  %v4324 = vadd.f32 0.0, %v4323
  %v4325 = vpop.f32.mrb[0].mxu0
  %4326 = vmatprep.mubr.f32.mxu0 0.0
  %4327 = vmatmul.mubr.f32.gmra.mrb[0].mxu0 %v4174
  %v4328 = vpop.f32.mrb[0].mxu0
  %v4329 = vadd.f32 0.0, %v4328
  %v4330 = vpop.f32.mrb[0].mxu0
  %4331 = vmatprep.mubr.f32.mxu0 0.0
  %4332 = vmatmul.mubr.f32.gmra.mrb[0].mxu0 %v4175
  %v4333 = vpop.f32.mrb[0].mxu0
  %v4334 = vadd.f32 0.0, %v4333
  %v4335 = vpop.f32.mrb[0].mxu0
  %4336 = vdwg.mxu0
  %v4337 = vadd.f32 %v4144, %v4259
  %v4338 = vadd.f32 %v4145, %v4264
  %v4339 = vadd.f32 %v4146, %v4269
  %v4340 = vadd.f32 %v4147, %v4274
  %v4341 = vadd.f32 %v4148, %v4279
  %v4342 = vadd.f32 %v4149, %v4284
  %v4343 = vadd.f32 %v4150, %v4289
  %v4344 = vadd.f32 %v4151, %v4294
  %v4345 = vadd.f32 %v4152, %v4299
  %v4346 = vadd.f32 %v4153, %v4304
  %v4347 = vadd.f32 %v4154, %v4309
  %v4348 = vadd.f32 %v4155, %v4314
  %v4349 = vadd.f32 %v4156, %v4319
  %v4350 = vadd.f32 %v4157, %v4324
  %v4351 = vadd.f32 %v4158, %v4329
  %v4352 = vadd.f32 %v4159, %v4334
  %v4353 = vld [vmem:[%s3966 + $0x2] sm:$0xff]
  %v4354 = vld [vmem:[%s3966 + $0xa] sm:$0xff]
  %v4355 = vld [vmem:[%s3966 + $0x1a] sm:$0xff]
  %v4356 = vld [vmem:[%s3966 + $0x22] sm:$0xff]
  %v4357 = vld [vmem:[%s3966 + $0x32] sm:$0xff]
  %v4358 = vld [vmem:[%s3966 + $0x3a] sm:$0xff]
  %v4359 = vld [vmem:[%s3966 + $0x4a] sm:$0xff]
  %v4360 = vld [vmem:[%s3966 + $0x52] sm:$0xff]
  %v4361 = vld [vmem:[%s3966 + $0x62] sm:$0xff]
  %v4362 = vld [vmem:[%s3966 + $0x6a] sm:$0xff]
  %v4363 = vld [vmem:[%s3966 + $0x7a] sm:$0xff]
  %v4364 = vld [vmem:[%s3966 + $0x82] sm:$0xff]
  %v4365 = vld [vmem:[%s3966 + $0x92] sm:$0xff]
  %v4366 = vld [vmem:[%s3966 + $0x9a] sm:$0xff]
  %v4367 = vld [vmem:[%s3966 + $0xaa] sm:$0xff]
  %v4368 = vld [vmem:[%s3966 + $0xb2] sm:$0xff]
  %v4369 = vld [vmem:[%s2613] sm:$0xff]
  %v4370 = vld [vmem:[%s2613 + $0x8] sm:$0xff]
  %v4371 = vld [vmem:[%s2613 + $0x10] sm:$0xff]
  %v4372 = vld [vmem:[%s2613 + $0x18] sm:$0xff]
  %v4373 = vld [vmem:[%s2613 + $0x20] sm:$0xff]
  %v4374 = vld [vmem:[%s2613 + $0x28] sm:$0xff]
  %v4375 = vld [vmem:[%s2613 + $0x30] sm:$0xff]
  %v4376 = vld [vmem:[%s2613 + $0x38] sm:$0xff]
  %v4377 = vld [vmem:[%s2613 + $0x40] sm:$0xff]
  %v4378 = vld [vmem:[%s2613 + $0x48] sm:$0xff]
  %v4379 = vld [vmem:[%s2613 + $0x50] sm:$0xff]
  %v4380 = vld [vmem:[%s2613 + $0x58] sm:$0xff]
  %v4381 = vld [vmem:[%s2613 + $0x60] sm:$0xff]
  %v4382 = vld [vmem:[%s2613 + $0x68] sm:$0xff]
  %v4383 = vld [vmem:[%s2613 + $0x70] sm:$0xff]
  %v4384 = vld [vmem:[%s2613 + $0x78] sm:$0xff]
  %4385 = vmatprep.subr.mxu0 0.0
  %4386 = vmatpush1.msra.mxu0 %v4369
  %4387 = vmatprep.subr.mxu0 0.0
  %4388 = vmatpush1.msra.mxu0 %v4370
  %4389 = vmatprep.subr.mxu0 0.0
  %4390 = vmatpush1.msra.mxu0 %v4371
  %4391 = vmatprep.subr.mxu0 0.0
  %4392 = vmatpush1.msra.mxu0 %v4372
  %4393 = vmatprep.subr.mxu0 0.0
  %4394 = vmatpush1.msra.mxu0 %v4373
  %4395 = vmatprep.subr.mxu0 0.0
  %4396 = vmatpush1.msra.mxu0 %v4374
  %4397 = vmatprep.subr.mxu0 0.0
  %4398 = vmatpush1.msra.mxu0 %v4375
  %4399 = vmatprep.subr.mxu0 0.0
  %4400 = vmatpush1.msra.mxu0 %v4376
  %4401 = vmatprep.subr.mxu0 0.0
  %4402 = vmatpush1.msra.mxu0 %v4377
  %4403 = vmatprep.subr.mxu0 0.0
  %4404 = vmatpush1.msra.mxu0 %v4378
  %4405 = vmatprep.subr.mxu0 0.0
  %4406 = vmatpush1.msra.mxu0 %v4379
  %4407 = vmatprep.subr.mxu0 0.0
  %4408 = vmatpush1.msra.mxu0 %v4380
  %4409 = vmatprep.subr.mxu0 0.0
  %4410 = vmatpush1.msra.mxu0 %v4381
  %4411 = vmatprep.subr.mxu0 0.0
  %4412 = vmatpush1.msra.mxu0 %v4382
  %4413 = vmatprep.subr.mxu0 0.0
  %4414 = vmatpush1.msra.mxu0 %v4383
  %4415 = vmatprep.subr.mxu0 0.0
  %4416 = vmatpush1.msra.mxu0 %v4384
  %4417 = vmatprep.subr.mxu0 0.0
  %4418 = vmatpush1.msra.mxu0 0.0
  %4419 = vmatprep.subr.mxu0 0.0
  %4420 = vmatpush1.msra.mxu0 0.0
  %4421 = vmatprep.subr.mxu0 0.0
  %4422 = vmatpush1.msra.mxu0 0.0
  %4423 = vmatprep.subr.mxu0 0.0
  %4424 = vmatpush1.msra.mxu0 0.0
  %4425 = vmatprep.subr.mxu0 0.0
  %4426 = vmatpush1.msra.mxu0 0.0
  %4427 = vmatprep.subr.mxu0 0.0
  %4428 = vmatpush1.msra.mxu0 0.0
  %4429 = vmatprep.subr.mxu0 0.0
  %4430 = vmatpush1.msra.mxu0 0.0
  %4431 = vmatprep.subr.mxu0 0.0
  %4432 = vmatpush1.msra.mxu0 0.0
  %4433 = vmatprep.subr.mxu0 0.0
  %4434 = vmatpush1.msra.mxu0 0.0
  %4435 = vmatprep.subr.mxu0 0.0
  %4436 = vmatpush1.msra.mxu0 0.0
  %4437 = vmatprep.subr.mxu0 0.0
  %4438 = vmatpush1.msra.mxu0 0.0
  %4439 = vmatprep.subr.mxu0 0.0
  %4440 = vmatpush1.msra.mxu0 0.0
  %4441 = vmatprep.subr.mxu0 0.0
  %4442 = vmatpush1.msra.mxu0 0.0
  %4443 = vmatprep.subr.mxu0 0.0
  %4444 = vmatpush1.msra.mxu0 0.0
  %4445 = vmatprep.subr.mxu0 0.0
  %4446 = vmatpush1.msra.mxu0 0.0
  %4447 = vmatprep.subr.mxu0 0.0
  %4448 = vmatpush1.msra.mxu0 0.0
  %4449 = vmatprep.mubr.f32.mxu0 0.0
  %4450 = vmatmul.mubr.f32.gmra.mrb[0].mxu0 %v4353
  %v4451 = vpop.f32.mrb[0].mxu0
  %v4452 = vadd.f32 0.0, %v4451
  %v4453 = vpop.f32.mrb[0].mxu0
  %4454 = vmatprep.mubr.f32.mxu0 0.0
  %4455 = vmatmul.mubr.f32.gmra.mrb[0].mxu0 %v4354
  %v4456 = vpop.f32.mrb[0].mxu0
  %v4457 = vadd.f32 0.0, %v4456
  %v4458 = vpop.f32.mrb[0].mxu0
  %4459 = vmatprep.mubr.f32.mxu0 0.0
  %4460 = vmatmul.mubr.f32.gmra.mrb[0].mxu0 %v4355
  %v4461 = vpop.f32.mrb[0].mxu0
  %v4462 = vadd.f32 0.0, %v4461
  %v4463 = vpop.f32.mrb[0].mxu0
  %4464 = vmatprep.mubr.f32.mxu0 0.0
  %4465 = vmatmul.mubr.f32.gmra.mrb[0].mxu0 %v4356
  %v4466 = vpop.f32.mrb[0].mxu0
  %v4467 = vadd.f32 0.0, %v4466
  %v4468 = vpop.f32.mrb[0].mxu0
  %4469 = vmatprep.mubr.f32.mxu0 0.0
  %4470 = vmatmul.mubr.f32.gmra.mrb[0].mxu0 %v4357
  %v4471 = vpop.f32.mrb[0].mxu0
  %v4472 = vadd.f32 0.0, %v4471
  %v4473 = vpop.f32.mrb[0].mxu0
  %4474 = vmatprep.mubr.f32.mxu0 0.0
  %4475 = vmatmul.mubr.f32.gmra.mrb[0].mxu0 %v4358
  %v4476 = vpop.f32.mrb[0].mxu0
  %v4477 = vadd.f32 0.0, %v4476
  %v4478 = vpop.f32.mrb[0].mxu0
  %4479 = vmatprep.mubr.f32.mxu0 0.0
  %4480 = vmatmul.mubr.f32.gmra.mrb[0].mxu0 %v4359
  %v4481 = vpop.f32.mrb[0].mxu0
  %v4482 = vadd.f32 0.0, %v4481
  %v4483 = vpop.f32.mrb[0].mxu0
  %4484 = vmatprep.mubr.f32.mxu0 0.0
  %4485 = vmatmul.mubr.f32.gmra.mrb[0].mxu0 %v4360
  %v4486 = vpop.f32.mrb[0].mxu0
  %v4487 = vadd.f32 0.0, %v4486
  %v4488 = vpop.f32.mrb[0].mxu0
  %4489 = vmatprep.mubr.f32.mxu0 0.0
  %4490 = vmatmul.mubr.f32.gmra.mrb[0].mxu0 %v4361
  %v4491 = vpop.f32.mrb[0].mxu0
  %v4492 = vadd.f32 0.0, %v4491
  %v4493 = vpop.f32.mrb[0].mxu0
  %4494 = vmatprep.mubr.f32.mxu0 0.0
  %4495 = vmatmul.mubr.f32.gmra.mrb[0].mxu0 %v4362
  %v4496 = vpop.f32.mrb[0].mxu0
  %v4497 = vadd.f32 0.0, %v4496
  %v4498 = vpop.f32.mrb[0].mxu0
  %4499 = vmatprep.mubr.f32.mxu0 0.0
  %4500 = vmatmul.mubr.f32.gmra.mrb[0].mxu0 %v4363
  %v4501 = vpop.f32.mrb[0].mxu0
  %v4502 = vadd.f32 0.0, %v4501
  %v4503 = vpop.f32.mrb[0].mxu0
  %4504 = vmatprep.mubr.f32.mxu0 0.0
  %4505 = vmatmul.mubr.f32.gmra.mrb[0].mxu0 %v4364
  %v4506 = vpop.f32.mrb[0].mxu0
  %v4507 = vadd.f32 0.0, %v4506
  %v4508 = vpop.f32.mrb[0].mxu0
  %4509 = vmatprep.mubr.f32.mxu0 0.0
  %4510 = vmatmul.mubr.f32.gmra.mrb[0].mxu0 %v4365
  %v4511 = vpop.f32.mrb[0].mxu0
  %v4512 = vadd.f32 0.0, %v4511
  %v4513 = vpop.f32.mrb[0].mxu0
  %4514 = vmatprep.mubr.f32.mxu0 0.0
  %4515 = vmatmul.mubr.f32.gmra.mrb[0].mxu0 %v4366
  %v4516 = vpop.f32.mrb[0].mxu0
  %v4517 = vadd.f32 0.0, %v4516
  %v4518 = vpop.f32.mrb[0].mxu0
  %4519 = vmatprep.mubr.f32.mxu0 0.0
  %4520 = vmatmul.mubr.f32.gmra.mrb[0].mxu0 %v4367
  %v4521 = vpop.f32.mrb[0].mxu0
  %v4522 = vadd.f32 0.0, %v4521
  %v4523 = vpop.f32.mrb[0].mxu0
  %4524 = vmatprep.mubr.f32.mxu0 0.0
  %4525 = vmatmul.mubr.f32.gmra.mrb[0].mxu0 %v4368
  %v4526 = vpop.f32.mrb[0].mxu0
  %v4527 = vadd.f32 0.0, %v4526
  %v4528 = vpop.f32.mrb[0].mxu0
  %4529 = vdwg.mxu0
  %v4530 = vadd.f32 %v4337, %v4452
  %v4531 = vadd.f32 %v4338, %v4457
  %v4532 = vadd.f32 %v4339, %v4462
  %v4533 = vadd.f32 %v4340, %v4467
  %v4534 = vadd.f32 %v4341, %v4472
  %v4535 = vadd.f32 %v4342, %v4477
  %v4536 = vadd.f32 %v4343, %v4482
  %v4537 = vadd.f32 %v4344, %v4487
  %v4538 = vadd.f32 %v4345, %v4492
  %v4539 = vadd.f32 %v4346, %v4497
  %v4540 = vadd.f32 %v4347, %v4502
  %v4541 = vadd.f32 %v4348, %v4507
  %v4542 = vadd.f32 %v4349, %v4512
  %v4543 = vadd.f32 %v4350, %v4517
  %v4544 = vadd.f32 %v4351, %v4522
  %v4545 = vadd.f32 %v4352, %v4527
  %4546 = vxpose.xlu0.b32.start [1/16] %v4530, 128
  %4547 = vxpose.xlu0.b32.cont [2/16] %v4531, 128
  %4548 = vxpose.xlu0.b32.cont [3/16] %v4532, 128
  %4549 = vxpose.xlu0.b32.cont [4/16] %v4533, 128
  %4550 = vxpose.xlu0.b32.cont [5/16] %v4534, 128
  %4551 = vxpose.xlu0.b32.cont [6/16] %v4535, 128
  %4552 = vxpose.xlu0.b32.cont [7/16] %v4536, 128
  %4553 = vxpose.xlu0.b32.cont [8/16] %v4537, 128
  %4554 = vxpose.xlu0.b32.cont [9/16] %v4538, 128
  %4555 = vxpose.xlu0.b32.cont [10/16] %v4539, 128
  %4556 = vxpose.xlu0.b32.cont [11/16] %v4540, 128
  %4557 = vxpose.xlu0.b32.cont [12/16] %v4541, 128
  %4558 = vxpose.xlu0.b32.cont [13/16] %v4542, 128
  %4559 = vxpose.xlu0.b32.cont [14/16] %v4543, 128
  %4560 = vxpose.xlu0.b32.cont [15/16] %v4544, 128
  %4561 = vxpose.xlu0.b32.end [16/16] %v4545, 128
  %v4562 = vpop.trf.xlu0
  %v4563 = vpop.trf.xlu0
  %v4564 = vpop.trf.xlu0
  %v4565 = vpop.trf.xlu0
  %v4566 = vpop.trf.xlu0
  %v4567 = vpop.trf.xlu0
  %v4568 = vpop.trf.xlu0
  %v4569 = vpop.trf.xlu0
  %v4570 = vpop.trf.xlu0
  %v4571 = vpop.trf.xlu0
  %v4572 = vpop.trf.xlu0
  %v4573 = vpop.trf.xlu0
  %v4574 = vpop.trf.xlu0
  %v4575 = vpop.trf.xlu0
  %v4576 = vpop.trf.xlu0
  %v4577 = vpop.trf.xlu0
  %4578 = vst [vmem:[%s3 + $0x8] sm:$0xff] %v4562
  %4579 = vst [vmem:[%s3 + $0x18] sm:$0xff] %v4563
  %4580 = vst [vmem:[%s3 + $0x28] sm:$0xff] %v4564
  %4581 = vst [vmem:[%s3 + $0x38] sm:$0xff] %v4565
  %4582 = vst [vmem:[%s3 + $0x48] sm:$0xff] %v4566
  %4583 = vst [vmem:[%s3 + $0x58] sm:$0xff] %v4567
  %4584 = vst [vmem:[%s3 + $0x68] sm:$0xff] %v4568
  %4585 = vst [vmem:[%s3 + $0x78] sm:$0xff] %v4569
  %4586 = vst [vmem:[%s3 + $0x88] sm:$0xff] %v4570
  %4587 = vst [vmem:[%s3 + $0x98] sm:$0xff] %v4571
  %4588 = vst [vmem:[%s3 + $0xa8] sm:$0xff] %v4572
  %4589 = vst [vmem:[%s3 + $0xb8] sm:$0xff] %v4573
  %4590 = vst [vmem:[%s3 + $0xc8] sm:$0xff] %v4574
  %4591 = vst [vmem:[%s3 + $0xd8] sm:$0xff] %v4575
  %4592 = vst [vmem:[%s3 + $0xe8] sm:$0xff] %v4576
  %4593 = vst [vmem:[%s3 + $0xf8] sm:$0xff] %v4577
  %s4594 = scalar_lea.vmem [#allocation2], 432
  %v4595 = vld [vmem:[%s4594] sm:$0xff]
  %v4596 = vld [vmem:[%s4594 + $0x8] sm:$0xff]
  %v4597 = vld [vmem:[%s4594 + $0x18] sm:$0xff]
  %v4598 = vld [vmem:[%s4594 + $0x20] sm:$0xff]
  %v4599 = vld [vmem:[%s4594 + $0x30] sm:$0xff]
  %v4600 = vld [vmem:[%s4594 + $0x38] sm:$0xff]
  %v4601 = vld [vmem:[%s4594 + $0x48] sm:$0xff]
  %v4602 = vld [vmem:[%s4594 + $0x50] sm:$0xff]
  %v4603 = vld [vmem:[%s4594 + $0x60] sm:$0xff]
  %v4604 = vld [vmem:[%s4594 + $0x68] sm:$0xff]
  %v4605 = vld [vmem:[%s4594 + $0x78] sm:$0xff]
  %v4606 = vld [vmem:[%s4594 + $0x80] sm:$0xff]
  %v4607 = vld [vmem:[%s4594 + $0x90] sm:$0xff]
  %v4608 = vld [vmem:[%s4594 + $0x98] sm:$0xff]
  %v4609 = vld [vmem:[%s4594 + $0xa8] sm:$0xff]
  %v4610 = vld [vmem:[%s4594 + $0xb0] sm:$0xff]
  %v4611 = vld [vmem:[%s2] sm:$0xff]
  %v4612 = vld [vmem:[%s2 + $0x8] sm:$0xff]
  %v4613 = vld [vmem:[%s2 + $0x10] sm:$0xff]
  %v4614 = vld [vmem:[%s2 + $0x18] sm:$0xff]
  %v4615 = vld [vmem:[%s2 + $0x20] sm:$0xff]
  %v4616 = vld [vmem:[%s2 + $0x28] sm:$0xff]
  %v4617 = vld [vmem:[%s2 + $0x30] sm:$0xff]
  %v4618 = vld [vmem:[%s2 + $0x38] sm:$0xff]
  %v4619 = vld [vmem:[%s2 + $0x40] sm:$0xff]
  %v4620 = vld [vmem:[%s2 + $0x48] sm:$0xff]
  %v4621 = vld [vmem:[%s2 + $0x50] sm:$0xff]
  %v4622 = vld [vmem:[%s2 + $0x58] sm:$0xff]
  %v4623 = vld [vmem:[%s2 + $0x60] sm:$0xff]
  %v4624 = vld [vmem:[%s2 + $0x68] sm:$0xff]
  %v4625 = vld [vmem:[%s2 + $0x70] sm:$0xff]
  %v4626 = vld [vmem:[%s2 + $0x78] sm:$0xff]
  %v4627 = vld [vmem:[%s4594 + $0x1] sm:$0xff]
  %v4628 = vld [vmem:[%s4594 + $0x9] sm:$0xff]
  %v4629 = vld [vmem:[%s4594 + $0x19] sm:$0xff]
  %v4630 = vld [vmem:[%s4594 + $0x21] sm:$0xff]
  %v4631 = vld [vmem:[%s4594 + $0x31] sm:$0xff]
  %v4632 = vld [vmem:[%s4594 + $0x39] sm:$0xff]
  %v4633 = vld [vmem:[%s4594 + $0x49] sm:$0xff]
  %v4634 = vld [vmem:[%s4594 + $0x51] sm:$0xff]
  %v4635 = vld [vmem:[%s4594 + $0x61] sm:$0xff]
  %v4636 = vld [vmem:[%s4594 + $0x69] sm:$0xff]
  %v4637 = vld [vmem:[%s4594 + $0x79] sm:$0xff]
  %v4638 = vld [vmem:[%s4594 + $0x81] sm:$0xff]
  %v4639 = vld [vmem:[%s4594 + $0x91] sm:$0xff]
  %v4640 = vld [vmem:[%s4594 + $0x99] sm:$0xff]
  %v4641 = vld [vmem:[%s4594 + $0xa9] sm:$0xff]
  %v4642 = vld [vmem:[%s4594 + $0xb1] sm:$0xff]
  %v4643 = vld [vmem:[%s1125] sm:$0xff]
  %v4644 = vld [vmem:[%s1125 + $0x8] sm:$0xff]
  %v4645 = vld [vmem:[%s1125 + $0x10] sm:$0xff]
  %v4646 = vld [vmem:[%s1125 + $0x18] sm:$0xff]
  %v4647 = vld [vmem:[%s1125 + $0x20] sm:$0xff]
  %v4648 = vld [vmem:[%s1125 + $0x28] sm:$0xff]
  %v4649 = vld [vmem:[%s1125 + $0x30] sm:$0xff]
  %v4650 = vld [vmem:[%s1125 + $0x38] sm:$0xff]
  %v4651 = vld [vmem:[%s1125 + $0x40] sm:$0xff]
  %v4652 = vld [vmem:[%s1125 + $0x48] sm:$0xff]
  %v4653 = vld [vmem:[%s1125 + $0x50] sm:$0xff]
  %v4654 = vld [vmem:[%s1125 + $0x58] sm:$0xff]
  %v4655 = vld [vmem:[%s1125 + $0x60] sm:$0xff]
  %v4656 = vld [vmem:[%s1125 + $0x68] sm:$0xff]
  %v4657 = vld [vmem:[%s1125 + $0x70] sm:$0xff]
  %v4658 = vld [vmem:[%s1125 + $0x78] sm:$0xff]
  %4659 = vmatprep.subr.mxu0 0.0
  %4660 = vmatpush1.msra.mxu0 %v4643
  %4661 = vmatprep.subr.mxu0 0.0
  %4662 = vmatpush1.msra.mxu0 %v4644
  %4663 = vmatprep.subr.mxu0 0.0
  %4664 = vmatpush1.msra.mxu0 %v4645
  %4665 = vmatprep.subr.mxu0 0.0
  %4666 = vmatpush1.msra.mxu0 %v4646
  %4667 = vmatprep.subr.mxu0 0.0
  %4668 = vmatpush1.msra.mxu0 %v4647
  %4669 = vmatprep.subr.mxu0 0.0
  %4670 = vmatpush1.msra.mxu0 %v4648
  %4671 = vmatprep.subr.mxu0 0.0
  %4672 = vmatpush1.msra.mxu0 %v4649
  %4673 = vmatprep.subr.mxu0 0.0
  %4674 = vmatpush1.msra.mxu0 %v4650
  %4675 = vmatprep.subr.mxu0 0.0
  %4676 = vmatpush1.msra.mxu0 %v4651
  %4677 = vmatprep.subr.mxu0 0.0
  %4678 = vmatpush1.msra.mxu0 %v4652
  %4679 = vmatprep.subr.mxu0 0.0
  %4680 = vmatpush1.msra.mxu0 %v4653
  %4681 = vmatprep.subr.mxu0 0.0
  %4682 = vmatpush1.msra.mxu0 %v4654
  %4683 = vmatprep.subr.mxu0 0.0
  %4684 = vmatpush1.msra.mxu0 %v4655
  %4685 = vmatprep.subr.mxu0 0.0
  %4686 = vmatpush1.msra.mxu0 %v4656
  %4687 = vmatprep.subr.mxu0 0.0
  %4688 = vmatpush1.msra.mxu0 %v4657
  %4689 = vmatprep.subr.mxu0 0.0
  %4690 = vmatpush1.msra.mxu0 %v4658
  %4691 = vmatprep.subr.mxu0 0.0
  %4692 = vmatpush1.msra.mxu0 0.0
  %4693 = vmatprep.subr.mxu0 0.0
  %4694 = vmatpush1.msra.mxu0 0.0
  %4695 = vmatprep.subr.mxu0 0.0
  %4696 = vmatpush1.msra.mxu0 0.0
  %4697 = vmatprep.subr.mxu0 0.0
  %4698 = vmatpush1.msra.mxu0 0.0
  %4699 = vmatprep.subr.mxu0 0.0
  %4700 = vmatpush1.msra.mxu0 0.0
  %4701 = vmatprep.subr.mxu0 0.0
  %4702 = vmatpush1.msra.mxu0 0.0
  %4703 = vmatprep.subr.mxu0 0.0
  %4704 = vmatpush1.msra.mxu0 0.0
  %4705 = vmatprep.subr.mxu0 0.0
  %4706 = vmatpush1.msra.mxu0 0.0
  %4707 = vmatprep.subr.mxu0 0.0
  %4708 = vmatpush1.msra.mxu0 0.0
  %4709 = vmatprep.subr.mxu0 0.0
  %4710 = vmatpush1.msra.mxu0 0.0
  %4711 = vmatprep.subr.mxu0 0.0
  %4712 = vmatpush1.msra.mxu0 0.0
  %4713 = vmatprep.subr.mxu0 0.0
  %4714 = vmatpush1.msra.mxu0 0.0
  %4715 = vmatprep.subr.mxu0 0.0
  %4716 = vmatpush1.msra.mxu0 0.0
  %4717 = vmatprep.subr.mxu0 0.0
  %4718 = vmatpush1.msra.mxu0 0.0
  %4719 = vmatprep.subr.mxu0 0.0
  %4720 = vmatpush1.msra.mxu0 0.0
  %4721 = vmatprep.subr.mxu0 0.0
  %4722 = vmatpush1.msra.mxu0 0.0
  %4723 = vmatprep.mubr.f32.mxu0 0.0
  %4724 = vmatmul.mubr.f32.gmra.mrb[0].mxu0 %v4627
  %v4725 = vpop.f32.mrb[0].mxu0
  %v4726 = vadd.f32 0.0, %v4725
  %v4727 = vpop.f32.mrb[0].mxu0
  %4728 = vmatprep.mubr.f32.mxu0 0.0
  %4729 = vmatmul.mubr.f32.gmra.mrb[0].mxu0 %v4628
  %v4730 = vpop.f32.mrb[0].mxu0
  %v4731 = vadd.f32 0.0, %v4730
  %v4732 = vpop.f32.mrb[0].mxu0
  %4733 = vmatprep.mubr.f32.mxu0 0.0
  %4734 = vmatmul.mubr.f32.gmra.mrb[0].mxu0 %v4629
  %v4735 = vpop.f32.mrb[0].mxu0
  %v4736 = vadd.f32 0.0, %v4735
  %v4737 = vpop.f32.mrb[0].mxu0
  %4738 = vmatprep.mubr.f32.mxu0 0.0
  %4739 = vmatmul.mubr.f32.gmra.mrb[0].mxu0 %v4630
  %v4740 = vpop.f32.mrb[0].mxu0
  %v4741 = vadd.f32 0.0, %v4740
  %v4742 = vpop.f32.mrb[0].mxu0
  %4743 = vmatprep.mubr.f32.mxu0 0.0
  %4744 = vmatmul.mubr.f32.gmra.mrb[0].mxu0 %v4631
  %v4745 = vpop.f32.mrb[0].mxu0
  %v4746 = vadd.f32 0.0, %v4745
  %v4747 = vpop.f32.mrb[0].mxu0
  %4748 = vmatprep.mubr.f32.mxu0 0.0
  %4749 = vmatmul.mubr.f32.gmra.mrb[0].mxu0 %v4632
  %v4750 = vpop.f32.mrb[0].mxu0
  %v4751 = vadd.f32 0.0, %v4750
  %v4752 = vpop.f32.mrb[0].mxu0
  %4753 = vmatprep.mubr.f32.mxu0 0.0
  %4754 = vmatmul.mubr.f32.gmra.mrb[0].mxu0 %v4633
  %v4755 = vpop.f32.mrb[0].mxu0
  %v4756 = vadd.f32 0.0, %v4755
  %v4757 = vpop.f32.mrb[0].mxu0
  %4758 = vmatprep.mubr.f32.mxu0 0.0
  %4759 = vmatmul.mubr.f32.gmra.mrb[0].mxu0 %v4634
  %v4760 = vpop.f32.mrb[0].mxu0
  %v4761 = vadd.f32 0.0, %v4760
  %v4762 = vpop.f32.mrb[0].mxu0
  %4763 = vmatprep.mubr.f32.mxu0 0.0
  %4764 = vmatmul.mubr.f32.gmra.mrb[0].mxu0 %v4635
  %v4765 = vpop.f32.mrb[0].mxu0
  %v4766 = vadd.f32 0.0, %v4765
  %v4767 = vpop.f32.mrb[0].mxu0
  %4768 = vmatprep.mubr.f32.mxu0 0.0
  %4769 = vmatmul.mubr.f32.gmra.mrb[0].mxu0 %v4636
  %v4770 = vpop.f32.mrb[0].mxu0
  %v4771 = vadd.f32 0.0, %v4770
  %v4772 = vpop.f32.mrb[0].mxu0
  %4773 = vmatprep.mubr.f32.mxu0 0.0
  %4774 = vmatmul.mubr.f32.gmra.mrb[0].mxu0 %v4637
  %v4775 = vpop.f32.mrb[0].mxu0
  %v4776 = vadd.f32 0.0, %v4775
  %v4777 = vpop.f32.mrb[0].mxu0
  %4778 = vmatprep.mubr.f32.mxu0 0.0
  %4779 = vmatmul.mubr.f32.gmra.mrb[0].mxu0 %v4638
  %v4780 = vpop.f32.mrb[0].mxu0
  %v4781 = vadd.f32 0.0, %v4780
  %v4782 = vpop.f32.mrb[0].mxu0
  %4783 = vmatprep.mubr.f32.mxu0 0.0
  %4784 = vmatmul.mubr.f32.gmra.mrb[0].mxu0 %v4639
  %v4785 = vpop.f32.mrb[0].mxu0
  %v4786 = vadd.f32 0.0, %v4785
  %v4787 = vpop.f32.mrb[0].mxu0
  %4788 = vmatprep.mubr.f32.mxu0 0.0
  %4789 = vmatmul.mubr.f32.gmra.mrb[0].mxu0 %v4640
  %v4790 = vpop.f32.mrb[0].mxu0
  %v4791 = vadd.f32 0.0, %v4790
  %v4792 = vpop.f32.mrb[0].mxu0
  %4793 = vmatprep.mubr.f32.mxu0 0.0
  %4794 = vmatmul.mubr.f32.gmra.mrb[0].mxu0 %v4641
  %v4795 = vpop.f32.mrb[0].mxu0
  %v4796 = vadd.f32 0.0, %v4795
  %v4797 = vpop.f32.mrb[0].mxu0
  %4798 = vmatprep.mubr.f32.mxu0 0.0
  %4799 = vmatmul.mubr.f32.gmra.mrb[0].mxu0 %v4642
  %v4800 = vpop.f32.mrb[0].mxu0
  %v4801 = vadd.f32 0.0, %v4800
  %v4802 = vpop.f32.mrb[0].mxu0
  %4803 = vdwg.mxu0
  %4804 = vmatprep.subr.mxu0 0.0
  %4805 = vmatpush1.msra.mxu0 %v4611
  %4806 = vmatprep.subr.mxu0 0.0
  %4807 = vmatpush1.msra.mxu0 %v4612
  %4808 = vmatprep.subr.mxu0 0.0
  %4809 = vmatpush1.msra.mxu0 %v4613
  %4810 = vmatprep.subr.mxu0 0.0
  %4811 = vmatpush1.msra.mxu0 %v4614
  %4812 = vmatprep.subr.mxu0 0.0
  %4813 = vmatpush1.msra.mxu0 %v4615
  %4814 = vmatprep.subr.mxu0 0.0
  %4815 = vmatpush1.msra.mxu0 %v4616
  %4816 = vmatprep.subr.mxu0 0.0
  %4817 = vmatpush1.msra.mxu0 %v4617
  %4818 = vmatprep.subr.mxu0 0.0
  %4819 = vmatpush1.msra.mxu0 %v4618
  %4820 = vmatprep.subr.mxu0 0.0
  %4821 = vmatpush1.msra.mxu0 %v4619
  %4822 = vmatprep.subr.mxu0 0.0
  %4823 = vmatpush1.msra.mxu0 %v4620
  %4824 = vmatprep.subr.mxu0 0.0
  %4825 = vmatpush1.msra.mxu0 %v4621
  %4826 = vmatprep.subr.mxu0 0.0
  %4827 = vmatpush1.msra.mxu0 %v4622
  %4828 = vmatprep.subr.mxu0 0.0
  %4829 = vmatpush1.msra.mxu0 %v4623
  %4830 = vmatprep.subr.mxu0 0.0
  %4831 = vmatpush1.msra.mxu0 %v4624
  %4832 = vmatprep.subr.mxu0 0.0
  %4833 = vmatpush1.msra.mxu0 %v4625
  %4834 = vmatprep.subr.mxu0 0.0
  %4835 = vmatpush1.msra.mxu0 %v4626
  %4836 = vmatprep.subr.mxu0 0.0
  %4837 = vmatpush1.msra.mxu0 0.0
  %4838 = vmatprep.subr.mxu0 0.0
  %4839 = vmatpush1.msra.mxu0 0.0
  %4840 = vmatprep.subr.mxu0 0.0
  %4841 = vmatpush1.msra.mxu0 0.0
  %4842 = vmatprep.subr.mxu0 0.0
  %4843 = vmatpush1.msra.mxu0 0.0
  %4844 = vmatprep.subr.mxu0 0.0
  %4845 = vmatpush1.msra.mxu0 0.0
  %4846 = vmatprep.subr.mxu0 0.0
  %4847 = vmatpush1.msra.mxu0 0.0
  %4848 = vmatprep.subr.mxu0 0.0
  %4849 = vmatpush1.msra.mxu0 0.0
  %4850 = vmatprep.subr.mxu0 0.0
  %4851 = vmatpush1.msra.mxu0 0.0
  %4852 = vmatprep.subr.mxu0 0.0
  %4853 = vmatpush1.msra.mxu0 0.0
  %4854 = vmatprep.subr.mxu0 0.0
  %4855 = vmatpush1.msra.mxu0 0.0
  %4856 = vmatprep.subr.mxu0 0.0
  %4857 = vmatpush1.msra.mxu0 0.0
  %4858 = vmatprep.subr.mxu0 0.0
  %4859 = vmatpush1.msra.mxu0 0.0
  %4860 = vmatprep.subr.mxu0 0.0
  %4861 = vmatpush1.msra.mxu0 0.0
  %4862 = vmatprep.subr.mxu0 0.0
  %4863 = vmatpush1.msra.mxu0 0.0
  %4864 = vmatprep.subr.mxu0 0.0
  %4865 = vmatpush1.msra.mxu0 0.0
  %4866 = vmatprep.subr.mxu0 0.0
  %4867 = vmatpush1.msra.mxu0 0.0
  %4868 = vmatprep.mubr.f32.mxu0 0.0
  %4869 = vmatmul.mubr.f32.gmra.mrb[0].mxu0 %v4595
  %v4870 = vpop.f32.mrb[0].mxu0
  %v4871 = vadd.f32 %v4726, %v4870
  %v4872 = vpop.f32.mrb[0].mxu0
  %4873 = vmatprep.mubr.f32.mxu0 0.0
  %4874 = vmatmul.mubr.f32.gmra.mrb[0].mxu0 %v4596
  %v4875 = vpop.f32.mrb[0].mxu0
  %v4876 = vadd.f32 %v4731, %v4875
  %v4877 = vpop.f32.mrb[0].mxu0
  %4878 = vmatprep.mubr.f32.mxu0 0.0
  %4879 = vmatmul.mubr.f32.gmra.mrb[0].mxu0 %v4597
  %v4880 = vpop.f32.mrb[0].mxu0
  %v4881 = vadd.f32 %v4736, %v4880
  %v4882 = vpop.f32.mrb[0].mxu0
  %4883 = vmatprep.mubr.f32.mxu0 0.0
  %4884 = vmatmul.mubr.f32.gmra.mrb[0].mxu0 %v4598
  %v4885 = vpop.f32.mrb[0].mxu0
  %v4886 = vadd.f32 %v4741, %v4885
  %v4887 = vpop.f32.mrb[0].mxu0
  %4888 = vmatprep.mubr.f32.mxu0 0.0
  %4889 = vmatmul.mubr.f32.gmra.mrb[0].mxu0 %v4599
  %v4890 = vpop.f32.mrb[0].mxu0
  %v4891 = vadd.f32 %v4746, %v4890
  %v4892 = vpop.f32.mrb[0].mxu0
  %4893 = vmatprep.mubr.f32.mxu0 0.0
  %4894 = vmatmul.mubr.f32.gmra.mrb[0].mxu0 %v4600
  %v4895 = vpop.f32.mrb[0].mxu0
  %v4896 = vadd.f32 %v4751, %v4895
  %v4897 = vpop.f32.mrb[0].mxu0
  %4898 = vmatprep.mubr.f32.mxu0 0.0
  %4899 = vmatmul.mubr.f32.gmra.mrb[0].mxu0 %v4601
  %v4900 = vpop.f32.mrb[0].mxu0
  %v4901 = vadd.f32 %v4756, %v4900
  %v4902 = vpop.f32.mrb[0].mxu0
  %4903 = vmatprep.mubr.f32.mxu0 0.0
  %4904 = vmatmul.mubr.f32.gmra.mrb[0].mxu0 %v4602
  %v4905 = vpop.f32.mrb[0].mxu0
  %v4906 = vadd.f32 %v4761, %v4905
  %v4907 = vpop.f32.mrb[0].mxu0
  %4908 = vmatprep.mubr.f32.mxu0 0.0
  %4909 = vmatmul.mubr.f32.gmra.mrb[0].mxu0 %v4603
  %v4910 = vpop.f32.mrb[0].mxu0
  %v4911 = vadd.f32 %v4766, %v4910
  %v4912 = vpop.f32.mrb[0].mxu0
  %4913 = vmatprep.mubr.f32.mxu0 0.0
  %4914 = vmatmul.mubr.f32.gmra.mrb[0].mxu0 %v4604
  %v4915 = vpop.f32.mrb[0].mxu0
  %v4916 = vadd.f32 %v4771, %v4915
  %v4917 = vpop.f32.mrb[0].mxu0
  %4918 = vmatprep.mubr.f32.mxu0 0.0
  %4919 = vmatmul.mubr.f32.gmra.mrb[0].mxu0 %v4605
  %v4920 = vpop.f32.mrb[0].mxu0
  %v4921 = vadd.f32 %v4776, %v4920
  %v4922 = vpop.f32.mrb[0].mxu0
  %4923 = vmatprep.mubr.f32.mxu0 0.0
  %4924 = vmatmul.mubr.f32.gmra.mrb[0].mxu0 %v4606
  %v4925 = vpop.f32.mrb[0].mxu0
  %v4926 = vadd.f32 %v4781, %v4925
  %v4927 = vpop.f32.mrb[0].mxu0
  %4928 = vmatprep.mubr.f32.mxu0 0.0
  %4929 = vmatmul.mubr.f32.gmra.mrb[0].mxu0 %v4607
  %v4930 = vpop.f32.mrb[0].mxu0
  %v4931 = vadd.f32 %v4786, %v4930
  %v4932 = vpop.f32.mrb[0].mxu0
  %4933 = vmatprep.mubr.f32.mxu0 0.0
  %4934 = vmatmul.mubr.f32.gmra.mrb[0].mxu0 %v4608
  %v4935 = vpop.f32.mrb[0].mxu0
  %v4936 = vadd.f32 %v4791, %v4935
  %v4937 = vpop.f32.mrb[0].mxu0
  %4938 = vmatprep.mubr.f32.mxu0 0.0
  %4939 = vmatmul.mubr.f32.gmra.mrb[0].mxu0 %v4609
  %v4940 = vpop.f32.mrb[0].mxu0
  %v4941 = vadd.f32 %v4796, %v4940
  %v4942 = vpop.f32.mrb[0].mxu0
  %4943 = vmatprep.mubr.f32.mxu0 0.0
  %4944 = vmatmul.mubr.f32.gmra.mrb[0].mxu0 %v4610
  %v4945 = vpop.f32.mrb[0].mxu0
  %v4946 = vadd.f32 %v4801, %v4945
  %v4947 = vpop.f32.mrb[0].mxu0
  %4948 = vdwg.mxu0
  %v4949 = vld [vmem:[%s4594 + $0x2] sm:$0xff]
  %v4950 = vld [vmem:[%s4594 + $0xa] sm:$0xff]
  %v4951 = vld [vmem:[%s4594 + $0x1a] sm:$0xff]
  %v4952 = vld [vmem:[%s4594 + $0x22] sm:$0xff]
  %v4953 = vld [vmem:[%s4594 + $0x32] sm:$0xff]
  %v4954 = vld [vmem:[%s4594 + $0x3a] sm:$0xff]
  %v4955 = vld [vmem:[%s4594 + $0x4a] sm:$0xff]
  %v4956 = vld [vmem:[%s4594 + $0x52] sm:$0xff]
  %v4957 = vld [vmem:[%s4594 + $0x62] sm:$0xff]
  %v4958 = vld [vmem:[%s4594 + $0x6a] sm:$0xff]
  %v4959 = vld [vmem:[%s4594 + $0x7a] sm:$0xff]
  %v4960 = vld [vmem:[%s4594 + $0x82] sm:$0xff]
  %v4961 = vld [vmem:[%s4594 + $0x92] sm:$0xff]
  %v4962 = vld [vmem:[%s4594 + $0x9a] sm:$0xff]
  %v4963 = vld [vmem:[%s4594 + $0xaa] sm:$0xff]
  %v4964 = vld [vmem:[%s4594 + $0xb2] sm:$0xff]
  %v4965 = vld [vmem:[%s1448] sm:$0xff]
  %v4966 = vld [vmem:[%s1448 + $0x8] sm:$0xff]
  %v4967 = vld [vmem:[%s1448 + $0x10] sm:$0xff]
  %v4968 = vld [vmem:[%s1448 + $0x18] sm:$0xff]
  %v4969 = vld [vmem:[%s1448 + $0x20] sm:$0xff]
  %v4970 = vld [vmem:[%s1448 + $0x28] sm:$0xff]
  %v4971 = vld [vmem:[%s1448 + $0x30] sm:$0xff]
  %v4972 = vld [vmem:[%s1448 + $0x38] sm:$0xff]
  %v4973 = vld [vmem:[%s1448 + $0x40] sm:$0xff]
  %v4974 = vld [vmem:[%s1448 + $0x48] sm:$0xff]
  %v4975 = vld [vmem:[%s1448 + $0x50] sm:$0xff]
  %v4976 = vld [vmem:[%s1448 + $0x58] sm:$0xff]
  %v4977 = vld [vmem:[%s1448 + $0x60] sm:$0xff]
  %v4978 = vld [vmem:[%s1448 + $0x68] sm:$0xff]
  %v4979 = vld [vmem:[%s1448 + $0x70] sm:$0xff]
  %v4980 = vld [vmem:[%s1448 + $0x78] sm:$0xff]
  %4981 = vmatprep.subr.mxu0 0.0
  %4982 = vmatpush1.msra.mxu0 %v4965
  %4983 = vmatprep.subr.mxu0 0.0
  %4984 = vmatpush1.msra.mxu0 %v4966
  %4985 = vmatprep.subr.mxu0 0.0
  %4986 = vmatpush1.msra.mxu0 %v4967
  %4987 = vmatprep.subr.mxu0 0.0
  %4988 = vmatpush1.msra.mxu0 %v4968
  %4989 = vmatprep.subr.mxu0 0.0
  %4990 = vmatpush1.msra.mxu0 %v4969
  %4991 = vmatprep.subr.mxu0 0.0
  %4992 = vmatpush1.msra.mxu0 %v4970
  %4993 = vmatprep.subr.mxu0 0.0
  %4994 = vmatpush1.msra.mxu0 %v4971
  %4995 = vmatprep.subr.mxu0 0.0
  %4996 = vmatpush1.msra.mxu0 %v4972
  %4997 = vmatprep.subr.mxu0 0.0
  %4998 = vmatpush1.msra.mxu0 %v4973
  %4999 = vmatprep.subr.mxu0 0.0
  %5000 = vmatpush1.msra.mxu0 %v4974
  %5001 = vmatprep.subr.mxu0 0.0
  %5002 = vmatpush1.msra.mxu0 %v4975
  %5003 = vmatprep.subr.mxu0 0.0
  %5004 = vmatpush1.msra.mxu0 %v4976
  %5005 = vmatprep.subr.mxu0 0.0
  %5006 = vmatpush1.msra.mxu0 %v4977
  %5007 = vmatprep.subr.mxu0 0.0
  %5008 = vmatpush1.msra.mxu0 %v4978
  %5009 = vmatprep.subr.mxu0 0.0
  %5010 = vmatpush1.msra.mxu0 %v4979
  %5011 = vmatprep.subr.mxu0 0.0
  %5012 = vmatpush1.msra.mxu0 %v4980
  %5013 = vmatprep.subr.mxu0 0.0
  %5014 = vmatpush1.msra.mxu0 0.0
  %5015 = vmatprep.subr.mxu0 0.0
  %5016 = vmatpush1.msra.mxu0 0.0
  %5017 = vmatprep.subr.mxu0 0.0
  %5018 = vmatpush1.msra.mxu0 0.0
  %5019 = vmatprep.subr.mxu0 0.0
  %5020 = vmatpush1.msra.mxu0 0.0
  %5021 = vmatprep.subr.mxu0 0.0
  %5022 = vmatpush1.msra.mxu0 0.0
  %5023 = vmatprep.subr.mxu0 0.0
  %5024 = vmatpush1.msra.mxu0 0.0
  %5025 = vmatprep.subr.mxu0 0.0
  %5026 = vmatpush1.msra.mxu0 0.0
  %5027 = vmatprep.subr.mxu0 0.0
  %5028 = vmatpush1.msra.mxu0 0.0
  %5029 = vmatprep.subr.mxu0 0.0
  %5030 = vmatpush1.msra.mxu0 0.0
  %5031 = vmatprep.subr.mxu0 0.0
  %5032 = vmatpush1.msra.mxu0 0.0
  %5033 = vmatprep.subr.mxu0 0.0
  %5034 = vmatpush1.msra.mxu0 0.0
  %5035 = vmatprep.subr.mxu0 0.0
  %5036 = vmatpush1.msra.mxu0 0.0
  %5037 = vmatprep.subr.mxu0 0.0
  %5038 = vmatpush1.msra.mxu0 0.0
  %5039 = vmatprep.subr.mxu0 0.0
  %5040 = vmatpush1.msra.mxu0 0.0
  %5041 = vmatprep.subr.mxu0 0.0
  %5042 = vmatpush1.msra.mxu0 0.0
  %5043 = vmatprep.subr.mxu0 0.0
  %5044 = vmatpush1.msra.mxu0 0.0
  %5045 = vmatprep.mubr.f32.mxu0 0.0
  %5046 = vmatmul.mubr.f32.gmra.mrb[0].mxu0 %v4949
  %v5047 = vpop.f32.mrb[0].mxu0
  %v5048 = vadd.f32 0.0, %v5047
  %v5049 = vpop.f32.mrb[0].mxu0
  %5050 = vmatprep.mubr.f32.mxu0 0.0
  %5051 = vmatmul.mubr.f32.gmra.mrb[0].mxu0 %v4950
  %v5052 = vpop.f32.mrb[0].mxu0
  %v5053 = vadd.f32 0.0, %v5052
  %v5054 = vpop.f32.mrb[0].mxu0
  %5055 = vmatprep.mubr.f32.mxu0 0.0
  %5056 = vmatmul.mubr.f32.gmra.mrb[0].mxu0 %v4951
  %v5057 = vpop.f32.mrb[0].mxu0
  %v5058 = vadd.f32 0.0, %v5057
  %v5059 = vpop.f32.mrb[0].mxu0
  %5060 = vmatprep.mubr.f32.mxu0 0.0
  %5061 = vmatmul.mubr.f32.gmra.mrb[0].mxu0 %v4952
  %v5062 = vpop.f32.mrb[0].mxu0
  %v5063 = vadd.f32 0.0, %v5062
  %v5064 = vpop.f32.mrb[0].mxu0
  %5065 = vmatprep.mubr.f32.mxu0 0.0
  %5066 = vmatmul.mubr.f32.gmra.mrb[0].mxu0 %v4953
  %v5067 = vpop.f32.mrb[0].mxu0
  %v5068 = vadd.f32 0.0, %v5067
  %v5069 = vpop.f32.mrb[0].mxu0
  %5070 = vmatprep.mubr.f32.mxu0 0.0
  %5071 = vmatmul.mubr.f32.gmra.mrb[0].mxu0 %v4954
  %v5072 = vpop.f32.mrb[0].mxu0
  %v5073 = vadd.f32 0.0, %v5072
  %v5074 = vpop.f32.mrb[0].mxu0
  %5075 = vmatprep.mubr.f32.mxu0 0.0
  %5076 = vmatmul.mubr.f32.gmra.mrb[0].mxu0 %v4955
  %v5077 = vpop.f32.mrb[0].mxu0
  %v5078 = vadd.f32 0.0, %v5077
  %v5079 = vpop.f32.mrb[0].mxu0
  %5080 = vmatprep.mubr.f32.mxu0 0.0
  %5081 = vmatmul.mubr.f32.gmra.mrb[0].mxu0 %v4956
  %v5082 = vpop.f32.mrb[0].mxu0
  %v5083 = vadd.f32 0.0, %v5082
  %v5084 = vpop.f32.mrb[0].mxu0
  %5085 = vmatprep.mubr.f32.mxu0 0.0
  %5086 = vmatmul.mubr.f32.gmra.mrb[0].mxu0 %v4957
  %v5087 = vpop.f32.mrb[0].mxu0
  %v5088 = vadd.f32 0.0, %v5087
  %v5089 = vpop.f32.mrb[0].mxu0
  %5090 = vmatprep.mubr.f32.mxu0 0.0
  %5091 = vmatmul.mubr.f32.gmra.mrb[0].mxu0 %v4958
  %v5092 = vpop.f32.mrb[0].mxu0
  %v5093 = vadd.f32 0.0, %v5092
  %v5094 = vpop.f32.mrb[0].mxu0
  %5095 = vmatprep.mubr.f32.mxu0 0.0
  %5096 = vmatmul.mubr.f32.gmra.mrb[0].mxu0 %v4959
  %v5097 = vpop.f32.mrb[0].mxu0
  %v5098 = vadd.f32 0.0, %v5097
  %v5099 = vpop.f32.mrb[0].mxu0
  %5100 = vmatprep.mubr.f32.mxu0 0.0
  %5101 = vmatmul.mubr.f32.gmra.mrb[0].mxu0 %v4960
  %v5102 = vpop.f32.mrb[0].mxu0
  %v5103 = vadd.f32 0.0, %v5102
  %v5104 = vpop.f32.mrb[0].mxu0
  %5105 = vmatprep.mubr.f32.mxu0 0.0
  %5106 = vmatmul.mubr.f32.gmra.mrb[0].mxu0 %v4961
  %v5107 = vpop.f32.mrb[0].mxu0
  %v5108 = vadd.f32 0.0, %v5107
  %v5109 = vpop.f32.mrb[0].mxu0
  %5110 = vmatprep.mubr.f32.mxu0 0.0
  %5111 = vmatmul.mubr.f32.gmra.mrb[0].mxu0 %v4962
  %v5112 = vpop.f32.mrb[0].mxu0
  %v5113 = vadd.f32 0.0, %v5112
  %v5114 = vpop.f32.mrb[0].mxu0
  %5115 = vmatprep.mubr.f32.mxu0 0.0
  %5116 = vmatmul.mubr.f32.gmra.mrb[0].mxu0 %v4963
  %v5117 = vpop.f32.mrb[0].mxu0
  %v5118 = vadd.f32 0.0, %v5117
  %v5119 = vpop.f32.mrb[0].mxu0
  %5120 = vmatprep.mubr.f32.mxu0 0.0
  %5121 = vmatmul.mubr.f32.gmra.mrb[0].mxu0 %v4964
  %v5122 = vpop.f32.mrb[0].mxu0
  %v5123 = vadd.f32 0.0, %v5122
  %v5124 = vpop.f32.mrb[0].mxu0
  %5125 = vdwg.mxu0
  %v5126 = vadd.f32 %v4871, %v5048
  %v5127 = vadd.f32 %v4876, %v5053
  %v5128 = vadd.f32 %v4881, %v5058
  %v5129 = vadd.f32 %v4886, %v5063
  %v5130 = vadd.f32 %v4891, %v5068
  %v5131 = vadd.f32 %v4896, %v5073
  %v5132 = vadd.f32 %v4901, %v5078
  %v5133 = vadd.f32 %v4906, %v5083
  %v5134 = vadd.f32 %v4911, %v5088
  %v5135 = vadd.f32 %v4916, %v5093
  %v5136 = vadd.f32 %v4921, %v5098
  %v5137 = vadd.f32 %v4926, %v5103
  %v5138 = vadd.f32 %v4931, %v5108
  %v5139 = vadd.f32 %v4936, %v5113
  %v5140 = vadd.f32 %v4941, %v5118
  %v5141 = vadd.f32 %v4946, %v5123
  %v5142 = vld [vmem:[%s818] sm:$0xff]
  %v5143 = vld [vmem:[%s818 + $0x8] sm:$0xff]
  %v5144 = vld [vmem:[%s818 + $0x18] sm:$0xff]
  %v5145 = vld [vmem:[%s818 + $0x20] sm:$0xff]
  %v5146 = vld [vmem:[%s818 + $0x30] sm:$0xff]
  %v5147 = vld [vmem:[%s818 + $0x38] sm:$0xff]
  %v5148 = vld [vmem:[%s818 + $0x48] sm:$0xff]
  %v5149 = vld [vmem:[%s818 + $0x50] sm:$0xff]
  %v5150 = vld [vmem:[%s818 + $0x60] sm:$0xff]
  %v5151 = vld [vmem:[%s818 + $0x68] sm:$0xff]
  %v5152 = vld [vmem:[%s818 + $0x78] sm:$0xff]
  %v5153 = vld [vmem:[%s818 + $0x80] sm:$0xff]
  %v5154 = vld [vmem:[%s818 + $0x90] sm:$0xff]
  %v5155 = vld [vmem:[%s818 + $0x98] sm:$0xff]
  %v5156 = vld [vmem:[%s818 + $0xa8] sm:$0xff]
  %v5157 = vld [vmem:[%s818 + $0xb0] sm:$0xff]
  %v5158 = vld [vmem:[%s1642] sm:$0xff]
  %v5159 = vld [vmem:[%s1642 + $0x8] sm:$0xff]
  %v5160 = vld [vmem:[%s1642 + $0x10] sm:$0xff]
  %v5161 = vld [vmem:[%s1642 + $0x18] sm:$0xff]
  %v5162 = vld [vmem:[%s1642 + $0x20] sm:$0xff]
  %v5163 = vld [vmem:[%s1642 + $0x28] sm:$0xff]
  %v5164 = vld [vmem:[%s1642 + $0x30] sm:$0xff]
  %v5165 = vld [vmem:[%s1642 + $0x38] sm:$0xff]
  %v5166 = vld [vmem:[%s1642 + $0x40] sm:$0xff]
  %v5167 = vld [vmem:[%s1642 + $0x48] sm:$0xff]
  %v5168 = vld [vmem:[%s1642 + $0x50] sm:$0xff]
  %v5169 = vld [vmem:[%s1642 + $0x58] sm:$0xff]
  %v5170 = vld [vmem:[%s1642 + $0x60] sm:$0xff]
  %v5171 = vld [vmem:[%s1642 + $0x68] sm:$0xff]
  %v5172 = vld [vmem:[%s1642 + $0x70] sm:$0xff]
  %v5173 = vld [vmem:[%s1642 + $0x78] sm:$0xff]
  %5174 = vmatprep.subr.mxu0 0.0
  %5175 = vmatpush1.msra.mxu0 %v5158
  %5176 = vmatprep.subr.mxu0 0.0
  %5177 = vmatpush1.msra.mxu0 %v5159
  %5178 = vmatprep.subr.mxu0 0.0
  %5179 = vmatpush1.msra.mxu0 %v5160
  %5180 = vmatprep.subr.mxu0 0.0
  %5181 = vmatpush1.msra.mxu0 %v5161
  %5182 = vmatprep.subr.mxu0 0.0
  %5183 = vmatpush1.msra.mxu0 %v5162
  %5184 = vmatprep.subr.mxu0 0.0
  %5185 = vmatpush1.msra.mxu0 %v5163
  %5186 = vmatprep.subr.mxu0 0.0
  %5187 = vmatpush1.msra.mxu0 %v5164
  %5188 = vmatprep.subr.mxu0 0.0
  %5189 = vmatpush1.msra.mxu0 %v5165
  %5190 = vmatprep.subr.mxu0 0.0
  %5191 = vmatpush1.msra.mxu0 %v5166
  %5192 = vmatprep.subr.mxu0 0.0
  %5193 = vmatpush1.msra.mxu0 %v5167
  %5194 = vmatprep.subr.mxu0 0.0
  %5195 = vmatpush1.msra.mxu0 %v5168
  %5196 = vmatprep.subr.mxu0 0.0
  %5197 = vmatpush1.msra.mxu0 %v5169
  %5198 = vmatprep.subr.mxu0 0.0
  %5199 = vmatpush1.msra.mxu0 %v5170
  %5200 = vmatprep.subr.mxu0 0.0
  %5201 = vmatpush1.msra.mxu0 %v5171
  %5202 = vmatprep.subr.mxu0 0.0
  %5203 = vmatpush1.msra.mxu0 %v5172
  %5204 = vmatprep.subr.mxu0 0.0
  %5205 = vmatpush1.msra.mxu0 %v5173
  %5206 = vmatprep.subr.mxu0 0.0
  %5207 = vmatpush1.msra.mxu0 0.0
  %5208 = vmatprep.subr.mxu0 0.0
  %5209 = vmatpush1.msra.mxu0 0.0
  %5210 = vmatprep.subr.mxu0 0.0
  %5211 = vmatpush1.msra.mxu0 0.0
  %5212 = vmatprep.subr.mxu0 0.0
  %5213 = vmatpush1.msra.mxu0 0.0
  %5214 = vmatprep.subr.mxu0 0.0
  %5215 = vmatpush1.msra.mxu0 0.0
  %5216 = vmatprep.subr.mxu0 0.0
  %5217 = vmatpush1.msra.mxu0 0.0
  %5218 = vmatprep.subr.mxu0 0.0
  %5219 = vmatpush1.msra.mxu0 0.0
  %5220 = vmatprep.subr.mxu0 0.0
  %5221 = vmatpush1.msra.mxu0 0.0
  %5222 = vmatprep.subr.mxu0 0.0
  %5223 = vmatpush1.msra.mxu0 0.0
  %5224 = vmatprep.subr.mxu0 0.0
  %5225 = vmatpush1.msra.mxu0 0.0
  %5226 = vmatprep.subr.mxu0 0.0
  %5227 = vmatpush1.msra.mxu0 0.0
  %5228 = vmatprep.subr.mxu0 0.0
  %5229 = vmatpush1.msra.mxu0 0.0
  %5230 = vmatprep.subr.mxu0 0.0
  %5231 = vmatpush1.msra.mxu0 0.0
  %5232 = vmatprep.subr.mxu0 0.0
  %5233 = vmatpush1.msra.mxu0 0.0
  %5234 = vmatprep.subr.mxu0 0.0
  %5235 = vmatpush1.msra.mxu0 0.0
  %5236 = vmatprep.subr.mxu0 0.0
  %5237 = vmatpush1.msra.mxu0 0.0
  %5238 = vmatprep.mubr.f32.mxu0 0.0
  %5239 = vmatmul.mubr.f32.gmra.mrb[0].mxu0 %v5142
  %v5240 = vpop.f32.mrb[0].mxu0
  %v5241 = vadd.f32 0.0, %v5240
  %v5242 = vpop.f32.mrb[0].mxu0
  %5243 = vmatprep.mubr.f32.mxu0 0.0
  %5244 = vmatmul.mubr.f32.gmra.mrb[0].mxu0 %v5143
  %v5245 = vpop.f32.mrb[0].mxu0
  %v5246 = vadd.f32 0.0, %v5245
  %v5247 = vpop.f32.mrb[0].mxu0
  %5248 = vmatprep.mubr.f32.mxu0 0.0
  %5249 = vmatmul.mubr.f32.gmra.mrb[0].mxu0 %v5144
  %v5250 = vpop.f32.mrb[0].mxu0
  %v5251 = vadd.f32 0.0, %v5250
  %v5252 = vpop.f32.mrb[0].mxu0
  %5253 = vmatprep.mubr.f32.mxu0 0.0
  %5254 = vmatmul.mubr.f32.gmra.mrb[0].mxu0 %v5145
  %v5255 = vpop.f32.mrb[0].mxu0
  %v5256 = vadd.f32 0.0, %v5255
  %v5257 = vpop.f32.mrb[0].mxu0
  %5258 = vmatprep.mubr.f32.mxu0 0.0
  %5259 = vmatmul.mubr.f32.gmra.mrb[0].mxu0 %v5146
  %v5260 = vpop.f32.mrb[0].mxu0
  %v5261 = vadd.f32 0.0, %v5260
  %v5262 = vpop.f32.mrb[0].mxu0
  %5263 = vmatprep.mubr.f32.mxu0 0.0
  %5264 = vmatmul.mubr.f32.gmra.mrb[0].mxu0 %v5147
  %v5265 = vpop.f32.mrb[0].mxu0
  %v5266 = vadd.f32 0.0, %v5265
  %v5267 = vpop.f32.mrb[0].mxu0
  %5268 = vmatprep.mubr.f32.mxu0 0.0
  %5269 = vmatmul.mubr.f32.gmra.mrb[0].mxu0 %v5148
  %v5270 = vpop.f32.mrb[0].mxu0
  %v5271 = vadd.f32 0.0, %v5270
  %v5272 = vpop.f32.mrb[0].mxu0
  %5273 = vmatprep.mubr.f32.mxu0 0.0
  %5274 = vmatmul.mubr.f32.gmra.mrb[0].mxu0 %v5149
  %v5275 = vpop.f32.mrb[0].mxu0
  %v5276 = vadd.f32 0.0, %v5275
  %v5277 = vpop.f32.mrb[0].mxu0
  %5278 = vmatprep.mubr.f32.mxu0 0.0
  %5279 = vmatmul.mubr.f32.gmra.mrb[0].mxu0 %v5150
  %v5280 = vpop.f32.mrb[0].mxu0
  %v5281 = vadd.f32 0.0, %v5280
  %v5282 = vpop.f32.mrb[0].mxu0
  %5283 = vmatprep.mubr.f32.mxu0 0.0
  %5284 = vmatmul.mubr.f32.gmra.mrb[0].mxu0 %v5151
  %v5285 = vpop.f32.mrb[0].mxu0
  %v5286 = vadd.f32 0.0, %v5285
  %v5287 = vpop.f32.mrb[0].mxu0
  %5288 = vmatprep.mubr.f32.mxu0 0.0
  %5289 = vmatmul.mubr.f32.gmra.mrb[0].mxu0 %v5152
  %v5290 = vpop.f32.mrb[0].mxu0
  %v5291 = vadd.f32 0.0, %v5290
  %v5292 = vpop.f32.mrb[0].mxu0
  %5293 = vmatprep.mubr.f32.mxu0 0.0
  %5294 = vmatmul.mubr.f32.gmra.mrb[0].mxu0 %v5153
  %v5295 = vpop.f32.mrb[0].mxu0
  %v5296 = vadd.f32 0.0, %v5295
  %v5297 = vpop.f32.mrb[0].mxu0
  %5298 = vmatprep.mubr.f32.mxu0 0.0
  %5299 = vmatmul.mubr.f32.gmra.mrb[0].mxu0 %v5154
  %v5300 = vpop.f32.mrb[0].mxu0
  %v5301 = vadd.f32 0.0, %v5300
  %v5302 = vpop.f32.mrb[0].mxu0
  %5303 = vmatprep.mubr.f32.mxu0 0.0
  %5304 = vmatmul.mubr.f32.gmra.mrb[0].mxu0 %v5155
  %v5305 = vpop.f32.mrb[0].mxu0
  %v5306 = vadd.f32 0.0, %v5305
  %v5307 = vpop.f32.mrb[0].mxu0
  %5308 = vmatprep.mubr.f32.mxu0 0.0
  %5309 = vmatmul.mubr.f32.gmra.mrb[0].mxu0 %v5156
  %v5310 = vpop.f32.mrb[0].mxu0
  %v5311 = vadd.f32 0.0, %v5310
  %v5312 = vpop.f32.mrb[0].mxu0
  %5313 = vmatprep.mubr.f32.mxu0 0.0
  %5314 = vmatmul.mubr.f32.gmra.mrb[0].mxu0 %v5157
  %v5315 = vpop.f32.mrb[0].mxu0
  %v5316 = vadd.f32 0.0, %v5315
  %v5317 = vpop.f32.mrb[0].mxu0
  %5318 = vdwg.mxu0
  %v5319 = vadd.f32 %v5126, %v5241
  %v5320 = vadd.f32 %v5127, %v5246
  %v5321 = vadd.f32 %v5128, %v5251
  %v5322 = vadd.f32 %v5129, %v5256
  %v5323 = vadd.f32 %v5130, %v5261
  %v5324 = vadd.f32 %v5131, %v5266
  %v5325 = vadd.f32 %v5132, %v5271
  %v5326 = vadd.f32 %v5133, %v5276
  %v5327 = vadd.f32 %v5134, %v5281
  %v5328 = vadd.f32 %v5135, %v5286
  %v5329 = vadd.f32 %v5136, %v5291
  %v5330 = vadd.f32 %v5137, %v5296
  %v5331 = vadd.f32 %v5138, %v5301
  %v5332 = vadd.f32 %v5139, %v5306
  %v5333 = vadd.f32 %v5140, %v5311
  %v5334 = vadd.f32 %v5141, %v5316
  %v5335 = vld [vmem:[%s818 + $0x1] sm:$0xff]
  %v5336 = vld [vmem:[%s818 + $0x9] sm:$0xff]
  %v5337 = vld [vmem:[%s818 + $0x19] sm:$0xff]
  %v5338 = vld [vmem:[%s818 + $0x21] sm:$0xff]
  %v5339 = vld [vmem:[%s818 + $0x31] sm:$0xff]
  %v5340 = vld [vmem:[%s818 + $0x39] sm:$0xff]
  %v5341 = vld [vmem:[%s818 + $0x49] sm:$0xff]
  %v5342 = vld [vmem:[%s818 + $0x51] sm:$0xff]
  %v5343 = vld [vmem:[%s818 + $0x61] sm:$0xff]
  %v5344 = vld [vmem:[%s818 + $0x69] sm:$0xff]
  %v5345 = vld [vmem:[%s818 + $0x79] sm:$0xff]
  %v5346 = vld [vmem:[%s818 + $0x81] sm:$0xff]
  %v5347 = vld [vmem:[%s818 + $0x91] sm:$0xff]
  %v5348 = vld [vmem:[%s818 + $0x99] sm:$0xff]
  %v5349 = vld [vmem:[%s818 + $0xa9] sm:$0xff]
  %v5350 = vld [vmem:[%s818 + $0xb1] sm:$0xff]
  %v5351 = vld [vmem:[%s1836] sm:$0xff]
  %v5352 = vld [vmem:[%s1836 + $0x8] sm:$0xff]
  %v5353 = vld [vmem:[%s1836 + $0x10] sm:$0xff]
  %v5354 = vld [vmem:[%s1836 + $0x18] sm:$0xff]
  %v5355 = vld [vmem:[%s1836 + $0x20] sm:$0xff]
  %v5356 = vld [vmem:[%s1836 + $0x28] sm:$0xff]
  %v5357 = vld [vmem:[%s1836 + $0x30] sm:$0xff]
  %v5358 = vld [vmem:[%s1836 + $0x38] sm:$0xff]
  %v5359 = vld [vmem:[%s1836 + $0x40] sm:$0xff]
  %v5360 = vld [vmem:[%s1836 + $0x48] sm:$0xff]
  %v5361 = vld [vmem:[%s1836 + $0x50] sm:$0xff]
  %v5362 = vld [vmem:[%s1836 + $0x58] sm:$0xff]
  %v5363 = vld [vmem:[%s1836 + $0x60] sm:$0xff]
  %v5364 = vld [vmem:[%s1836 + $0x68] sm:$0xff]
  %v5365 = vld [vmem:[%s1836 + $0x70] sm:$0xff]
  %v5366 = vld [vmem:[%s1836 + $0x78] sm:$0xff]
  %5367 = vmatprep.subr.mxu0 0.0
  %5368 = vmatpush1.msra.mxu0 %v5351
  %5369 = vmatprep.subr.mxu0 0.0
  %5370 = vmatpush1.msra.mxu0 %v5352
  %5371 = vmatprep.subr.mxu0 0.0
  %5372 = vmatpush1.msra.mxu0 %v5353
  %5373 = vmatprep.subr.mxu0 0.0
  %5374 = vmatpush1.msra.mxu0 %v5354
  %5375 = vmatprep.subr.mxu0 0.0
  %5376 = vmatpush1.msra.mxu0 %v5355
  %5377 = vmatprep.subr.mxu0 0.0
  %5378 = vmatpush1.msra.mxu0 %v5356
  %5379 = vmatprep.subr.mxu0 0.0
  %5380 = vmatpush1.msra.mxu0 %v5357
  %5381 = vmatprep.subr.mxu0 0.0
  %5382 = vmatpush1.msra.mxu0 %v5358
  %5383 = vmatprep.subr.mxu0 0.0
  %5384 = vmatpush1.msra.mxu0 %v5359
  %5385 = vmatprep.subr.mxu0 0.0
  %5386 = vmatpush1.msra.mxu0 %v5360
  %5387 = vmatprep.subr.mxu0 0.0
  %5388 = vmatpush1.msra.mxu0 %v5361
  %5389 = vmatprep.subr.mxu0 0.0
  %5390 = vmatpush1.msra.mxu0 %v5362
  %5391 = vmatprep.subr.mxu0 0.0
  %5392 = vmatpush1.msra.mxu0 %v5363
  %5393 = vmatprep.subr.mxu0 0.0
  %5394 = vmatpush1.msra.mxu0 %v5364
  %5395 = vmatprep.subr.mxu0 0.0
  %5396 = vmatpush1.msra.mxu0 %v5365
  %5397 = vmatprep.subr.mxu0 0.0
  %5398 = vmatpush1.msra.mxu0 %v5366
  %5399 = vmatprep.subr.mxu0 0.0
  %5400 = vmatpush1.msra.mxu0 0.0
  %5401 = vmatprep.subr.mxu0 0.0
  %5402 = vmatpush1.msra.mxu0 0.0
  %5403 = vmatprep.subr.mxu0 0.0
  %5404 = vmatpush1.msra.mxu0 0.0
  %5405 = vmatprep.subr.mxu0 0.0
  %5406 = vmatpush1.msra.mxu0 0.0
  %5407 = vmatprep.subr.mxu0 0.0
  %5408 = vmatpush1.msra.mxu0 0.0
  %5409 = vmatprep.subr.mxu0 0.0
  %5410 = vmatpush1.msra.mxu0 0.0
  %5411 = vmatprep.subr.mxu0 0.0
  %5412 = vmatpush1.msra.mxu0 0.0
  %5413 = vmatprep.subr.mxu0 0.0
  %5414 = vmatpush1.msra.mxu0 0.0
  %5415 = vmatprep.subr.mxu0 0.0
  %5416 = vmatpush1.msra.mxu0 0.0
  %5417 = vmatprep.subr.mxu0 0.0
  %5418 = vmatpush1.msra.mxu0 0.0
  %5419 = vmatprep.subr.mxu0 0.0
  %5420 = vmatpush1.msra.mxu0 0.0
  %5421 = vmatprep.subr.mxu0 0.0
  %5422 = vmatpush1.msra.mxu0 0.0
  %5423 = vmatprep.subr.mxu0 0.0
  %5424 = vmatpush1.msra.mxu0 0.0
  %5425 = vmatprep.subr.mxu0 0.0
  %5426 = vmatpush1.msra.mxu0 0.0
  %5427 = vmatprep.subr.mxu0 0.0
  %5428 = vmatpush1.msra.mxu0 0.0
  %5429 = vmatprep.subr.mxu0 0.0
  %5430 = vmatpush1.msra.mxu0 0.0
  %5431 = vmatprep.mubr.f32.mxu0 0.0
  %5432 = vmatmul.mubr.f32.gmra.mrb[0].mxu0 %v5335
  %v5433 = vpop.f32.mrb[0].mxu0
  %v5434 = vadd.f32 0.0, %v5433
  %v5435 = vpop.f32.mrb[0].mxu0
  %5436 = vmatprep.mubr.f32.mxu0 0.0
  %5437 = vmatmul.mubr.f32.gmra.mrb[0].mxu0 %v5336
  %v5438 = vpop.f32.mrb[0].mxu0
  %v5439 = vadd.f32 0.0, %v5438
  %v5440 = vpop.f32.mrb[0].mxu0
  %5441 = vmatprep.mubr.f32.mxu0 0.0
  %5442 = vmatmul.mubr.f32.gmra.mrb[0].mxu0 %v5337
  %v5443 = vpop.f32.mrb[0].mxu0
  %v5444 = vadd.f32 0.0, %v5443
  %v5445 = vpop.f32.mrb[0].mxu0
  %5446 = vmatprep.mubr.f32.mxu0 0.0
  %5447 = vmatmul.mubr.f32.gmra.mrb[0].mxu0 %v5338
  %v5448 = vpop.f32.mrb[0].mxu0
  %v5449 = vadd.f32 0.0, %v5448
  %v5450 = vpop.f32.mrb[0].mxu0
  %5451 = vmatprep.mubr.f32.mxu0 0.0
  %5452 = vmatmul.mubr.f32.gmra.mrb[0].mxu0 %v5339
  %v5453 = vpop.f32.mrb[0].mxu0
  %v5454 = vadd.f32 0.0, %v5453
  %v5455 = vpop.f32.mrb[0].mxu0
  %5456 = vmatprep.mubr.f32.mxu0 0.0
  %5457 = vmatmul.mubr.f32.gmra.mrb[0].mxu0 %v5340
  %v5458 = vpop.f32.mrb[0].mxu0
  %v5459 = vadd.f32 0.0, %v5458
  %v5460 = vpop.f32.mrb[0].mxu0
  %5461 = vmatprep.mubr.f32.mxu0 0.0
  %5462 = vmatmul.mubr.f32.gmra.mrb[0].mxu0 %v5341
  %v5463 = vpop.f32.mrb[0].mxu0
  %v5464 = vadd.f32 0.0, %v5463
  %v5465 = vpop.f32.mrb[0].mxu0
  %5466 = vmatprep.mubr.f32.mxu0 0.0
  %5467 = vmatmul.mubr.f32.gmra.mrb[0].mxu0 %v5342
  %v5468 = vpop.f32.mrb[0].mxu0
  %v5469 = vadd.f32 0.0, %v5468
  %v5470 = vpop.f32.mrb[0].mxu0
  %5471 = vmatprep.mubr.f32.mxu0 0.0
  %5472 = vmatmul.mubr.f32.gmra.mrb[0].mxu0 %v5343
  %v5473 = vpop.f32.mrb[0].mxu0
  %v5474 = vadd.f32 0.0, %v5473
  %v5475 = vpop.f32.mrb[0].mxu0
  %5476 = vmatprep.mubr.f32.mxu0 0.0
  %5477 = vmatmul.mubr.f32.gmra.mrb[0].mxu0 %v5344
  %v5478 = vpop.f32.mrb[0].mxu0
  %v5479 = vadd.f32 0.0, %v5478
  %v5480 = vpop.f32.mrb[0].mxu0
  %5481 = vmatprep.mubr.f32.mxu0 0.0
  %5482 = vmatmul.mubr.f32.gmra.mrb[0].mxu0 %v5345
  %v5483 = vpop.f32.mrb[0].mxu0
  %v5484 = vadd.f32 0.0, %v5483
  %v5485 = vpop.f32.mrb[0].mxu0
  %5486 = vmatprep.mubr.f32.mxu0 0.0
  %5487 = vmatmul.mubr.f32.gmra.mrb[0].mxu0 %v5346
  %v5488 = vpop.f32.mrb[0].mxu0
  %v5489 = vadd.f32 0.0, %v5488
  %v5490 = vpop.f32.mrb[0].mxu0
  %5491 = vmatprep.mubr.f32.mxu0 0.0
  %5492 = vmatmul.mubr.f32.gmra.mrb[0].mxu0 %v5347
  %v5493 = vpop.f32.mrb[0].mxu0
  %v5494 = vadd.f32 0.0, %v5493
  %v5495 = vpop.f32.mrb[0].mxu0
  %5496 = vmatprep.mubr.f32.mxu0 0.0
  %5497 = vmatmul.mubr.f32.gmra.mrb[0].mxu0 %v5348
  %v5498 = vpop.f32.mrb[0].mxu0
  %v5499 = vadd.f32 0.0, %v5498
  %v5500 = vpop.f32.mrb[0].mxu0
  %5501 = vmatprep.mubr.f32.mxu0 0.0
  %5502 = vmatmul.mubr.f32.gmra.mrb[0].mxu0 %v5349
  %v5503 = vpop.f32.mrb[0].mxu0
  %v5504 = vadd.f32 0.0, %v5503
  %v5505 = vpop.f32.mrb[0].mxu0
  %5506 = vmatprep.mubr.f32.mxu0 0.0
  %5507 = vmatmul.mubr.f32.gmra.mrb[0].mxu0 %v5350
  %v5508 = vpop.f32.mrb[0].mxu0
  %v5509 = vadd.f32 0.0, %v5508
  %v5510 = vpop.f32.mrb[0].mxu0
  %5511 = vdwg.mxu0
  %v5512 = vadd.f32 %v5319, %v5434
  %v5513 = vadd.f32 %v5320, %v5439
  %v5514 = vadd.f32 %v5321, %v5444
  %v5515 = vadd.f32 %v5322, %v5449
  %v5516 = vadd.f32 %v5323, %v5454
  %v5517 = vadd.f32 %v5324, %v5459
  %v5518 = vadd.f32 %v5325, %v5464
  %v5519 = vadd.f32 %v5326, %v5469
  %v5520 = vadd.f32 %v5327, %v5474
  %v5521 = vadd.f32 %v5328, %v5479
  %v5522 = vadd.f32 %v5329, %v5484
  %v5523 = vadd.f32 %v5330, %v5489
  %v5524 = vadd.f32 %v5331, %v5494
  %v5525 = vadd.f32 %v5332, %v5499
  %v5526 = vadd.f32 %v5333, %v5504
  %v5527 = vadd.f32 %v5334, %v5509
  %v5528 = vld [vmem:[%s818 + $0x2] sm:$0xff]
  %v5529 = vld [vmem:[%s818 + $0xa] sm:$0xff]
  %v5530 = vld [vmem:[%s818 + $0x1a] sm:$0xff]
  %v5531 = vld [vmem:[%s818 + $0x22] sm:$0xff]
  %v5532 = vld [vmem:[%s818 + $0x32] sm:$0xff]
  %v5533 = vld [vmem:[%s818 + $0x3a] sm:$0xff]
  %v5534 = vld [vmem:[%s818 + $0x4a] sm:$0xff]
  %v5535 = vld [vmem:[%s818 + $0x52] sm:$0xff]
  %v5536 = vld [vmem:[%s818 + $0x62] sm:$0xff]
  %v5537 = vld [vmem:[%s818 + $0x6a] sm:$0xff]
  %v5538 = vld [vmem:[%s818 + $0x7a] sm:$0xff]
  %v5539 = vld [vmem:[%s818 + $0x82] sm:$0xff]
  %v5540 = vld [vmem:[%s818 + $0x92] sm:$0xff]
  %v5541 = vld [vmem:[%s818 + $0x9a] sm:$0xff]
  %v5542 = vld [vmem:[%s818 + $0xaa] sm:$0xff]
  %v5543 = vld [vmem:[%s818 + $0xb2] sm:$0xff]
  %v5544 = vld [vmem:[%s2030] sm:$0xff]
  %v5545 = vld [vmem:[%s2030 + $0x8] sm:$0xff]
  %v5546 = vld [vmem:[%s2030 + $0x10] sm:$0xff]
  %v5547 = vld [vmem:[%s2030 + $0x18] sm:$0xff]
  %v5548 = vld [vmem:[%s2030 + $0x20] sm:$0xff]
  %v5549 = vld [vmem:[%s2030 + $0x28] sm:$0xff]
  %v5550 = vld [vmem:[%s2030 + $0x30] sm:$0xff]
  %v5551 = vld [vmem:[%s2030 + $0x38] sm:$0xff]
  %v5552 = vld [vmem:[%s2030 + $0x40] sm:$0xff]
  %v5553 = vld [vmem:[%s2030 + $0x48] sm:$0xff]
  %v5554 = vld [vmem:[%s2030 + $0x50] sm:$0xff]
  %v5555 = vld [vmem:[%s2030 + $0x58] sm:$0xff]
  %v5556 = vld [vmem:[%s2030 + $0x60] sm:$0xff]
  %v5557 = vld [vmem:[%s2030 + $0x68] sm:$0xff]
  %v5558 = vld [vmem:[%s2030 + $0x70] sm:$0xff]
  %v5559 = vld [vmem:[%s2030 + $0x78] sm:$0xff]
  %5560 = vmatprep.subr.mxu0 0.0
  %5561 = vmatpush1.msra.mxu0 %v5544
  %5562 = vmatprep.subr.mxu0 0.0
  %5563 = vmatpush1.msra.mxu0 %v5545
  %5564 = vmatprep.subr.mxu0 0.0
  %5565 = vmatpush1.msra.mxu0 %v5546
  %5566 = vmatprep.subr.mxu0 0.0
  %5567 = vmatpush1.msra.mxu0 %v5547
  %5568 = vmatprep.subr.mxu0 0.0
  %5569 = vmatpush1.msra.mxu0 %v5548
  %5570 = vmatprep.subr.mxu0 0.0
  %5571 = vmatpush1.msra.mxu0 %v5549
  %5572 = vmatprep.subr.mxu0 0.0
  %5573 = vmatpush1.msra.mxu0 %v5550
  %5574 = vmatprep.subr.mxu0 0.0
  %5575 = vmatpush1.msra.mxu0 %v5551
  %5576 = vmatprep.subr.mxu0 0.0
  %5577 = vmatpush1.msra.mxu0 %v5552
  %5578 = vmatprep.subr.mxu0 0.0
  %5579 = vmatpush1.msra.mxu0 %v5553
  %5580 = vmatprep.subr.mxu0 0.0
  %5581 = vmatpush1.msra.mxu0 %v5554
  %5582 = vmatprep.subr.mxu0 0.0
  %5583 = vmatpush1.msra.mxu0 %v5555
  %5584 = vmatprep.subr.mxu0 0.0
  %5585 = vmatpush1.msra.mxu0 %v5556
  %5586 = vmatprep.subr.mxu0 0.0
  %5587 = vmatpush1.msra.mxu0 %v5557
  %5588 = vmatprep.subr.mxu0 0.0
  %5589 = vmatpush1.msra.mxu0 %v5558
  %5590 = vmatprep.subr.mxu0 0.0
  %5591 = vmatpush1.msra.mxu0 %v5559
  %5592 = vmatprep.subr.mxu0 0.0
  %5593 = vmatpush1.msra.mxu0 0.0
  %5594 = vmatprep.subr.mxu0 0.0
  %5595 = vmatpush1.msra.mxu0 0.0
  %5596 = vmatprep.subr.mxu0 0.0
  %5597 = vmatpush1.msra.mxu0 0.0
  %5598 = vmatprep.subr.mxu0 0.0
  %5599 = vmatpush1.msra.mxu0 0.0
  %5600 = vmatprep.subr.mxu0 0.0
  %5601 = vmatpush1.msra.mxu0 0.0
  %5602 = vmatprep.subr.mxu0 0.0
  %5603 = vmatpush1.msra.mxu0 0.0
  %5604 = vmatprep.subr.mxu0 0.0
  %5605 = vmatpush1.msra.mxu0 0.0
  %5606 = vmatprep.subr.mxu0 0.0
  %5607 = vmatpush1.msra.mxu0 0.0
  %5608 = vmatprep.subr.mxu0 0.0
  %5609 = vmatpush1.msra.mxu0 0.0
  %5610 = vmatprep.subr.mxu0 0.0
  %5611 = vmatpush1.msra.mxu0 0.0
  %5612 = vmatprep.subr.mxu0 0.0
  %5613 = vmatpush1.msra.mxu0 0.0
  %5614 = vmatprep.subr.mxu0 0.0
  %5615 = vmatpush1.msra.mxu0 0.0
  %5616 = vmatprep.subr.mxu0 0.0
  %5617 = vmatpush1.msra.mxu0 0.0
  %5618 = vmatprep.subr.mxu0 0.0
  %5619 = vmatpush1.msra.mxu0 0.0
  %5620 = vmatprep.subr.mxu0 0.0
  %5621 = vmatpush1.msra.mxu0 0.0
  %5622 = vmatprep.subr.mxu0 0.0
  %5623 = vmatpush1.msra.mxu0 0.0
  %5624 = vmatprep.mubr.f32.mxu0 0.0
  %5625 = vmatmul.mubr.f32.gmra.mrb[0].mxu0 %v5528
  %v5626 = vpop.f32.mrb[0].mxu0
  %v5627 = vadd.f32 0.0, %v5626
  %v5628 = vpop.f32.mrb[0].mxu0
  %5629 = vmatprep.mubr.f32.mxu0 0.0
  %5630 = vmatmul.mubr.f32.gmra.mrb[0].mxu0 %v5529
  %v5631 = vpop.f32.mrb[0].mxu0
  %v5632 = vadd.f32 0.0, %v5631
  %v5633 = vpop.f32.mrb[0].mxu0
  %5634 = vmatprep.mubr.f32.mxu0 0.0
  %5635 = vmatmul.mubr.f32.gmra.mrb[0].mxu0 %v5530
  %v5636 = vpop.f32.mrb[0].mxu0
  %v5637 = vadd.f32 0.0, %v5636
  %v5638 = vpop.f32.mrb[0].mxu0
  %5639 = vmatprep.mubr.f32.mxu0 0.0
  %5640 = vmatmul.mubr.f32.gmra.mrb[0].mxu0 %v5531
  %v5641 = vpop.f32.mrb[0].mxu0
  %v5642 = vadd.f32 0.0, %v5641
  %v5643 = vpop.f32.mrb[0].mxu0
  %5644 = vmatprep.mubr.f32.mxu0 0.0
  %5645 = vmatmul.mubr.f32.gmra.mrb[0].mxu0 %v5532
  %v5646 = vpop.f32.mrb[0].mxu0
  %v5647 = vadd.f32 0.0, %v5646
  %v5648 = vpop.f32.mrb[0].mxu0
  %5649 = vmatprep.mubr.f32.mxu0 0.0
  %5650 = vmatmul.mubr.f32.gmra.mrb[0].mxu0 %v5533
  %v5651 = vpop.f32.mrb[0].mxu0
  %v5652 = vadd.f32 0.0, %v5651
  %v5653 = vpop.f32.mrb[0].mxu0
  %5654 = vmatprep.mubr.f32.mxu0 0.0
  %5655 = vmatmul.mubr.f32.gmra.mrb[0].mxu0 %v5534
  %v5656 = vpop.f32.mrb[0].mxu0
  %v5657 = vadd.f32 0.0, %v5656
  %v5658 = vpop.f32.mrb[0].mxu0
  %5659 = vmatprep.mubr.f32.mxu0 0.0
  %5660 = vmatmul.mubr.f32.gmra.mrb[0].mxu0 %v5535
  %v5661 = vpop.f32.mrb[0].mxu0
  %v5662 = vadd.f32 0.0, %v5661
  %v5663 = vpop.f32.mrb[0].mxu0
  %5664 = vmatprep.mubr.f32.mxu0 0.0
  %5665 = vmatmul.mubr.f32.gmra.mrb[0].mxu0 %v5536
  %v5666 = vpop.f32.mrb[0].mxu0
  %v5667 = vadd.f32 0.0, %v5666
  %v5668 = vpop.f32.mrb[0].mxu0
  %5669 = vmatprep.mubr.f32.mxu0 0.0
  %5670 = vmatmul.mubr.f32.gmra.mrb[0].mxu0 %v5537
  %v5671 = vpop.f32.mrb[0].mxu0
  %v5672 = vadd.f32 0.0, %v5671
  %v5673 = vpop.f32.mrb[0].mxu0
  %5674 = vmatprep.mubr.f32.mxu0 0.0
  %5675 = vmatmul.mubr.f32.gmra.mrb[0].mxu0 %v5538
  %v5676 = vpop.f32.mrb[0].mxu0
  %v5677 = vadd.f32 0.0, %v5676
  %v5678 = vpop.f32.mrb[0].mxu0
  %5679 = vmatprep.mubr.f32.mxu0 0.0
  %5680 = vmatmul.mubr.f32.gmra.mrb[0].mxu0 %v5539
  %v5681 = vpop.f32.mrb[0].mxu0
  %v5682 = vadd.f32 0.0, %v5681
  %v5683 = vpop.f32.mrb[0].mxu0
  %5684 = vmatprep.mubr.f32.mxu0 0.0
  %5685 = vmatmul.mubr.f32.gmra.mrb[0].mxu0 %v5540
  %v5686 = vpop.f32.mrb[0].mxu0
  %v5687 = vadd.f32 0.0, %v5686
  %v5688 = vpop.f32.mrb[0].mxu0
  %5689 = vmatprep.mubr.f32.mxu0 0.0
  %5690 = vmatmul.mubr.f32.gmra.mrb[0].mxu0 %v5541
  %v5691 = vpop.f32.mrb[0].mxu0
  %v5692 = vadd.f32 0.0, %v5691
  %v5693 = vpop.f32.mrb[0].mxu0
  %5694 = vmatprep.mubr.f32.mxu0 0.0
  %5695 = vmatmul.mubr.f32.gmra.mrb[0].mxu0 %v5542
  %v5696 = vpop.f32.mrb[0].mxu0
  %v5697 = vadd.f32 0.0, %v5696
  %v5698 = vpop.f32.mrb[0].mxu0
  %5699 = vmatprep.mubr.f32.mxu0 0.0
  %5700 = vmatmul.mubr.f32.gmra.mrb[0].mxu0 %v5543
  %v5701 = vpop.f32.mrb[0].mxu0
  %v5702 = vadd.f32 0.0, %v5701
  %v5703 = vpop.f32.mrb[0].mxu0
  %5704 = vdwg.mxu0
  %v5705 = vadd.f32 %v5512, %v5627
  %v5706 = vadd.f32 %v5513, %v5632
  %v5707 = vadd.f32 %v5514, %v5637
  %v5708 = vadd.f32 %v5515, %v5642
  %v5709 = vadd.f32 %v5516, %v5647
  %v5710 = vadd.f32 %v5517, %v5652
  %v5711 = vadd.f32 %v5518, %v5657
  %v5712 = vadd.f32 %v5519, %v5662
  %v5713 = vadd.f32 %v5520, %v5667
  %v5714 = vadd.f32 %v5521, %v5672
  %v5715 = vadd.f32 %v5522, %v5677
  %v5716 = vadd.f32 %v5523, %v5682
  %v5717 = vadd.f32 %v5524, %v5687
  %v5718 = vadd.f32 %v5525, %v5692
  %v5719 = vadd.f32 %v5526, %v5697
  %v5720 = vadd.f32 %v5527, %v5702
  %s5721 = scalar_lea.vmem [#allocation2], 480
  %v5722 = vld [vmem:[%s5721] sm:$0xff]
  %v5723 = vld [vmem:[%s5721 + $0x8] sm:$0xff]
  %v5724 = vld [vmem:[%s5721 + $0x18] sm:$0xff]
  %v5725 = vld [vmem:[%s5721 + $0x20] sm:$0xff]
  %v5726 = vld [vmem:[%s5721 + $0x30] sm:$0xff]
  %v5727 = vld [vmem:[%s5721 + $0x38] sm:$0xff]
  %v5728 = vld [vmem:[%s5721 + $0x48] sm:$0xff]
  %v5729 = vld [vmem:[%s5721 + $0x50] sm:$0xff]
  %v5730 = vld [vmem:[%s5721 + $0x60] sm:$0xff]
  %v5731 = vld [vmem:[%s5721 + $0x68] sm:$0xff]
  %v5732 = vld [vmem:[%s5721 + $0x78] sm:$0xff]
  %v5733 = vld [vmem:[%s5721 + $0x80] sm:$0xff]
  %v5734 = vld [vmem:[%s5721 + $0x90] sm:$0xff]
  %v5735 = vld [vmem:[%s5721 + $0x98] sm:$0xff]
  %v5736 = vld [vmem:[%s5721 + $0xa8] sm:$0xff]
  %v5737 = vld [vmem:[%s5721 + $0xb0] sm:$0xff]
  %v5738 = vld [vmem:[%s2225] sm:$0xff]
  %v5739 = vld [vmem:[%s2225 + $0x8] sm:$0xff]
  %v5740 = vld [vmem:[%s2225 + $0x10] sm:$0xff]
  %v5741 = vld [vmem:[%s2225 + $0x18] sm:$0xff]
  %v5742 = vld [vmem:[%s2225 + $0x20] sm:$0xff]
  %v5743 = vld [vmem:[%s2225 + $0x28] sm:$0xff]
  %v5744 = vld [vmem:[%s2225 + $0x30] sm:$0xff]
  %v5745 = vld [vmem:[%s2225 + $0x38] sm:$0xff]
  %v5746 = vld [vmem:[%s2225 + $0x40] sm:$0xff]
  %v5747 = vld [vmem:[%s2225 + $0x48] sm:$0xff]
  %v5748 = vld [vmem:[%s2225 + $0x50] sm:$0xff]
  %v5749 = vld [vmem:[%s2225 + $0x58] sm:$0xff]
  %v5750 = vld [vmem:[%s2225 + $0x60] sm:$0xff]
  %v5751 = vld [vmem:[%s2225 + $0x68] sm:$0xff]
  %v5752 = vld [vmem:[%s2225 + $0x70] sm:$0xff]
  %v5753 = vld [vmem:[%s2225 + $0x78] sm:$0xff]
  %5754 = vmatprep.subr.mxu0 0.0
  %5755 = vmatpush1.msra.mxu0 %v5738
  %5756 = vmatprep.subr.mxu0 0.0
  %5757 = vmatpush1.msra.mxu0 %v5739
  %5758 = vmatprep.subr.mxu0 0.0
  %5759 = vmatpush1.msra.mxu0 %v5740
  %5760 = vmatprep.subr.mxu0 0.0
  %5761 = vmatpush1.msra.mxu0 %v5741
  %5762 = vmatprep.subr.mxu0 0.0
  %5763 = vmatpush1.msra.mxu0 %v5742
  %5764 = vmatprep.subr.mxu0 0.0
  %5765 = vmatpush1.msra.mxu0 %v5743
  %5766 = vmatprep.subr.mxu0 0.0
  %5767 = vmatpush1.msra.mxu0 %v5744
  %5768 = vmatprep.subr.mxu0 0.0
  %5769 = vmatpush1.msra.mxu0 %v5745
  %5770 = vmatprep.subr.mxu0 0.0
  %5771 = vmatpush1.msra.mxu0 %v5746
  %5772 = vmatprep.subr.mxu0 0.0
  %5773 = vmatpush1.msra.mxu0 %v5747
  %5774 = vmatprep.subr.mxu0 0.0
  %5775 = vmatpush1.msra.mxu0 %v5748
  %5776 = vmatprep.subr.mxu0 0.0
  %5777 = vmatpush1.msra.mxu0 %v5749
  %5778 = vmatprep.subr.mxu0 0.0
  %5779 = vmatpush1.msra.mxu0 %v5750
  %5780 = vmatprep.subr.mxu0 0.0
  %5781 = vmatpush1.msra.mxu0 %v5751
  %5782 = vmatprep.subr.mxu0 0.0
  %5783 = vmatpush1.msra.mxu0 %v5752
  %5784 = vmatprep.subr.mxu0 0.0
  %5785 = vmatpush1.msra.mxu0 %v5753
  %5786 = vmatprep.subr.mxu0 0.0
  %5787 = vmatpush1.msra.mxu0 0.0
  %5788 = vmatprep.subr.mxu0 0.0
  %5789 = vmatpush1.msra.mxu0 0.0
  %5790 = vmatprep.subr.mxu0 0.0
  %5791 = vmatpush1.msra.mxu0 0.0
  %5792 = vmatprep.subr.mxu0 0.0
  %5793 = vmatpush1.msra.mxu0 0.0
  %5794 = vmatprep.subr.mxu0 0.0
  %5795 = vmatpush1.msra.mxu0 0.0
  %5796 = vmatprep.subr.mxu0 0.0
  %5797 = vmatpush1.msra.mxu0 0.0
  %5798 = vmatprep.subr.mxu0 0.0
  %5799 = vmatpush1.msra.mxu0 0.0
  %5800 = vmatprep.subr.mxu0 0.0
  %5801 = vmatpush1.msra.mxu0 0.0
  %5802 = vmatprep.subr.mxu0 0.0
  %5803 = vmatpush1.msra.mxu0 0.0
  %5804 = vmatprep.subr.mxu0 0.0
  %5805 = vmatpush1.msra.mxu0 0.0
  %5806 = vmatprep.subr.mxu0 0.0
  %5807 = vmatpush1.msra.mxu0 0.0
  %5808 = vmatprep.subr.mxu0 0.0
  %5809 = vmatpush1.msra.mxu0 0.0
  %5810 = vmatprep.subr.mxu0 0.0
  %5811 = vmatpush1.msra.mxu0 0.0
  %5812 = vmatprep.subr.mxu0 0.0
  %5813 = vmatpush1.msra.mxu0 0.0
  %5814 = vmatprep.subr.mxu0 0.0
  %5815 = vmatpush1.msra.mxu0 0.0
  %5816 = vmatprep.subr.mxu0 0.0
  %5817 = vmatpush1.msra.mxu0 0.0
  %5818 = vmatprep.mubr.f32.mxu0 0.0
  %5819 = vmatmul.mubr.f32.gmra.mrb[0].mxu0 %v5722
  %v5820 = vpop.f32.mrb[0].mxu0
  %v5821 = vadd.f32 0.0, %v5820
  %v5822 = vpop.f32.mrb[0].mxu0
  %5823 = vmatprep.mubr.f32.mxu0 0.0
  %5824 = vmatmul.mubr.f32.gmra.mrb[0].mxu0 %v5723
  %v5825 = vpop.f32.mrb[0].mxu0
  %v5826 = vadd.f32 0.0, %v5825
  %v5827 = vpop.f32.mrb[0].mxu0
  %5828 = vmatprep.mubr.f32.mxu0 0.0
  %5829 = vmatmul.mubr.f32.gmra.mrb[0].mxu0 %v5724
  %v5830 = vpop.f32.mrb[0].mxu0
  %v5831 = vadd.f32 0.0, %v5830
  %v5832 = vpop.f32.mrb[0].mxu0
  %5833 = vmatprep.mubr.f32.mxu0 0.0
  %5834 = vmatmul.mubr.f32.gmra.mrb[0].mxu0 %v5725
  %v5835 = vpop.f32.mrb[0].mxu0
  %v5836 = vadd.f32 0.0, %v5835
  %v5837 = vpop.f32.mrb[0].mxu0
  %5838 = vmatprep.mubr.f32.mxu0 0.0
  %5839 = vmatmul.mubr.f32.gmra.mrb[0].mxu0 %v5726
  %v5840 = vpop.f32.mrb[0].mxu0
  %v5841 = vadd.f32 0.0, %v5840
  %v5842 = vpop.f32.mrb[0].mxu0
  %5843 = vmatprep.mubr.f32.mxu0 0.0
  %5844 = vmatmul.mubr.f32.gmra.mrb[0].mxu0 %v5727
  %v5845 = vpop.f32.mrb[0].mxu0
  %v5846 = vadd.f32 0.0, %v5845
  %v5847 = vpop.f32.mrb[0].mxu0
  %5848 = vmatprep.mubr.f32.mxu0 0.0
  %5849 = vmatmul.mubr.f32.gmra.mrb[0].mxu0 %v5728
  %v5850 = vpop.f32.mrb[0].mxu0
  %v5851 = vadd.f32 0.0, %v5850
  %v5852 = vpop.f32.mrb[0].mxu0
  %5853 = vmatprep.mubr.f32.mxu0 0.0
  %5854 = vmatmul.mubr.f32.gmra.mrb[0].mxu0 %v5729
  %v5855 = vpop.f32.mrb[0].mxu0
  %v5856 = vadd.f32 0.0, %v5855
  %v5857 = vpop.f32.mrb[0].mxu0
  %5858 = vmatprep.mubr.f32.mxu0 0.0
  %5859 = vmatmul.mubr.f32.gmra.mrb[0].mxu0 %v5730
  %v5860 = vpop.f32.mrb[0].mxu0
  %v5861 = vadd.f32 0.0, %v5860
  %v5862 = vpop.f32.mrb[0].mxu0
  %5863 = vmatprep.mubr.f32.mxu0 0.0
  %5864 = vmatmul.mubr.f32.gmra.mrb[0].mxu0 %v5731
  %v5865 = vpop.f32.mrb[0].mxu0
  %v5866 = vadd.f32 0.0, %v5865
  %v5867 = vpop.f32.mrb[0].mxu0
  %5868 = vmatprep.mubr.f32.mxu0 0.0
  %5869 = vmatmul.mubr.f32.gmra.mrb[0].mxu0 %v5732
  %v5870 = vpop.f32.mrb[0].mxu0
  %v5871 = vadd.f32 0.0, %v5870
  %v5872 = vpop.f32.mrb[0].mxu0
  %5873 = vmatprep.mubr.f32.mxu0 0.0
  %5874 = vmatmul.mubr.f32.gmra.mrb[0].mxu0 %v5733
  %v5875 = vpop.f32.mrb[0].mxu0
  %v5876 = vadd.f32 0.0, %v5875
  %v5877 = vpop.f32.mrb[0].mxu0
  %5878 = vmatprep.mubr.f32.mxu0 0.0
  %5879 = vmatmul.mubr.f32.gmra.mrb[0].mxu0 %v5734
  %v5880 = vpop.f32.mrb[0].mxu0
  %v5881 = vadd.f32 0.0, %v5880
  %v5882 = vpop.f32.mrb[0].mxu0
  %5883 = vmatprep.mubr.f32.mxu0 0.0
  %5884 = vmatmul.mubr.f32.gmra.mrb[0].mxu0 %v5735
  %v5885 = vpop.f32.mrb[0].mxu0
  %v5886 = vadd.f32 0.0, %v5885
  %v5887 = vpop.f32.mrb[0].mxu0
  %5888 = vmatprep.mubr.f32.mxu0 0.0
  %5889 = vmatmul.mubr.f32.gmra.mrb[0].mxu0 %v5736
  %v5890 = vpop.f32.mrb[0].mxu0
  %v5891 = vadd.f32 0.0, %v5890
  %v5892 = vpop.f32.mrb[0].mxu0
  %5893 = vmatprep.mubr.f32.mxu0 0.0
  %5894 = vmatmul.mubr.f32.gmra.mrb[0].mxu0 %v5737
  %v5895 = vpop.f32.mrb[0].mxu0
  %v5896 = vadd.f32 0.0, %v5895
  %v5897 = vpop.f32.mrb[0].mxu0
  %5898 = vdwg.mxu0
  %v5899 = vadd.f32 %v5705, %v5821
  %v5900 = vadd.f32 %v5706, %v5826
  %v5901 = vadd.f32 %v5707, %v5831
  %v5902 = vadd.f32 %v5708, %v5836
  %v5903 = vadd.f32 %v5709, %v5841
  %v5904 = vadd.f32 %v5710, %v5846
  %v5905 = vadd.f32 %v5711, %v5851
  %v5906 = vadd.f32 %v5712, %v5856
  %v5907 = vadd.f32 %v5713, %v5861
  %v5908 = vadd.f32 %v5714, %v5866
  %v5909 = vadd.f32 %v5715, %v5871
  %v5910 = vadd.f32 %v5716, %v5876
  %v5911 = vadd.f32 %v5717, %v5881
  %v5912 = vadd.f32 %v5718, %v5886
  %v5913 = vadd.f32 %v5719, %v5891
  %v5914 = vadd.f32 %v5720, %v5896
  %v5915 = vld [vmem:[%s5721 + $0x1] sm:$0xff]
  %v5916 = vld [vmem:[%s5721 + $0x9] sm:$0xff]
  %v5917 = vld [vmem:[%s5721 + $0x19] sm:$0xff]
  %v5918 = vld [vmem:[%s5721 + $0x21] sm:$0xff]
  %v5919 = vld [vmem:[%s5721 + $0x31] sm:$0xff]
  %v5920 = vld [vmem:[%s5721 + $0x39] sm:$0xff]
  %v5921 = vld [vmem:[%s5721 + $0x49] sm:$0xff]
  %v5922 = vld [vmem:[%s5721 + $0x51] sm:$0xff]
  %v5923 = vld [vmem:[%s5721 + $0x61] sm:$0xff]
  %v5924 = vld [vmem:[%s5721 + $0x69] sm:$0xff]
  %v5925 = vld [vmem:[%s5721 + $0x79] sm:$0xff]
  %v5926 = vld [vmem:[%s5721 + $0x81] sm:$0xff]
  %v5927 = vld [vmem:[%s5721 + $0x91] sm:$0xff]
  %v5928 = vld [vmem:[%s5721 + $0x99] sm:$0xff]
  %v5929 = vld [vmem:[%s5721 + $0xa9] sm:$0xff]
  %v5930 = vld [vmem:[%s5721 + $0xb1] sm:$0xff]
  %v5931 = vld [vmem:[%s2419] sm:$0xff]
  %v5932 = vld [vmem:[%s2419 + $0x8] sm:$0xff]
  %v5933 = vld [vmem:[%s2419 + $0x10] sm:$0xff]
  %v5934 = vld [vmem:[%s2419 + $0x18] sm:$0xff]
  %v5935 = vld [vmem:[%s2419 + $0x20] sm:$0xff]
  %v5936 = vld [vmem:[%s2419 + $0x28] sm:$0xff]
  %v5937 = vld [vmem:[%s2419 + $0x30] sm:$0xff]
  %v5938 = vld [vmem:[%s2419 + $0x38] sm:$0xff]
  %v5939 = vld [vmem:[%s2419 + $0x40] sm:$0xff]
  %v5940 = vld [vmem:[%s2419 + $0x48] sm:$0xff]
  %v5941 = vld [vmem:[%s2419 + $0x50] sm:$0xff]
  %v5942 = vld [vmem:[%s2419 + $0x58] sm:$0xff]
  %v5943 = vld [vmem:[%s2419 + $0x60] sm:$0xff]
  %v5944 = vld [vmem:[%s2419 + $0x68] sm:$0xff]
  %v5945 = vld [vmem:[%s2419 + $0x70] sm:$0xff]
  %v5946 = vld [vmem:[%s2419 + $0x78] sm:$0xff]
  %5947 = vmatprep.subr.mxu0 0.0
  %5948 = vmatpush1.msra.mxu0 %v5931
  %5949 = vmatprep.subr.mxu0 0.0
  %5950 = vmatpush1.msra.mxu0 %v5932
  %5951 = vmatprep.subr.mxu0 0.0
  %5952 = vmatpush1.msra.mxu0 %v5933
  %5953 = vmatprep.subr.mxu0 0.0
  %5954 = vmatpush1.msra.mxu0 %v5934
  %5955 = vmatprep.subr.mxu0 0.0
  %5956 = vmatpush1.msra.mxu0 %v5935
  %5957 = vmatprep.subr.mxu0 0.0
  %5958 = vmatpush1.msra.mxu0 %v5936
  %5959 = vmatprep.subr.mxu0 0.0
  %5960 = vmatpush1.msra.mxu0 %v5937
  %5961 = vmatprep.subr.mxu0 0.0
  %5962 = vmatpush1.msra.mxu0 %v5938
  %5963 = vmatprep.subr.mxu0 0.0
  %5964 = vmatpush1.msra.mxu0 %v5939
  %5965 = vmatprep.subr.mxu0 0.0
  %5966 = vmatpush1.msra.mxu0 %v5940
  %5967 = vmatprep.subr.mxu0 0.0
  %5968 = vmatpush1.msra.mxu0 %v5941
  %5969 = vmatprep.subr.mxu0 0.0
  %5970 = vmatpush1.msra.mxu0 %v5942
  %5971 = vmatprep.subr.mxu0 0.0
  %5972 = vmatpush1.msra.mxu0 %v5943
  %5973 = vmatprep.subr.mxu0 0.0
  %5974 = vmatpush1.msra.mxu0 %v5944
  %5975 = vmatprep.subr.mxu0 0.0
  %5976 = vmatpush1.msra.mxu0 %v5945
  %5977 = vmatprep.subr.mxu0 0.0
  %5978 = vmatpush1.msra.mxu0 %v5946
  %5979 = vmatprep.subr.mxu0 0.0
  %5980 = vmatpush1.msra.mxu0 0.0
  %5981 = vmatprep.subr.mxu0 0.0
  %5982 = vmatpush1.msra.mxu0 0.0
  %5983 = vmatprep.subr.mxu0 0.0
  %5984 = vmatpush1.msra.mxu0 0.0
  %5985 = vmatprep.subr.mxu0 0.0
  %5986 = vmatpush1.msra.mxu0 0.0
  %5987 = vmatprep.subr.mxu0 0.0
  %5988 = vmatpush1.msra.mxu0 0.0
  %5989 = vmatprep.subr.mxu0 0.0
  %5990 = vmatpush1.msra.mxu0 0.0
  %5991 = vmatprep.subr.mxu0 0.0
  %5992 = vmatpush1.msra.mxu0 0.0
  %5993 = vmatprep.subr.mxu0 0.0
  %5994 = vmatpush1.msra.mxu0 0.0
  %5995 = vmatprep.subr.mxu0 0.0
  %5996 = vmatpush1.msra.mxu0 0.0
  %5997 = vmatprep.subr.mxu0 0.0
  %5998 = vmatpush1.msra.mxu0 0.0
  %5999 = vmatprep.subr.mxu0 0.0
  %6000 = vmatpush1.msra.mxu0 0.0
  %6001 = vmatprep.subr.mxu0 0.0
  %6002 = vmatpush1.msra.mxu0 0.0
  %6003 = vmatprep.subr.mxu0 0.0
  %6004 = vmatpush1.msra.mxu0 0.0
  %6005 = vmatprep.subr.mxu0 0.0
  %6006 = vmatpush1.msra.mxu0 0.0
  %6007 = vmatprep.subr.mxu0 0.0
  %6008 = vmatpush1.msra.mxu0 0.0
  %6009 = vmatprep.subr.mxu0 0.0
  %6010 = vmatpush1.msra.mxu0 0.0
  %6011 = vmatprep.mubr.f32.mxu0 0.0
  %6012 = vmatmul.mubr.f32.gmra.mrb[0].mxu0 %v5915
  %v6013 = vpop.f32.mrb[0].mxu0
  %v6014 = vadd.f32 0.0, %v6013
  %v6015 = vpop.f32.mrb[0].mxu0
  %6016 = vmatprep.mubr.f32.mxu0 0.0
  %6017 = vmatmul.mubr.f32.gmra.mrb[0].mxu0 %v5916
  %v6018 = vpop.f32.mrb[0].mxu0
  %v6019 = vadd.f32 0.0, %v6018
  %v6020 = vpop.f32.mrb[0].mxu0
  %6021 = vmatprep.mubr.f32.mxu0 0.0
  %6022 = vmatmul.mubr.f32.gmra.mrb[0].mxu0 %v5917
  %v6023 = vpop.f32.mrb[0].mxu0
  %v6024 = vadd.f32 0.0, %v6023
  %v6025 = vpop.f32.mrb[0].mxu0
  %6026 = vmatprep.mubr.f32.mxu0 0.0
  %6027 = vmatmul.mubr.f32.gmra.mrb[0].mxu0 %v5918
  %v6028 = vpop.f32.mrb[0].mxu0
  %v6029 = vadd.f32 0.0, %v6028
  %v6030 = vpop.f32.mrb[0].mxu0
  %6031 = vmatprep.mubr.f32.mxu0 0.0
  %6032 = vmatmul.mubr.f32.gmra.mrb[0].mxu0 %v5919
  %v6033 = vpop.f32.mrb[0].mxu0
  %v6034 = vadd.f32 0.0, %v6033
  %v6035 = vpop.f32.mrb[0].mxu0
  %6036 = vmatprep.mubr.f32.mxu0 0.0
  %6037 = vmatmul.mubr.f32.gmra.mrb[0].mxu0 %v5920
  %v6038 = vpop.f32.mrb[0].mxu0
  %v6039 = vadd.f32 0.0, %v6038
  %v6040 = vpop.f32.mrb[0].mxu0
  %6041 = vmatprep.mubr.f32.mxu0 0.0
  %6042 = vmatmul.mubr.f32.gmra.mrb[0].mxu0 %v5921
  %v6043 = vpop.f32.mrb[0].mxu0
  %v6044 = vadd.f32 0.0, %v6043
  %v6045 = vpop.f32.mrb[0].mxu0
  %6046 = vmatprep.mubr.f32.mxu0 0.0
  %6047 = vmatmul.mubr.f32.gmra.mrb[0].mxu0 %v5922
  %v6048 = vpop.f32.mrb[0].mxu0
  %v6049 = vadd.f32 0.0, %v6048
  %v6050 = vpop.f32.mrb[0].mxu0
  %6051 = vmatprep.mubr.f32.mxu0 0.0
  %6052 = vmatmul.mubr.f32.gmra.mrb[0].mxu0 %v5923
  %v6053 = vpop.f32.mrb[0].mxu0
  %v6054 = vadd.f32 0.0, %v6053
  %v6055 = vpop.f32.mrb[0].mxu0
  %6056 = vmatprep.mubr.f32.mxu0 0.0
  %6057 = vmatmul.mubr.f32.gmra.mrb[0].mxu0 %v5924
  %v6058 = vpop.f32.mrb[0].mxu0
  %v6059 = vadd.f32 0.0, %v6058
  %v6060 = vpop.f32.mrb[0].mxu0
  %6061 = vmatprep.mubr.f32.mxu0 0.0
  %6062 = vmatmul.mubr.f32.gmra.mrb[0].mxu0 %v5925
  %v6063 = vpop.f32.mrb[0].mxu0
  %v6064 = vadd.f32 0.0, %v6063
  %v6065 = vpop.f32.mrb[0].mxu0
  %6066 = vmatprep.mubr.f32.mxu0 0.0
  %6067 = vmatmul.mubr.f32.gmra.mrb[0].mxu0 %v5926
  %v6068 = vpop.f32.mrb[0].mxu0
  %v6069 = vadd.f32 0.0, %v6068
  %v6070 = vpop.f32.mrb[0].mxu0
  %6071 = vmatprep.mubr.f32.mxu0 0.0
  %6072 = vmatmul.mubr.f32.gmra.mrb[0].mxu0 %v5927
  %v6073 = vpop.f32.mrb[0].mxu0
  %v6074 = vadd.f32 0.0, %v6073
  %v6075 = vpop.f32.mrb[0].mxu0
  %6076 = vmatprep.mubr.f32.mxu0 0.0
  %6077 = vmatmul.mubr.f32.gmra.mrb[0].mxu0 %v5928
  %v6078 = vpop.f32.mrb[0].mxu0
  %v6079 = vadd.f32 0.0, %v6078
  %v6080 = vpop.f32.mrb[0].mxu0
  %6081 = vmatprep.mubr.f32.mxu0 0.0
  %6082 = vmatmul.mubr.f32.gmra.mrb[0].mxu0 %v5929
  %v6083 = vpop.f32.mrb[0].mxu0
  %v6084 = vadd.f32 0.0, %v6083
  %v6085 = vpop.f32.mrb[0].mxu0
  %6086 = vmatprep.mubr.f32.mxu0 0.0
  %6087 = vmatmul.mubr.f32.gmra.mrb[0].mxu0 %v5930
  %v6088 = vpop.f32.mrb[0].mxu0
  %v6089 = vadd.f32 0.0, %v6088
  %v6090 = vpop.f32.mrb[0].mxu0
  %6091 = vdwg.mxu0
  %v6092 = vadd.f32 %v5899, %v6014
  %v6093 = vadd.f32 %v5900, %v6019
  %v6094 = vadd.f32 %v5901, %v6024
  %v6095 = vadd.f32 %v5902, %v6029
  %v6096 = vadd.f32 %v5903, %v6034
  %v6097 = vadd.f32 %v5904, %v6039
  %v6098 = vadd.f32 %v5905, %v6044
  %v6099 = vadd.f32 %v5906, %v6049
  %v6100 = vadd.f32 %v5907, %v6054
  %v6101 = vadd.f32 %v5908, %v6059
  %v6102 = vadd.f32 %v5909, %v6064
  %v6103 = vadd.f32 %v5910, %v6069
  %v6104 = vadd.f32 %v5911, %v6074
  %v6105 = vadd.f32 %v5912, %v6079
  %v6106 = vadd.f32 %v5913, %v6084
  %v6107 = vadd.f32 %v5914, %v6089
  %v6108 = vld [vmem:[%s5721 + $0x2] sm:$0xff]
  %v6109 = vld [vmem:[%s5721 + $0xa] sm:$0xff]
  %v6110 = vld [vmem:[%s5721 + $0x1a] sm:$0xff]
  %v6111 = vld [vmem:[%s5721 + $0x22] sm:$0xff]
  %v6112 = vld [vmem:[%s5721 + $0x32] sm:$0xff]
  %v6113 = vld [vmem:[%s5721 + $0x3a] sm:$0xff]
  %v6114 = vld [vmem:[%s5721 + $0x4a] sm:$0xff]
  %v6115 = vld [vmem:[%s5721 + $0x52] sm:$0xff]
  %v6116 = vld [vmem:[%s5721 + $0x62] sm:$0xff]
  %v6117 = vld [vmem:[%s5721 + $0x6a] sm:$0xff]
  %v6118 = vld [vmem:[%s5721 + $0x7a] sm:$0xff]
  %v6119 = vld [vmem:[%s5721 + $0x82] sm:$0xff]
  %v6120 = vld [vmem:[%s5721 + $0x92] sm:$0xff]
  %v6121 = vld [vmem:[%s5721 + $0x9a] sm:$0xff]
  %v6122 = vld [vmem:[%s5721 + $0xaa] sm:$0xff]
  %v6123 = vld [vmem:[%s5721 + $0xb2] sm:$0xff]
  %v6124 = vld [vmem:[%s2613] sm:$0xff]
  %v6125 = vld [vmem:[%s2613 + $0x8] sm:$0xff]
  %v6126 = vld [vmem:[%s2613 + $0x10] sm:$0xff]
  %v6127 = vld [vmem:[%s2613 + $0x18] sm:$0xff]
  %v6128 = vld [vmem:[%s2613 + $0x20] sm:$0xff]
  %v6129 = vld [vmem:[%s2613 + $0x28] sm:$0xff]
  %v6130 = vld [vmem:[%s2613 + $0x30] sm:$0xff]
  %v6131 = vld [vmem:[%s2613 + $0x38] sm:$0xff]
  %v6132 = vld [vmem:[%s2613 + $0x40] sm:$0xff]
  %v6133 = vld [vmem:[%s2613 + $0x48] sm:$0xff]
  %v6134 = vld [vmem:[%s2613 + $0x50] sm:$0xff]
  %v6135 = vld [vmem:[%s2613 + $0x58] sm:$0xff]
  %v6136 = vld [vmem:[%s2613 + $0x60] sm:$0xff]
  %v6137 = vld [vmem:[%s2613 + $0x68] sm:$0xff]
  %v6138 = vld [vmem:[%s2613 + $0x70] sm:$0xff]
  %v6139 = vld [vmem:[%s2613 + $0x78] sm:$0xff]
  %6140 = vmatprep.subr.mxu0 0.0
  %6141 = vmatpush1.msra.mxu0 %v6124
  %6142 = vmatprep.subr.mxu0 0.0
  %6143 = vmatpush1.msra.mxu0 %v6125
  %6144 = vmatprep.subr.mxu0 0.0
  %6145 = vmatpush1.msra.mxu0 %v6126
  %6146 = vmatprep.subr.mxu0 0.0
  %6147 = vmatpush1.msra.mxu0 %v6127
  %6148 = vmatprep.subr.mxu0 0.0
  %6149 = vmatpush1.msra.mxu0 %v6128
  %6150 = vmatprep.subr.mxu0 0.0
  %6151 = vmatpush1.msra.mxu0 %v6129
  %6152 = vmatprep.subr.mxu0 0.0
  %6153 = vmatpush1.msra.mxu0 %v6130
  %6154 = vmatprep.subr.mxu0 0.0
  %6155 = vmatpush1.msra.mxu0 %v6131
  %6156 = vmatprep.subr.mxu0 0.0
  %6157 = vmatpush1.msra.mxu0 %v6132
  %6158 = vmatprep.subr.mxu0 0.0
  %6159 = vmatpush1.msra.mxu0 %v6133
  %6160 = vmatprep.subr.mxu0 0.0
  %6161 = vmatpush1.msra.mxu0 %v6134
  %6162 = vmatprep.subr.mxu0 0.0
  %6163 = vmatpush1.msra.mxu0 %v6135
  %6164 = vmatprep.subr.mxu0 0.0
  %6165 = vmatpush1.msra.mxu0 %v6136
  %6166 = vmatprep.subr.mxu0 0.0
  %6167 = vmatpush1.msra.mxu0 %v6137
  %6168 = vmatprep.subr.mxu0 0.0
  %6169 = vmatpush1.msra.mxu0 %v6138
  %6170 = vmatprep.subr.mxu0 0.0
  %6171 = vmatpush1.msra.mxu0 %v6139
  %6172 = vmatprep.subr.mxu0 0.0
  %6173 = vmatpush1.msra.mxu0 0.0
  %6174 = vmatprep.subr.mxu0 0.0
  %6175 = vmatpush1.msra.mxu0 0.0
  %6176 = vmatprep.subr.mxu0 0.0
  %6177 = vmatpush1.msra.mxu0 0.0
  %6178 = vmatprep.subr.mxu0 0.0
  %6179 = vmatpush1.msra.mxu0 0.0
  %6180 = vmatprep.subr.mxu0 0.0
  %6181 = vmatpush1.msra.mxu0 0.0
  %6182 = vmatprep.subr.mxu0 0.0
  %6183 = vmatpush1.msra.mxu0 0.0
  %6184 = vmatprep.subr.mxu0 0.0
  %6185 = vmatpush1.msra.mxu0 0.0
  %6186 = vmatprep.subr.mxu0 0.0
  %6187 = vmatpush1.msra.mxu0 0.0
  %6188 = vmatprep.subr.mxu0 0.0
  %6189 = vmatpush1.msra.mxu0 0.0
  %6190 = vmatprep.subr.mxu0 0.0
  %6191 = vmatpush1.msra.mxu0 0.0
  %6192 = vmatprep.subr.mxu0 0.0
  %6193 = vmatpush1.msra.mxu0 0.0
  %6194 = vmatprep.subr.mxu0 0.0
  %6195 = vmatpush1.msra.mxu0 0.0
  %6196 = vmatprep.subr.mxu0 0.0
  %6197 = vmatpush1.msra.mxu0 0.0
  %6198 = vmatprep.subr.mxu0 0.0
  %6199 = vmatpush1.msra.mxu0 0.0
  %6200 = vmatprep.subr.mxu0 0.0
  %6201 = vmatpush1.msra.mxu0 0.0
  %6202 = vmatprep.subr.mxu0 0.0
  %6203 = vmatpush1.msra.mxu0 0.0
  %6204 = vmatprep.mubr.f32.mxu0 0.0
  %6205 = vmatmul.mubr.f32.gmra.mrb[0].mxu0 %v6108
  %v6206 = vpop.f32.mrb[0].mxu0
  %v6207 = vadd.f32 0.0, %v6206
  %v6208 = vpop.f32.mrb[0].mxu0
  %6209 = vmatprep.mubr.f32.mxu0 0.0
  %6210 = vmatmul.mubr.f32.gmra.mrb[0].mxu0 %v6109
  %v6211 = vpop.f32.mrb[0].mxu0
  %v6212 = vadd.f32 0.0, %v6211
  %v6213 = vpop.f32.mrb[0].mxu0
  %6214 = vmatprep.mubr.f32.mxu0 0.0
  %6215 = vmatmul.mubr.f32.gmra.mrb[0].mxu0 %v6110
  %v6216 = vpop.f32.mrb[0].mxu0
  %v6217 = vadd.f32 0.0, %v6216
  %v6218 = vpop.f32.mrb[0].mxu0
  %6219 = vmatprep.mubr.f32.mxu0 0.0
  %6220 = vmatmul.mubr.f32.gmra.mrb[0].mxu0 %v6111
  %v6221 = vpop.f32.mrb[0].mxu0
  %v6222 = vadd.f32 0.0, %v6221
  %v6223 = vpop.f32.mrb[0].mxu0
  %6224 = vmatprep.mubr.f32.mxu0 0.0
  %6225 = vmatmul.mubr.f32.gmra.mrb[0].mxu0 %v6112
  %v6226 = vpop.f32.mrb[0].mxu0
  %v6227 = vadd.f32 0.0, %v6226
  %v6228 = vpop.f32.mrb[0].mxu0
  %6229 = vmatprep.mubr.f32.mxu0 0.0
  %6230 = vmatmul.mubr.f32.gmra.mrb[0].mxu0 %v6113
  %v6231 = vpop.f32.mrb[0].mxu0
  %v6232 = vadd.f32 0.0, %v6231
  %v6233 = vpop.f32.mrb[0].mxu0
  %6234 = vmatprep.mubr.f32.mxu0 0.0
  %6235 = vmatmul.mubr.f32.gmra.mrb[0].mxu0 %v6114
  %v6236 = vpop.f32.mrb[0].mxu0
  %v6237 = vadd.f32 0.0, %v6236
  %v6238 = vpop.f32.mrb[0].mxu0
  %6239 = vmatprep.mubr.f32.mxu0 0.0
  %6240 = vmatmul.mubr.f32.gmra.mrb[0].mxu0 %v6115
  %v6241 = vpop.f32.mrb[0].mxu0
  %v6242 = vadd.f32 0.0, %v6241
  %v6243 = vpop.f32.mrb[0].mxu0
  %6244 = vmatprep.mubr.f32.mxu0 0.0
  %6245 = vmatmul.mubr.f32.gmra.mrb[0].mxu0 %v6116
  %v6246 = vpop.f32.mrb[0].mxu0
  %v6247 = vadd.f32 0.0, %v6246
  %v6248 = vpop.f32.mrb[0].mxu0
  %6249 = vmatprep.mubr.f32.mxu0 0.0
  %6250 = vmatmul.mubr.f32.gmra.mrb[0].mxu0 %v6117
  %v6251 = vpop.f32.mrb[0].mxu0
  %v6252 = vadd.f32 0.0, %v6251
  %v6253 = vpop.f32.mrb[0].mxu0
  %6254 = vmatprep.mubr.f32.mxu0 0.0
  %6255 = vmatmul.mubr.f32.gmra.mrb[0].mxu0 %v6118
  %v6256 = vpop.f32.mrb[0].mxu0
  %v6257 = vadd.f32 0.0, %v6256
  %v6258 = vpop.f32.mrb[0].mxu0
  %6259 = vmatprep.mubr.f32.mxu0 0.0
  %6260 = vmatmul.mubr.f32.gmra.mrb[0].mxu0 %v6119
  %v6261 = vpop.f32.mrb[0].mxu0
  %v6262 = vadd.f32 0.0, %v6261
  %v6263 = vpop.f32.mrb[0].mxu0
  %6264 = vmatprep.mubr.f32.mxu0 0.0
  %6265 = vmatmul.mubr.f32.gmra.mrb[0].mxu0 %v6120
  %v6266 = vpop.f32.mrb[0].mxu0
  %v6267 = vadd.f32 0.0, %v6266
  %v6268 = vpop.f32.mrb[0].mxu0
  %6269 = vmatprep.mubr.f32.mxu0 0.0
  %6270 = vmatmul.mubr.f32.gmra.mrb[0].mxu0 %v6121
  %v6271 = vpop.f32.mrb[0].mxu0
  %v6272 = vadd.f32 0.0, %v6271
  %v6273 = vpop.f32.mrb[0].mxu0
  %6274 = vmatprep.mubr.f32.mxu0 0.0
  %6275 = vmatmul.mubr.f32.gmra.mrb[0].mxu0 %v6122
  %v6276 = vpop.f32.mrb[0].mxu0
  %v6277 = vadd.f32 0.0, %v6276
  %v6278 = vpop.f32.mrb[0].mxu0
  %6279 = vmatprep.mubr.f32.mxu0 0.0
  %6280 = vmatmul.mubr.f32.gmra.mrb[0].mxu0 %v6123
  %v6281 = vpop.f32.mrb[0].mxu0
  %v6282 = vadd.f32 0.0, %v6281
  %v6283 = vpop.f32.mrb[0].mxu0
  %6284 = vdwg.mxu0
  %v6285 = vadd.f32 %v6092, %v6207
  %v6286 = vadd.f32 %v6093, %v6212
  %v6287 = vadd.f32 %v6094, %v6217
  %v6288 = vadd.f32 %v6095, %v6222
  %v6289 = vadd.f32 %v6096, %v6227
  %v6290 = vadd.f32 %v6097, %v6232
  %v6291 = vadd.f32 %v6098, %v6237
  %v6292 = vadd.f32 %v6099, %v6242
  %v6293 = vadd.f32 %v6100, %v6247
  %v6294 = vadd.f32 %v6101, %v6252
  %v6295 = vadd.f32 %v6102, %v6257
  %v6296 = vadd.f32 %v6103, %v6262
  %v6297 = vadd.f32 %v6104, %v6267
  %v6298 = vadd.f32 %v6105, %v6272
  %v6299 = vadd.f32 %v6106, %v6277
  %v6300 = vadd.f32 %v6107, %v6282
  %6301 = vxpose.xlu0.b32.start [1/16] %v6285, 128
  %6302 = vxpose.xlu0.b32.cont [2/16] %v6286, 128
  %6303 = vxpose.xlu0.b32.cont [3/16] %v6287, 128
  %6304 = vxpose.xlu0.b32.cont [4/16] %v6288, 128
  %6305 = vxpose.xlu0.b32.cont [5/16] %v6289, 128
  %6306 = vxpose.xlu0.b32.cont [6/16] %v6290, 128
  %6307 = vxpose.xlu0.b32.cont [7/16] %v6291, 128
  %6308 = vxpose.xlu0.b32.cont [8/16] %v6292, 128
  %6309 = vxpose.xlu0.b32.cont [9/16] %v6293, 128
  %6310 = vxpose.xlu0.b32.cont [10/16] %v6294, 128
  %6311 = vxpose.xlu0.b32.cont [11/16] %v6295, 128
  %6312 = vxpose.xlu0.b32.cont [12/16] %v6296, 128
  %6313 = vxpose.xlu0.b32.cont [13/16] %v6297, 128
  %6314 = vxpose.xlu0.b32.cont [14/16] %v6298, 128
  %6315 = vxpose.xlu0.b32.cont [15/16] %v6299, 128
  %6316 = vxpose.xlu0.b32.end [16/16] %v6300, 128
  %v6317 = vpop.trf.xlu0
  %v6318 = vpop.trf.xlu0
  %v6319 = vpop.trf.xlu0
  %v6320 = vpop.trf.xlu0
  %v6321 = vpop.trf.xlu0
  %v6322 = vpop.trf.xlu0
  %v6323 = vpop.trf.xlu0
  %v6324 = vpop.trf.xlu0
  %v6325 = vpop.trf.xlu0
  %v6326 = vpop.trf.xlu0
  %v6327 = vpop.trf.xlu0
  %v6328 = vpop.trf.xlu0
  %v6329 = vpop.trf.xlu0
  %v6330 = vpop.trf.xlu0
  %v6331 = vpop.trf.xlu0
  %v6332 = vpop.trf.xlu0
  %s6333 = scalar_lea.vmem %s3, 256
  %6334 = vst [vmem:[%s6333] sm:$0xff] %v6317
  %6335 = vst [vmem:[%s6333 + $0x10] sm:$0xff] %v6318
  %6336 = vst [vmem:[%s6333 + $0x20] sm:$0xff] %v6319
  %6337 = vst [vmem:[%s6333 + $0x30] sm:$0xff] %v6320
  %6338 = vst [vmem:[%s6333 + $0x40] sm:$0xff] %v6321
  %6339 = vst [vmem:[%s6333 + $0x50] sm:$0xff] %v6322
  %6340 = vst [vmem:[%s6333 + $0x60] sm:$0xff] %v6323
  %6341 = vst [vmem:[%s6333 + $0x70] sm:$0xff] %v6324
  %6342 = vst [vmem:[%s6333 + $0x80] sm:$0xff] %v6325
  %6343 = vst [vmem:[%s6333 + $0x90] sm:$0xff] %v6326
  %6344 = vst [vmem:[%s6333 + $0xa0] sm:$0xff] %v6327
  %6345 = vst [vmem:[%s6333 + $0xb0] sm:$0xff] %v6328
  %6346 = vst [vmem:[%s6333 + $0xc0] sm:$0xff] %v6329
  %6347 = vst [vmem:[%s6333 + $0xd0] sm:$0xff] %v6330
  %6348 = vst [vmem:[%s6333 + $0xe0] sm:$0xff] %v6331
  %6349 = vst [vmem:[%s6333 + $0xf0] sm:$0xff] %v6332
  %s6350 = scalar_lea.vmem [#allocation2], 624
  %v6351 = vld [vmem:[%s6350] sm:$0xff]
  %v6352 = vld [vmem:[%s6350 + $0x8] sm:$0xff]
  %v6353 = vld [vmem:[%s6350 + $0x18] sm:$0xff]
  %v6354 = vld [vmem:[%s6350 + $0x20] sm:$0xff]
  %v6355 = vld [vmem:[%s6350 + $0x30] sm:$0xff]
  %v6356 = vld [vmem:[%s6350 + $0x38] sm:$0xff]
  %v6357 = vld [vmem:[%s6350 + $0x48] sm:$0xff]
  %v6358 = vld [vmem:[%s6350 + $0x50] sm:$0xff]
  %v6359 = vld [vmem:[%s6350 + $0x60] sm:$0xff]
  %v6360 = vld [vmem:[%s6350 + $0x68] sm:$0xff]
  %v6361 = vld [vmem:[%s6350 + $0x78] sm:$0xff]
  %v6362 = vld [vmem:[%s6350 + $0x80] sm:$0xff]
  %v6363 = vld [vmem:[%s6350 + $0x90] sm:$0xff]
  %v6364 = vld [vmem:[%s6350 + $0x98] sm:$0xff]
  %v6365 = vld [vmem:[%s6350 + $0xa8] sm:$0xff]
  %v6366 = vld [vmem:[%s6350 + $0xb0] sm:$0xff]
  %v6367 = vld [vmem:[%s2] sm:$0xff]
  %v6368 = vld [vmem:[%s2 + $0x8] sm:$0xff]
  %v6369 = vld [vmem:[%s2 + $0x10] sm:$0xff]
  %v6370 = vld [vmem:[%s2 + $0x18] sm:$0xff]
  %v6371 = vld [vmem:[%s2 + $0x20] sm:$0xff]
  %v6372 = vld [vmem:[%s2 + $0x28] sm:$0xff]
  %v6373 = vld [vmem:[%s2 + $0x30] sm:$0xff]
  %v6374 = vld [vmem:[%s2 + $0x38] sm:$0xff]
  %v6375 = vld [vmem:[%s2 + $0x40] sm:$0xff]
  %v6376 = vld [vmem:[%s2 + $0x48] sm:$0xff]
  %v6377 = vld [vmem:[%s2 + $0x50] sm:$0xff]
  %v6378 = vld [vmem:[%s2 + $0x58] sm:$0xff]
  %v6379 = vld [vmem:[%s2 + $0x60] sm:$0xff]
  %v6380 = vld [vmem:[%s2 + $0x68] sm:$0xff]
  %v6381 = vld [vmem:[%s2 + $0x70] sm:$0xff]
  %v6382 = vld [vmem:[%s2 + $0x78] sm:$0xff]
  %v6383 = vld [vmem:[%s6350 + $0x1] sm:$0xff]
  %v6384 = vld [vmem:[%s6350 + $0x9] sm:$0xff]
  %v6385 = vld [vmem:[%s6350 + $0x19] sm:$0xff]
  %v6386 = vld [vmem:[%s6350 + $0x21] sm:$0xff]
  %v6387 = vld [vmem:[%s6350 + $0x31] sm:$0xff]
  %v6388 = vld [vmem:[%s6350 + $0x39] sm:$0xff]
  %v6389 = vld [vmem:[%s6350 + $0x49] sm:$0xff]
  %v6390 = vld [vmem:[%s6350 + $0x51] sm:$0xff]
  %v6391 = vld [vmem:[%s6350 + $0x61] sm:$0xff]
  %v6392 = vld [vmem:[%s6350 + $0x69] sm:$0xff]
  %v6393 = vld [vmem:[%s6350 + $0x79] sm:$0xff]
  %v6394 = vld [vmem:[%s6350 + $0x81] sm:$0xff]
  %v6395 = vld [vmem:[%s6350 + $0x91] sm:$0xff]
  %v6396 = vld [vmem:[%s6350 + $0x99] sm:$0xff]
  %v6397 = vld [vmem:[%s6350 + $0xa9] sm:$0xff]
  %v6398 = vld [vmem:[%s6350 + $0xb1] sm:$0xff]
  %v6399 = vld [vmem:[%s1125] sm:$0xff]
  %v6400 = vld [vmem:[%s1125 + $0x8] sm:$0xff]
  %v6401 = vld [vmem:[%s1125 + $0x10] sm:$0xff]
  %v6402 = vld [vmem:[%s1125 + $0x18] sm:$0xff]
  %v6403 = vld [vmem:[%s1125 + $0x20] sm:$0xff]
  %v6404 = vld [vmem:[%s1125 + $0x28] sm:$0xff]
  %v6405 = vld [vmem:[%s1125 + $0x30] sm:$0xff]
  %v6406 = vld [vmem:[%s1125 + $0x38] sm:$0xff]
  %v6407 = vld [vmem:[%s1125 + $0x40] sm:$0xff]
  %v6408 = vld [vmem:[%s1125 + $0x48] sm:$0xff]
  %v6409 = vld [vmem:[%s1125 + $0x50] sm:$0xff]
  %v6410 = vld [vmem:[%s1125 + $0x58] sm:$0xff]
  %v6411 = vld [vmem:[%s1125 + $0x60] sm:$0xff]
  %v6412 = vld [vmem:[%s1125 + $0x68] sm:$0xff]
  %v6413 = vld [vmem:[%s1125 + $0x70] sm:$0xff]
  %v6414 = vld [vmem:[%s1125 + $0x78] sm:$0xff]
  %6415 = vmatprep.subr.mxu0 0.0
  %6416 = vmatpush1.msra.mxu0 %v6399
  %6417 = vmatprep.subr.mxu0 0.0
  %6418 = vmatpush1.msra.mxu0 %v6400
  %6419 = vmatprep.subr.mxu0 0.0
  %6420 = vmatpush1.msra.mxu0 %v6401
  %6421 = vmatprep.subr.mxu0 0.0
  %6422 = vmatpush1.msra.mxu0 %v6402
  %6423 = vmatprep.subr.mxu0 0.0
  %6424 = vmatpush1.msra.mxu0 %v6403
  %6425 = vmatprep.subr.mxu0 0.0
  %6426 = vmatpush1.msra.mxu0 %v6404
  %6427 = vmatprep.subr.mxu0 0.0
  %6428 = vmatpush1.msra.mxu0 %v6405
  %6429 = vmatprep.subr.mxu0 0.0
  %6430 = vmatpush1.msra.mxu0 %v6406
  %6431 = vmatprep.subr.mxu0 0.0
  %6432 = vmatpush1.msra.mxu0 %v6407
  %6433 = vmatprep.subr.mxu0 0.0
  %6434 = vmatpush1.msra.mxu0 %v6408
  %6435 = vmatprep.subr.mxu0 0.0
  %6436 = vmatpush1.msra.mxu0 %v6409
  %6437 = vmatprep.subr.mxu0 0.0
  %6438 = vmatpush1.msra.mxu0 %v6410
  %6439 = vmatprep.subr.mxu0 0.0
  %6440 = vmatpush1.msra.mxu0 %v6411
  %6441 = vmatprep.subr.mxu0 0.0
  %6442 = vmatpush1.msra.mxu0 %v6412
  %6443 = vmatprep.subr.mxu0 0.0
  %6444 = vmatpush1.msra.mxu0 %v6413
  %6445 = vmatprep.subr.mxu0 0.0
  %6446 = vmatpush1.msra.mxu0 %v6414
  %6447 = vmatprep.subr.mxu0 0.0
  %6448 = vmatpush1.msra.mxu0 0.0
  %6449 = vmatprep.subr.mxu0 0.0
  %6450 = vmatpush1.msra.mxu0 0.0
  %6451 = vmatprep.subr.mxu0 0.0
  %6452 = vmatpush1.msra.mxu0 0.0
  %6453 = vmatprep.subr.mxu0 0.0
  %6454 = vmatpush1.msra.mxu0 0.0
  %6455 = vmatprep.subr.mxu0 0.0
  %6456 = vmatpush1.msra.mxu0 0.0
  %6457 = vmatprep.subr.mxu0 0.0
  %6458 = vmatpush1.msra.mxu0 0.0
  %6459 = vmatprep.subr.mxu0 0.0
  %6460 = vmatpush1.msra.mxu0 0.0
  %6461 = vmatprep.subr.mxu0 0.0
  %6462 = vmatpush1.msra.mxu0 0.0
  %6463 = vmatprep.subr.mxu0 0.0
  %6464 = vmatpush1.msra.mxu0 0.0
  %6465 = vmatprep.subr.mxu0 0.0
  %6466 = vmatpush1.msra.mxu0 0.0
  %6467 = vmatprep.subr.mxu0 0.0
  %6468 = vmatpush1.msra.mxu0 0.0
  %6469 = vmatprep.subr.mxu0 0.0
  %6470 = vmatpush1.msra.mxu0 0.0
  %6471 = vmatprep.subr.mxu0 0.0
  %6472 = vmatpush1.msra.mxu0 0.0
  %6473 = vmatprep.subr.mxu0 0.0
  %6474 = vmatpush1.msra.mxu0 0.0
  %6475 = vmatprep.subr.mxu0 0.0
  %6476 = vmatpush1.msra.mxu0 0.0
  %6477 = vmatprep.subr.mxu0 0.0
  %6478 = vmatpush1.msra.mxu0 0.0
  %6479 = vmatprep.mubr.f32.mxu0 0.0
  %6480 = vmatmul.mubr.f32.gmra.mrb[0].mxu0 %v6383
  %v6481 = vpop.f32.mrb[0].mxu0
  %v6482 = vadd.f32 0.0, %v6481
  %v6483 = vpop.f32.mrb[0].mxu0
  %6484 = vmatprep.mubr.f32.mxu0 0.0
  %6485 = vmatmul.mubr.f32.gmra.mrb[0].mxu0 %v6384
  %v6486 = vpop.f32.mrb[0].mxu0
  %v6487 = vadd.f32 0.0, %v6486
  %v6488 = vpop.f32.mrb[0].mxu0
  %6489 = vmatprep.mubr.f32.mxu0 0.0
  %6490 = vmatmul.mubr.f32.gmra.mrb[0].mxu0 %v6385
  %v6491 = vpop.f32.mrb[0].mxu0
  %v6492 = vadd.f32 0.0, %v6491
  %v6493 = vpop.f32.mrb[0].mxu0
  %6494 = vmatprep.mubr.f32.mxu0 0.0
  %6495 = vmatmul.mubr.f32.gmra.mrb[0].mxu0 %v6386
  %v6496 = vpop.f32.mrb[0].mxu0
  %v6497 = vadd.f32 0.0, %v6496
  %v6498 = vpop.f32.mrb[0].mxu0
  %6499 = vmatprep.mubr.f32.mxu0 0.0
  %6500 = vmatmul.mubr.f32.gmra.mrb[0].mxu0 %v6387
  %v6501 = vpop.f32.mrb[0].mxu0
  %v6502 = vadd.f32 0.0, %v6501
  %v6503 = vpop.f32.mrb[0].mxu0
  %6504 = vmatprep.mubr.f32.mxu0 0.0
  %6505 = vmatmul.mubr.f32.gmra.mrb[0].mxu0 %v6388
  %v6506 = vpop.f32.mrb[0].mxu0
  %v6507 = vadd.f32 0.0, %v6506
  %v6508 = vpop.f32.mrb[0].mxu0
  %6509 = vmatprep.mubr.f32.mxu0 0.0
  %6510 = vmatmul.mubr.f32.gmra.mrb[0].mxu0 %v6389
  %v6511 = vpop.f32.mrb[0].mxu0
  %v6512 = vadd.f32 0.0, %v6511
  %v6513 = vpop.f32.mrb[0].mxu0
  %6514 = vmatprep.mubr.f32.mxu0 0.0
  %6515 = vmatmul.mubr.f32.gmra.mrb[0].mxu0 %v6390
  %v6516 = vpop.f32.mrb[0].mxu0
  %v6517 = vadd.f32 0.0, %v6516
  %v6518 = vpop.f32.mrb[0].mxu0
  %6519 = vmatprep.mubr.f32.mxu0 0.0
  %6520 = vmatmul.mubr.f32.gmra.mrb[0].mxu0 %v6391
  %v6521 = vpop.f32.mrb[0].mxu0
  %v6522 = vadd.f32 0.0, %v6521
  %v6523 = vpop.f32.mrb[0].mxu0
  %6524 = vmatprep.mubr.f32.mxu0 0.0
  %6525 = vmatmul.mubr.f32.gmra.mrb[0].mxu0 %v6392
  %v6526 = vpop.f32.mrb[0].mxu0
  %v6527 = vadd.f32 0.0, %v6526
  %v6528 = vpop.f32.mrb[0].mxu0
  %6529 = vmatprep.mubr.f32.mxu0 0.0
  %6530 = vmatmul.mubr.f32.gmra.mrb[0].mxu0 %v6393
  %v6531 = vpop.f32.mrb[0].mxu0
  %v6532 = vadd.f32 0.0, %v6531
  %v6533 = vpop.f32.mrb[0].mxu0
  %6534 = vmatprep.mubr.f32.mxu0 0.0
  %6535 = vmatmul.mubr.f32.gmra.mrb[0].mxu0 %v6394
  %v6536 = vpop.f32.mrb[0].mxu0
  %v6537 = vadd.f32 0.0, %v6536
  %v6538 = vpop.f32.mrb[0].mxu0
  %6539 = vmatprep.mubr.f32.mxu0 0.0
  %6540 = vmatmul.mubr.f32.gmra.mrb[0].mxu0 %v6395
  %v6541 = vpop.f32.mrb[0].mxu0
  %v6542 = vadd.f32 0.0, %v6541
  %v6543 = vpop.f32.mrb[0].mxu0
  %6544 = vmatprep.mubr.f32.mxu0 0.0
  %6545 = vmatmul.mubr.f32.gmra.mrb[0].mxu0 %v6396
  %v6546 = vpop.f32.mrb[0].mxu0
  %v6547 = vadd.f32 0.0, %v6546
  %v6548 = vpop.f32.mrb[0].mxu0
  %6549 = vmatprep.mubr.f32.mxu0 0.0
  %6550 = vmatmul.mubr.f32.gmra.mrb[0].mxu0 %v6397
  %v6551 = vpop.f32.mrb[0].mxu0
  %v6552 = vadd.f32 0.0, %v6551
  %v6553 = vpop.f32.mrb[0].mxu0
  %6554 = vmatprep.mubr.f32.mxu0 0.0
  %6555 = vmatmul.mubr.f32.gmra.mrb[0].mxu0 %v6398
  %v6556 = vpop.f32.mrb[0].mxu0
  %v6557 = vadd.f32 0.0, %v6556
  %v6558 = vpop.f32.mrb[0].mxu0
  %6559 = vdwg.mxu0
  %6560 = vmatprep.subr.mxu0 0.0
  %6561 = vmatpush1.msra.mxu0 %v6367
  %6562 = vmatprep.subr.mxu0 0.0
  %6563 = vmatpush1.msra.mxu0 %v6368
  %6564 = vmatprep.subr.mxu0 0.0
  %6565 = vmatpush1.msra.mxu0 %v6369
  %6566 = vmatprep.subr.mxu0 0.0
  %6567 = vmatpush1.msra.mxu0 %v6370
  %6568 = vmatprep.subr.mxu0 0.0
  %6569 = vmatpush1.msra.mxu0 %v6371
  %6570 = vmatprep.subr.mxu0 0.0
  %6571 = vmatpush1.msra.mxu0 %v6372
  %6572 = vmatprep.subr.mxu0 0.0
  %6573 = vmatpush1.msra.mxu0 %v6373
  %6574 = vmatprep.subr.mxu0 0.0
  %6575 = vmatpush1.msra.mxu0 %v6374
  %6576 = vmatprep.subr.mxu0 0.0
  %6577 = vmatpush1.msra.mxu0 %v6375
  %6578 = vmatprep.subr.mxu0 0.0
  %6579 = vmatpush1.msra.mxu0 %v6376
  %6580 = vmatprep.subr.mxu0 0.0
  %6581 = vmatpush1.msra.mxu0 %v6377
  %6582 = vmatprep.subr.mxu0 0.0
  %6583 = vmatpush1.msra.mxu0 %v6378
  %6584 = vmatprep.subr.mxu0 0.0
  %6585 = vmatpush1.msra.mxu0 %v6379
  %6586 = vmatprep.subr.mxu0 0.0
  %6587 = vmatpush1.msra.mxu0 %v6380
  %6588 = vmatprep.subr.mxu0 0.0
  %6589 = vmatpush1.msra.mxu0 %v6381
  %6590 = vmatprep.subr.mxu0 0.0
  %6591 = vmatpush1.msra.mxu0 %v6382
  %6592 = vmatprep.subr.mxu0 0.0
  %6593 = vmatpush1.msra.mxu0 0.0
  %6594 = vmatprep.subr.mxu0 0.0
  %6595 = vmatpush1.msra.mxu0 0.0
  %6596 = vmatprep.subr.mxu0 0.0
  %6597 = vmatpush1.msra.mxu0 0.0
  %6598 = vmatprep.subr.mxu0 0.0
  %6599 = vmatpush1.msra.mxu0 0.0
  %6600 = vmatprep.subr.mxu0 0.0
  %6601 = vmatpush1.msra.mxu0 0.0
  %6602 = vmatprep.subr.mxu0 0.0
  %6603 = vmatpush1.msra.mxu0 0.0
  %6604 = vmatprep.subr.mxu0 0.0
  %6605 = vmatpush1.msra.mxu0 0.0
  %6606 = vmatprep.subr.mxu0 0.0
  %6607 = vmatpush1.msra.mxu0 0.0
  %6608 = vmatprep.subr.mxu0 0.0
  %6609 = vmatpush1.msra.mxu0 0.0
  %6610 = vmatprep.subr.mxu0 0.0
  %6611 = vmatpush1.msra.mxu0 0.0
  %6612 = vmatprep.subr.mxu0 0.0
  %6613 = vmatpush1.msra.mxu0 0.0
  %6614 = vmatprep.subr.mxu0 0.0
  %6615 = vmatpush1.msra.mxu0 0.0
  %6616 = vmatprep.subr.mxu0 0.0
  %6617 = vmatpush1.msra.mxu0 0.0
  %6618 = vmatprep.subr.mxu0 0.0
  %6619 = vmatpush1.msra.mxu0 0.0
  %6620 = vmatprep.subr.mxu0 0.0
  %6621 = vmatpush1.msra.mxu0 0.0
  %6622 = vmatprep.subr.mxu0 0.0
  %6623 = vmatpush1.msra.mxu0 0.0
  %6624 = vmatprep.mubr.f32.mxu0 0.0
  %6625 = vmatmul.mubr.f32.gmra.mrb[0].mxu0 %v6351
  %v6626 = vpop.f32.mrb[0].mxu0
  %v6627 = vadd.f32 %v6482, %v6626
  %v6628 = vpop.f32.mrb[0].mxu0
  %6629 = vmatprep.mubr.f32.mxu0 0.0
  %6630 = vmatmul.mubr.f32.gmra.mrb[0].mxu0 %v6352
  %v6631 = vpop.f32.mrb[0].mxu0
  %v6632 = vadd.f32 %v6487, %v6631
  %v6633 = vpop.f32.mrb[0].mxu0
  %6634 = vmatprep.mubr.f32.mxu0 0.0
  %6635 = vmatmul.mubr.f32.gmra.mrb[0].mxu0 %v6353
  %v6636 = vpop.f32.mrb[0].mxu0
  %v6637 = vadd.f32 %v6492, %v6636
  %v6638 = vpop.f32.mrb[0].mxu0
  %6639 = vmatprep.mubr.f32.mxu0 0.0
  %6640 = vmatmul.mubr.f32.gmra.mrb[0].mxu0 %v6354
  %v6641 = vpop.f32.mrb[0].mxu0
  %v6642 = vadd.f32 %v6497, %v6641
  %v6643 = vpop.f32.mrb[0].mxu0
  %6644 = vmatprep.mubr.f32.mxu0 0.0
  %6645 = vmatmul.mubr.f32.gmra.mrb[0].mxu0 %v6355
  %v6646 = vpop.f32.mrb[0].mxu0
  %v6647 = vadd.f32 %v6502, %v6646
  %v6648 = vpop.f32.mrb[0].mxu0
  %6649 = vmatprep.mubr.f32.mxu0 0.0
  %6650 = vmatmul.mubr.f32.gmra.mrb[0].mxu0 %v6356
  %v6651 = vpop.f32.mrb[0].mxu0
  %v6652 = vadd.f32 %v6507, %v6651
  %v6653 = vpop.f32.mrb[0].mxu0
  %6654 = vmatprep.mubr.f32.mxu0 0.0
  %6655 = vmatmul.mubr.f32.gmra.mrb[0].mxu0 %v6357
  %v6656 = vpop.f32.mrb[0].mxu0
  %v6657 = vadd.f32 %v6512, %v6656
  %v6658 = vpop.f32.mrb[0].mxu0
  %6659 = vmatprep.mubr.f32.mxu0 0.0
  %6660 = vmatmul.mubr.f32.gmra.mrb[0].mxu0 %v6358
  %v6661 = vpop.f32.mrb[0].mxu0
  %v6662 = vadd.f32 %v6517, %v6661
  %v6663 = vpop.f32.mrb[0].mxu0
  %6664 = vmatprep.mubr.f32.mxu0 0.0
  %6665 = vmatmul.mubr.f32.gmra.mrb[0].mxu0 %v6359
  %v6666 = vpop.f32.mrb[0].mxu0
  %v6667 = vadd.f32 %v6522, %v6666
  %v6668 = vpop.f32.mrb[0].mxu0
  %6669 = vmatprep.mubr.f32.mxu0 0.0
  %6670 = vmatmul.mubr.f32.gmra.mrb[0].mxu0 %v6360
  %v6671 = vpop.f32.mrb[0].mxu0
  %v6672 = vadd.f32 %v6527, %v6671
  %v6673 = vpop.f32.mrb[0].mxu0
  %6674 = vmatprep.mubr.f32.mxu0 0.0
  %6675 = vmatmul.mubr.f32.gmra.mrb[0].mxu0 %v6361
  %v6676 = vpop.f32.mrb[0].mxu0
  %v6677 = vadd.f32 %v6532, %v6676
  %v6678 = vpop.f32.mrb[0].mxu0
  %6679 = vmatprep.mubr.f32.mxu0 0.0
  %6680 = vmatmul.mubr.f32.gmra.mrb[0].mxu0 %v6362
  %v6681 = vpop.f32.mrb[0].mxu0
  %v6682 = vadd.f32 %v6537, %v6681
  %v6683 = vpop.f32.mrb[0].mxu0
  %6684 = vmatprep.mubr.f32.mxu0 0.0
  %6685 = vmatmul.mubr.f32.gmra.mrb[0].mxu0 %v6363
  %v6686 = vpop.f32.mrb[0].mxu0
  %v6687 = vadd.f32 %v6542, %v6686
  %v6688 = vpop.f32.mrb[0].mxu0
  %6689 = vmatprep.mubr.f32.mxu0 0.0
  %6690 = vmatmul.mubr.f32.gmra.mrb[0].mxu0 %v6364
  %v6691 = vpop.f32.mrb[0].mxu0
  %v6692 = vadd.f32 %v6547, %v6691
  %v6693 = vpop.f32.mrb[0].mxu0
  %6694 = vmatprep.mubr.f32.mxu0 0.0
  %6695 = vmatmul.mubr.f32.gmra.mrb[0].mxu0 %v6365
  %v6696 = vpop.f32.mrb[0].mxu0
  %v6697 = vadd.f32 %v6552, %v6696
  %v6698 = vpop.f32.mrb[0].mxu0
  %6699 = vmatprep.mubr.f32.mxu0 0.0
  %6700 = vmatmul.mubr.f32.gmra.mrb[0].mxu0 %v6366
  %v6701 = vpop.f32.mrb[0].mxu0
  %v6702 = vadd.f32 %v6557, %v6701
  %v6703 = vpop.f32.mrb[0].mxu0
  %6704 = vdwg.mxu0
  %v6705 = vld [vmem:[%s6350 + $0x2] sm:$0xff]
  %v6706 = vld [vmem:[%s6350 + $0xa] sm:$0xff]
  %v6707 = vld [vmem:[%s6350 + $0x1a] sm:$0xff]
  %v6708 = vld [vmem:[%s6350 + $0x22] sm:$0xff]
  %v6709 = vld [vmem:[%s6350 + $0x32] sm:$0xff]
  %v6710 = vld [vmem:[%s6350 + $0x3a] sm:$0xff]
  %v6711 = vld [vmem:[%s6350 + $0x4a] sm:$0xff]
  %v6712 = vld [vmem:[%s6350 + $0x52] sm:$0xff]
  %v6713 = vld [vmem:[%s6350 + $0x62] sm:$0xff]
  %v6714 = vld [vmem:[%s6350 + $0x6a] sm:$0xff]
  %v6715 = vld [vmem:[%s6350 + $0x7a] sm:$0xff]
  %v6716 = vld [vmem:[%s6350 + $0x82] sm:$0xff]
  %v6717 = vld [vmem:[%s6350 + $0x92] sm:$0xff]
  %v6718 = vld [vmem:[%s6350 + $0x9a] sm:$0xff]
  %v6719 = vld [vmem:[%s6350 + $0xaa] sm:$0xff]
  %v6720 = vld [vmem:[%s6350 + $0xb2] sm:$0xff]
  %v6721 = vld [vmem:[%s1448] sm:$0xff]
  %v6722 = vld [vmem:[%s1448 + $0x8] sm:$0xff]
  %v6723 = vld [vmem:[%s1448 + $0x10] sm:$0xff]
  %v6724 = vld [vmem:[%s1448 + $0x18] sm:$0xff]
  %v6725 = vld [vmem:[%s1448 + $0x20] sm:$0xff]
  %v6726 = vld [vmem:[%s1448 + $0x28] sm:$0xff]
  %v6727 = vld [vmem:[%s1448 + $0x30] sm:$0xff]
  %v6728 = vld [vmem:[%s1448 + $0x38] sm:$0xff]
  %v6729 = vld [vmem:[%s1448 + $0x40] sm:$0xff]
  %v6730 = vld [vmem:[%s1448 + $0x48] sm:$0xff]
  %v6731 = vld [vmem:[%s1448 + $0x50] sm:$0xff]
  %v6732 = vld [vmem:[%s1448 + $0x58] sm:$0xff]
  %v6733 = vld [vmem:[%s1448 + $0x60] sm:$0xff]
  %v6734 = vld [vmem:[%s1448 + $0x68] sm:$0xff]
  %v6735 = vld [vmem:[%s1448 + $0x70] sm:$0xff]
  %v6736 = vld [vmem:[%s1448 + $0x78] sm:$0xff]
  %6737 = vmatprep.subr.mxu0 0.0
  %6738 = vmatpush1.msra.mxu0 %v6721
  %6739 = vmatprep.subr.mxu0 0.0
  %6740 = vmatpush1.msra.mxu0 %v6722
  %6741 = vmatprep.subr.mxu0 0.0
  %6742 = vmatpush1.msra.mxu0 %v6723
  %6743 = vmatprep.subr.mxu0 0.0
  %6744 = vmatpush1.msra.mxu0 %v6724
  %6745 = vmatprep.subr.mxu0 0.0
  %6746 = vmatpush1.msra.mxu0 %v6725
  %6747 = vmatprep.subr.mxu0 0.0
  %6748 = vmatpush1.msra.mxu0 %v6726
  %6749 = vmatprep.subr.mxu0 0.0
  %6750 = vmatpush1.msra.mxu0 %v6727
  %6751 = vmatprep.subr.mxu0 0.0
  %6752 = vmatpush1.msra.mxu0 %v6728
  %6753 = vmatprep.subr.mxu0 0.0
  %6754 = vmatpush1.msra.mxu0 %v6729
  %6755 = vmatprep.subr.mxu0 0.0
  %6756 = vmatpush1.msra.mxu0 %v6730
  %6757 = vmatprep.subr.mxu0 0.0
  %6758 = vmatpush1.msra.mxu0 %v6731
  %6759 = vmatprep.subr.mxu0 0.0
  %6760 = vmatpush1.msra.mxu0 %v6732
  %6761 = vmatprep.subr.mxu0 0.0
  %6762 = vmatpush1.msra.mxu0 %v6733
  %6763 = vmatprep.subr.mxu0 0.0
  %6764 = vmatpush1.msra.mxu0 %v6734
  %6765 = vmatprep.subr.mxu0 0.0
  %6766 = vmatpush1.msra.mxu0 %v6735
  %6767 = vmatprep.subr.mxu0 0.0
  %6768 = vmatpush1.msra.mxu0 %v6736
  %6769 = vmatprep.subr.mxu0 0.0
  %6770 = vmatpush1.msra.mxu0 0.0
  %6771 = vmatprep.subr.mxu0 0.0
  %6772 = vmatpush1.msra.mxu0 0.0
  %6773 = vmatprep.subr.mxu0 0.0
  %6774 = vmatpush1.msra.mxu0 0.0
  %6775 = vmatprep.subr.mxu0 0.0
  %6776 = vmatpush1.msra.mxu0 0.0
  %6777 = vmatprep.subr.mxu0 0.0
  %6778 = vmatpush1.msra.mxu0 0.0
  %6779 = vmatprep.subr.mxu0 0.0
  %6780 = vmatpush1.msra.mxu0 0.0
  %6781 = vmatprep.subr.mxu0 0.0
  %6782 = vmatpush1.msra.mxu0 0.0
  %6783 = vmatprep.subr.mxu0 0.0
  %6784 = vmatpush1.msra.mxu0 0.0
  %6785 = vmatprep.subr.mxu0 0.0
  %6786 = vmatpush1.msra.mxu0 0.0
  %6787 = vmatprep.subr.mxu0 0.0
  %6788 = vmatpush1.msra.mxu0 0.0
  %6789 = vmatprep.subr.mxu0 0.0
  %6790 = vmatpush1.msra.mxu0 0.0
  %6791 = vmatprep.subr.mxu0 0.0
  %6792 = vmatpush1.msra.mxu0 0.0
  %6793 = vmatprep.subr.mxu0 0.0
  %6794 = vmatpush1.msra.mxu0 0.0
  %6795 = vmatprep.subr.mxu0 0.0
  %6796 = vmatpush1.msra.mxu0 0.0
  %6797 = vmatprep.subr.mxu0 0.0
  %6798 = vmatpush1.msra.mxu0 0.0
  %6799 = vmatprep.subr.mxu0 0.0
  %6800 = vmatpush1.msra.mxu0 0.0
  %6801 = vmatprep.mubr.f32.mxu0 0.0
  %6802 = vmatmul.mubr.f32.gmra.mrb[0].mxu0 %v6705
  %v6803 = vpop.f32.mrb[0].mxu0
  %v6804 = vadd.f32 0.0, %v6803
  %v6805 = vpop.f32.mrb[0].mxu0
  %6806 = vmatprep.mubr.f32.mxu0 0.0
  %6807 = vmatmul.mubr.f32.gmra.mrb[0].mxu0 %v6706
  %v6808 = vpop.f32.mrb[0].mxu0
  %v6809 = vadd.f32 0.0, %v6808
  %v6810 = vpop.f32.mrb[0].mxu0
  %6811 = vmatprep.mubr.f32.mxu0 0.0
  %6812 = vmatmul.mubr.f32.gmra.mrb[0].mxu0 %v6707
  %v6813 = vpop.f32.mrb[0].mxu0
  %v6814 = vadd.f32 0.0, %v6813
  %v6815 = vpop.f32.mrb[0].mxu0
  %6816 = vmatprep.mubr.f32.mxu0 0.0
  %6817 = vmatmul.mubr.f32.gmra.mrb[0].mxu0 %v6708
  %v6818 = vpop.f32.mrb[0].mxu0
  %v6819 = vadd.f32 0.0, %v6818
  %v6820 = vpop.f32.mrb[0].mxu0
  %6821 = vmatprep.mubr.f32.mxu0 0.0
  %6822 = vmatmul.mubr.f32.gmra.mrb[0].mxu0 %v6709
  %v6823 = vpop.f32.mrb[0].mxu0
  %v6824 = vadd.f32 0.0, %v6823
  %v6825 = vpop.f32.mrb[0].mxu0
  %6826 = vmatprep.mubr.f32.mxu0 0.0
  %6827 = vmatmul.mubr.f32.gmra.mrb[0].mxu0 %v6710
  %v6828 = vpop.f32.mrb[0].mxu0
  %v6829 = vadd.f32 0.0, %v6828
  %v6830 = vpop.f32.mrb[0].mxu0
  %6831 = vmatprep.mubr.f32.mxu0 0.0
  %6832 = vmatmul.mubr.f32.gmra.mrb[0].mxu0 %v6711
  %v6833 = vpop.f32.mrb[0].mxu0
  %v6834 = vadd.f32 0.0, %v6833
  %v6835 = vpop.f32.mrb[0].mxu0
  %6836 = vmatprep.mubr.f32.mxu0 0.0
  %6837 = vmatmul.mubr.f32.gmra.mrb[0].mxu0 %v6712
  %v6838 = vpop.f32.mrb[0].mxu0
  %v6839 = vadd.f32 0.0, %v6838
  %v6840 = vpop.f32.mrb[0].mxu0
  %6841 = vmatprep.mubr.f32.mxu0 0.0
  %6842 = vmatmul.mubr.f32.gmra.mrb[0].mxu0 %v6713
  %v6843 = vpop.f32.mrb[0].mxu0
  %v6844 = vadd.f32 0.0, %v6843
  %v6845 = vpop.f32.mrb[0].mxu0
  %6846 = vmatprep.mubr.f32.mxu0 0.0
  %6847 = vmatmul.mubr.f32.gmra.mrb[0].mxu0 %v6714
  %v6848 = vpop.f32.mrb[0].mxu0
  %v6849 = vadd.f32 0.0, %v6848
  %v6850 = vpop.f32.mrb[0].mxu0
  %6851 = vmatprep.mubr.f32.mxu0 0.0
  %6852 = vmatmul.mubr.f32.gmra.mrb[0].mxu0 %v6715
  %v6853 = vpop.f32.mrb[0].mxu0
  %v6854 = vadd.f32 0.0, %v6853
  %v6855 = vpop.f32.mrb[0].mxu0
  %6856 = vmatprep.mubr.f32.mxu0 0.0
  %6857 = vmatmul.mubr.f32.gmra.mrb[0].mxu0 %v6716
  %v6858 = vpop.f32.mrb[0].mxu0
  %v6859 = vadd.f32 0.0, %v6858
  %v6860 = vpop.f32.mrb[0].mxu0
  %6861 = vmatprep.mubr.f32.mxu0 0.0
  %6862 = vmatmul.mubr.f32.gmra.mrb[0].mxu0 %v6717
  %v6863 = vpop.f32.mrb[0].mxu0
  %v6864 = vadd.f32 0.0, %v6863
  %v6865 = vpop.f32.mrb[0].mxu0
  %6866 = vmatprep.mubr.f32.mxu0 0.0
  %6867 = vmatmul.mubr.f32.gmra.mrb[0].mxu0 %v6718
  %v6868 = vpop.f32.mrb[0].mxu0
  %v6869 = vadd.f32 0.0, %v6868
  %v6870 = vpop.f32.mrb[0].mxu0
  %6871 = vmatprep.mubr.f32.mxu0 0.0
  %6872 = vmatmul.mubr.f32.gmra.mrb[0].mxu0 %v6719
  %v6873 = vpop.f32.mrb[0].mxu0
  %v6874 = vadd.f32 0.0, %v6873
  %v6875 = vpop.f32.mrb[0].mxu0
  %6876 = vmatprep.mubr.f32.mxu0 0.0
  %6877 = vmatmul.mubr.f32.gmra.mrb[0].mxu0 %v6720
  %v6878 = vpop.f32.mrb[0].mxu0
  %v6879 = vadd.f32 0.0, %v6878
  %v6880 = vpop.f32.mrb[0].mxu0
  %6881 = vdwg.mxu0
  %v6882 = vadd.f32 %v6627, %v6804
  %v6883 = vadd.f32 %v6632, %v6809
  %v6884 = vadd.f32 %v6637, %v6814
  %v6885 = vadd.f32 %v6642, %v6819
  %v6886 = vadd.f32 %v6647, %v6824
  %v6887 = vadd.f32 %v6652, %v6829
  %v6888 = vadd.f32 %v6657, %v6834
  %v6889 = vadd.f32 %v6662, %v6839
  %v6890 = vadd.f32 %v6667, %v6844
  %v6891 = vadd.f32 %v6672, %v6849
  %v6892 = vadd.f32 %v6677, %v6854
  %v6893 = vadd.f32 %v6682, %v6859
  %v6894 = vadd.f32 %v6687, %v6864
  %v6895 = vadd.f32 %v6692, %v6869
  %v6896 = vadd.f32 %v6697, %v6874
  %v6897 = vadd.f32 %v6702, %v6879
  %v6898 = vld [vmem:[%s1060] sm:$0xff]
  %v6899 = vld [vmem:[%s1060 + $0x8] sm:$0xff]
  %v6900 = vld [vmem:[%s1060 + $0x18] sm:$0xff]
  %v6901 = vld [vmem:[%s1060 + $0x20] sm:$0xff]
  %v6902 = vld [vmem:[%s1060 + $0x30] sm:$0xff]
  %v6903 = vld [vmem:[%s1060 + $0x38] sm:$0xff]
  %v6904 = vld [vmem:[%s1060 + $0x48] sm:$0xff]
  %v6905 = vld [vmem:[%s1060 + $0x50] sm:$0xff]
  %v6906 = vld [vmem:[%s1060 + $0x60] sm:$0xff]
  %v6907 = vld [vmem:[%s1060 + $0x68] sm:$0xff]
  %v6908 = vld [vmem:[%s1060 + $0x78] sm:$0xff]
  %v6909 = vld [vmem:[%s1060 + $0x80] sm:$0xff]
  %v6910 = vld [vmem:[%s1060 + $0x90] sm:$0xff]
  %v6911 = vld [vmem:[%s1060 + $0x98] sm:$0xff]
  %v6912 = vld [vmem:[%s1060 + $0xa8] sm:$0xff]
  %v6913 = vld [vmem:[%s1060 + $0xb0] sm:$0xff]
  %v6914 = vld [vmem:[%s1642] sm:$0xff]
  %v6915 = vld [vmem:[%s1642 + $0x8] sm:$0xff]
  %v6916 = vld [vmem:[%s1642 + $0x10] sm:$0xff]
  %v6917 = vld [vmem:[%s1642 + $0x18] sm:$0xff]
  %v6918 = vld [vmem:[%s1642 + $0x20] sm:$0xff]
  %v6919 = vld [vmem:[%s1642 + $0x28] sm:$0xff]
  %v6920 = vld [vmem:[%s1642 + $0x30] sm:$0xff]
  %v6921 = vld [vmem:[%s1642 + $0x38] sm:$0xff]
  %v6922 = vld [vmem:[%s1642 + $0x40] sm:$0xff]
  %v6923 = vld [vmem:[%s1642 + $0x48] sm:$0xff]
  %v6924 = vld [vmem:[%s1642 + $0x50] sm:$0xff]
  %v6925 = vld [vmem:[%s1642 + $0x58] sm:$0xff]
  %v6926 = vld [vmem:[%s1642 + $0x60] sm:$0xff]
  %v6927 = vld [vmem:[%s1642 + $0x68] sm:$0xff]
  %v6928 = vld [vmem:[%s1642 + $0x70] sm:$0xff]
  %v6929 = vld [vmem:[%s1642 + $0x78] sm:$0xff]
  %6930 = vmatprep.subr.mxu0 0.0
  %6931 = vmatpush1.msra.mxu0 %v6914
  %6932 = vmatprep.subr.mxu0 0.0
  %6933 = vmatpush1.msra.mxu0 %v6915
  %6934 = vmatprep.subr.mxu0 0.0
  %6935 = vmatpush1.msra.mxu0 %v6916
  %6936 = vmatprep.subr.mxu0 0.0
  %6937 = vmatpush1.msra.mxu0 %v6917
  %6938 = vmatprep.subr.mxu0 0.0
  %6939 = vmatpush1.msra.mxu0 %v6918
  %6940 = vmatprep.subr.mxu0 0.0
  %6941 = vmatpush1.msra.mxu0 %v6919
  %6942 = vmatprep.subr.mxu0 0.0
  %6943 = vmatpush1.msra.mxu0 %v6920
  %6944 = vmatprep.subr.mxu0 0.0
  %6945 = vmatpush1.msra.mxu0 %v6921
  %6946 = vmatprep.subr.mxu0 0.0
  %6947 = vmatpush1.msra.mxu0 %v6922
  %6948 = vmatprep.subr.mxu0 0.0
  %6949 = vmatpush1.msra.mxu0 %v6923
  %6950 = vmatprep.subr.mxu0 0.0
  %6951 = vmatpush1.msra.mxu0 %v6924
  %6952 = vmatprep.subr.mxu0 0.0
  %6953 = vmatpush1.msra.mxu0 %v6925
  %6954 = vmatprep.subr.mxu0 0.0
  %6955 = vmatpush1.msra.mxu0 %v6926
  %6956 = vmatprep.subr.mxu0 0.0
  %6957 = vmatpush1.msra.mxu0 %v6927
  %6958 = vmatprep.subr.mxu0 0.0
  %6959 = vmatpush1.msra.mxu0 %v6928
  %6960 = vmatprep.subr.mxu0 0.0
  %6961 = vmatpush1.msra.mxu0 %v6929
  %6962 = vmatprep.subr.mxu0 0.0
  %6963 = vmatpush1.msra.mxu0 0.0
  %6964 = vmatprep.subr.mxu0 0.0
  %6965 = vmatpush1.msra.mxu0 0.0
  %6966 = vmatprep.subr.mxu0 0.0
  %6967 = vmatpush1.msra.mxu0 0.0
  %6968 = vmatprep.subr.mxu0 0.0
  %6969 = vmatpush1.msra.mxu0 0.0
  %6970 = vmatprep.subr.mxu0 0.0
  %6971 = vmatpush1.msra.mxu0 0.0
  %6972 = vmatprep.subr.mxu0 0.0
  %6973 = vmatpush1.msra.mxu0 0.0
  %6974 = vmatprep.subr.mxu0 0.0
  %6975 = vmatpush1.msra.mxu0 0.0
  %6976 = vmatprep.subr.mxu0 0.0
  %6977 = vmatpush1.msra.mxu0 0.0
  %6978 = vmatprep.subr.mxu0 0.0
  %6979 = vmatpush1.msra.mxu0 0.0
  %6980 = vmatprep.subr.mxu0 0.0
  %6981 = vmatpush1.msra.mxu0 0.0
  %6982 = vmatprep.subr.mxu0 0.0
  %6983 = vmatpush1.msra.mxu0 0.0
  %6984 = vmatprep.subr.mxu0 0.0
  %6985 = vmatpush1.msra.mxu0 0.0
  %6986 = vmatprep.subr.mxu0 0.0
  %6987 = vmatpush1.msra.mxu0 0.0
  %6988 = vmatprep.subr.mxu0 0.0
  %6989 = vmatpush1.msra.mxu0 0.0
  %6990 = vmatprep.subr.mxu0 0.0
  %6991 = vmatpush1.msra.mxu0 0.0
  %6992 = vmatprep.subr.mxu0 0.0
  %6993 = vmatpush1.msra.mxu0 0.0
  %6994 = vmatprep.mubr.f32.mxu0 0.0
  %6995 = vmatmul.mubr.f32.gmra.mrb[0].mxu0 %v6898
  %v6996 = vpop.f32.mrb[0].mxu0
  %v6997 = vadd.f32 0.0, %v6996
  %v6998 = vpop.f32.mrb[0].mxu0
  %6999 = vmatprep.mubr.f32.mxu0 0.0
  %7000 = vmatmul.mubr.f32.gmra.mrb[0].mxu0 %v6899
  %v7001 = vpop.f32.mrb[0].mxu0
  %v7002 = vadd.f32 0.0, %v7001
  %v7003 = vpop.f32.mrb[0].mxu0
  %7004 = vmatprep.mubr.f32.mxu0 0.0
  %7005 = vmatmul.mubr.f32.gmra.mrb[0].mxu0 %v6900
  %v7006 = vpop.f32.mrb[0].mxu0
  %v7007 = vadd.f32 0.0, %v7006
  %v7008 = vpop.f32.mrb[0].mxu0
  %7009 = vmatprep.mubr.f32.mxu0 0.0
  %7010 = vmatmul.mubr.f32.gmra.mrb[0].mxu0 %v6901
  %v7011 = vpop.f32.mrb[0].mxu0
  %v7012 = vadd.f32 0.0, %v7011
  %v7013 = vpop.f32.mrb[0].mxu0
  %7014 = vmatprep.mubr.f32.mxu0 0.0
  %7015 = vmatmul.mubr.f32.gmra.mrb[0].mxu0 %v6902
  %v7016 = vpop.f32.mrb[0].mxu0
  %v7017 = vadd.f32 0.0, %v7016
  %v7018 = vpop.f32.mrb[0].mxu0
  %7019 = vmatprep.mubr.f32.mxu0 0.0
  %7020 = vmatmul.mubr.f32.gmra.mrb[0].mxu0 %v6903
  %v7021 = vpop.f32.mrb[0].mxu0
  %v7022 = vadd.f32 0.0, %v7021
  %v7023 = vpop.f32.mrb[0].mxu0
  %7024 = vmatprep.mubr.f32.mxu0 0.0
  %7025 = vmatmul.mubr.f32.gmra.mrb[0].mxu0 %v6904
  %v7026 = vpop.f32.mrb[0].mxu0
  %v7027 = vadd.f32 0.0, %v7026
  %v7028 = vpop.f32.mrb[0].mxu0
  %7029 = vmatprep.mubr.f32.mxu0 0.0
  %7030 = vmatmul.mubr.f32.gmra.mrb[0].mxu0 %v6905
  %v7031 = vpop.f32.mrb[0].mxu0
  %v7032 = vadd.f32 0.0, %v7031
  %v7033 = vpop.f32.mrb[0].mxu0
  %7034 = vmatprep.mubr.f32.mxu0 0.0
  %7035 = vmatmul.mubr.f32.gmra.mrb[0].mxu0 %v6906
  %v7036 = vpop.f32.mrb[0].mxu0
  %v7037 = vadd.f32 0.0, %v7036
  %v7038 = vpop.f32.mrb[0].mxu0
  %7039 = vmatprep.mubr.f32.mxu0 0.0
  %7040 = vmatmul.mubr.f32.gmra.mrb[0].mxu0 %v6907
  %v7041 = vpop.f32.mrb[0].mxu0
  %v7042 = vadd.f32 0.0, %v7041
  %v7043 = vpop.f32.mrb[0].mxu0
  %7044 = vmatprep.mubr.f32.mxu0 0.0
  %7045 = vmatmul.mubr.f32.gmra.mrb[0].mxu0 %v6908
  %v7046 = vpop.f32.mrb[0].mxu0
  %v7047 = vadd.f32 0.0, %v7046
  %v7048 = vpop.f32.mrb[0].mxu0
  %7049 = vmatprep.mubr.f32.mxu0 0.0
  %7050 = vmatmul.mubr.f32.gmra.mrb[0].mxu0 %v6909
  %v7051 = vpop.f32.mrb[0].mxu0
  %v7052 = vadd.f32 0.0, %v7051
  %v7053 = vpop.f32.mrb[0].mxu0
  %7054 = vmatprep.mubr.f32.mxu0 0.0
  %7055 = vmatmul.mubr.f32.gmra.mrb[0].mxu0 %v6910
  %v7056 = vpop.f32.mrb[0].mxu0
  %v7057 = vadd.f32 0.0, %v7056
  %v7058 = vpop.f32.mrb[0].mxu0
  %7059 = vmatprep.mubr.f32.mxu0 0.0
  %7060 = vmatmul.mubr.f32.gmra.mrb[0].mxu0 %v6911
  %v7061 = vpop.f32.mrb[0].mxu0
  %v7062 = vadd.f32 0.0, %v7061
  %v7063 = vpop.f32.mrb[0].mxu0
  %7064 = vmatprep.mubr.f32.mxu0 0.0
  %7065 = vmatmul.mubr.f32.gmra.mrb[0].mxu0 %v6912
  %v7066 = vpop.f32.mrb[0].mxu0
  %v7067 = vadd.f32 0.0, %v7066
  %v7068 = vpop.f32.mrb[0].mxu0
  %7069 = vmatprep.mubr.f32.mxu0 0.0
  %7070 = vmatmul.mubr.f32.gmra.mrb[0].mxu0 %v6913
  %v7071 = vpop.f32.mrb[0].mxu0
  %v7072 = vadd.f32 0.0, %v7071
  %v7073 = vpop.f32.mrb[0].mxu0
  %7074 = vdwg.mxu0
  %v7075 = vadd.f32 %v6882, %v6997
  %v7076 = vadd.f32 %v6883, %v7002
  %v7077 = vadd.f32 %v6884, %v7007
  %v7078 = vadd.f32 %v6885, %v7012
  %v7079 = vadd.f32 %v6886, %v7017
  %v7080 = vadd.f32 %v6887, %v7022
  %v7081 = vadd.f32 %v6888, %v7027
  %v7082 = vadd.f32 %v6889, %v7032
  %v7083 = vadd.f32 %v6890, %v7037
  %v7084 = vadd.f32 %v6891, %v7042
  %v7085 = vadd.f32 %v6892, %v7047
  %v7086 = vadd.f32 %v6893, %v7052
  %v7087 = vadd.f32 %v6894, %v7057
  %v7088 = vadd.f32 %v6895, %v7062
  %v7089 = vadd.f32 %v6896, %v7067
  %v7090 = vadd.f32 %v6897, %v7072
  %v7091 = vld [vmem:[%s1060 + $0x1] sm:$0xff]
  %v7092 = vld [vmem:[%s1060 + $0x9] sm:$0xff]
  %v7093 = vld [vmem:[%s1060 + $0x19] sm:$0xff]
  %v7094 = vld [vmem:[%s1060 + $0x21] sm:$0xff]
  %v7095 = vld [vmem:[%s1060 + $0x31] sm:$0xff]
  %v7096 = vld [vmem:[%s1060 + $0x39] sm:$0xff]
  %v7097 = vld [vmem:[%s1060 + $0x49] sm:$0xff]
  %v7098 = vld [vmem:[%s1060 + $0x51] sm:$0xff]
  %v7099 = vld [vmem:[%s1060 + $0x61] sm:$0xff]
  %v7100 = vld [vmem:[%s1060 + $0x69] sm:$0xff]
  %v7101 = vld [vmem:[%s1060 + $0x79] sm:$0xff]
  %v7102 = vld [vmem:[%s1060 + $0x81] sm:$0xff]
  %v7103 = vld [vmem:[%s1060 + $0x91] sm:$0xff]
  %v7104 = vld [vmem:[%s1060 + $0x99] sm:$0xff]
  %v7105 = vld [vmem:[%s1060 + $0xa9] sm:$0xff]
  %v7106 = vld [vmem:[%s1060 + $0xb1] sm:$0xff]
  %v7107 = vld [vmem:[%s1836] sm:$0xff]
  %v7108 = vld [vmem:[%s1836 + $0x8] sm:$0xff]
  %v7109 = vld [vmem:[%s1836 + $0x10] sm:$0xff]
  %v7110 = vld [vmem:[%s1836 + $0x18] sm:$0xff]
  %v7111 = vld [vmem:[%s1836 + $0x20] sm:$0xff]
  %v7112 = vld [vmem:[%s1836 + $0x28] sm:$0xff]
  %v7113 = vld [vmem:[%s1836 + $0x30] sm:$0xff]
  %v7114 = vld [vmem:[%s1836 + $0x38] sm:$0xff]
  %v7115 = vld [vmem:[%s1836 + $0x40] sm:$0xff]
  %v7116 = vld [vmem:[%s1836 + $0x48] sm:$0xff]
  %v7117 = vld [vmem:[%s1836 + $0x50] sm:$0xff]
  %v7118 = vld [vmem:[%s1836 + $0x58] sm:$0xff]
  %v7119 = vld [vmem:[%s1836 + $0x60] sm:$0xff]
  %v7120 = vld [vmem:[%s1836 + $0x68] sm:$0xff]
  %v7121 = vld [vmem:[%s1836 + $0x70] sm:$0xff]
  %v7122 = vld [vmem:[%s1836 + $0x78] sm:$0xff]
  %7123 = vmatprep.subr.mxu0 0.0
  %7124 = vmatpush1.msra.mxu0 %v7107
  %7125 = vmatprep.subr.mxu0 0.0
  %7126 = vmatpush1.msra.mxu0 %v7108
  %7127 = vmatprep.subr.mxu0 0.0
  %7128 = vmatpush1.msra.mxu0 %v7109
  %7129 = vmatprep.subr.mxu0 0.0
  %7130 = vmatpush1.msra.mxu0 %v7110
  %7131 = vmatprep.subr.mxu0 0.0
  %7132 = vmatpush1.msra.mxu0 %v7111
  %7133 = vmatprep.subr.mxu0 0.0
  %7134 = vmatpush1.msra.mxu0 %v7112
  %7135 = vmatprep.subr.mxu0 0.0
  %7136 = vmatpush1.msra.mxu0 %v7113
  %7137 = vmatprep.subr.mxu0 0.0
  %7138 = vmatpush1.msra.mxu0 %v7114
  %7139 = vmatprep.subr.mxu0 0.0
  %7140 = vmatpush1.msra.mxu0 %v7115
  %7141 = vmatprep.subr.mxu0 0.0
  %7142 = vmatpush1.msra.mxu0 %v7116
  %7143 = vmatprep.subr.mxu0 0.0
  %7144 = vmatpush1.msra.mxu0 %v7117
  %7145 = vmatprep.subr.mxu0 0.0
  %7146 = vmatpush1.msra.mxu0 %v7118
  %7147 = vmatprep.subr.mxu0 0.0
  %7148 = vmatpush1.msra.mxu0 %v7119
  %7149 = vmatprep.subr.mxu0 0.0
  %7150 = vmatpush1.msra.mxu0 %v7120
  %7151 = vmatprep.subr.mxu0 0.0
  %7152 = vmatpush1.msra.mxu0 %v7121
  %7153 = vmatprep.subr.mxu0 0.0
  %7154 = vmatpush1.msra.mxu0 %v7122
  %7155 = vmatprep.subr.mxu0 0.0
  %7156 = vmatpush1.msra.mxu0 0.0
  %7157 = vmatprep.subr.mxu0 0.0
  %7158 = vmatpush1.msra.mxu0 0.0
  %7159 = vmatprep.subr.mxu0 0.0
  %7160 = vmatpush1.msra.mxu0 0.0
  %7161 = vmatprep.subr.mxu0 0.0
  %7162 = vmatpush1.msra.mxu0 0.0
  %7163 = vmatprep.subr.mxu0 0.0
  %7164 = vmatpush1.msra.mxu0 0.0
  %7165 = vmatprep.subr.mxu0 0.0
  %7166 = vmatpush1.msra.mxu0 0.0
  %7167 = vmatprep.subr.mxu0 0.0
  %7168 = vmatpush1.msra.mxu0 0.0
  %7169 = vmatprep.subr.mxu0 0.0
  %7170 = vmatpush1.msra.mxu0 0.0
  %7171 = vmatprep.subr.mxu0 0.0
  %7172 = vmatpush1.msra.mxu0 0.0
  %7173 = vmatprep.subr.mxu0 0.0
  %7174 = vmatpush1.msra.mxu0 0.0
  %7175 = vmatprep.subr.mxu0 0.0
  %7176 = vmatpush1.msra.mxu0 0.0
  %7177 = vmatprep.subr.mxu0 0.0
  %7178 = vmatpush1.msra.mxu0 0.0
  %7179 = vmatprep.subr.mxu0 0.0
  %7180 = vmatpush1.msra.mxu0 0.0
  %7181 = vmatprep.subr.mxu0 0.0
  %7182 = vmatpush1.msra.mxu0 0.0
  %7183 = vmatprep.subr.mxu0 0.0
  %7184 = vmatpush1.msra.mxu0 0.0
  %7185 = vmatprep.subr.mxu0 0.0
  %7186 = vmatpush1.msra.mxu0 0.0
  %7187 = vmatprep.mubr.f32.mxu0 0.0
  %7188 = vmatmul.mubr.f32.gmra.mrb[0].mxu0 %v7091
  %v7189 = vpop.f32.mrb[0].mxu0
  %v7190 = vadd.f32 0.0, %v7189
  %v7191 = vpop.f32.mrb[0].mxu0
  %7192 = vmatprep.mubr.f32.mxu0 0.0
  %7193 = vmatmul.mubr.f32.gmra.mrb[0].mxu0 %v7092
  %v7194 = vpop.f32.mrb[0].mxu0
  %v7195 = vadd.f32 0.0, %v7194
  %v7196 = vpop.f32.mrb[0].mxu0
  %7197 = vmatprep.mubr.f32.mxu0 0.0
  %7198 = vmatmul.mubr.f32.gmra.mrb[0].mxu0 %v7093
  %v7199 = vpop.f32.mrb[0].mxu0
  %v7200 = vadd.f32 0.0, %v7199
  %v7201 = vpop.f32.mrb[0].mxu0
  %7202 = vmatprep.mubr.f32.mxu0 0.0
  %7203 = vmatmul.mubr.f32.gmra.mrb[0].mxu0 %v7094
  %v7204 = vpop.f32.mrb[0].mxu0
  %v7205 = vadd.f32 0.0, %v7204
  %v7206 = vpop.f32.mrb[0].mxu0
  %7207 = vmatprep.mubr.f32.mxu0 0.0
  %7208 = vmatmul.mubr.f32.gmra.mrb[0].mxu0 %v7095
  %v7209 = vpop.f32.mrb[0].mxu0
  %v7210 = vadd.f32 0.0, %v7209
  %v7211 = vpop.f32.mrb[0].mxu0
  %7212 = vmatprep.mubr.f32.mxu0 0.0
  %7213 = vmatmul.mubr.f32.gmra.mrb[0].mxu0 %v7096
  %v7214 = vpop.f32.mrb[0].mxu0
  %v7215 = vadd.f32 0.0, %v7214
  %v7216 = vpop.f32.mrb[0].mxu0
  %7217 = vmatprep.mubr.f32.mxu0 0.0
  %7218 = vmatmul.mubr.f32.gmra.mrb[0].mxu0 %v7097
  %v7219 = vpop.f32.mrb[0].mxu0
  %v7220 = vadd.f32 0.0, %v7219
  %v7221 = vpop.f32.mrb[0].mxu0
  %7222 = vmatprep.mubr.f32.mxu0 0.0
  %7223 = vmatmul.mubr.f32.gmra.mrb[0].mxu0 %v7098
  %v7224 = vpop.f32.mrb[0].mxu0
  %v7225 = vadd.f32 0.0, %v7224
  %v7226 = vpop.f32.mrb[0].mxu0
  %7227 = vmatprep.mubr.f32.mxu0 0.0
  %7228 = vmatmul.mubr.f32.gmra.mrb[0].mxu0 %v7099
  %v7229 = vpop.f32.mrb[0].mxu0
  %v7230 = vadd.f32 0.0, %v7229
  %v7231 = vpop.f32.mrb[0].mxu0
  %7232 = vmatprep.mubr.f32.mxu0 0.0
  %7233 = vmatmul.mubr.f32.gmra.mrb[0].mxu0 %v7100
  %v7234 = vpop.f32.mrb[0].mxu0
  %v7235 = vadd.f32 0.0, %v7234
  %v7236 = vpop.f32.mrb[0].mxu0
  %7237 = vmatprep.mubr.f32.mxu0 0.0
  %7238 = vmatmul.mubr.f32.gmra.mrb[0].mxu0 %v7101
  %v7239 = vpop.f32.mrb[0].mxu0
  %v7240 = vadd.f32 0.0, %v7239
  %v7241 = vpop.f32.mrb[0].mxu0
  %7242 = vmatprep.mubr.f32.mxu0 0.0
  %7243 = vmatmul.mubr.f32.gmra.mrb[0].mxu0 %v7102
  %v7244 = vpop.f32.mrb[0].mxu0
  %v7245 = vadd.f32 0.0, %v7244
  %v7246 = vpop.f32.mrb[0].mxu0
  %7247 = vmatprep.mubr.f32.mxu0 0.0
  %7248 = vmatmul.mubr.f32.gmra.mrb[0].mxu0 %v7103
  %v7249 = vpop.f32.mrb[0].mxu0
  %v7250 = vadd.f32 0.0, %v7249
  %v7251 = vpop.f32.mrb[0].mxu0
  %7252 = vmatprep.mubr.f32.mxu0 0.0
  %7253 = vmatmul.mubr.f32.gmra.mrb[0].mxu0 %v7104
  %v7254 = vpop.f32.mrb[0].mxu0
  %v7255 = vadd.f32 0.0, %v7254
  %v7256 = vpop.f32.mrb[0].mxu0
  %7257 = vmatprep.mubr.f32.mxu0 0.0
  %7258 = vmatmul.mubr.f32.gmra.mrb[0].mxu0 %v7105
  %v7259 = vpop.f32.mrb[0].mxu0
  %v7260 = vadd.f32 0.0, %v7259
  %v7261 = vpop.f32.mrb[0].mxu0
  %7262 = vmatprep.mubr.f32.mxu0 0.0
  %7263 = vmatmul.mubr.f32.gmra.mrb[0].mxu0 %v7106
  %v7264 = vpop.f32.mrb[0].mxu0
  %v7265 = vadd.f32 0.0, %v7264
  %v7266 = vpop.f32.mrb[0].mxu0
  %7267 = vdwg.mxu0
  %v7268 = vadd.f32 %v7075, %v7190
  %v7269 = vadd.f32 %v7076, %v7195
  %v7270 = vadd.f32 %v7077, %v7200
  %v7271 = vadd.f32 %v7078, %v7205
  %v7272 = vadd.f32 %v7079, %v7210
  %v7273 = vadd.f32 %v7080, %v7215
  %v7274 = vadd.f32 %v7081, %v7220
  %v7275 = vadd.f32 %v7082, %v7225
  %v7276 = vadd.f32 %v7083, %v7230
  %v7277 = vadd.f32 %v7084, %v7235
  %v7278 = vadd.f32 %v7085, %v7240
  %v7279 = vadd.f32 %v7086, %v7245
  %v7280 = vadd.f32 %v7087, %v7250
  %v7281 = vadd.f32 %v7088, %v7255
  %v7282 = vadd.f32 %v7089, %v7260
  %v7283 = vadd.f32 %v7090, %v7265
  %v7284 = vld [vmem:[%s1060 + $0x2] sm:$0xff]
  %v7285 = vld [vmem:[%s1060 + $0xa] sm:$0xff]
  %v7286 = vld [vmem:[%s1060 + $0x1a] sm:$0xff]
  %v7287 = vld [vmem:[%s1060 + $0x22] sm:$0xff]
  %v7288 = vld [vmem:[%s1060 + $0x32] sm:$0xff]
  %v7289 = vld [vmem:[%s1060 + $0x3a] sm:$0xff]
  %v7290 = vld [vmem:[%s1060 + $0x4a] sm:$0xff]
  %v7291 = vld [vmem:[%s1060 + $0x52] sm:$0xff]
  %v7292 = vld [vmem:[%s1060 + $0x62] sm:$0xff]
  %v7293 = vld [vmem:[%s1060 + $0x6a] sm:$0xff]
  %v7294 = vld [vmem:[%s1060 + $0x7a] sm:$0xff]
  %v7295 = vld [vmem:[%s1060 + $0x82] sm:$0xff]
  %v7296 = vld [vmem:[%s1060 + $0x92] sm:$0xff]
  %v7297 = vld [vmem:[%s1060 + $0x9a] sm:$0xff]
  %v7298 = vld [vmem:[%s1060 + $0xaa] sm:$0xff]
  %v7299 = vld [vmem:[%s1060 + $0xb2] sm:$0xff]
  %v7300 = vld [vmem:[%s2030] sm:$0xff]
  %v7301 = vld [vmem:[%s2030 + $0x8] sm:$0xff]
  %v7302 = vld [vmem:[%s2030 + $0x10] sm:$0xff]
  %v7303 = vld [vmem:[%s2030 + $0x18] sm:$0xff]
  %v7304 = vld [vmem:[%s2030 + $0x20] sm:$0xff]
  %v7305 = vld [vmem:[%s2030 + $0x28] sm:$0xff]
  %v7306 = vld [vmem:[%s2030 + $0x30] sm:$0xff]
  %v7307 = vld [vmem:[%s2030 + $0x38] sm:$0xff]
  %v7308 = vld [vmem:[%s2030 + $0x40] sm:$0xff]
  %v7309 = vld [vmem:[%s2030 + $0x48] sm:$0xff]
  %v7310 = vld [vmem:[%s2030 + $0x50] sm:$0xff]
  %v7311 = vld [vmem:[%s2030 + $0x58] sm:$0xff]
  %v7312 = vld [vmem:[%s2030 + $0x60] sm:$0xff]
  %v7313 = vld [vmem:[%s2030 + $0x68] sm:$0xff]
  %v7314 = vld [vmem:[%s2030 + $0x70] sm:$0xff]
  %v7315 = vld [vmem:[%s2030 + $0x78] sm:$0xff]
  %7316 = vmatprep.subr.mxu0 0.0
  %7317 = vmatpush1.msra.mxu0 %v7300
  %7318 = vmatprep.subr.mxu0 0.0
  %7319 = vmatpush1.msra.mxu0 %v7301
  %7320 = vmatprep.subr.mxu0 0.0
  %7321 = vmatpush1.msra.mxu0 %v7302
  %7322 = vmatprep.subr.mxu0 0.0
  %7323 = vmatpush1.msra.mxu0 %v7303
  %7324 = vmatprep.subr.mxu0 0.0
  %7325 = vmatpush1.msra.mxu0 %v7304
  %7326 = vmatprep.subr.mxu0 0.0
  %7327 = vmatpush1.msra.mxu0 %v7305
  %7328 = vmatprep.subr.mxu0 0.0
  %7329 = vmatpush1.msra.mxu0 %v7306
  %7330 = vmatprep.subr.mxu0 0.0
  %7331 = vmatpush1.msra.mxu0 %v7307
  %7332 = vmatprep.subr.mxu0 0.0
  %7333 = vmatpush1.msra.mxu0 %v7308
  %7334 = vmatprep.subr.mxu0 0.0
  %7335 = vmatpush1.msra.mxu0 %v7309
  %7336 = vmatprep.subr.mxu0 0.0
  %7337 = vmatpush1.msra.mxu0 %v7310
  %7338 = vmatprep.subr.mxu0 0.0
  %7339 = vmatpush1.msra.mxu0 %v7311
  %7340 = vmatprep.subr.mxu0 0.0
  %7341 = vmatpush1.msra.mxu0 %v7312
  %7342 = vmatprep.subr.mxu0 0.0
  %7343 = vmatpush1.msra.mxu0 %v7313
  %7344 = vmatprep.subr.mxu0 0.0
  %7345 = vmatpush1.msra.mxu0 %v7314
  %7346 = vmatprep.subr.mxu0 0.0
  %7347 = vmatpush1.msra.mxu0 %v7315
  %7348 = vmatprep.subr.mxu0 0.0
  %7349 = vmatpush1.msra.mxu0 0.0
  %7350 = vmatprep.subr.mxu0 0.0
  %7351 = vmatpush1.msra.mxu0 0.0
  %7352 = vmatprep.subr.mxu0 0.0
  %7353 = vmatpush1.msra.mxu0 0.0
  %7354 = vmatprep.subr.mxu0 0.0
  %7355 = vmatpush1.msra.mxu0 0.0
  %7356 = vmatprep.subr.mxu0 0.0
  %7357 = vmatpush1.msra.mxu0 0.0
  %7358 = vmatprep.subr.mxu0 0.0
  %7359 = vmatpush1.msra.mxu0 0.0
  %7360 = vmatprep.subr.mxu0 0.0
  %7361 = vmatpush1.msra.mxu0 0.0
  %7362 = vmatprep.subr.mxu0 0.0
  %7363 = vmatpush1.msra.mxu0 0.0
  %7364 = vmatprep.subr.mxu0 0.0
  %7365 = vmatpush1.msra.mxu0 0.0
  %7366 = vmatprep.subr.mxu0 0.0
  %7367 = vmatpush1.msra.mxu0 0.0
  %7368 = vmatprep.subr.mxu0 0.0
  %7369 = vmatpush1.msra.mxu0 0.0
  %7370 = vmatprep.subr.mxu0 0.0
  %7371 = vmatpush1.msra.mxu0 0.0
  %7372 = vmatprep.subr.mxu0 0.0
  %7373 = vmatpush1.msra.mxu0 0.0
  %7374 = vmatprep.subr.mxu0 0.0
  %7375 = vmatpush1.msra.mxu0 0.0
  %7376 = vmatprep.subr.mxu0 0.0
  %7377 = vmatpush1.msra.mxu0 0.0
  %7378 = vmatprep.subr.mxu0 0.0
  %7379 = vmatpush1.msra.mxu0 0.0
  %7380 = vmatprep.mubr.f32.mxu0 0.0
  %7381 = vmatmul.mubr.f32.gmra.mrb[0].mxu0 %v7284
  %v7382 = vpop.f32.mrb[0].mxu0
  %v7383 = vadd.f32 0.0, %v7382
  %v7384 = vpop.f32.mrb[0].mxu0
  %7385 = vmatprep.mubr.f32.mxu0 0.0
  %7386 = vmatmul.mubr.f32.gmra.mrb[0].mxu0 %v7285
  %v7387 = vpop.f32.mrb[0].mxu0
  %v7388 = vadd.f32 0.0, %v7387
  %v7389 = vpop.f32.mrb[0].mxu0
  %7390 = vmatprep.mubr.f32.mxu0 0.0
  %7391 = vmatmul.mubr.f32.gmra.mrb[0].mxu0 %v7286
  %v7392 = vpop.f32.mrb[0].mxu0
  %v7393 = vadd.f32 0.0, %v7392
  %v7394 = vpop.f32.mrb[0].mxu0
  %7395 = vmatprep.mubr.f32.mxu0 0.0
  %7396 = vmatmul.mubr.f32.gmra.mrb[0].mxu0 %v7287
  %v7397 = vpop.f32.mrb[0].mxu0
  %v7398 = vadd.f32 0.0, %v7397
  %v7399 = vpop.f32.mrb[0].mxu0
  %7400 = vmatprep.mubr.f32.mxu0 0.0
  %7401 = vmatmul.mubr.f32.gmra.mrb[0].mxu0 %v7288
  %v7402 = vpop.f32.mrb[0].mxu0
  %v7403 = vadd.f32 0.0, %v7402
  %v7404 = vpop.f32.mrb[0].mxu0
  %7405 = vmatprep.mubr.f32.mxu0 0.0
  %7406 = vmatmul.mubr.f32.gmra.mrb[0].mxu0 %v7289
  %v7407 = vpop.f32.mrb[0].mxu0
  %v7408 = vadd.f32 0.0, %v7407
  %v7409 = vpop.f32.mrb[0].mxu0
  %7410 = vmatprep.mubr.f32.mxu0 0.0
  %7411 = vmatmul.mubr.f32.gmra.mrb[0].mxu0 %v7290
  %v7412 = vpop.f32.mrb[0].mxu0
  %v7413 = vadd.f32 0.0, %v7412
  %v7414 = vpop.f32.mrb[0].mxu0
  %7415 = vmatprep.mubr.f32.mxu0 0.0
  %7416 = vmatmul.mubr.f32.gmra.mrb[0].mxu0 %v7291
  %v7417 = vpop.f32.mrb[0].mxu0
  %v7418 = vadd.f32 0.0, %v7417
  %v7419 = vpop.f32.mrb[0].mxu0
  %7420 = vmatprep.mubr.f32.mxu0 0.0
  %7421 = vmatmul.mubr.f32.gmra.mrb[0].mxu0 %v7292
  %v7422 = vpop.f32.mrb[0].mxu0
  %v7423 = vadd.f32 0.0, %v7422
  %v7424 = vpop.f32.mrb[0].mxu0
  %7425 = vmatprep.mubr.f32.mxu0 0.0
  %7426 = vmatmul.mubr.f32.gmra.mrb[0].mxu0 %v7293
  %v7427 = vpop.f32.mrb[0].mxu0
  %v7428 = vadd.f32 0.0, %v7427
  %v7429 = vpop.f32.mrb[0].mxu0
  %7430 = vmatprep.mubr.f32.mxu0 0.0
  %7431 = vmatmul.mubr.f32.gmra.mrb[0].mxu0 %v7294
  %v7432 = vpop.f32.mrb[0].mxu0
  %v7433 = vadd.f32 0.0, %v7432
  %v7434 = vpop.f32.mrb[0].mxu0
  %7435 = vmatprep.mubr.f32.mxu0 0.0
  %7436 = vmatmul.mubr.f32.gmra.mrb[0].mxu0 %v7295
  %v7437 = vpop.f32.mrb[0].mxu0
  %v7438 = vadd.f32 0.0, %v7437
  %v7439 = vpop.f32.mrb[0].mxu0
  %7440 = vmatprep.mubr.f32.mxu0 0.0
  %7441 = vmatmul.mubr.f32.gmra.mrb[0].mxu0 %v7296
  %v7442 = vpop.f32.mrb[0].mxu0
  %v7443 = vadd.f32 0.0, %v7442
  %v7444 = vpop.f32.mrb[0].mxu0
  %7445 = vmatprep.mubr.f32.mxu0 0.0
  %7446 = vmatmul.mubr.f32.gmra.mrb[0].mxu0 %v7297
  %v7447 = vpop.f32.mrb[0].mxu0
  %v7448 = vadd.f32 0.0, %v7447
  %v7449 = vpop.f32.mrb[0].mxu0
  %7450 = vmatprep.mubr.f32.mxu0 0.0
  %7451 = vmatmul.mubr.f32.gmra.mrb[0].mxu0 %v7298
  %v7452 = vpop.f32.mrb[0].mxu0
  %v7453 = vadd.f32 0.0, %v7452
  %v7454 = vpop.f32.mrb[0].mxu0
  %7455 = vmatprep.mubr.f32.mxu0 0.0
  %7456 = vmatmul.mubr.f32.gmra.mrb[0].mxu0 %v7299
  %v7457 = vpop.f32.mrb[0].mxu0
  %v7458 = vadd.f32 0.0, %v7457
  %v7459 = vpop.f32.mrb[0].mxu0
  %7460 = vdwg.mxu0
  %v7461 = vadd.f32 %v7268, %v7383
  %v7462 = vadd.f32 %v7269, %v7388
  %v7463 = vadd.f32 %v7270, %v7393
  %v7464 = vadd.f32 %v7271, %v7398
  %v7465 = vadd.f32 %v7272, %v7403
  %v7466 = vadd.f32 %v7273, %v7408
  %v7467 = vadd.f32 %v7274, %v7413
  %v7468 = vadd.f32 %v7275, %v7418
  %v7469 = vadd.f32 %v7276, %v7423
  %v7470 = vadd.f32 %v7277, %v7428
  %v7471 = vadd.f32 %v7278, %v7433
  %v7472 = vadd.f32 %v7279, %v7438
  %v7473 = vadd.f32 %v7280, %v7443
  %v7474 = vadd.f32 %v7281, %v7448
  %v7475 = vadd.f32 %v7282, %v7453
  %v7476 = vadd.f32 %v7283, %v7458
  %s7477 = scalar_lea.vmem [#allocation2], 672
  %v7478 = vld [vmem:[%s7477] sm:$0xff]
  %v7479 = vld [vmem:[%s7477 + $0x8] sm:$0xff]
  %v7480 = vld [vmem:[%s7477 + $0x18] sm:$0xff]
  %v7481 = vld [vmem:[%s7477 + $0x20] sm:$0xff]
  %v7482 = vld [vmem:[%s7477 + $0x30] sm:$0xff]
  %v7483 = vld [vmem:[%s7477 + $0x38] sm:$0xff]
  %v7484 = vld [vmem:[%s7477 + $0x48] sm:$0xff]
  %v7485 = vld [vmem:[%s7477 + $0x50] sm:$0xff]
  %v7486 = vld [vmem:[%s7477 + $0x60] sm:$0xff]
  %v7487 = vld [vmem:[%s7477 + $0x68] sm:$0xff]
  %v7488 = vld [vmem:[%s7477 + $0x78] sm:$0xff]
  %v7489 = vld [vmem:[%s7477 + $0x80] sm:$0xff]
  %v7490 = vld [vmem:[%s7477 + $0x90] sm:$0xff]
  %v7491 = vld [vmem:[%s7477 + $0x98] sm:$0xff]
  %v7492 = vld [vmem:[%s7477 + $0xa8] sm:$0xff]
  %v7493 = vld [vmem:[%s7477 + $0xb0] sm:$0xff]
  %v7494 = vld [vmem:[%s2225] sm:$0xff]
  %v7495 = vld [vmem:[%s2225 + $0x8] sm:$0xff]
  %v7496 = vld [vmem:[%s2225 + $0x10] sm:$0xff]
  %v7497 = vld [vmem:[%s2225 + $0x18] sm:$0xff]
  %v7498 = vld [vmem:[%s2225 + $0x20] sm:$0xff]
  %v7499 = vld [vmem:[%s2225 + $0x28] sm:$0xff]
  %v7500 = vld [vmem:[%s2225 + $0x30] sm:$0xff]
  %v7501 = vld [vmem:[%s2225 + $0x38] sm:$0xff]
  %v7502 = vld [vmem:[%s2225 + $0x40] sm:$0xff]
  %v7503 = vld [vmem:[%s2225 + $0x48] sm:$0xff]
  %v7504 = vld [vmem:[%s2225 + $0x50] sm:$0xff]
  %v7505 = vld [vmem:[%s2225 + $0x58] sm:$0xff]
  %v7506 = vld [vmem:[%s2225 + $0x60] sm:$0xff]
  %v7507 = vld [vmem:[%s2225 + $0x68] sm:$0xff]
  %v7508 = vld [vmem:[%s2225 + $0x70] sm:$0xff]
  %v7509 = vld [vmem:[%s2225 + $0x78] sm:$0xff]
  %7510 = vmatprep.subr.mxu0 0.0
  %7511 = vmatpush1.msra.mxu0 %v7494
  %7512 = vmatprep.subr.mxu0 0.0
  %7513 = vmatpush1.msra.mxu0 %v7495
  %7514 = vmatprep.subr.mxu0 0.0
  %7515 = vmatpush1.msra.mxu0 %v7496
  %7516 = vmatprep.subr.mxu0 0.0
  %7517 = vmatpush1.msra.mxu0 %v7497
  %7518 = vmatprep.subr.mxu0 0.0
  %7519 = vmatpush1.msra.mxu0 %v7498
  %7520 = vmatprep.subr.mxu0 0.0
  %7521 = vmatpush1.msra.mxu0 %v7499
  %7522 = vmatprep.subr.mxu0 0.0
  %7523 = vmatpush1.msra.mxu0 %v7500
  %7524 = vmatprep.subr.mxu0 0.0
  %7525 = vmatpush1.msra.mxu0 %v7501
  %7526 = vmatprep.subr.mxu0 0.0
  %7527 = vmatpush1.msra.mxu0 %v7502
  %7528 = vmatprep.subr.mxu0 0.0
  %7529 = vmatpush1.msra.mxu0 %v7503
  %7530 = vmatprep.subr.mxu0 0.0
  %7531 = vmatpush1.msra.mxu0 %v7504
  %7532 = vmatprep.subr.mxu0 0.0
  %7533 = vmatpush1.msra.mxu0 %v7505
  %7534 = vmatprep.subr.mxu0 0.0
  %7535 = vmatpush1.msra.mxu0 %v7506
  %7536 = vmatprep.subr.mxu0 0.0
  %7537 = vmatpush1.msra.mxu0 %v7507
  %7538 = vmatprep.subr.mxu0 0.0
  %7539 = vmatpush1.msra.mxu0 %v7508
  %7540 = vmatprep.subr.mxu0 0.0
  %7541 = vmatpush1.msra.mxu0 %v7509
  %7542 = vmatprep.subr.mxu0 0.0
  %7543 = vmatpush1.msra.mxu0 0.0
  %7544 = vmatprep.subr.mxu0 0.0
  %7545 = vmatpush1.msra.mxu0 0.0
  %7546 = vmatprep.subr.mxu0 0.0
  %7547 = vmatpush1.msra.mxu0 0.0
  %7548 = vmatprep.subr.mxu0 0.0
  %7549 = vmatpush1.msra.mxu0 0.0
  %7550 = vmatprep.subr.mxu0 0.0
  %7551 = vmatpush1.msra.mxu0 0.0
  %7552 = vmatprep.subr.mxu0 0.0
  %7553 = vmatpush1.msra.mxu0 0.0
  %7554 = vmatprep.subr.mxu0 0.0
  %7555 = vmatpush1.msra.mxu0 0.0
  %7556 = vmatprep.subr.mxu0 0.0
  %7557 = vmatpush1.msra.mxu0 0.0
  %7558 = vmatprep.subr.mxu0 0.0
  %7559 = vmatpush1.msra.mxu0 0.0
  %7560 = vmatprep.subr.mxu0 0.0
  %7561 = vmatpush1.msra.mxu0 0.0
  %7562 = vmatprep.subr.mxu0 0.0
  %7563 = vmatpush1.msra.mxu0 0.0
  %7564 = vmatprep.subr.mxu0 0.0
  %7565 = vmatpush1.msra.mxu0 0.0
  %7566 = vmatprep.subr.mxu0 0.0
  %7567 = vmatpush1.msra.mxu0 0.0
  %7568 = vmatprep.subr.mxu0 0.0
  %7569 = vmatpush1.msra.mxu0 0.0
  %7570 = vmatprep.subr.mxu0 0.0
  %7571 = vmatpush1.msra.mxu0 0.0
  %7572 = vmatprep.subr.mxu0 0.0
  %7573 = vmatpush1.msra.mxu0 0.0
  %7574 = vmatprep.mubr.f32.mxu0 0.0
  %7575 = vmatmul.mubr.f32.gmra.mrb[0].mxu0 %v7478
  %v7576 = vpop.f32.mrb[0].mxu0
  %v7577 = vadd.f32 0.0, %v7576
  %v7578 = vpop.f32.mrb[0].mxu0
  %7579 = vmatprep.mubr.f32.mxu0 0.0
  %7580 = vmatmul.mubr.f32.gmra.mrb[0].mxu0 %v7479
  %v7581 = vpop.f32.mrb[0].mxu0
  %v7582 = vadd.f32 0.0, %v7581
  %v7583 = vpop.f32.mrb[0].mxu0
  %7584 = vmatprep.mubr.f32.mxu0 0.0
  %7585 = vmatmul.mubr.f32.gmra.mrb[0].mxu0 %v7480
  %v7586 = vpop.f32.mrb[0].mxu0
  %v7587 = vadd.f32 0.0, %v7586
  %v7588 = vpop.f32.mrb[0].mxu0
  %7589 = vmatprep.mubr.f32.mxu0 0.0
  %7590 = vmatmul.mubr.f32.gmra.mrb[0].mxu0 %v7481
  %v7591 = vpop.f32.mrb[0].mxu0
  %v7592 = vadd.f32 0.0, %v7591
  %v7593 = vpop.f32.mrb[0].mxu0
  %7594 = vmatprep.mubr.f32.mxu0 0.0
  %7595 = vmatmul.mubr.f32.gmra.mrb[0].mxu0 %v7482
  %v7596 = vpop.f32.mrb[0].mxu0
  %v7597 = vadd.f32 0.0, %v7596
  %v7598 = vpop.f32.mrb[0].mxu0
  %7599 = vmatprep.mubr.f32.mxu0 0.0
  %7600 = vmatmul.mubr.f32.gmra.mrb[0].mxu0 %v7483
  %v7601 = vpop.f32.mrb[0].mxu0
  %v7602 = vadd.f32 0.0, %v7601
  %v7603 = vpop.f32.mrb[0].mxu0
  %7604 = vmatprep.mubr.f32.mxu0 0.0
  %7605 = vmatmul.mubr.f32.gmra.mrb[0].mxu0 %v7484
  %v7606 = vpop.f32.mrb[0].mxu0
  %v7607 = vadd.f32 0.0, %v7606
  %v7608 = vpop.f32.mrb[0].mxu0
  %7609 = vmatprep.mubr.f32.mxu0 0.0
  %7610 = vmatmul.mubr.f32.gmra.mrb[0].mxu0 %v7485
  %v7611 = vpop.f32.mrb[0].mxu0
  %v7612 = vadd.f32 0.0, %v7611
  %v7613 = vpop.f32.mrb[0].mxu0
  %7614 = vmatprep.mubr.f32.mxu0 0.0
  %7615 = vmatmul.mubr.f32.gmra.mrb[0].mxu0 %v7486
  %v7616 = vpop.f32.mrb[0].mxu0
  %v7617 = vadd.f32 0.0, %v7616
  %v7618 = vpop.f32.mrb[0].mxu0
  %7619 = vmatprep.mubr.f32.mxu0 0.0
  %7620 = vmatmul.mubr.f32.gmra.mrb[0].mxu0 %v7487
  %v7621 = vpop.f32.mrb[0].mxu0
  %v7622 = vadd.f32 0.0, %v7621
  %v7623 = vpop.f32.mrb[0].mxu0
  %7624 = vmatprep.mubr.f32.mxu0 0.0
  %7625 = vmatmul.mubr.f32.gmra.mrb[0].mxu0 %v7488
  %v7626 = vpop.f32.mrb[0].mxu0
  %v7627 = vadd.f32 0.0, %v7626
  %v7628 = vpop.f32.mrb[0].mxu0
  %7629 = vmatprep.mubr.f32.mxu0 0.0
  %7630 = vmatmul.mubr.f32.gmra.mrb[0].mxu0 %v7489
  %v7631 = vpop.f32.mrb[0].mxu0
  %v7632 = vadd.f32 0.0, %v7631
  %v7633 = vpop.f32.mrb[0].mxu0
  %7634 = vmatprep.mubr.f32.mxu0 0.0
  %7635 = vmatmul.mubr.f32.gmra.mrb[0].mxu0 %v7490
  %v7636 = vpop.f32.mrb[0].mxu0
  %v7637 = vadd.f32 0.0, %v7636
  %v7638 = vpop.f32.mrb[0].mxu0
  %7639 = vmatprep.mubr.f32.mxu0 0.0
  %7640 = vmatmul.mubr.f32.gmra.mrb[0].mxu0 %v7491
  %v7641 = vpop.f32.mrb[0].mxu0
  %v7642 = vadd.f32 0.0, %v7641
  %v7643 = vpop.f32.mrb[0].mxu0
  %7644 = vmatprep.mubr.f32.mxu0 0.0
  %7645 = vmatmul.mubr.f32.gmra.mrb[0].mxu0 %v7492
  %v7646 = vpop.f32.mrb[0].mxu0
  %v7647 = vadd.f32 0.0, %v7646
  %v7648 = vpop.f32.mrb[0].mxu0
  %7649 = vmatprep.mubr.f32.mxu0 0.0
  %7650 = vmatmul.mubr.f32.gmra.mrb[0].mxu0 %v7493
  %v7651 = vpop.f32.mrb[0].mxu0
  %v7652 = vadd.f32 0.0, %v7651
  %v7653 = vpop.f32.mrb[0].mxu0
  %7654 = vdwg.mxu0
  %v7655 = vadd.f32 %v7461, %v7577
  %v7656 = vadd.f32 %v7462, %v7582
  %v7657 = vadd.f32 %v7463, %v7587
  %v7658 = vadd.f32 %v7464, %v7592
  %v7659 = vadd.f32 %v7465, %v7597
  %v7660 = vadd.f32 %v7466, %v7602
  %v7661 = vadd.f32 %v7467, %v7607
  %v7662 = vadd.f32 %v7468, %v7612
  %v7663 = vadd.f32 %v7469, %v7617
  %v7664 = vadd.f32 %v7470, %v7622
  %v7665 = vadd.f32 %v7471, %v7627
  %v7666 = vadd.f32 %v7472, %v7632
  %v7667 = vadd.f32 %v7473, %v7637
  %v7668 = vadd.f32 %v7474, %v7642
  %v7669 = vadd.f32 %v7475, %v7647
  %v7670 = vadd.f32 %v7476, %v7652
  %v7671 = vld [vmem:[%s7477 + $0x1] sm:$0xff]
  %v7672 = vld [vmem:[%s7477 + $0x9] sm:$0xff]
  %v7673 = vld [vmem:[%s7477 + $0x19] sm:$0xff]
  %v7674 = vld [vmem:[%s7477 + $0x21] sm:$0xff]
  %v7675 = vld [vmem:[%s7477 + $0x31] sm:$0xff]
  %v7676 = vld [vmem:[%s7477 + $0x39] sm:$0xff]
  %v7677 = vld [vmem:[%s7477 + $0x49] sm:$0xff]
  %v7678 = vld [vmem:[%s7477 + $0x51] sm:$0xff]
  %v7679 = vld [vmem:[%s7477 + $0x61] sm:$0xff]
  %v7680 = vld [vmem:[%s7477 + $0x69] sm:$0xff]
  %v7681 = vld [vmem:[%s7477 + $0x79] sm:$0xff]
  %v7682 = vld [vmem:[%s7477 + $0x81] sm:$0xff]
  %v7683 = vld [vmem:[%s7477 + $0x91] sm:$0xff]
  %v7684 = vld [vmem:[%s7477 + $0x99] sm:$0xff]
  %v7685 = vld [vmem:[%s7477 + $0xa9] sm:$0xff]
  %v7686 = vld [vmem:[%s7477 + $0xb1] sm:$0xff]
  %v7687 = vld [vmem:[%s2419] sm:$0xff]
  %v7688 = vld [vmem:[%s2419 + $0x8] sm:$0xff]
  %v7689 = vld [vmem:[%s2419 + $0x10] sm:$0xff]
  %v7690 = vld [vmem:[%s2419 + $0x18] sm:$0xff]
  %v7691 = vld [vmem:[%s2419 + $0x20] sm:$0xff]
  %v7692 = vld [vmem:[%s2419 + $0x28] sm:$0xff]
  %v7693 = vld [vmem:[%s2419 + $0x30] sm:$0xff]
  %v7694 = vld [vmem:[%s2419 + $0x38] sm:$0xff]
  %v7695 = vld [vmem:[%s2419 + $0x40] sm:$0xff]
  %v7696 = vld [vmem:[%s2419 + $0x48] sm:$0xff]
  %v7697 = vld [vmem:[%s2419 + $0x50] sm:$0xff]
  %v7698 = vld [vmem:[%s2419 + $0x58] sm:$0xff]
  %v7699 = vld [vmem:[%s2419 + $0x60] sm:$0xff]
  %v7700 = vld [vmem:[%s2419 + $0x68] sm:$0xff]
  %v7701 = vld [vmem:[%s2419 + $0x70] sm:$0xff]
  %v7702 = vld [vmem:[%s2419 + $0x78] sm:$0xff]
  %7703 = vmatprep.subr.mxu0 0.0
  %7704 = vmatpush1.msra.mxu0 %v7687
  %7705 = vmatprep.subr.mxu0 0.0
  %7706 = vmatpush1.msra.mxu0 %v7688
  %7707 = vmatprep.subr.mxu0 0.0
  %7708 = vmatpush1.msra.mxu0 %v7689
  %7709 = vmatprep.subr.mxu0 0.0
  %7710 = vmatpush1.msra.mxu0 %v7690
  %7711 = vmatprep.subr.mxu0 0.0
  %7712 = vmatpush1.msra.mxu0 %v7691
  %7713 = vmatprep.subr.mxu0 0.0
  %7714 = vmatpush1.msra.mxu0 %v7692
  %7715 = vmatprep.subr.mxu0 0.0
  %7716 = vmatpush1.msra.mxu0 %v7693
  %7717 = vmatprep.subr.mxu0 0.0
  %7718 = vmatpush1.msra.mxu0 %v7694
  %7719 = vmatprep.subr.mxu0 0.0
  %7720 = vmatpush1.msra.mxu0 %v7695
  %7721 = vmatprep.subr.mxu0 0.0
  %7722 = vmatpush1.msra.mxu0 %v7696
  %7723 = vmatprep.subr.mxu0 0.0
  %7724 = vmatpush1.msra.mxu0 %v7697
  %7725 = vmatprep.subr.mxu0 0.0
  %7726 = vmatpush1.msra.mxu0 %v7698
  %7727 = vmatprep.subr.mxu0 0.0
  %7728 = vmatpush1.msra.mxu0 %v7699
  %7729 = vmatprep.subr.mxu0 0.0
  %7730 = vmatpush1.msra.mxu0 %v7700
  %7731 = vmatprep.subr.mxu0 0.0
  %7732 = vmatpush1.msra.mxu0 %v7701
  %7733 = vmatprep.subr.mxu0 0.0
  %7734 = vmatpush1.msra.mxu0 %v7702
  %7735 = vmatprep.subr.mxu0 0.0
  %7736 = vmatpush1.msra.mxu0 0.0
  %7737 = vmatprep.subr.mxu0 0.0
  %7738 = vmatpush1.msra.mxu0 0.0
  %7739 = vmatprep.subr.mxu0 0.0
  %7740 = vmatpush1.msra.mxu0 0.0
  %7741 = vmatprep.subr.mxu0 0.0
  %7742 = vmatpush1.msra.mxu0 0.0
  %7743 = vmatprep.subr.mxu0 0.0
  %7744 = vmatpush1.msra.mxu0 0.0
  %7745 = vmatprep.subr.mxu0 0.0
  %7746 = vmatpush1.msra.mxu0 0.0
  %7747 = vmatprep.subr.mxu0 0.0
  %7748 = vmatpush1.msra.mxu0 0.0
  %7749 = vmatprep.subr.mxu0 0.0
  %7750 = vmatpush1.msra.mxu0 0.0
  %7751 = vmatprep.subr.mxu0 0.0
  %7752 = vmatpush1.msra.mxu0 0.0
  %7753 = vmatprep.subr.mxu0 0.0
  %7754 = vmatpush1.msra.mxu0 0.0
  %7755 = vmatprep.subr.mxu0 0.0
  %7756 = vmatpush1.msra.mxu0 0.0
  %7757 = vmatprep.subr.mxu0 0.0
  %7758 = vmatpush1.msra.mxu0 0.0
  %7759 = vmatprep.subr.mxu0 0.0
  %7760 = vmatpush1.msra.mxu0 0.0
  %7761 = vmatprep.subr.mxu0 0.0
  %7762 = vmatpush1.msra.mxu0 0.0
  %7763 = vmatprep.subr.mxu0 0.0
  %7764 = vmatpush1.msra.mxu0 0.0
  %7765 = vmatprep.subr.mxu0 0.0
  %7766 = vmatpush1.msra.mxu0 0.0
  %7767 = vmatprep.mubr.f32.mxu0 0.0
  %7768 = vmatmul.mubr.f32.gmra.mrb[0].mxu0 %v7671
  %v7769 = vpop.f32.mrb[0].mxu0
  %v7770 = vadd.f32 0.0, %v7769
  %v7771 = vpop.f32.mrb[0].mxu0
  %7772 = vmatprep.mubr.f32.mxu0 0.0
  %7773 = vmatmul.mubr.f32.gmra.mrb[0].mxu0 %v7672
  %v7774 = vpop.f32.mrb[0].mxu0
  %v7775 = vadd.f32 0.0, %v7774
  %v7776 = vpop.f32.mrb[0].mxu0
  %7777 = vmatprep.mubr.f32.mxu0 0.0
  %7778 = vmatmul.mubr.f32.gmra.mrb[0].mxu0 %v7673
  %v7779 = vpop.f32.mrb[0].mxu0
  %v7780 = vadd.f32 0.0, %v7779
  %v7781 = vpop.f32.mrb[0].mxu0
  %7782 = vmatprep.mubr.f32.mxu0 0.0
  %7783 = vmatmul.mubr.f32.gmra.mrb[0].mxu0 %v7674
  %v7784 = vpop.f32.mrb[0].mxu0
  %v7785 = vadd.f32 0.0, %v7784
  %v7786 = vpop.f32.mrb[0].mxu0
  %7787 = vmatprep.mubr.f32.mxu0 0.0
  %7788 = vmatmul.mubr.f32.gmra.mrb[0].mxu0 %v7675
  %v7789 = vpop.f32.mrb[0].mxu0
  %v7790 = vadd.f32 0.0, %v7789
  %v7791 = vpop.f32.mrb[0].mxu0
  %7792 = vmatprep.mubr.f32.mxu0 0.0
  %7793 = vmatmul.mubr.f32.gmra.mrb[0].mxu0 %v7676
  %v7794 = vpop.f32.mrb[0].mxu0
  %v7795 = vadd.f32 0.0, %v7794
  %v7796 = vpop.f32.mrb[0].mxu0
  %7797 = vmatprep.mubr.f32.mxu0 0.0
  %7798 = vmatmul.mubr.f32.gmra.mrb[0].mxu0 %v7677
  %v7799 = vpop.f32.mrb[0].mxu0
  %v7800 = vadd.f32 0.0, %v7799
  %v7801 = vpop.f32.mrb[0].mxu0
  %7802 = vmatprep.mubr.f32.mxu0 0.0
  %7803 = vmatmul.mubr.f32.gmra.mrb[0].mxu0 %v7678
  %v7804 = vpop.f32.mrb[0].mxu0
  %v7805 = vadd.f32 0.0, %v7804
  %v7806 = vpop.f32.mrb[0].mxu0
  %7807 = vmatprep.mubr.f32.mxu0 0.0
  %7808 = vmatmul.mubr.f32.gmra.mrb[0].mxu0 %v7679
  %v7809 = vpop.f32.mrb[0].mxu0
  %v7810 = vadd.f32 0.0, %v7809
  %v7811 = vpop.f32.mrb[0].mxu0
  %7812 = vmatprep.mubr.f32.mxu0 0.0
  %7813 = vmatmul.mubr.f32.gmra.mrb[0].mxu0 %v7680
  %v7814 = vpop.f32.mrb[0].mxu0
  %v7815 = vadd.f32 0.0, %v7814
  %v7816 = vpop.f32.mrb[0].mxu0
  %7817 = vmatprep.mubr.f32.mxu0 0.0
  %7818 = vmatmul.mubr.f32.gmra.mrb[0].mxu0 %v7681
  %v7819 = vpop.f32.mrb[0].mxu0
  %v7820 = vadd.f32 0.0, %v7819
  %v7821 = vpop.f32.mrb[0].mxu0
  %7822 = vmatprep.mubr.f32.mxu0 0.0
  %7823 = vmatmul.mubr.f32.gmra.mrb[0].mxu0 %v7682
  %v7824 = vpop.f32.mrb[0].mxu0
  %v7825 = vadd.f32 0.0, %v7824
  %v7826 = vpop.f32.mrb[0].mxu0
  %7827 = vmatprep.mubr.f32.mxu0 0.0
  %7828 = vmatmul.mubr.f32.gmra.mrb[0].mxu0 %v7683
  %v7829 = vpop.f32.mrb[0].mxu0
  %v7830 = vadd.f32 0.0, %v7829
  %v7831 = vpop.f32.mrb[0].mxu0
  %7832 = vmatprep.mubr.f32.mxu0 0.0
  %7833 = vmatmul.mubr.f32.gmra.mrb[0].mxu0 %v7684
  %v7834 = vpop.f32.mrb[0].mxu0
  %v7835 = vadd.f32 0.0, %v7834
  %v7836 = vpop.f32.mrb[0].mxu0
  %7837 = vmatprep.mubr.f32.mxu0 0.0
  %7838 = vmatmul.mubr.f32.gmra.mrb[0].mxu0 %v7685
  %v7839 = vpop.f32.mrb[0].mxu0
  %v7840 = vadd.f32 0.0, %v7839
  %v7841 = vpop.f32.mrb[0].mxu0
  %7842 = vmatprep.mubr.f32.mxu0 0.0
  %7843 = vmatmul.mubr.f32.gmra.mrb[0].mxu0 %v7686
  %v7844 = vpop.f32.mrb[0].mxu0
  %v7845 = vadd.f32 0.0, %v7844
  %v7846 = vpop.f32.mrb[0].mxu0
  %7847 = vdwg.mxu0
  %v7848 = vadd.f32 %v7655, %v7770
  %v7849 = vadd.f32 %v7656, %v7775
  %v7850 = vadd.f32 %v7657, %v7780
  %v7851 = vadd.f32 %v7658, %v7785
  %v7852 = vadd.f32 %v7659, %v7790
  %v7853 = vadd.f32 %v7660, %v7795
  %v7854 = vadd.f32 %v7661, %v7800
  %v7855 = vadd.f32 %v7662, %v7805
  %v7856 = vadd.f32 %v7663, %v7810
  %v7857 = vadd.f32 %v7664, %v7815
  %v7858 = vadd.f32 %v7665, %v7820
  %v7859 = vadd.f32 %v7666, %v7825
  %v7860 = vadd.f32 %v7667, %v7830
  %v7861 = vadd.f32 %v7668, %v7835
  %v7862 = vadd.f32 %v7669, %v7840
  %v7863 = vadd.f32 %v7670, %v7845
  %v7864 = vld [vmem:[%s7477 + $0x2] sm:$0xff]
  %v7865 = vld [vmem:[%s7477 + $0xa] sm:$0xff]
  %v7866 = vld [vmem:[%s7477 + $0x1a] sm:$0xff]
  %v7867 = vld [vmem:[%s7477 + $0x22] sm:$0xff]
  %v7868 = vld [vmem:[%s7477 + $0x32] sm:$0xff]
  %v7869 = vld [vmem:[%s7477 + $0x3a] sm:$0xff]
  %v7870 = vld [vmem:[%s7477 + $0x4a] sm:$0xff]
  %v7871 = vld [vmem:[%s7477 + $0x52] sm:$0xff]
  %v7872 = vld [vmem:[%s7477 + $0x62] sm:$0xff]
  %v7873 = vld [vmem:[%s7477 + $0x6a] sm:$0xff]
  %v7874 = vld [vmem:[%s7477 + $0x7a] sm:$0xff]
  %v7875 = vld [vmem:[%s7477 + $0x82] sm:$0xff]
  %v7876 = vld [vmem:[%s7477 + $0x92] sm:$0xff]
  %v7877 = vld [vmem:[%s7477 + $0x9a] sm:$0xff]
  %v7878 = vld [vmem:[%s7477 + $0xaa] sm:$0xff]
  %v7879 = vld [vmem:[%s7477 + $0xb2] sm:$0xff]
  %v7880 = vld [vmem:[%s2613] sm:$0xff]
  %v7881 = vld [vmem:[%s2613 + $0x8] sm:$0xff]
  %v7882 = vld [vmem:[%s2613 + $0x10] sm:$0xff]
  %v7883 = vld [vmem:[%s2613 + $0x18] sm:$0xff]
  %v7884 = vld [vmem:[%s2613 + $0x20] sm:$0xff]
  %v7885 = vld [vmem:[%s2613 + $0x28] sm:$0xff]
  %v7886 = vld [vmem:[%s2613 + $0x30] sm:$0xff]
  %v7887 = vld [vmem:[%s2613 + $0x38] sm:$0xff]
  %v7888 = vld [vmem:[%s2613 + $0x40] sm:$0xff]
  %v7889 = vld [vmem:[%s2613 + $0x48] sm:$0xff]
  %v7890 = vld [vmem:[%s2613 + $0x50] sm:$0xff]
  %v7891 = vld [vmem:[%s2613 + $0x58] sm:$0xff]
  %v7892 = vld [vmem:[%s2613 + $0x60] sm:$0xff]
  %v7893 = vld [vmem:[%s2613 + $0x68] sm:$0xff]
  %v7894 = vld [vmem:[%s2613 + $0x70] sm:$0xff]
  %v7895 = vld [vmem:[%s2613 + $0x78] sm:$0xff]
  %7896 = vmatprep.subr.mxu0 0.0
  %7897 = vmatpush1.msra.mxu0 %v7880
  %7898 = vmatprep.subr.mxu0 0.0
  %7899 = vmatpush1.msra.mxu0 %v7881
  %7900 = vmatprep.subr.mxu0 0.0
  %7901 = vmatpush1.msra.mxu0 %v7882
  %7902 = vmatprep.subr.mxu0 0.0
  %7903 = vmatpush1.msra.mxu0 %v7883
  %7904 = vmatprep.subr.mxu0 0.0
  %7905 = vmatpush1.msra.mxu0 %v7884
  %7906 = vmatprep.subr.mxu0 0.0
  %7907 = vmatpush1.msra.mxu0 %v7885
  %7908 = vmatprep.subr.mxu0 0.0
  %7909 = vmatpush1.msra.mxu0 %v7886
  %7910 = vmatprep.subr.mxu0 0.0
  %7911 = vmatpush1.msra.mxu0 %v7887
  %7912 = vmatprep.subr.mxu0 0.0
  %7913 = vmatpush1.msra.mxu0 %v7888
  %7914 = vmatprep.subr.mxu0 0.0
  %7915 = vmatpush1.msra.mxu0 %v7889
  %7916 = vmatprep.subr.mxu0 0.0
  %7917 = vmatpush1.msra.mxu0 %v7890
  %7918 = vmatprep.subr.mxu0 0.0
  %7919 = vmatpush1.msra.mxu0 %v7891
  %7920 = vmatprep.subr.mxu0 0.0
  %7921 = vmatpush1.msra.mxu0 %v7892
  %7922 = vmatprep.subr.mxu0 0.0
  %7923 = vmatpush1.msra.mxu0 %v7893
  %7924 = vmatprep.subr.mxu0 0.0
  %7925 = vmatpush1.msra.mxu0 %v7894
  %7926 = vmatprep.subr.mxu0 0.0
  %7927 = vmatpush1.msra.mxu0 %v7895
  %7928 = vmatprep.subr.mxu0 0.0
  %7929 = vmatpush1.msra.mxu0 0.0
  %7930 = vmatprep.subr.mxu0 0.0
  %7931 = vmatpush1.msra.mxu0 0.0
  %7932 = vmatprep.subr.mxu0 0.0
  %7933 = vmatpush1.msra.mxu0 0.0
  %7934 = vmatprep.subr.mxu0 0.0
  %7935 = vmatpush1.msra.mxu0 0.0
  %7936 = vmatprep.subr.mxu0 0.0
  %7937 = vmatpush1.msra.mxu0 0.0
  %7938 = vmatprep.subr.mxu0 0.0
  %7939 = vmatpush1.msra.mxu0 0.0
  %7940 = vmatprep.subr.mxu0 0.0
  %7941 = vmatpush1.msra.mxu0 0.0
  %7942 = vmatprep.subr.mxu0 0.0
  %7943 = vmatpush1.msra.mxu0 0.0
  %7944 = vmatprep.subr.mxu0 0.0
  %7945 = vmatpush1.msra.mxu0 0.0
  %7946 = vmatprep.subr.mxu0 0.0
  %7947 = vmatpush1.msra.mxu0 0.0
  %7948 = vmatprep.subr.mxu0 0.0
  %7949 = vmatpush1.msra.mxu0 0.0
  %7950 = vmatprep.subr.mxu0 0.0
  %7951 = vmatpush1.msra.mxu0 0.0
  %7952 = vmatprep.subr.mxu0 0.0
  %7953 = vmatpush1.msra.mxu0 0.0
  %7954 = vmatprep.subr.mxu0 0.0
  %7955 = vmatpush1.msra.mxu0 0.0
  %7956 = vmatprep.subr.mxu0 0.0
  %7957 = vmatpush1.msra.mxu0 0.0
  %7958 = vmatprep.subr.mxu0 0.0
  %7959 = vmatpush1.msra.mxu0 0.0
  %7960 = vmatprep.mubr.f32.mxu0 0.0
  %7961 = vmatmul.mubr.f32.gmra.mrb[0].mxu0 %v7864
  %v7962 = vpop.f32.mrb[0].mxu0
  %v7963 = vadd.f32 0.0, %v7962
  %v7964 = vpop.f32.mrb[0].mxu0
  %7965 = vmatprep.mubr.f32.mxu0 0.0
  %7966 = vmatmul.mubr.f32.gmra.mrb[0].mxu0 %v7865
  %v7967 = vpop.f32.mrb[0].mxu0
  %v7968 = vadd.f32 0.0, %v7967
  %v7969 = vpop.f32.mrb[0].mxu0
  %7970 = vmatprep.mubr.f32.mxu0 0.0
  %7971 = vmatmul.mubr.f32.gmra.mrb[0].mxu0 %v7866
  %v7972 = vpop.f32.mrb[0].mxu0
  %v7973 = vadd.f32 0.0, %v7972
  %v7974 = vpop.f32.mrb[0].mxu0
  %7975 = vmatprep.mubr.f32.mxu0 0.0
  %7976 = vmatmul.mubr.f32.gmra.mrb[0].mxu0 %v7867
  %v7977 = vpop.f32.mrb[0].mxu0
  %v7978 = vadd.f32 0.0, %v7977
  %v7979 = vpop.f32.mrb[0].mxu0
  %7980 = vmatprep.mubr.f32.mxu0 0.0
  %7981 = vmatmul.mubr.f32.gmra.mrb[0].mxu0 %v7868
  %v7982 = vpop.f32.mrb[0].mxu0
  %v7983 = vadd.f32 0.0, %v7982
  %v7984 = vpop.f32.mrb[0].mxu0
  %7985 = vmatprep.mubr.f32.mxu0 0.0
  %7986 = vmatmul.mubr.f32.gmra.mrb[0].mxu0 %v7869
  %v7987 = vpop.f32.mrb[0].mxu0
  %v7988 = vadd.f32 0.0, %v7987
  %v7989 = vpop.f32.mrb[0].mxu0
  %7990 = vmatprep.mubr.f32.mxu0 0.0
  %7991 = vmatmul.mubr.f32.gmra.mrb[0].mxu0 %v7870
  %v7992 = vpop.f32.mrb[0].mxu0
  %v7993 = vadd.f32 0.0, %v7992
  %v7994 = vpop.f32.mrb[0].mxu0
  %7995 = vmatprep.mubr.f32.mxu0 0.0
  %7996 = vmatmul.mubr.f32.gmra.mrb[0].mxu0 %v7871
  %v7997 = vpop.f32.mrb[0].mxu0
  %v7998 = vadd.f32 0.0, %v7997
  %v7999 = vpop.f32.mrb[0].mxu0
  %8000 = vmatprep.mubr.f32.mxu0 0.0
  %8001 = vmatmul.mubr.f32.gmra.mrb[0].mxu0 %v7872
  %v8002 = vpop.f32.mrb[0].mxu0
  %v8003 = vadd.f32 0.0, %v8002
  %v8004 = vpop.f32.mrb[0].mxu0
  %8005 = vmatprep.mubr.f32.mxu0 0.0
  %8006 = vmatmul.mubr.f32.gmra.mrb[0].mxu0 %v7873
  %v8007 = vpop.f32.mrb[0].mxu0
  %v8008 = vadd.f32 0.0, %v8007
  %v8009 = vpop.f32.mrb[0].mxu0
  %8010 = vmatprep.mubr.f32.mxu0 0.0
  %8011 = vmatmul.mubr.f32.gmra.mrb[0].mxu0 %v7874
  %v8012 = vpop.f32.mrb[0].mxu0
  %v8013 = vadd.f32 0.0, %v8012
  %v8014 = vpop.f32.mrb[0].mxu0
  %8015 = vmatprep.mubr.f32.mxu0 0.0
  %8016 = vmatmul.mubr.f32.gmra.mrb[0].mxu0 %v7875
  %v8017 = vpop.f32.mrb[0].mxu0
  %v8018 = vadd.f32 0.0, %v8017
  %v8019 = vpop.f32.mrb[0].mxu0
  %8020 = vmatprep.mubr.f32.mxu0 0.0
  %8021 = vmatmul.mubr.f32.gmra.mrb[0].mxu0 %v7876
  %v8022 = vpop.f32.mrb[0].mxu0
  %v8023 = vadd.f32 0.0, %v8022
  %v8024 = vpop.f32.mrb[0].mxu0
  %8025 = vmatprep.mubr.f32.mxu0 0.0
  %8026 = vmatmul.mubr.f32.gmra.mrb[0].mxu0 %v7877
  %v8027 = vpop.f32.mrb[0].mxu0
  %v8028 = vadd.f32 0.0, %v8027
  %v8029 = vpop.f32.mrb[0].mxu0
  %8030 = vmatprep.mubr.f32.mxu0 0.0
  %8031 = vmatmul.mubr.f32.gmra.mrb[0].mxu0 %v7878
  %v8032 = vpop.f32.mrb[0].mxu0
  %v8033 = vadd.f32 0.0, %v8032
  %v8034 = vpop.f32.mrb[0].mxu0
  %8035 = vmatprep.mubr.f32.mxu0 0.0
  %8036 = vmatmul.mubr.f32.gmra.mrb[0].mxu0 %v7879
  %v8037 = vpop.f32.mrb[0].mxu0
  %v8038 = vadd.f32 0.0, %v8037
  %v8039 = vpop.f32.mrb[0].mxu0
  %8040 = vdwg.mxu0
  %v8041 = vadd.f32 %v7848, %v7963
  %v8042 = vadd.f32 %v7849, %v7968
  %v8043 = vadd.f32 %v7850, %v7973
  %v8044 = vadd.f32 %v7851, %v7978
  %v8045 = vadd.f32 %v7852, %v7983
  %v8046 = vadd.f32 %v7853, %v7988
  %v8047 = vadd.f32 %v7854, %v7993
  %v8048 = vadd.f32 %v7855, %v7998
  %v8049 = vadd.f32 %v7856, %v8003
  %v8050 = vadd.f32 %v7857, %v8008
  %v8051 = vadd.f32 %v7858, %v8013
  %v8052 = vadd.f32 %v7859, %v8018
  %v8053 = vadd.f32 %v7860, %v8023
  %v8054 = vadd.f32 %v7861, %v8028
  %v8055 = vadd.f32 %v7862, %v8033
  %v8056 = vadd.f32 %v7863, %v8038
  %8057 = vxpose.xlu0.b32.start [1/16] %v8041, 128
  %8058 = vxpose.xlu0.b32.cont [2/16] %v8042, 128
  %8059 = vxpose.xlu0.b32.cont [3/16] %v8043, 128
  %8060 = vxpose.xlu0.b32.cont [4/16] %v8044, 128
  %8061 = vxpose.xlu0.b32.cont [5/16] %v8045, 128
  %8062 = vxpose.xlu0.b32.cont [6/16] %v8046, 128
  %8063 = vxpose.xlu0.b32.cont [7/16] %v8047, 128
  %8064 = vxpose.xlu0.b32.cont [8/16] %v8048, 128
  %8065 = vxpose.xlu0.b32.cont [9/16] %v8049, 128
  %8066 = vxpose.xlu0.b32.cont [10/16] %v8050, 128
  %8067 = vxpose.xlu0.b32.cont [11/16] %v8051, 128
  %8068 = vxpose.xlu0.b32.cont [12/16] %v8052, 128
  %8069 = vxpose.xlu0.b32.cont [13/16] %v8053, 128
  %8070 = vxpose.xlu0.b32.cont [14/16] %v8054, 128
  %8071 = vxpose.xlu0.b32.cont [15/16] %v8055, 128
  %8072 = vxpose.xlu0.b32.end [16/16] %v8056, 128
  %v8073 = vpop.trf.xlu0
  %v8074 = vpop.trf.xlu0
  %v8075 = vpop.trf.xlu0
  %v8076 = vpop.trf.xlu0
  %v8077 = vpop.trf.xlu0
  %v8078 = vpop.trf.xlu0
  %v8079 = vpop.trf.xlu0
  %v8080 = vpop.trf.xlu0
  %v8081 = vpop.trf.xlu0
  %v8082 = vpop.trf.xlu0
  %v8083 = vpop.trf.xlu0
  %v8084 = vpop.trf.xlu0
  %v8085 = vpop.trf.xlu0
  %v8086 = vpop.trf.xlu0
  %v8087 = vpop.trf.xlu0
  %v8088 = vpop.trf.xlu0
  %8089 = vst [vmem:[%s6333 + $0x8] sm:$0xff] %v8073
  %8090 = vst [vmem:[%s6333 + $0x18] sm:$0xff] %v8074
  %8091 = vst [vmem:[%s6333 + $0x28] sm:$0xff] %v8075
  %8092 = vst [vmem:[%s6333 + $0x38] sm:$0xff] %v8076
  %8093 = vst [vmem:[%s6333 + $0x48] sm:$0xff] %v8077
  %8094 = vst [vmem:[%s6333 + $0x58] sm:$0xff] %v8078
  %8095 = vst [vmem:[%s6333 + $0x68] sm:$0xff] %v8079
  %8096 = vst [vmem:[%s6333 + $0x78] sm:$0xff] %v8080
  %8097 = vst [vmem:[%s6333 + $0x88] sm:$0xff] %v8081
  %8098 = vst [vmem:[%s6333 + $0x98] sm:$0xff] %v8082
  %8099 = vst [vmem:[%s6333 + $0xa8] sm:$0xff] %v8083
  %8100 = vst [vmem:[%s6333 + $0xb8] sm:$0xff] %v8084
  %8101 = vst [vmem:[%s6333 + $0xc8] sm:$0xff] %v8085
  %8102 = vst [vmem:[%s6333 + $0xd8] sm:$0xff] %v8086
  %8103 = vst [vmem:[%s6333 + $0xe8] sm:$0xff] %v8087
  %8104 = vst [vmem:[%s6333 + $0xf8] sm:$0xff] %v8088
  // Predicated region
  $region14: #{base_block.1} parent=0 // pred_check
    _
  $region15: #{base_block.1} parent=0 // pred_check_branch
    %8106 = sbr.rel (0) target = $region17
  $region16: #{base_block.1} parent=0 // pred_region
    _
  $region17: #{base_block.1} parent=0 // pred_fallthru
    _
  // Predicated region
  $region18: #{base_block.1} parent=0 // pred_check
    _
  $region19: #{base_block.1} parent=0 // pred_check_branch
    %8108 = sbr.rel (0) target = $region21
  $region20: #{base_block.1} parent=0 // pred_region
    _
  $region21: #{base_block.1} parent=0 // pred_fallthru
    _

</llo_original>
